<compile_context>
chip_gen: v7x
topology: tpu7x:2x2x1
jax: 0.10.0
libtpu: 0.0.40
codegen_flags: <defaults>
</compile_context>

<pallas_src>
import functools

import jax
import jax.numpy as jnp
from jax.experimental import pallas as pl
from jax.experimental.pallas import tpu as pltpu

BN_EPS = 1e-5
LANE = 128


def _round_up(x, m):
    return (x + m - 1) // m * m


# ------------------------------ fused kernel -------------------------------- #

def _fused_residual_block_kernel(xpad_ref, w1_ref, b1_ref, g1_ref, be1_ref,
                                 w2_ref, b2_ref, g2_ref, be2_ref,
                                 o_ref, ypad_s, *, N, H, W, Cp):
    """conv1+ReLU -> BN1 -> conv2 -> BN2 -> +residual -> ReLU, all in VMEM."""
    R = N * H * W
    inv_r = 1.0 / R

    xpad = xpad_ref[...]                                   # (N, H+2, W+2, Cp)

    def dw_shifts(padded):
        # One sublane (W-axis) slice per dw, done once per conv; dw=0 is aligned.
        return [padded[:, :, dw:dw + W, :] for dw in range(3)]   # (N, H+2, W, Cp)

    def conv3x3(shifted, w_ref, b_row):
        # w_ref: (3, 3*Cp, Cp) -- per-dh weights, the 3 dw taps stacked on ci.
        acc = jnp.zeros((R, Cp), jnp.float32)
        for dh in range(3):
            # dh slices are on an untiled leading axis -> free views.
            patch = jnp.concatenate(
                [shifted[dw][:, dh:dh + H, :, :] for dw in range(3)],
                axis=-1).reshape(R, 3 * Cp)                # lane-packed K=3*Cp
            acc = acc + jnp.dot(patch, w_ref[dh],
                                preferred_element_type=jnp.float32)
        return acc + b_row

    def bn_affine(h, g_row, be_row):
        # Train-mode BatchNorm over N*H*W, biased variance, two-pass (stable).
        mean = jnp.sum(h, axis=0, keepdims=True) * inv_r            # (1, Cp)
        d = h - mean
        var = jnp.sum(d * d, axis=0, keepdims=True) * inv_r
        scale = g_row * jax.lax.rsqrt(var + BN_EPS)
        shift = be_row - mean * scale
        return scale, shift

    # ---- conv1 + bias + ReLU ------------------------------------------------
    xs = dw_shifts(xpad)
    h1 = jnp.maximum(conv3x3(xs, w1_ref, b1_ref[...]), 0.0)         # (R, Cp)

    # ---- BN1 apply (global affine, in VMEM) ---------------------------------
    scale1, shift1 = bn_affine(h1, g1_ref[...], be1_ref[...])
    y1 = h1 * scale1 + shift1                                       # (R, Cp)

    # ---- re-pad y1 with a zero halo for conv2 (scratch; no iota/masking) ----
    ypad_s[...] = jnp.zeros_like(ypad_s)
    ypad_s[:, 1:H + 1, 1:W + 1, :] = y1.reshape(N, H, W, Cp)
    ypad = ypad_s[...]

    # ---- conv2 + bias --------------------------------------------------------
    h2 = conv3x3(dw_shifts(ypad), w2_ref, b2_ref[...])              # (R, Cp)

    # ---- BN2 apply + residual + ReLU ----------------------------------------
    scale2, shift2 = bn_affine(h2, g2_ref[...], be2_ref[...])
    res = xs[1][:, 1:H + 1, :, :].reshape(R, Cp)                    # x interior
    out = jnp.maximum(h2 * scale2 + shift2 + res, 0.0)
    o_ref[...] = out.reshape(N, H, W, Cp)


# ------------------------------- JAX wrapper -------------------------------- #

def residual_block_forward(x_nchw, params):
    """Pallas implementation of ResidualBlock.forward. Input/Output: NCHW f32."""
    N, Cin, H, W = x_nchw.shape
    Cout = params["w1"].shape[0]
    assert Cin == Cout, "residual add requires in_channels == out_channels"
    Cp = max(LANE, _round_up(Cout, LANE))
    f32 = jnp.float32

    # NCHW -> NHWC, pad channels to the lane boundary, pad spatially by 1.
    # (Single small XLA copy on the input path; all intermediates stay in VMEM.)
    x_nhwc = jnp.transpose(x_nchw, (0, 2, 3, 1)).astype(f32)
    x_nhwc = jnp.pad(x_nhwc, ((0, 0), (0, 0), (0, 0), (0, Cp - Cin)))
    x_pad = jnp.pad(x_nhwc, ((0, 0), (1, 1), (1, 1), (0, 0)))   # (N, H+2, W+2, Cp)

    def packed_weight(w_oihw):
        # PyTorch (Cout, Cin, 3, 3) -> (3, 3*Cp, Cp): rows are dw-major ci blocks,
        # so each dh needs a single K=3*Cp contraction in the kernel.
        co, ci, kh, kw = w_oihw.shape
        w = jnp.transpose(w_oihw.astype(f32), (2, 3, 1, 0))         # (kh, kw, ci, co)
        w = jnp.pad(w, ((0, 0), (0, 0), (0, Cp - ci), (0, Cp - co)))
        return w.reshape(kh, kw * Cp, Cp)

    def packed_vec(v):
        return jnp.pad(v.astype(f32), (0, Cp - v.shape[0])).reshape(1, Cp)

    w1, w2 = packed_weight(params["w1"]), packed_weight(params["w2"])
    b1, b2 = packed_vec(params["b1"]), packed_vec(params["b2"])
    g1, be1 = packed_vec(params["g1"]), packed_vec(params["be1"])
    g2, be2 = packed_vec(params["g2"]), packed_vec(params["be2"])

    vec_spec = pl.BlockSpec((1, Cp), lambda i: (0, 0))
    w_spec = pl.BlockSpec((3, 3 * Cp, Cp), lambda i: (0, 0, 0))

    out_padded = pl.pallas_call(
        functools.partial(_fused_residual_block_kernel, N=N, H=H, W=W, Cp=Cp),
        grid=(1,),
        in_specs=[
            pl.BlockSpec((N, H + 2, W + 2, Cp), lambda i: (0, 0, 0, 0)),
            w_spec, vec_spec, vec_spec, vec_spec,
            w_spec, vec_spec, vec_spec, vec_spec,
        ],
        out_specs=pl.BlockSpec((N, H, W, Cp), lambda i: (0, 0, 0, 0)),
        out_shape=jax.ShapeDtypeStruct((N, H, W, Cp), f32),
        scratch_shapes=[pltpu.VMEM((N, H + 2, W + 2, Cp), f32)],
        compiler_params=pltpu.CompilerParams(
            dimension_semantics=("arbitrary",),
            vmem_limit_bytes=32 * 1024 * 1024),   # safe on v5e/v6e/v7x
    )(x_pad, w1, b1, g1, be1, w2, b2, g2, be2)

    # XLA fuses the channel slice + NHWC->NCHW transpose into one small copy.
    return jnp.transpose(out_padded[..., :Cout], (0, 3, 1, 2))


# --------------------------- pure-JAX reference ----------------------------- #

def _reference_forward(x_nchw, params):
    def conv(x, w, b):
        y = jax.lax.conv_general_dilated(
            x, w, window_strides=(1, 1), padding=((1, 1), (1, 1)),
            dimension_numbers=("NCHW", "OIHW", "NCHW"))
        return y + b[None, :, None, None]

    def bn(x, g, be):
        mean = jnp.mean(x, axis=(0, 2, 3), keepdims=True)
        var = jnp.mean((x - mean) ** 2, axis=(0, 2, 3), keepdims=True)
        return ((x - mean) * jax.lax.rsqrt(var + BN_EPS)
                * g[None, :, None, None] + be[None, :, None, None])

    y = conv(x_nchw, params["w1"], params["b1"])
    y = jnp.maximum(y, 0.0)
    y = bn(y, params["g1"], params["be1"])
    y = conv(y, params["w2"], params["b2"])
    y = bn(y, params["g2"], params["be2"])
    return jnp.maximum(y + x_nchw, 0.0)


# ---------------------------------- main ------------------------------------ #

if __name__ == "__main__":
    key = jax.random.PRNGKey(0)
    N, C, H, W = 2, 4, 16, 16            # ResidualBlock(in_channels=4, out_channels=4)
    ks = jax.random.split(key, 9)

    x = jax.random.normal(ks[0], (N, C, H, W), jnp.float32)
    params = {
        "w1": 0.1 * jax.random.normal(ks[1], (C, C, 3, 3), jnp.float32),
        "b1": 0.05 * jax.random.normal(ks[2], (C,), jnp.float32),
        "w2": 0.1 * jax.random.normal(ks[3], (C, C, 3, 3), jnp.float32),
        "b2": 0.05 * jax.random.normal(ks[4], (C,), jnp.float32),
        "g1": 1.0 + 0.1 * jax.random.normal(ks[5], (C,), jnp.float32),
        "be1": 0.05 * jax.random.normal(ks[6], (C,), jnp.float32),
        "g2": 1.0 + 0.1 * jax.random.normal(ks[7], (C,), jnp.float32),
        "be2": 0.05 * jax.random.normal(ks[8], (C,), jnp.float32),
    }

    fwd = jax.jit(residual_block_forward)
    out = fwd(x, params)
    jax.block_until_ready(out)

    ref = _reference_forward(x, params)
    assert out.shape == (N, C, H, W)
    max_err = float(jnp.max(jnp.abs(out - ref)))
    assert jnp.allclose(out, ref, atol=2e-4, rtol=2e-4), f"max abs err = {max_err}"

    print("KERNEL_OK")
</pallas_src>

<mosaic_0001>
module attributes {stable_mosaic.version = 11 : i64} {
  func.func @_fused_residual_block_kernel(%arg0: i32, %arg1: memref<2x18x18x128xf32, #tpu.memory_space<vmem>>, %arg2: memref<3x384x128xf32, #tpu.memory_space<vmem>>, %arg3: memref<1x128xf32, #tpu.memory_space<vmem>>, %arg4: memref<1x128xf32, #tpu.memory_space<vmem>>, %arg5: memref<1x128xf32, #tpu.memory_space<vmem>>, %arg6: memref<3x384x128xf32, #tpu.memory_space<vmem>>, %arg7: memref<1x128xf32, #tpu.memory_space<vmem>>, %arg8: memref<1x128xf32, #tpu.memory_space<vmem>>, %arg9: memref<1x128xf32, #tpu.memory_space<vmem>>, %arg10: memref<2x16x16x128xf32, #tpu.memory_space<vmem>>, %arg11: memref<2x18x18x128xf32, #tpu.memory_space<vmem>>) attributes {dimension_semantics = [#tpu.dimension_semantics<arbitrary>], iteration_bounds = array<i64: 1>, scalar_prefetch = 0 : i64, scratch_operands = 1 : i64, tpu.core_type = #tpu.core_type<tc>, window_params = [{pipeline_mode = #tpu.pipeline_mode<synchronous>, transform_indices = @transform_0, window_bounds = array<i64: 2, 18, 18, 128>}, {pipeline_mode = #tpu.pipeline_mode<synchronous>, transform_indices = @transform_1, window_bounds = array<i64: 3, 384, 128>}, {pipeline_mode = #tpu.pipeline_mode<synchronous>, transform_indices = @transform_2, window_bounds = array<i64: 1, 128>}, {pipeline_mode = #tpu.pipeline_mode<synchronous>, transform_indices = @transform_3, window_bounds = array<i64: 1, 128>}, {pipeline_mode = #tpu.pipeline_mode<synchronous>, transform_indices = @transform_4, window_bounds = array<i64: 1, 128>}, {pipeline_mode = #tpu.pipeline_mode<synchronous>, transform_indices = @transform_5, window_bounds = array<i64: 3, 384, 128>}, {pipeline_mode = #tpu.pipeline_mode<synchronous>, transform_indices = @transform_6, window_bounds = array<i64: 1, 128>}, {pipeline_mode = #tpu.pipeline_mode<synchronous>, transform_indices = @transform_7, window_bounds = array<i64: 1, 128>}, {pipeline_mode = #tpu.pipeline_mode<synchronous>, transform_indices = @transform_8, window_bounds = array<i64: 1, 128>}, {pipeline_mode = #tpu.pipeline_mode<synchronous>, transform_indices = @transform_9, window_bounds = array<i64: 2, 16, 16, 128>}]} {
    %c0 = arith.constant 0 : index
    %c0_0 = arith.constant 0 : index
    %c0_1 = arith.constant 0 : index
    %c0_2 = arith.constant 0 : index
    %0 = vector.load %arg1[%c0, %c0_0, %c0_1, %c0_2] : memref<2x18x18x128xf32, #tpu.memory_space<vmem>>, vector<2x18x18x128xf32>
    %1 = vector.extract_strided_slice %0 {offsets = [0, 0, 0, 0], sizes = [2, 18, 16, 128], strides = [1, 1, 1, 1]} : vector<2x18x18x128xf32> to vector<2x18x16x128xf32>
    %2 = vector.extract_strided_slice %0 {offsets = [0, 0, 1, 0], sizes = [2, 18, 16, 128], strides = [1, 1, 1, 1]} : vector<2x18x18x128xf32> to vector<2x18x16x128xf32>
    %3 = vector.extract_strided_slice %0 {offsets = [0, 0, 2, 0], sizes = [2, 18, 16, 128], strides = [1, 1, 1, 1]} : vector<2x18x18x128xf32> to vector<2x18x16x128xf32>
    %c0_3 = arith.constant 0 : index
    %c0_4 = arith.constant 0 : index
    %4 = vector.load %arg3[%c0_3, %c0_4] : memref<1x128xf32, #tpu.memory_space<vmem>>, vector<1x128xf32>
    %cst = arith.constant 0.000000e+00 : f32
    %5 = vector.broadcast %cst : f32 to vector<512x128xf32>
    %6 = vector.extract_strided_slice %1 {offsets = [0, 0, 0, 0], sizes = [2, 16, 16, 128], strides = [1, 1, 1, 1]} : vector<2x18x16x128xf32> to vector<2x16x16x128xf32>
    %7 = vector.extract_strided_slice %2 {offsets = [0, 0, 0, 0], sizes = [2, 16, 16, 128], strides = [1, 1, 1, 1]} : vector<2x18x16x128xf32> to vector<2x16x16x128xf32>
    %8 = vector.extract_strided_slice %3 {offsets = [0, 0, 0, 0], sizes = [2, 16, 16, 128], strides = [1, 1, 1, 1]} : vector<2x18x16x128xf32> to vector<2x16x16x128xf32>
    %9 = tpu.concatenate %6, %7, %8 in 3 : vector<2x16x16x128xf32>, vector<2x16x16x128xf32>, vector<2x16x16x128xf32> -> vector<2x16x16x384xf32>
    %10 = vector.shape_cast %9 : vector<2x16x16x384xf32> to vector<512x384xf32>
    %c0_5 = arith.constant 0 : index
    %c0_6 = arith.constant 0 : index
    %c0_7 = arith.constant 0 : index
    %11 = vector.load %arg2[%c0_5, %c0_6, %c0_7] : memref<3x384x128xf32, #tpu.memory_space<vmem>>, vector<1x384x128xf32>
    %12 = vector.shape_cast %11 : vector<1x384x128xf32> to vector<384x128xf32>
    %cst_8 = arith.constant dense<0.000000e+00> : vector<512x128xf32>
    %13 = tpu.matmul %10, %12, %cst_8 {dimension_numbers = #tpu.dot_dimension_numbers<[1], [0], [0], [1], [0, 0, 1, 1], [], []>} : vector<512x384xf32>, vector<384x128xf32>, vector<512x128xf32> -> vector<512x128xf32>
    %14 = arith.addf %5, %13 : vector<512x128xf32>
    %15 = vector.extract_strided_slice %1 {offsets = [0, 1, 0, 0], sizes = [2, 16, 16, 128], strides = [1, 1, 1, 1]} : vector<2x18x16x128xf32> to vector<2x16x16x128xf32>
    %16 = vector.extract_strided_slice %2 {offsets = [0, 1, 0, 0], sizes = [2, 16, 16, 128], strides = [1, 1, 1, 1]} : vector<2x18x16x128xf32> to vector<2x16x16x128xf32>
    %17 = vector.extract_strided_slice %3 {offsets = [0, 1, 0, 0], sizes = [2, 16, 16, 128], strides = [1, 1, 1, 1]} : vector<2x18x16x128xf32> to vector<2x16x16x128xf32>
    %18 = tpu.concatenate %15, %16, %17 in 3 : vector<2x16x16x128xf32>, vector<2x16x16x128xf32>, vector<2x16x16x128xf32> -> vector<2x16x16x384xf32>
    %19 = vector.shape_cast %18 : vector<2x16x16x384xf32> to vector<512x384xf32>
    %c1 = arith.constant 1 : index
    %c0_9 = arith.constant 0 : index
    %c0_10 = arith.constant 0 : index
    %20 = vector.load %arg2[%c1, %c0_9, %c0_10] : memref<3x384x128xf32, #tpu.memory_space<vmem>>, vector<1x384x128xf32>
    %21 = vector.shape_cast %20 : vector<1x384x128xf32> to vector<384x128xf32>
    %cst_11 = arith.constant dense<0.000000e+00> : vector<512x128xf32>
    %22 = tpu.matmul %19, %21, %cst_11 {dimension_numbers = #tpu.dot_dimension_numbers<[1], [0], [0], [1], [0, 0, 1, 1], [], []>} : vector<512x384xf32>, vector<384x128xf32>, vector<512x128xf32> -> vector<512x128xf32>
    %23 = arith.addf %14, %22 : vector<512x128xf32>
    %24 = vector.extract_strided_slice %1 {offsets = [0, 2, 0, 0], sizes = [2, 16, 16, 128], strides = [1, 1, 1, 1]} : vector<2x18x16x128xf32> to vector<2x16x16x128xf32>
    %25 = vector.extract_strided_slice %2 {offsets = [0, 2, 0, 0], sizes = [2, 16, 16, 128], strides = [1, 1, 1, 1]} : vector<2x18x16x128xf32> to vector<2x16x16x128xf32>
    %26 = vector.extract_strided_slice %3 {offsets = [0, 2, 0, 0], sizes = [2, 16, 16, 128], strides = [1, 1, 1, 1]} : vector<2x18x16x128xf32> to vector<2x16x16x128xf32>
    %27 = tpu.concatenate %24, %25, %26 in 3 : vector<2x16x16x128xf32>, vector<2x16x16x128xf32>, vector<2x16x16x128xf32> -> vector<2x16x16x384xf32>
    %28 = vector.shape_cast %27 : vector<2x16x16x384xf32> to vector<512x384xf32>
    %c2 = arith.constant 2 : index
    %c0_12 = arith.constant 0 : index
    %c0_13 = arith.constant 0 : index
    %29 = vector.load %arg2[%c2, %c0_12, %c0_13] : memref<3x384x128xf32, #tpu.memory_space<vmem>>, vector<1x384x128xf32>
    %30 = vector.shape_cast %29 : vector<1x384x128xf32> to vector<384x128xf32>
    %cst_14 = arith.constant dense<0.000000e+00> : vector<512x128xf32>
    %31 = tpu.matmul %28, %30, %cst_14 {dimension_numbers = #tpu.dot_dimension_numbers<[1], [0], [0], [1], [0, 0, 1, 1], [], []>} : vector<512x384xf32>, vector<384x128xf32>, vector<512x128xf32> -> vector<512x128xf32>
    %32 = arith.addf %23, %31 : vector<512x128xf32>
    %33 = vector.broadcast %4 : vector<1x128xf32> to vector<512x128xf32>
    %34 = arith.addf %32, %33 : vector<512x128xf32>
    %cst_15 = arith.constant 0.000000e+00 : f32
    %35 = vector.broadcast %cst_15 : f32 to vector<512x128xf32>
    %36 = arith.maximumf %34, %35 : vector<512x128xf32>
    %c0_16 = arith.constant 0 : index
    %c0_17 = arith.constant 0 : index
    %37 = vector.load %arg4[%c0_16, %c0_17] : memref<1x128xf32, #tpu.memory_space<vmem>>, vector<1x128xf32>
    %c0_18 = arith.constant 0 : index
    %c0_19 = arith.constant 0 : index
    %38 = vector.load %arg5[%c0_18, %c0_19] : memref<1x128xf32, #tpu.memory_space<vmem>>, vector<1x128xf32>
    %cst_20 = arith.constant dense<0.000000e+00> : vector<128xf32>
    %39 = vector.multi_reduction <add>, %36, %cst_20 [0] : vector<512x128xf32> to vector<128xf32>
    %40 = vector.shape_cast %39 : vector<128xf32> to vector<1x128xf32>
    %cst_21 = arith.constant 0.001953125 : f32
    %41 = vector.broadcast %cst_21 : f32 to vector<1x128xf32>
    %42 = arith.mulf %40, %41 : vector<1x128xf32>
    %43 = vector.broadcast %42 : vector<1x128xf32> to vector<512x128xf32>
    %44 = arith.subf %36, %43 : vector<512x128xf32>
    %45 = arith.mulf %44, %44 : vector<512x128xf32>
    %cst_22 = arith.constant dense<0.000000e+00> : vector<128xf32>
    %46 = vector.multi_reduction <add>, %45, %cst_22 [0] : vector<512x128xf32> to vector<128xf32>
    %47 = vector.shape_cast %46 : vector<128xf32> to vector<1x128xf32>
    %cst_23 = arith.constant 0.001953125 : f32
    %48 = vector.broadcast %cst_23 : f32 to vector<1x128xf32>
    %49 = arith.mulf %47, %48 : vector<1x128xf32>
    %cst_24 = arith.constant 9.99999974E-6 : f32
    %50 = vector.broadcast %cst_24 : f32 to vector<1x128xf32>
    %51 = arith.addf %49, %50 : vector<1x128xf32>
    %52 = math.rsqrt %51 : vector<1x128xf32>
    %53 = arith.mulf %37, %52 : vector<1x128xf32>
    %54 = arith.mulf %42, %53 : vector<1x128xf32>
    %55 = arith.subf %38, %54 : vector<1x128xf32>
    %56 = vector.broadcast %53 : vector<1x128xf32> to vector<512x128xf32>
    %57 = arith.mulf %36, %56 : vector<512x128xf32>
    %58 = vector.broadcast %55 : vector<1x128xf32> to vector<512x128xf32>
    %59 = arith.addf %57, %58 : vector<512x128xf32>
    %cst_25 = arith.constant 0.000000e+00 : f32
    %60 = vector.broadcast %cst_25 : f32 to vector<2x18x18x128xf32>
    %c0_26 = arith.constant 0 : index
    %c0_27 = arith.constant 0 : index
    %c0_28 = arith.constant 0 : index
    %c0_29 = arith.constant 0 : index
    %61 = vector.load %arg11[%c0_26, %c0_27, %c0_28, %c0_29] : memref<2x18x18x128xf32, #tpu.memory_space<vmem>>, vector<2x18x18x128xf32>
    tpu.vector_store %arg11[%c0_26, %c0_27, %c0_28, %c0_29], %60 {strides = array<i32>} : memref<2x18x18x128xf32, #tpu.memory_space<vmem>>, vector<2x18x18x128xf32>,
    %62 = vector.shape_cast %59 : vector<512x128xf32> to vector<2x16x16x128xf32>
    %c0_30 = arith.constant 0 : index
    %c1_31 = arith.constant 1 : index
    %c1_32 = arith.constant 1 : index
    %c0_33 = arith.constant 0 : index
    %63 = vector.load %arg11[%c0_30, %c1_31, %c1_32, %c0_33] : memref<2x18x18x128xf32, #tpu.memory_space<vmem>>, vector<2x16x16x128xf32>
    tpu.vector_store %arg11[%c0_30, %c1_31, %c1_32, %c0_33], %62 {strides = array<i32>} : memref<2x18x18x128xf32, #tpu.memory_space<vmem>>, vector<2x16x16x128xf32>,
    %c0_34 = arith.constant 0 : index
    %c0_35 = arith.constant 0 : index
    %c0_36 = arith.constant 0 : index
    %c0_37 = arith.constant 0 : index
    %64 = vector.load %arg11[%c0_34, %c0_35, %c0_36, %c0_37] : memref<2x18x18x128xf32, #tpu.memory_space<vmem>>, vector<2x18x18x128xf32>
    %65 = vector.extract_strided_slice %64 {offsets = [0, 0, 0, 0], sizes = [2, 18, 16, 128], strides = [1, 1, 1, 1]} : vector<2x18x18x128xf32> to vector<2x18x16x128xf32>
    %66 = vector.extract_strided_slice %64 {offsets = [0, 0, 1, 0], sizes = [2, 18, 16, 128], strides = [1, 1, 1, 1]} : vector<2x18x18x128xf32> to vector<2x18x16x128xf32>
    %67 = vector.extract_strided_slice %64 {offsets = [0, 0, 2, 0], sizes = [2, 18, 16, 128], strides = [1, 1, 1, 1]} : vector<2x18x18x128xf32> to vector<2x18x16x128xf32>
    %c0_38 = arith.constant 0 : index
    %c0_39 = arith.constant 0 : index
    %68 = vector.load %arg7[%c0_38, %c0_39] : memref<1x128xf32, #tpu.memory_space<vmem>>, vector<1x128xf32>
    %cst_40 = arith.constant 0.000000e+00 : f32
    %69 = vector.broadcast %cst_40 : f32 to vector<512x128xf32>
    %70 = vector.extract_strided_slice %65 {offsets = [0, 0, 0, 0], sizes = [2, 16, 16, 128], strides = [1, 1, 1, 1]} : vector<2x18x16x128xf32> to vector<2x16x16x128xf32>
    %71 = vector.extract_strided_slice %66 {offsets = [0, 0, 0, 0], sizes = [2, 16, 16, 128], strides = [1, 1, 1, 1]} : vector<2x18x16x128xf32> to vector<2x16x16x128xf32>
    %72 = vector.extract_strided_slice %67 {offsets = [0, 0, 0, 0], sizes = [2, 16, 16, 128], strides = [1, 1, 1, 1]} : vector<2x18x16x128xf32> to vector<2x16x16x128xf32>
    %73 = tpu.concatenate %70, %71, %72 in 3 : vector<2x16x16x128xf32>, vector<2x16x16x128xf32>, vector<2x16x16x128xf32> -> vector<2x16x16x384xf32>
    %74 = vector.shape_cast %73 : vector<2x16x16x384xf32> to vector<512x384xf32>
    %c0_41 = arith.constant 0 : index
    %c0_42 = arith.constant 0 : index
    %c0_43 = arith.constant 0 : index
    %75 = vector.load %arg6[%c0_41, %c0_42, %c0_43] : memref<3x384x128xf32, #tpu.memory_space<vmem>>, vector<1x384x128xf32>
    %76 = vector.shape_cast %75 : vector<1x384x128xf32> to vector<384x128xf32>
    %cst_44 = arith.constant dense<0.000000e+00> : vector<512x128xf32>
    %77 = tpu.matmul %74, %76, %cst_44 {dimension_numbers = #tpu.dot_dimension_numbers<[1], [0], [0], [1], [0, 0, 1, 1], [], []>} : vector<512x384xf32>, vector<384x128xf32>, vector<512x128xf32> -> vector<512x128xf32>
    %78 = arith.addf %69, %77 : vector<512x128xf32>
    %79 = vector.extract_strided_slice %65 {offsets = [0, 1, 0, 0], sizes = [2, 16, 16, 128], strides = [1, 1, 1, 1]} : vector<2x18x16x128xf32> to vector<2x16x16x128xf32>
    %80 = vector.extract_strided_slice %66 {offsets = [0, 1, 0, 0], sizes = [2, 16, 16, 128], strides = [1, 1, 1, 1]} : vector<2x18x16x128xf32> to vector<2x16x16x128xf32>
    %81 = vector.extract_strided_slice %67 {offsets = [0, 1, 0, 0], sizes = [2, 16, 16, 128], strides = [1, 1, 1, 1]} : vector<2x18x16x128xf32> to vector<2x16x16x128xf32>
    %82 = tpu.concatenate %79, %80, %81 in 3 : vector<2x16x16x128xf32>, vector<2x16x16x128xf32>, vector<2x16x16x128xf32> -> vector<2x16x16x384xf32>
    %83 = vector.shape_cast %82 : vector<2x16x16x384xf32> to vector<512x384xf32>
    %c1_45 = arith.constant 1 : index
    %c0_46 = arith.constant 0 : index
    %c0_47 = arith.constant 0 : index
    %84 = vector.load %arg6[%c1_45, %c0_46, %c0_47] : memref<3x384x128xf32, #tpu.memory_space<vmem>>, vector<1x384x128xf32>
    %85 = vector.shape_cast %84 : vector<1x384x128xf32> to vector<384x128xf32>
    %cst_48 = arith.constant dense<0.000000e+00> : vector<512x128xf32>
    %86 = tpu.matmul %83, %85, %cst_48 {dimension_numbers = #tpu.dot_dimension_numbers<[1], [0], [0], [1], [0, 0, 1, 1], [], []>} : vector<512x384xf32>, vector<384x128xf32>, vector<512x128xf32> -> vector<512x128xf32>
    %87 = arith.addf %78, %86 : vector<512x128xf32>
    %88 = vector.extract_strided_slice %65 {offsets = [0, 2, 0, 0], sizes = [2, 16, 16, 128], strides = [1, 1, 1, 1]} : vector<2x18x16x128xf32> to vector<2x16x16x128xf32>
    %89 = vector.extract_strided_slice %66 {offsets = [0, 2, 0, 0], sizes = [2, 16, 16, 128], strides = [1, 1, 1, 1]} : vector<2x18x16x128xf32> to vector<2x16x16x128xf32>
    %90 = vector.extract_strided_slice %67 {offsets = [0, 2, 0, 0], sizes = [2, 16, 16, 128], strides = [1, 1, 1, 1]} : vector<2x18x16x128xf32> to vector<2x16x16x128xf32>
    %91 = tpu.concatenate %88, %89, %90 in 3 : vector<2x16x16x128xf32>, vector<2x16x16x128xf32>, vector<2x16x16x128xf32> -> vector<2x16x16x384xf32>
    %92 = vector.shape_cast %91 : vector<2x16x16x384xf32> to vector<512x384xf32>
    %c2_49 = arith.constant 2 : index
    %c0_50 = arith.constant 0 : index
    %c0_51 = arith.constant 0 : index
    %93 = vector.load %arg6[%c2_49, %c0_50, %c0_51] : memref<3x384x128xf32, #tpu.memory_space<vmem>>, vector<1x384x128xf32>
    %94 = vector.shape_cast %93 : vector<1x384x128xf32> to vector<384x128xf32>
    %cst_52 = arith.constant dense<0.000000e+00> : vector<512x128xf32>
    %95 = tpu.matmul %92, %94, %cst_52 {dimension_numbers = #tpu.dot_dimension_numbers<[1], [0], [0], [1], [0, 0, 1, 1], [], []>} : vector<512x384xf32>, vector<384x128xf32>, vector<512x128xf32> -> vector<512x128xf32>
    %96 = arith.addf %87, %95 : vector<512x128xf32>
    %97 = vector.broadcast %68 : vector<1x128xf32> to vector<512x128xf32>
    %98 = arith.addf %96, %97 : vector<512x128xf32>
    %c0_53 = arith.constant 0 : index
    %c0_54 = arith.constant 0 : index
    %99 = vector.load %arg8[%c0_53, %c0_54] : memref<1x128xf32, #tpu.memory_space<vmem>>, vector<1x128xf32>
    %c0_55 = arith.constant 0 : index
    %c0_56 = arith.constant 0 : index
    %100 = vector.load %arg9[%c0_55, %c0_56] : memref<1x128xf32, #tpu.memory_space<vmem>>, vector<1x128xf32>
    %cst_57 = arith.constant dense<0.000000e+00> : vector<128xf32>
    %101 = vector.multi_reduction <add>, %98, %cst_57 [0] : vector<512x128xf32> to vector<128xf32>
    %102 = vector.shape_cast %101 : vector<128xf32> to vector<1x128xf32>
    %cst_58 = arith.constant 0.001953125 : f32
    %103 = vector.broadcast %cst_58 : f32 to vector<1x128xf32>
    %104 = arith.mulf %102, %103 : vector<1x128xf32>
    %105 = vector.broadcast %104 : vector<1x128xf32> to vector<512x128xf32>
    %106 = arith.subf %98, %105 : vector<512x128xf32>
    %107 = arith.mulf %106, %106 : vector<512x128xf32>
    %cst_59 = arith.constant dense<0.000000e+00> : vector<128xf32>
    %108 = vector.multi_reduction <add>, %107, %cst_59 [0] : vector<512x128xf32> to vector<128xf32>
    %109 = vector.shape_cast %108 : vector<128xf32> to vector<1x128xf32>
    %cst_60 = arith.constant 0.001953125 : f32
    %110 = vector.broadcast %cst_60 : f32 to vector<1x128xf32>
    %111 = arith.mulf %109, %110 : vector<1x128xf32>
    %cst_61 = arith.constant 9.99999974E-6 : f32
    %112 = vector.broadcast %cst_61 : f32 to vector<1x128xf32>
    %113 = arith.addf %111, %112 : vector<1x128xf32>
    %114 = math.rsqrt %113 : vector<1x128xf32>
    %115 = arith.mulf %99, %114 : vector<1x128xf32>
    %116 = arith.mulf %104, %115 : vector<1x128xf32>
    %117 = arith.subf %100, %116 : vector<1x128xf32>
    %118 = vector.extract_strided_slice %2 {offsets = [0, 1, 0, 0], sizes = [2, 16, 16, 128], strides = [1, 1, 1, 1]} : vector<2x18x16x128xf32> to vector<2x16x16x128xf32>
    %119 = vector.shape_cast %118 : vector<2x16x16x128xf32> to vector<512x128xf32>
    %120 = vector.broadcast %115 : vector<1x128xf32> to vector<512x128xf32>
    %121 = arith.mulf %98, %120 : vector<512x128xf32>
    %122 = vector.broadcast %117 : vector<1x128xf32> to vector<512x128xf32>
    %123 = arith.addf %121, %122 : vector<512x128xf32>
    %124 = arith.addf %123, %119 : vector<512x128xf32>
    %cst_62 = arith.constant 0.000000e+00 : f32
    %125 = vector.broadcast %cst_62 : f32 to vector<512x128xf32>
    %126 = arith.maximumf %124, %125 : vector<512x128xf32>
    %127 = vector.shape_cast %126 : vector<512x128xf32> to vector<2x16x16x128xf32>
    %c0_63 = arith.constant 0 : index
    %c0_64 = arith.constant 0 : index
    %c0_65 = arith.constant 0 : index
    %c0_66 = arith.constant 0 : index
    %128 = vector.load %arg10[%c0_63, %c0_64, %c0_65, %c0_66] : memref<2x16x16x128xf32, #tpu.memory_space<vmem>>, vector<2x16x16x128xf32>
    tpu.vector_store %arg10[%c0_63, %c0_64, %c0_65, %c0_66], %127 {strides = array<i32>} : memref<2x16x16x128xf32, #tpu.memory_space<vmem>>, vector<2x16x16x128xf32>,
    return
  }
  func.func @transform_0(%arg0: i32) -> (i32, i32, i32, i32) {
    %c0_i32 = arith.constant 0 : i32
    %c0_i32_0 = arith.constant 0 : i32
    %c0_i32_1 = arith.constant 0 : i32
    %c0_i32_2 = arith.constant 0 : i32
    %c0_i32_3 = arith.constant 0 : i32
    return %c0_i32, %c0_i32_0, %c0_i32_1, %c0_i32_2 : i32, i32, i32, i32
  }
  func.func @transform_1(%arg0: i32) -> (i32, i32, i32) {
    %c0_i32 = arith.constant 0 : i32
    %c0_i32_0 = arith.constant 0 : i32
    %c0_i32_1 = arith.constant 0 : i32
    %c0_i32_2 = arith.constant 0 : i32
    return %c0_i32, %c0_i32_0, %c0_i32_1 : i32, i32, i32
  }
  func.func @transform_2(%arg0: i32) -> (i32, i32) {
    %c0_i32 = arith.constant 0 : i32
    %c0_i32_0 = arith.constant 0 : i32
    %c0_i32_1 = arith.constant 0 : i32
    return %c0_i32, %c0_i32_0 : i32, i32
  }
  func.func @transform_3(%arg0: i32) -> (i32, i32) {
    %c0_i32 = arith.constant 0 : i32
    %c0_i32_0 = arith.constant 0 : i32
    %c0_i32_1 = arith.constant 0 : i32
    return %c0_i32, %c0_i32_0 : i32, i32
  }
  func.func @transform_4(%arg0: i32) -> (i32, i32) {
    %c0_i32 = arith.constant 0 : i32
    %c0_i32_0 = arith.constant 0 : i32
    %c0_i32_1 = arith.constant 0 : i32
    return %c0_i32, %c0_i32_0 : i32, i32
  }
  func.func @transform_5(%arg0: i32) -> (i32, i32, i32) {
    %c0_i32 = arith.constant 0 : i32
    %c0_i32_0 = arith.constant 0 : i32
    %c0_i32_1 = arith.constant 0 : i32
    %c0_i32_2 = arith.constant 0 : i32
    return %c0_i32, %c0_i32_0, %c0_i32_1 : i32, i32, i32
  }
  func.func @transform_6(%arg0: i32) -> (i32, i32) {
    %c0_i32 = arith.constant 0 : i32
    %c0_i32_0 = arith.constant 0 : i32
    %c0_i32_1 = arith.constant 0 : i32
    return %c0_i32, %c0_i32_0 : i32, i32
  }
  func.func @transform_7(%arg0: i32) -> (i32, i32) {
    %c0_i32 = arith.constant 0 : i32
    %c0_i32_0 = arith.constant 0 : i32
    %c0_i32_1 = arith.constant 0 : i32
    return %c0_i32, %c0_i32_0 : i32, i32
  }
  func.func @transform_8(%arg0: i32) -> (i32, i32) {
    %c0_i32 = arith.constant 0 : i32
    %c0_i32_0 = arith.constant 0 : i32
    %c0_i32_1 = arith.constant 0 : i32
    return %c0_i32, %c0_i32_0 : i32, i32
  }
  func.func @transform_9(%arg0: i32) -> (i32, i32, i32, i32) {
    %c0_i32 = arith.constant 0 : i32
    %c0_i32_0 = arith.constant 0 : i32
    %c0_i32_1 = arith.constant 0 : i32
    %c0_i32_2 = arith.constant 0 : i32
    %c0_i32_3 = arith.constant 0 : i32
    return %c0_i32, %c0_i32_0, %c0_i32_1, %c0_i32_2 : i32, i32, i32, i32
  }
}

</mosaic_0001>

<llo_original>
// kernel: residual_block_forward.1
$region0: #{residual_block_forward.1}
  #allocation0 [shape = 'u32[]', space=smem, size = 0x4, offset = 0x4, fixed_abs, tag = 'smem constant byte address 0x4 - core index']
  #allocation1 [shape = 'u32[144,128]{1,0:T(1,128)}', space=vmem, size = 0x12000, scoped, tag = 'internal scratch']
  #allocation2 [shape = 'f32[2,18,18,128]{3,2,1,0:T(8,128)}', space=vmem, size = 0x6c000, scoped, tag = 'scratch operand']
  %s0 = inlined_call_operand.vmem [shape: f32[2,18,18,128], index: 0, kind: input, shape index: {}]
  %s1 = inlined_call_operand.vmem [shape: f32[3,384,128], index: 1, kind: input, shape index: {}]
  %s2 = inlined_call_operand.vmem [shape: f32[1,128], index: 2, kind: input, shape index: {}]
  %s3 = inlined_call_operand.vmem [shape: f32[1,128], index: 3, kind: input, shape index: {}]
  %s4 = inlined_call_operand.vmem [shape: f32[1,128], index: 4, kind: input, shape index: {}]
  %s5 = inlined_call_operand.vmem [shape: f32[3,384,128], index: 5, kind: input, shape index: {}]
  %s6 = inlined_call_operand.vmem [shape: f32[1,128], index: 6, kind: input, shape index: {}]
  %s7 = inlined_call_operand.vmem [shape: f32[1,128], index: 7, kind: input, shape index: {}]
  %s8 = inlined_call_operand.vmem [shape: f32[1,128], index: 8, kind: input, shape index: {}]
  %s9 = inlined_call_operand.vmem [shape: f32[2,16,16,128], index: 9, kind: output, shape index: {}]
  %s10 = sld [smem:[#allocation0]]
  $region46: #{residual_block_forward.1} parent=0
    _
  %s12 = ssub.s32 1, %s10
  %s13 = scalar_select 0, %s12, %s10
  // Predicated region
  $region2: #{residual_block_forward.1} parent=0 // pred_check
    _
  $region3: #{residual_block_forward.1} parent=0 // pred_check_branch
    %15 = sbr.rel (0) target = $region5
  $region4: #{residual_block_forward.1} parent=0 // pred_region
    _
  $region5: #{residual_block_forward.1} parent=0 // pred_fallthru
    _
  // Predicated region
  $region6: #{residual_block_forward.1} parent=0 // pred_check
    _
  $region7: #{residual_block_forward.1} parent=0 // pred_check_branch
    %17 = sbr.rel (0) target = $region9
  $region8: #{residual_block_forward.1} parent=0 // pred_region
    _
  $region9: #{residual_block_forward.1} parent=0 // pred_fallthru
    _
  // Predicated region
  $region10: #{residual_block_forward.1} parent=0 // pred_check
    _
  $region11: #{residual_block_forward.1} parent=0 // pred_check_branch
    %19 = sbr.rel (0) target = $region13
  $region12: #{residual_block_forward.1} parent=0 // pred_region
    _
  $region13: #{residual_block_forward.1} parent=0 // pred_fallthru
    _
  // Predicated region
  $region14: #{residual_block_forward.1} parent=0 // pred_check
    _
  $region15: #{residual_block_forward.1} parent=0 // pred_check_branch
    %21 = sbr.rel (0) target = $region17
  $region16: #{residual_block_forward.1} parent=0 // pred_region
    _
  $region17: #{residual_block_forward.1} parent=0 // pred_fallthru
    _
  // Predicated region
  $region18: #{residual_block_forward.1} parent=0 // pred_check
    _
  $region19: #{residual_block_forward.1} parent=0 // pred_check_branch
    %23 = sbr.rel (0) target = $region21
  $region20: #{residual_block_forward.1} parent=0 // pred_region
    _
  $region21: #{residual_block_forward.1} parent=0 // pred_fallthru
    _
  // Predicated region
  $region22: #{residual_block_forward.1} parent=0 // pred_check
    _
  $region23: #{residual_block_forward.1} parent=0 // pred_check_branch
    %25 = sbr.rel (0) target = $region25
  $region24: #{residual_block_forward.1} parent=0 // pred_region
    _
  $region25: #{residual_block_forward.1} parent=0 // pred_fallthru
    _
  // Predicated region
  $region26: #{residual_block_forward.1} parent=0 // pred_check
    _
  $region27: #{residual_block_forward.1} parent=0 // pred_check_branch
    %27 = sbr.rel (0) target = $region29
  $region28: #{residual_block_forward.1} parent=0 // pred_region
    _
  $region29: #{residual_block_forward.1} parent=0 // pred_fallthru
    _
  // Predicated region
  $region30: #{residual_block_forward.1} parent=0 // pred_check
    _
  $region31: #{residual_block_forward.1} parent=0 // pred_check_branch
    %29 = sbr.rel (0) target = $region33
  $region32: #{residual_block_forward.1} parent=0 // pred_region
    _
  $region33: #{residual_block_forward.1} parent=0 // pred_fallthru
    _
  // Predicated region
  $region34: #{residual_block_forward.1} parent=0 // pred_check
    _
  $region35: #{residual_block_forward.1} parent=0 // pred_check_branch
    %31 = sbr.rel (0) target = $region37
  $region36: #{residual_block_forward.1} parent=0 // pred_region
    _
  $region37: #{residual_block_forward.1} parent=0 // pred_fallthru
    _
  %v32 = vld [vmem:[%s0] sm:$0xff]
  %v33 = vld [vmem:[%s0 + $0x8] sm:$0xff]
  %v34 = vld [vmem:[%s0 + $0x10] sm:$0x3]
  %v35 = vld [vmem:[%s0 + $0x18] sm:$0xff]
  %v36 = vld [vmem:[%s0 + $0x20] sm:$0xff]
  %v37 = vld [vmem:[%s0 + $0x28] sm:$0x3]
  %v38 = vld [vmem:[%s0 + $0x30] sm:$0xff]
  %v39 = vld [vmem:[%s0 + $0x38] sm:$0xff]
  %v40 = vld [vmem:[%s0 + $0x40] sm:$0x3]
  %v41 = vld [vmem:[%s0 + $0x48] sm:$0xff]
  %v42 = vld [vmem:[%s0 + $0x50] sm:$0xff]
  %v43 = vld [vmem:[%s0 + $0x58] sm:$0x3]
  %v44 = vld [vmem:[%s0 + $0x60] sm:$0xff]
  %v45 = vld [vmem:[%s0 + $0x68] sm:$0xff]
  %v46 = vld [vmem:[%s0 + $0x70] sm:$0x3]
  %v47 = vld [vmem:[%s0 + $0x78] sm:$0xff]
  %v48 = vld [vmem:[%s0 + $0x80] sm:$0xff]
  %v49 = vld [vmem:[%s0 + $0x88] sm:$0x3]
  %v50 = vld [vmem:[%s0 + $0x90] sm:$0xff]
  %v51 = vld [vmem:[%s0 + $0x98] sm:$0xff]
  %v52 = vld [vmem:[%s0 + $0xa0] sm:$0x3]
  %v53 = vld [vmem:[%s0 + $0xa8] sm:$0xff]
  %v54 = vld [vmem:[%s0 + $0xb0] sm:$0xff]
  %v55 = vld [vmem:[%s0 + $0xb8] sm:$0x3]
  %v56 = vld [vmem:[%s0 + $0xc0] sm:$0xff]
  %v57 = vld [vmem:[%s0 + $0xc8] sm:$0xff]
  %v58 = vld [vmem:[%s0 + $0xd0] sm:$0x3]
  %v59 = vld [vmem:[%s0 + $0xd8] sm:$0xff]
  %v60 = vld [vmem:[%s0 + $0xe0] sm:$0xff]
  %v61 = vld [vmem:[%s0 + $0xe8] sm:$0x3]
  %v62 = vld [vmem:[%s0 + $0xf0] sm:$0xff]
  %v63 = vld [vmem:[%s0 + $0xf8] sm:$0xff]
  %v64 = vld [vmem:[%s0 + $0x100] sm:$0x3]
  %v65 = vld [vmem:[%s0 + $0x108] sm:$0xff]
  %v66 = vld [vmem:[%s0 + $0x110] sm:$0xff]
  %v67 = vld [vmem:[%s0 + $0x118] sm:$0x3]
  %v68 = vld [vmem:[%s0 + $0x120] sm:$0xff]
  %v69 = vld [vmem:[%s0 + $0x128] sm:$0xff]
  %v70 = vld [vmem:[%s0 + $0x130] sm:$0x3]
  %v71 = vld [vmem:[%s0 + $0x138] sm:$0xff]
  %v72 = vld [vmem:[%s0 + $0x140] sm:$0xff]
  %v73 = vld [vmem:[%s0 + $0x148] sm:$0x3]
  %v74 = vld [vmem:[%s0 + $0x150] sm:$0xff]
  %v75 = vld [vmem:[%s0 + $0x158] sm:$0xff]
  %v76 = vld [vmem:[%s0 + $0x160] sm:$0x3]
  %v77 = vld [vmem:[%s0 + $0x168] sm:$0xff]
  %v78 = vld [vmem:[%s0 + $0x170] sm:$0xff]
  %v79 = vld [vmem:[%s0 + $0x178] sm:$0x3]
  %v80 = vld [vmem:[%s0 + $0x180] sm:$0xff]
  %v81 = vld [vmem:[%s0 + $0x188] sm:$0xff]
  %v82 = vld [vmem:[%s0 + $0x190] sm:$0x3]
  %v83 = vld [vmem:[%s0 + $0x198] sm:$0xff]
  %v84 = vld [vmem:[%s0 + $0x1a0] sm:$0xff]
  %v85 = vld [vmem:[%s0 + $0x1a8] sm:$0x3]
  %v86 = vld [vmem:[%s0 + $0x1b0] sm:$0xff]
  %v87 = vld [vmem:[%s0 + $0x1b8] sm:$0xff]
  %v88 = vld [vmem:[%s0 + $0x1c0] sm:$0x3]
  %v89 = vld [vmem:[%s0 + $0x1c8] sm:$0xff]
  %v90 = vld [vmem:[%s0 + $0x1d0] sm:$0xff]
  %v91 = vld [vmem:[%s0 + $0x1d8] sm:$0x3]
  %v92 = vld [vmem:[%s0 + $0x1e0] sm:$0xff]
  %v93 = vld [vmem:[%s0 + $0x1e8] sm:$0xff]
  %v94 = vld [vmem:[%s0 + $0x1f0] sm:$0x3]
  %v95 = vld [vmem:[%s0 + $0x1f8] sm:$0xff]
  %v96 = vld [vmem:[%s0 + $0x200] sm:$0xff]
  %v97 = vld [vmem:[%s0 + $0x208] sm:$0x3]
  %v98 = vld [vmem:[%s0 + $0x210] sm:$0xff]
  %v99 = vld [vmem:[%s0 + $0x218] sm:$0xff]
  %v100 = vld [vmem:[%s0 + $0x220] sm:$0x3]
  %v101 = vld [vmem:[%s0 + $0x228] sm:$0xff]
  %v102 = vld [vmem:[%s0 + $0x230] sm:$0xff]
  %v103 = vld [vmem:[%s0 + $0x238] sm:$0x3]
  %v104 = vld [vmem:[%s0 + $0x240] sm:$0xff]
  %v105 = vld [vmem:[%s0 + $0x248] sm:$0xff]
  %v106 = vld [vmem:[%s0 + $0x250] sm:$0x3]
  %v107 = vld [vmem:[%s0 + $0x258] sm:$0xff]
  %v108 = vld [vmem:[%s0 + $0x260] sm:$0xff]
  %v109 = vld [vmem:[%s0 + $0x268] sm:$0x3]
  %v110 = vld [vmem:[%s0 + $0x270] sm:$0xff]
  %v111 = vld [vmem:[%s0 + $0x278] sm:$0xff]
  %v112 = vld [vmem:[%s0 + $0x280] sm:$0x3]
  %v113 = vld [vmem:[%s0 + $0x288] sm:$0xff]
  %v114 = vld [vmem:[%s0 + $0x290] sm:$0xff]
  %v115 = vld [vmem:[%s0 + $0x298] sm:$0x3]
  %v116 = vld [vmem:[%s0 + $0x2a0] sm:$0xff]
  %v117 = vld [vmem:[%s0 + $0x2a8] sm:$0xff]
  %v118 = vld [vmem:[%s0 + $0x2b0] sm:$0x3]
  %v119 = vld [vmem:[%s0 + $0x2b8] sm:$0xff]
  %v120 = vld [vmem:[%s0 + $0x2c0] sm:$0xff]
  %v121 = vld [vmem:[%s0 + $0x2c8] sm:$0x3]
  %v122 = vld [vmem:[%s0 + $0x2d0] sm:$0xff]
  %v123 = vld [vmem:[%s0 + $0x2d8] sm:$0xff]
  %v124 = vld [vmem:[%s0 + $0x2e0] sm:$0x3]
  %v125 = vld [vmem:[%s0 + $0x2e8] sm:$0xff]
  %v126 = vld [vmem:[%s0 + $0x2f0] sm:$0xff]
  %v127 = vld [vmem:[%s0 + $0x2f8] sm:$0x3]
  %v128 = vld [vmem:[%s0 + $0x300] sm:$0xff]
  %v129 = vld [vmem:[%s0 + $0x308] sm:$0xff]
  %v130 = vld [vmem:[%s0 + $0x310] sm:$0x3]
  %v131 = vld [vmem:[%s0 + $0x318] sm:$0xff]
  %v132 = vld [vmem:[%s0 + $0x320] sm:$0xff]
  %v133 = vld [vmem:[%s0 + $0x328] sm:$0x3]
  %v134 = vld [vmem:[%s0 + $0x330] sm:$0xff]
  %v135 = vld [vmem:[%s0 + $0x338] sm:$0xff]
  %v136 = vld [vmem:[%s0 + $0x340] sm:$0x3]
  %v137 = vld [vmem:[%s0 + $0x348] sm:$0xff]
  %v138 = vld [vmem:[%s0 + $0x350] sm:$0xff]
  %v139 = vld [vmem:[%s0 + $0x358] sm:$0x3]
  %v140 = vld [vmem:[%s2] sm:$0x1]
  %vm237 = vcmask 1046528
  %v238 = vrot.slane %v32, 1
  %v239 = vrot.slane %v33, 1
  %v240 = vsel %vm237, %v238, %v239
  %v241 = vrot.slane %v34, 1
  %v242 = vsel %vm237, %v239, %v241
  %v243 = vrot.slane %v35, 1
  %v244 = vrot.slane %v36, 1
  %v245 = vsel %vm237, %v243, %v244
  %v246 = vrot.slane %v37, 1
  %v247 = vsel %vm237, %v244, %v246
  %v248 = vrot.slane %v38, 1
  %v249 = vrot.slane %v39, 1
  %v250 = vsel %vm237, %v248, %v249
  %v251 = vrot.slane %v40, 1
  %v252 = vsel %vm237, %v249, %v251
  %v253 = vrot.slane %v41, 1
  %v254 = vrot.slane %v42, 1
  %v255 = vsel %vm237, %v253, %v254
  %v256 = vrot.slane %v43, 1
  %v257 = vsel %vm237, %v254, %v256
  %v258 = vrot.slane %v44, 1
  %v259 = vrot.slane %v45, 1
  %v260 = vsel %vm237, %v258, %v259
  %v261 = vrot.slane %v46, 1
  %v262 = vsel %vm237, %v259, %v261
  %v263 = vrot.slane %v47, 1
  %v264 = vrot.slane %v48, 1
  %v265 = vsel %vm237, %v263, %v264
  %v266 = vrot.slane %v49, 1
  %v267 = vsel %vm237, %v264, %v266
  %v268 = vrot.slane %v50, 1
  %v269 = vrot.slane %v51, 1
  %v270 = vsel %vm237, %v268, %v269
  %v271 = vrot.slane %v52, 1
  %v272 = vsel %vm237, %v269, %v271
  %v273 = vrot.slane %v53, 1
  %v274 = vrot.slane %v54, 1
  %v275 = vsel %vm237, %v273, %v274
  %v276 = vrot.slane %v55, 1
  %v277 = vsel %vm237, %v274, %v276
  %v278 = vrot.slane %v56, 1
  %v279 = vrot.slane %v57, 1
  %v280 = vsel %vm237, %v278, %v279
  %v281 = vrot.slane %v58, 1
  %v282 = vsel %vm237, %v279, %v281
  %v283 = vrot.slane %v59, 1
  %v284 = vrot.slane %v60, 1
  %v285 = vsel %vm237, %v283, %v284
  %v286 = vrot.slane %v61, 1
  %v287 = vsel %vm237, %v284, %v286
  %v288 = vrot.slane %v62, 1
  %v289 = vrot.slane %v63, 1
  %v290 = vsel %vm237, %v288, %v289
  %v291 = vrot.slane %v64, 1
  %v292 = vsel %vm237, %v289, %v291
  %v293 = vrot.slane %v65, 1
  %v294 = vrot.slane %v66, 1
  %v295 = vsel %vm237, %v293, %v294
  %v296 = vrot.slane %v67, 1
  %v297 = vsel %vm237, %v294, %v296
  %v298 = vrot.slane %v68, 1
  %v299 = vrot.slane %v69, 1
  %v300 = vsel %vm237, %v298, %v299
  %v301 = vrot.slane %v70, 1
  %v302 = vsel %vm237, %v299, %v301
  %v303 = vrot.slane %v71, 1
  %v304 = vrot.slane %v72, 1
  %v305 = vsel %vm237, %v303, %v304
  %v306 = vrot.slane %v73, 1
  %v307 = vsel %vm237, %v304, %v306
  %v308 = vrot.slane %v74, 1
  %v309 = vrot.slane %v75, 1
  %v310 = vsel %vm237, %v308, %v309
  %v311 = vrot.slane %v76, 1
  %v312 = vsel %vm237, %v309, %v311
  %v313 = vrot.slane %v77, 1
  %v314 = vrot.slane %v78, 1
  %v315 = vsel %vm237, %v313, %v314
  %v316 = vrot.slane %v79, 1
  %v317 = vsel %vm237, %v314, %v316
  %v318 = vrot.slane %v86, 1
  %v319 = vrot.slane %v87, 1
  %v320 = vsel %vm237, %v318, %v319
  %v321 = vrot.slane %v88, 1
  %v322 = vsel %vm237, %v319, %v321
  %v323 = vrot.slane %v89, 1
  %v324 = vrot.slane %v90, 1
  %v325 = vsel %vm237, %v323, %v324
  %v326 = vrot.slane %v91, 1
  %v327 = vsel %vm237, %v324, %v326
  %v328 = vrot.slane %v92, 1
  %v329 = vrot.slane %v93, 1
  %v330 = vsel %vm237, %v328, %v329
  %v331 = vrot.slane %v94, 1
  %v332 = vsel %vm237, %v329, %v331
  %v333 = vrot.slane %v95, 1
  %v334 = vrot.slane %v96, 1
  %v335 = vsel %vm237, %v333, %v334
  %v336 = vrot.slane %v97, 1
  %v337 = vsel %vm237, %v334, %v336
  %v338 = vrot.slane %v98, 1
  %v339 = vrot.slane %v99, 1
  %v340 = vsel %vm237, %v338, %v339
  %v341 = vrot.slane %v100, 1
  %v342 = vsel %vm237, %v339, %v341
  %v343 = vrot.slane %v101, 1
  %v344 = vrot.slane %v102, 1
  %v345 = vsel %vm237, %v343, %v344
  %v346 = vrot.slane %v103, 1
  %v347 = vsel %vm237, %v344, %v346
  %v348 = vrot.slane %v104, 1
  %v349 = vrot.slane %v105, 1
  %v350 = vsel %vm237, %v348, %v349
  %v351 = vrot.slane %v106, 1
  %v352 = vsel %vm237, %v349, %v351
  %v353 = vrot.slane %v107, 1
  %v354 = vrot.slane %v108, 1
  %v355 = vsel %vm237, %v353, %v354
  %v356 = vrot.slane %v109, 1
  %v357 = vsel %vm237, %v354, %v356
  %v358 = vrot.slane %v110, 1
  %v359 = vrot.slane %v111, 1
  %v360 = vsel %vm237, %v358, %v359
  %v361 = vrot.slane %v112, 1
  %v362 = vsel %vm237, %v359, %v361
  %v363 = vrot.slane %v113, 1
  %v364 = vrot.slane %v114, 1
  %v365 = vsel %vm237, %v363, %v364
  %v366 = vrot.slane %v115, 1
  %v367 = vsel %vm237, %v364, %v366
  %v368 = vrot.slane %v116, 1
  %v369 = vrot.slane %v117, 1
  %v370 = vsel %vm237, %v368, %v369
  %v371 = vrot.slane %v118, 1
  %v372 = vsel %vm237, %v369, %v371
  %v373 = vrot.slane %v119, 1
  %v374 = vrot.slane %v120, 1
  %v375 = vsel %vm237, %v373, %v374
  %v376 = vrot.slane %v121, 1
  %v377 = vsel %vm237, %v374, %v376
  %v378 = vrot.slane %v122, 1
  %v379 = vrot.slane %v123, 1
  %v380 = vsel %vm237, %v378, %v379
  %v381 = vrot.slane %v124, 1
  %v382 = vsel %vm237, %v379, %v381
  %v383 = vrot.slane %v125, 1
  %v384 = vrot.slane %v126, 1
  %v385 = vsel %vm237, %v383, %v384
  %v386 = vrot.slane %v127, 1
  %v387 = vsel %vm237, %v384, %v386
  %v388 = vrot.slane %v128, 1
  %v389 = vrot.slane %v129, 1
  %v390 = vsel %vm237, %v388, %v389
  %v391 = vrot.slane %v130, 1
  %v392 = vsel %vm237, %v389, %v391
  %v393 = vrot.slane %v131, 1
  %v394 = vrot.slane %v132, 1
  %v395 = vsel %vm237, %v393, %v394
  %v396 = vrot.slane %v133, 1
  %v397 = vsel %vm237, %v394, %v396
  %vm462 = vcmask 1045504
  %v463 = vrot.slane %v32, 2
  %v464 = vrot.slane %v33, 2
  %v465 = vsel %vm462, %v463, %v464
  %v466 = vrot.slane %v34, 2
  %v467 = vsel %vm462, %v464, %v466
  %v468 = vrot.slane %v35, 2
  %v469 = vrot.slane %v36, 2
  %v470 = vsel %vm462, %v468, %v469
  %v471 = vrot.slane %v37, 2
  %v472 = vsel %vm462, %v469, %v471
  %v473 = vrot.slane %v38, 2
  %v474 = vrot.slane %v39, 2
  %v475 = vsel %vm462, %v473, %v474
  %v476 = vrot.slane %v40, 2
  %v477 = vsel %vm462, %v474, %v476
  %v478 = vrot.slane %v41, 2
  %v479 = vrot.slane %v42, 2
  %v480 = vsel %vm462, %v478, %v479
  %v481 = vrot.slane %v43, 2
  %v482 = vsel %vm462, %v479, %v481
  %v483 = vrot.slane %v44, 2
  %v484 = vrot.slane %v45, 2
  %v485 = vsel %vm462, %v483, %v484
  %v486 = vrot.slane %v46, 2
  %v487 = vsel %vm462, %v484, %v486
  %v488 = vrot.slane %v47, 2
  %v489 = vrot.slane %v48, 2
  %v490 = vsel %vm462, %v488, %v489
  %v491 = vrot.slane %v49, 2
  %v492 = vsel %vm462, %v489, %v491
  %v493 = vrot.slane %v50, 2
  %v494 = vrot.slane %v51, 2
  %v495 = vsel %vm462, %v493, %v494
  %v496 = vrot.slane %v52, 2
  %v497 = vsel %vm462, %v494, %v496
  %v498 = vrot.slane %v53, 2
  %v499 = vrot.slane %v54, 2
  %v500 = vsel %vm462, %v498, %v499
  %v501 = vrot.slane %v55, 2
  %v502 = vsel %vm462, %v499, %v501
  %v503 = vrot.slane %v56, 2
  %v504 = vrot.slane %v57, 2
  %v505 = vsel %vm462, %v503, %v504
  %v506 = vrot.slane %v58, 2
  %v507 = vsel %vm462, %v504, %v506
  %v508 = vrot.slane %v59, 2
  %v509 = vrot.slane %v60, 2
  %v510 = vsel %vm462, %v508, %v509
  %v511 = vrot.slane %v61, 2
  %v512 = vsel %vm462, %v509, %v511
  %v513 = vrot.slane %v62, 2
  %v514 = vrot.slane %v63, 2
  %v515 = vsel %vm462, %v513, %v514
  %v516 = vrot.slane %v64, 2
  %v517 = vsel %vm462, %v514, %v516
  %v518 = vrot.slane %v65, 2
  %v519 = vrot.slane %v66, 2
  %v520 = vsel %vm462, %v518, %v519
  %v521 = vrot.slane %v67, 2
  %v522 = vsel %vm462, %v519, %v521
  %v523 = vrot.slane %v68, 2
  %v524 = vrot.slane %v69, 2
  %v525 = vsel %vm462, %v523, %v524
  %v526 = vrot.slane %v70, 2
  %v527 = vsel %vm462, %v524, %v526
  %v528 = vrot.slane %v71, 2
  %v529 = vrot.slane %v72, 2
  %v530 = vsel %vm462, %v528, %v529
  %v531 = vrot.slane %v73, 2
  %v532 = vsel %vm462, %v529, %v531
  %v533 = vrot.slane %v74, 2
  %v534 = vrot.slane %v75, 2
  %v535 = vsel %vm462, %v533, %v534
  %v536 = vrot.slane %v76, 2
  %v537 = vsel %vm462, %v534, %v536
  %v538 = vrot.slane %v77, 2
  %v539 = vrot.slane %v78, 2
  %v540 = vsel %vm462, %v538, %v539
  %v541 = vrot.slane %v79, 2
  %v542 = vsel %vm462, %v539, %v541
  %v543 = vrot.slane %v86, 2
  %v544 = vrot.slane %v87, 2
  %v545 = vsel %vm462, %v543, %v544
  %v546 = vrot.slane %v88, 2
  %v547 = vsel %vm462, %v544, %v546
  %v548 = vrot.slane %v89, 2
  %v549 = vrot.slane %v90, 2
  %v550 = vsel %vm462, %v548, %v549
  %v551 = vrot.slane %v91, 2
  %v552 = vsel %vm462, %v549, %v551
  %v553 = vrot.slane %v92, 2
  %v554 = vrot.slane %v93, 2
  %v555 = vsel %vm462, %v553, %v554
  %v556 = vrot.slane %v94, 2
  %v557 = vsel %vm462, %v554, %v556
  %v558 = vrot.slane %v95, 2
  %v559 = vrot.slane %v96, 2
  %v560 = vsel %vm462, %v558, %v559
  %v561 = vrot.slane %v97, 2
  %v562 = vsel %vm462, %v559, %v561
  %v563 = vrot.slane %v98, 2
  %v564 = vrot.slane %v99, 2
  %v565 = vsel %vm462, %v563, %v564
  %v566 = vrot.slane %v100, 2
  %v567 = vsel %vm462, %v564, %v566
  %v568 = vrot.slane %v101, 2
  %v569 = vrot.slane %v102, 2
  %v570 = vsel %vm462, %v568, %v569
  %v571 = vrot.slane %v103, 2
  %v572 = vsel %vm462, %v569, %v571
  %v573 = vrot.slane %v104, 2
  %v574 = vrot.slane %v105, 2
  %v575 = vsel %vm462, %v573, %v574
  %v576 = vrot.slane %v106, 2
  %v577 = vsel %vm462, %v574, %v576
  %v578 = vrot.slane %v107, 2
  %v579 = vrot.slane %v108, 2
  %v580 = vsel %vm462, %v578, %v579
  %v581 = vrot.slane %v109, 2
  %v582 = vsel %vm462, %v579, %v581
  %v583 = vrot.slane %v110, 2
  %v584 = vrot.slane %v111, 2
  %v585 = vsel %vm462, %v583, %v584
  %v586 = vrot.slane %v112, 2
  %v587 = vsel %vm462, %v584, %v586
  %v588 = vrot.slane %v113, 2
  %v589 = vrot.slane %v114, 2
  %v590 = vsel %vm462, %v588, %v589
  %v591 = vrot.slane %v115, 2
  %v592 = vsel %vm462, %v589, %v591
  %v593 = vrot.slane %v116, 2
  %v594 = vrot.slane %v117, 2
  %v595 = vsel %vm462, %v593, %v594
  %v596 = vrot.slane %v118, 2
  %v597 = vsel %vm462, %v594, %v596
  %v598 = vrot.slane %v119, 2
  %v599 = vrot.slane %v120, 2
  %v600 = vsel %vm462, %v598, %v599
  %v601 = vrot.slane %v121, 2
  %v602 = vsel %vm462, %v599, %v601
  %v603 = vrot.slane %v122, 2
  %v604 = vrot.slane %v123, 2
  %v605 = vsel %vm462, %v603, %v604
  %v606 = vrot.slane %v124, 2
  %v607 = vsel %vm462, %v604, %v606
  %v608 = vrot.slane %v125, 2
  %v609 = vrot.slane %v126, 2
  %v610 = vsel %vm462, %v608, %v609
  %v611 = vrot.slane %v127, 2
  %v612 = vsel %vm462, %v609, %v611
  %v613 = vrot.slane %v128, 2
  %v614 = vrot.slane %v129, 2
  %v615 = vsel %vm462, %v613, %v614
  %v616 = vrot.slane %v130, 2
  %v617 = vsel %vm462, %v614, %v616
  %v618 = vrot.slane %v131, 2
  %v619 = vrot.slane %v132, 2
  %v620 = vsel %vm462, %v618, %v619
  %v621 = vrot.slane %v133, 2
  %v622 = vsel %vm462, %v619, %v621
  %v687 = vld [vmem:[%s1] sm:$0xff]
  %v688 = vld [vmem:[%s1 + $0x8] sm:$0xff]
  %v689 = vld [vmem:[%s1 + $0x10] sm:$0xff]
  %v690 = vld [vmem:[%s1 + $0x18] sm:$0xff]
  %v691 = vld [vmem:[%s1 + $0x20] sm:$0xff]
  %v692 = vld [vmem:[%s1 + $0x28] sm:$0xff]
  %v693 = vld [vmem:[%s1 + $0x30] sm:$0xff]
  %v694 = vld [vmem:[%s1 + $0x38] sm:$0xff]
  %v695 = vld [vmem:[%s1 + $0x40] sm:$0xff]
  %v696 = vld [vmem:[%s1 + $0x48] sm:$0xff]
  %v697 = vld [vmem:[%s1 + $0x50] sm:$0xff]
  %v698 = vld [vmem:[%s1 + $0x58] sm:$0xff]
  %v699 = vld [vmem:[%s1 + $0x60] sm:$0xff]
  %v700 = vld [vmem:[%s1 + $0x68] sm:$0xff]
  %v701 = vld [vmem:[%s1 + $0x70] sm:$0xff]
  %v702 = vld [vmem:[%s1 + $0x78] sm:$0xff]
  %v703 = vld [vmem:[%s1 + $0x80] sm:$0xff]
  %v704 = vld [vmem:[%s1 + $0x88] sm:$0xff]
  %v705 = vld [vmem:[%s1 + $0x90] sm:$0xff]
  %v706 = vld [vmem:[%s1 + $0x98] sm:$0xff]
  %v707 = vld [vmem:[%s1 + $0xa0] sm:$0xff]
  %v708 = vld [vmem:[%s1 + $0xa8] sm:$0xff]
  %v709 = vld [vmem:[%s1 + $0xb0] sm:$0xff]
  %v710 = vld [vmem:[%s1 + $0xb8] sm:$0xff]
  %v711 = vld [vmem:[%s1 + $0xc0] sm:$0xff]
  %v712 = vld [vmem:[%s1 + $0xc8] sm:$0xff]
  %v713 = vld [vmem:[%s1 + $0xd0] sm:$0xff]
  %v714 = vld [vmem:[%s1 + $0xd8] sm:$0xff]
  %v715 = vld [vmem:[%s1 + $0xe0] sm:$0xff]
  %v716 = vld [vmem:[%s1 + $0xe8] sm:$0xff]
  %v717 = vld [vmem:[%s1 + $0xf0] sm:$0xff]
  %v718 = vld [vmem:[%s1 + $0xf8] sm:$0xff]
  %v719 = vld [vmem:[%s1 + $0x100] sm:$0xff]
  %v720 = vld [vmem:[%s1 + $0x108] sm:$0xff]
  %v721 = vld [vmem:[%s1 + $0x110] sm:$0xff]
  %v722 = vld [vmem:[%s1 + $0x118] sm:$0xff]
  %v723 = vld [vmem:[%s1 + $0x120] sm:$0xff]
  %v724 = vld [vmem:[%s1 + $0x128] sm:$0xff]
  %v725 = vld [vmem:[%s1 + $0x130] sm:$0xff]
  %v726 = vld [vmem:[%s1 + $0x138] sm:$0xff]
  %v727 = vld [vmem:[%s1 + $0x140] sm:$0xff]
  %v728 = vld [vmem:[%s1 + $0x148] sm:$0xff]
  %v729 = vld [vmem:[%s1 + $0x150] sm:$0xff]
  %v730 = vld [vmem:[%s1 + $0x158] sm:$0xff]
  %v731 = vld [vmem:[%s1 + $0x160] sm:$0xff]
  %v732 = vld [vmem:[%s1 + $0x168] sm:$0xff]
  %v733 = vld [vmem:[%s1 + $0x170] sm:$0xff]
  %v734 = vld [vmem:[%s1 + $0x178] sm:$0xff]
  %v741 = vrot.slane %v80, 1
  %v742 = vrot.slane %v81, 1
  %v743 = vsel %vm237, %v741, %v742
  %v744 = vrot.slane %v82, 1
  %v745 = vsel %vm237, %v742, %v744
  %v746 = vrot.slane %v134, 1
  %v747 = vrot.slane %v135, 1
  %v748 = vsel %vm237, %v746, %v747
  %v749 = vrot.slane %v136, 1
  %v750 = vsel %vm237, %v747, %v749
  %v755 = vrot.slane %v80, 2
  %v756 = vrot.slane %v81, 2
  %v757 = vsel %vm462, %v755, %v756
  %v758 = vrot.slane %v82, 2
  %v759 = vsel %vm462, %v756, %v758
  %v760 = vrot.slane %v134, 2
  %v761 = vrot.slane %v135, 2
  %v762 = vsel %vm462, %v760, %v761
  %v763 = vrot.slane %v136, 2
  %v764 = vsel %vm462, %v761, %v763
  %s769 = scalar_lea.vmem %s1, 384
  %v770 = vld [vmem:[%s769] sm:$0xff]
  %v771 = vld [vmem:[%s769 + $0x8] sm:$0xff]
  %v772 = vld [vmem:[%s769 + $0x10] sm:$0xff]
  %v773 = vld [vmem:[%s769 + $0x18] sm:$0xff]
  %v774 = vld [vmem:[%s769 + $0x20] sm:$0xff]
  %v775 = vld [vmem:[%s769 + $0x28] sm:$0xff]
  %v776 = vld [vmem:[%s769 + $0x30] sm:$0xff]
  %v777 = vld [vmem:[%s769 + $0x38] sm:$0xff]
  %v778 = vld [vmem:[%s769 + $0x40] sm:$0xff]
  %v779 = vld [vmem:[%s769 + $0x48] sm:$0xff]
  %v780 = vld [vmem:[%s769 + $0x50] sm:$0xff]
  %v781 = vld [vmem:[%s769 + $0x58] sm:$0xff]
  %v782 = vld [vmem:[%s769 + $0x60] sm:$0xff]
  %v783 = vld [vmem:[%s769 + $0x68] sm:$0xff]
  %v784 = vld [vmem:[%s769 + $0x70] sm:$0xff]
  %v785 = vld [vmem:[%s769 + $0x78] sm:$0xff]
  %v786 = vld [vmem:[%s769 + $0x80] sm:$0xff]
  %v787 = vld [vmem:[%s769 + $0x88] sm:$0xff]
  %v788 = vld [vmem:[%s769 + $0x90] sm:$0xff]
  %v789 = vld [vmem:[%s769 + $0x98] sm:$0xff]
  %v790 = vld [vmem:[%s769 + $0xa0] sm:$0xff]
  %v791 = vld [vmem:[%s769 + $0xa8] sm:$0xff]
  %v792 = vld [vmem:[%s769 + $0xb0] sm:$0xff]
  %v793 = vld [vmem:[%s769 + $0xb8] sm:$0xff]
  %v794 = vld [vmem:[%s769 + $0xc0] sm:$0xff]
  %v795 = vld [vmem:[%s769 + $0xc8] sm:$0xff]
  %v796 = vld [vmem:[%s769 + $0xd0] sm:$0xff]
  %v797 = vld [vmem:[%s769 + $0xd8] sm:$0xff]
  %v798 = vld [vmem:[%s769 + $0xe0] sm:$0xff]
  %v799 = vld [vmem:[%s769 + $0xe8] sm:$0xff]
  %v800 = vld [vmem:[%s769 + $0xf0] sm:$0xff]
  %v801 = vld [vmem:[%s769 + $0xf8] sm:$0xff]
  %v802 = vld [vmem:[%s769 + $0x100] sm:$0xff]
  %v803 = vld [vmem:[%s769 + $0x108] sm:$0xff]
  %v804 = vld [vmem:[%s769 + $0x110] sm:$0xff]
  %v805 = vld [vmem:[%s769 + $0x118] sm:$0xff]
  %v806 = vld [vmem:[%s769 + $0x120] sm:$0xff]
  %v807 = vld [vmem:[%s769 + $0x128] sm:$0xff]
  %v808 = vld [vmem:[%s769 + $0x130] sm:$0xff]
  %v809 = vld [vmem:[%s769 + $0x138] sm:$0xff]
  %v810 = vld [vmem:[%s769 + $0x140] sm:$0xff]
  %v811 = vld [vmem:[%s769 + $0x148] sm:$0xff]
  %v812 = vld [vmem:[%s769 + $0x150] sm:$0xff]
  %v813 = vld [vmem:[%s769 + $0x158] sm:$0xff]
  %v814 = vld [vmem:[%s769 + $0x160] sm:$0xff]
  %v815 = vld [vmem:[%s769 + $0x168] sm:$0xff]
  %v816 = vld [vmem:[%s769 + $0x170] sm:$0xff]
  %v817 = vld [vmem:[%s769 + $0x178] sm:$0xff]
  %818 = vmatprep.subr.mxu0 0.0
  %819 = vmatpush1.msra.mxu0 %v770
  %820 = vmatprep.subr.mxu0 0.0
  %821 = vmatpush1.msra.mxu0 %v771
  %822 = vmatprep.subr.mxu0 0.0
  %823 = vmatpush1.msra.mxu0 %v772
  %824 = vmatprep.subr.mxu0 0.0
  %825 = vmatpush1.msra.mxu0 %v773
  %826 = vmatprep.subr.mxu0 0.0
  %827 = vmatpush1.msra.mxu0 %v774
  %828 = vmatprep.subr.mxu0 0.0
  %829 = vmatpush1.msra.mxu0 %v775
  %830 = vmatprep.subr.mxu0 0.0
  %831 = vmatpush1.msra.mxu0 %v776
  %832 = vmatprep.subr.mxu0 0.0
  %833 = vmatpush1.msra.mxu0 %v777
  %834 = vmatprep.subr.mxu0 0.0
  %835 = vmatpush1.msra.mxu0 %v778
  %836 = vmatprep.subr.mxu0 0.0
  %837 = vmatpush1.msra.mxu0 %v779
  %838 = vmatprep.subr.mxu0 0.0
  %839 = vmatpush1.msra.mxu0 %v780
  %840 = vmatprep.subr.mxu0 0.0
  %841 = vmatpush1.msra.mxu0 %v781
  %842 = vmatprep.subr.mxu0 0.0
  %843 = vmatpush1.msra.mxu0 %v782
  %844 = vmatprep.subr.mxu0 0.0
  %845 = vmatpush1.msra.mxu0 %v783
  %846 = vmatprep.subr.mxu0 0.0
  %847 = vmatpush1.msra.mxu0 %v784
  %848 = vmatprep.subr.mxu0 0.0
  %849 = vmatpush1.msra.mxu0 %v785
  %850 = vmatprep.subr.mxu0 0.0
  %851 = vmatpush1.msra.mxu0 %v786
  %852 = vmatprep.subr.mxu0 0.0
  %853 = vmatpush1.msra.mxu0 %v787
  %854 = vmatprep.subr.mxu0 0.0
  %855 = vmatpush1.msra.mxu0 %v788
  %856 = vmatprep.subr.mxu0 0.0
  %857 = vmatpush1.msra.mxu0 %v789
  %858 = vmatprep.subr.mxu0 0.0
  %859 = vmatpush1.msra.mxu0 %v790
  %860 = vmatprep.subr.mxu0 0.0
  %861 = vmatpush1.msra.mxu0 %v791
  %862 = vmatprep.subr.mxu0 0.0
  %863 = vmatpush1.msra.mxu0 %v792
  %864 = vmatprep.subr.mxu0 0.0
  %865 = vmatpush1.msra.mxu0 %v793
  %866 = vmatprep.subr.mxu0 0.0
  %867 = vmatpush1.msra.mxu0 %v794
  %868 = vmatprep.subr.mxu0 0.0
  %869 = vmatpush1.msra.mxu0 %v795
  %870 = vmatprep.subr.mxu0 0.0
  %871 = vmatpush1.msra.mxu0 %v796
  %872 = vmatprep.subr.mxu0 0.0
  %873 = vmatpush1.msra.mxu0 %v797
  %874 = vmatprep.subr.mxu0 0.0
  %875 = vmatpush1.msra.mxu0 %v798
  %876 = vmatprep.subr.mxu0 0.0
  %877 = vmatpush1.msra.mxu0 %v799
  %878 = vmatprep.subr.mxu0 0.0
  %879 = vmatpush1.msra.mxu0 %v800
  %880 = vmatprep.subr.mxu0 0.0
  %881 = vmatpush1.msra.mxu0 %v801
  %882 = vmatprep.mubr.f32.mxu0 %v245
  %883 = vmatmul.mubr.f32.gmra.mrb[0].mxu0 %v35
  %v884 = vpop.f32.mrb[0].mxu0
  %v885 = vadd.f32 0.0, %v884
  %v886 = vpop.f32.mrb[0].mxu0
  %887 = vmatprep.mubr.f32.mxu0 %v247
  %888 = vmatmul.mubr.f32.gmra.mrb[0].mxu0 %v36
  %v889 = vpop.f32.mrb[0].mxu0
  %v890 = vadd.f32 0.0, %v889
  %v891 = vpop.f32.mrb[0].mxu0
  %892 = vmatprep.mubr.f32.mxu0 %v250
  %893 = vmatmul.mubr.f32.gmra.mrb[0].mxu0 %v38
  %v894 = vpop.f32.mrb[0].mxu0
  %v895 = vadd.f32 0.0, %v894
  %v896 = vpop.f32.mrb[0].mxu0
  %897 = vmatprep.mubr.f32.mxu0 %v252
  %898 = vmatmul.mubr.f32.gmra.mrb[0].mxu0 %v39
  %v899 = vpop.f32.mrb[0].mxu0
  %v900 = vadd.f32 0.0, %v899
  %v901 = vpop.f32.mrb[0].mxu0
  %902 = vmatprep.mubr.f32.mxu0 %v255
  %903 = vmatmul.mubr.f32.gmra.mrb[0].mxu0 %v41
  %v904 = vpop.f32.mrb[0].mxu0
  %v905 = vadd.f32 0.0, %v904
  %v906 = vpop.f32.mrb[0].mxu0
  %907 = vmatprep.mubr.f32.mxu0 %v257
  %908 = vmatmul.mubr.f32.gmra.mrb[0].mxu0 %v42
  %v909 = vpop.f32.mrb[0].mxu0
  %v910 = vadd.f32 0.0, %v909
  %v911 = vpop.f32.mrb[0].mxu0
  %912 = vmatprep.mubr.f32.mxu0 %v260
  %913 = vmatmul.mubr.f32.gmra.mrb[0].mxu0 %v44
  %v914 = vpop.f32.mrb[0].mxu0
  %v915 = vadd.f32 0.0, %v914
  %v916 = vpop.f32.mrb[0].mxu0
  %917 = vmatprep.mubr.f32.mxu0 %v262
  %918 = vmatmul.mubr.f32.gmra.mrb[0].mxu0 %v45
  %v919 = vpop.f32.mrb[0].mxu0
  %v920 = vadd.f32 0.0, %v919
  %v921 = vpop.f32.mrb[0].mxu0
  %922 = vmatprep.mubr.f32.mxu0 %v265
  %923 = vmatmul.mubr.f32.gmra.mrb[0].mxu0 %v47
  %v924 = vpop.f32.mrb[0].mxu0
  %v925 = vadd.f32 0.0, %v924
  %v926 = vpop.f32.mrb[0].mxu0
  %927 = vmatprep.mubr.f32.mxu0 %v267
  %928 = vmatmul.mubr.f32.gmra.mrb[0].mxu0 %v48
  %v929 = vpop.f32.mrb[0].mxu0
  %v930 = vadd.f32 0.0, %v929
  %v931 = vpop.f32.mrb[0].mxu0
  %932 = vmatprep.mubr.f32.mxu0 %v270
  %933 = vmatmul.mubr.f32.gmra.mrb[0].mxu0 %v50
  %v934 = vpop.f32.mrb[0].mxu0
  %v935 = vadd.f32 0.0, %v934
  %v936 = vpop.f32.mrb[0].mxu0
  %937 = vmatprep.mubr.f32.mxu0 %v272
  %938 = vmatmul.mubr.f32.gmra.mrb[0].mxu0 %v51
  %v939 = vpop.f32.mrb[0].mxu0
  %v940 = vadd.f32 0.0, %v939
  %v941 = vpop.f32.mrb[0].mxu0
  %942 = vmatprep.mubr.f32.mxu0 %v275
  %943 = vmatmul.mubr.f32.gmra.mrb[0].mxu0 %v53
  %v944 = vpop.f32.mrb[0].mxu0
  %v945 = vadd.f32 0.0, %v944
  %v946 = vpop.f32.mrb[0].mxu0
  %947 = vmatprep.mubr.f32.mxu0 %v277
  %948 = vmatmul.mubr.f32.gmra.mrb[0].mxu0 %v54
  %v949 = vpop.f32.mrb[0].mxu0
  %v950 = vadd.f32 0.0, %v949
  %v951 = vpop.f32.mrb[0].mxu0
  %952 = vmatprep.mubr.f32.mxu0 %v280
  %953 = vmatmul.mubr.f32.gmra.mrb[0].mxu0 %v56
  %v954 = vpop.f32.mrb[0].mxu0
  %v955 = vadd.f32 0.0, %v954
  %v956 = vpop.f32.mrb[0].mxu0
  %957 = vmatprep.mubr.f32.mxu0 %v282
  %958 = vmatmul.mubr.f32.gmra.mrb[0].mxu0 %v57
  %v959 = vpop.f32.mrb[0].mxu0
  %v960 = vadd.f32 0.0, %v959
  %v961 = vpop.f32.mrb[0].mxu0
  %962 = vmatprep.mubr.f32.mxu0 %v285
  %963 = vmatmul.mubr.f32.gmra.mrb[0].mxu0 %v59
  %v964 = vpop.f32.mrb[0].mxu0
  %v965 = vadd.f32 0.0, %v964
  %v966 = vpop.f32.mrb[0].mxu0
  %967 = vmatprep.mubr.f32.mxu0 %v287
  %968 = vmatmul.mubr.f32.gmra.mrb[0].mxu0 %v60
  %v969 = vpop.f32.mrb[0].mxu0
  %v970 = vadd.f32 0.0, %v969
  %v971 = vpop.f32.mrb[0].mxu0
  %972 = vmatprep.mubr.f32.mxu0 %v290
  %973 = vmatmul.mubr.f32.gmra.mrb[0].mxu0 %v62
  %v974 = vpop.f32.mrb[0].mxu0
  %v975 = vadd.f32 0.0, %v974
  %v976 = vpop.f32.mrb[0].mxu0
  %977 = vmatprep.mubr.f32.mxu0 %v292
  %978 = vmatmul.mubr.f32.gmra.mrb[0].mxu0 %v63
  %v979 = vpop.f32.mrb[0].mxu0
  %v980 = vadd.f32 0.0, %v979
  %v981 = vpop.f32.mrb[0].mxu0
  %982 = vmatprep.mubr.f32.mxu0 %v295
  %983 = vmatmul.mubr.f32.gmra.mrb[0].mxu0 %v65
  %v984 = vpop.f32.mrb[0].mxu0
  %v985 = vadd.f32 0.0, %v984
  %v986 = vpop.f32.mrb[0].mxu0
  %987 = vmatprep.mubr.f32.mxu0 %v297
  %988 = vmatmul.mubr.f32.gmra.mrb[0].mxu0 %v66
  %v989 = vpop.f32.mrb[0].mxu0
  %v990 = vadd.f32 0.0, %v989
  %v991 = vpop.f32.mrb[0].mxu0
  %992 = vmatprep.mubr.f32.mxu0 %v300
  %993 = vmatmul.mubr.f32.gmra.mrb[0].mxu0 %v68
  %v994 = vpop.f32.mrb[0].mxu0
  %v995 = vadd.f32 0.0, %v994
  %v996 = vpop.f32.mrb[0].mxu0
  %997 = vmatprep.mubr.f32.mxu0 %v302
  %998 = vmatmul.mubr.f32.gmra.mrb[0].mxu0 %v69
  %v999 = vpop.f32.mrb[0].mxu0
  %v1000 = vadd.f32 0.0, %v999
  %v1001 = vpop.f32.mrb[0].mxu0
  %1002 = vmatprep.mubr.f32.mxu0 %v305
  %1003 = vmatmul.mubr.f32.gmra.mrb[0].mxu0 %v71
  %v1004 = vpop.f32.mrb[0].mxu0
  %v1005 = vadd.f32 0.0, %v1004
  %v1006 = vpop.f32.mrb[0].mxu0
  %1007 = vmatprep.mubr.f32.mxu0 %v307
  %1008 = vmatmul.mubr.f32.gmra.mrb[0].mxu0 %v72
  %v1009 = vpop.f32.mrb[0].mxu0
  %v1010 = vadd.f32 0.0, %v1009
  %v1011 = vpop.f32.mrb[0].mxu0
  %1012 = vmatprep.mubr.f32.mxu0 %v310
  %1013 = vmatmul.mubr.f32.gmra.mrb[0].mxu0 %v74
  %v1014 = vpop.f32.mrb[0].mxu0
  %v1015 = vadd.f32 0.0, %v1014
  %v1016 = vpop.f32.mrb[0].mxu0
  %1017 = vmatprep.mubr.f32.mxu0 %v312
  %1018 = vmatmul.mubr.f32.gmra.mrb[0].mxu0 %v75
  %v1019 = vpop.f32.mrb[0].mxu0
  %v1020 = vadd.f32 0.0, %v1019
  %v1021 = vpop.f32.mrb[0].mxu0
  %1022 = vmatprep.mubr.f32.mxu0 %v315
  %1023 = vmatmul.mubr.f32.gmra.mrb[0].mxu0 %v77
  %v1024 = vpop.f32.mrb[0].mxu0
  %v1025 = vadd.f32 0.0, %v1024
  %v1026 = vpop.f32.mrb[0].mxu0
  %1027 = vmatprep.mubr.f32.mxu0 %v317
  %1028 = vmatmul.mubr.f32.gmra.mrb[0].mxu0 %v78
  %v1029 = vpop.f32.mrb[0].mxu0
  %v1030 = vadd.f32 0.0, %v1029
  %v1031 = vpop.f32.mrb[0].mxu0
  %1032 = vmatprep.mubr.f32.mxu0 %v743
  %1033 = vmatmul.mubr.f32.gmra.mrb[0].mxu0 %v80
  %v1034 = vpop.f32.mrb[0].mxu0
  %v1035 = vadd.f32 0.0, %v1034
  %v1036 = vpop.f32.mrb[0].mxu0
  %1037 = vmatprep.mubr.f32.mxu0 %v745
  %1038 = vmatmul.mubr.f32.gmra.mrb[0].mxu0 %v81
  %v1039 = vpop.f32.mrb[0].mxu0
  %v1040 = vadd.f32 0.0, %v1039
  %v1041 = vpop.f32.mrb[0].mxu0
  %1042 = vmatprep.mubr.f32.mxu0 %v325
  %1043 = vmatmul.mubr.f32.gmra.mrb[0].mxu0 %v89
  %v1044 = vpop.f32.mrb[0].mxu0
  %v1045 = vadd.f32 0.0, %v1044
  %v1046 = vpop.f32.mrb[0].mxu0
  %1047 = vmatprep.mubr.f32.mxu0 %v327
  %1048 = vmatmul.mubr.f32.gmra.mrb[0].mxu0 %v90
  %v1049 = vpop.f32.mrb[0].mxu0
  %v1050 = vadd.f32 0.0, %v1049
  %v1051 = vpop.f32.mrb[0].mxu0
  %1052 = vmatprep.mubr.f32.mxu0 %v330
  %1053 = vmatmul.mubr.f32.gmra.mrb[0].mxu0 %v92
  %v1054 = vpop.f32.mrb[0].mxu0
  %v1055 = vadd.f32 0.0, %v1054
  %v1056 = vpop.f32.mrb[0].mxu0
  %1057 = vmatprep.mubr.f32.mxu0 %v332
  %1058 = vmatmul.mubr.f32.gmra.mrb[0].mxu0 %v93
  %v1059 = vpop.f32.mrb[0].mxu0
  %v1060 = vadd.f32 0.0, %v1059
  %v1061 = vpop.f32.mrb[0].mxu0
  %1062 = vmatprep.mubr.f32.mxu0 %v335
  %1063 = vmatmul.mubr.f32.gmra.mrb[0].mxu0 %v95
  %v1064 = vpop.f32.mrb[0].mxu0
  %v1065 = vadd.f32 0.0, %v1064
  %v1066 = vpop.f32.mrb[0].mxu0
  %1067 = vmatprep.mubr.f32.mxu0 %v337
  %1068 = vmatmul.mubr.f32.gmra.mrb[0].mxu0 %v96
  %v1069 = vpop.f32.mrb[0].mxu0
  %v1070 = vadd.f32 0.0, %v1069
  %v1071 = vpop.f32.mrb[0].mxu0
  %1072 = vmatprep.mubr.f32.mxu0 %v340
  %1073 = vmatmul.mubr.f32.gmra.mrb[0].mxu0 %v98
  %v1074 = vpop.f32.mrb[0].mxu0
  %v1075 = vadd.f32 0.0, %v1074
  %v1076 = vpop.f32.mrb[0].mxu0
  %1077 = vmatprep.mubr.f32.mxu0 %v342
  %1078 = vmatmul.mubr.f32.gmra.mrb[0].mxu0 %v99
  %v1079 = vpop.f32.mrb[0].mxu0
  %v1080 = vadd.f32 0.0, %v1079
  %v1081 = vpop.f32.mrb[0].mxu0
  %1082 = vmatprep.mubr.f32.mxu0 %v345
  %1083 = vmatmul.mubr.f32.gmra.mrb[0].mxu0 %v101
  %v1084 = vpop.f32.mrb[0].mxu0
  %v1085 = vadd.f32 0.0, %v1084
  %v1086 = vpop.f32.mrb[0].mxu0
  %1087 = vmatprep.mubr.f32.mxu0 %v347
  %1088 = vmatmul.mubr.f32.gmra.mrb[0].mxu0 %v102
  %v1089 = vpop.f32.mrb[0].mxu0
  %v1090 = vadd.f32 0.0, %v1089
  %v1091 = vpop.f32.mrb[0].mxu0
  %1092 = vmatprep.mubr.f32.mxu0 %v350
  %1093 = vmatmul.mubr.f32.gmra.mrb[0].mxu0 %v104
  %v1094 = vpop.f32.mrb[0].mxu0
  %v1095 = vadd.f32 0.0, %v1094
  %v1096 = vpop.f32.mrb[0].mxu0
  %1097 = vmatprep.mubr.f32.mxu0 %v352
  %1098 = vmatmul.mubr.f32.gmra.mrb[0].mxu0 %v105
  %v1099 = vpop.f32.mrb[0].mxu0
  %v1100 = vadd.f32 0.0, %v1099
  %v1101 = vpop.f32.mrb[0].mxu0
  %1102 = vmatprep.mubr.f32.mxu0 %v355
  %1103 = vmatmul.mubr.f32.gmra.mrb[0].mxu0 %v107
  %v1104 = vpop.f32.mrb[0].mxu0
  %v1105 = vadd.f32 0.0, %v1104
  %v1106 = vpop.f32.mrb[0].mxu0
  %1107 = vmatprep.mubr.f32.mxu0 %v357
  %1108 = vmatmul.mubr.f32.gmra.mrb[0].mxu0 %v108
  %v1109 = vpop.f32.mrb[0].mxu0
  %v1110 = vadd.f32 0.0, %v1109
  %v1111 = vpop.f32.mrb[0].mxu0
  %1112 = vmatprep.mubr.f32.mxu0 %v360
  %1113 = vmatmul.mubr.f32.gmra.mrb[0].mxu0 %v110
  %v1114 = vpop.f32.mrb[0].mxu0
  %v1115 = vadd.f32 0.0, %v1114
  %v1116 = vpop.f32.mrb[0].mxu0
  %1117 = vmatprep.mubr.f32.mxu0 %v362
  %1118 = vmatmul.mubr.f32.gmra.mrb[0].mxu0 %v111
  %v1119 = vpop.f32.mrb[0].mxu0
  %v1120 = vadd.f32 0.0, %v1119
  %v1121 = vpop.f32.mrb[0].mxu0
  %1122 = vmatprep.mubr.f32.mxu0 %v365
  %1123 = vmatmul.mubr.f32.gmra.mrb[0].mxu0 %v113
  %v1124 = vpop.f32.mrb[0].mxu0
  %v1125 = vadd.f32 0.0, %v1124
  %v1126 = vpop.f32.mrb[0].mxu0
  %1127 = vmatprep.mubr.f32.mxu0 %v367
  %1128 = vmatmul.mubr.f32.gmra.mrb[0].mxu0 %v114
  %v1129 = vpop.f32.mrb[0].mxu0
  %v1130 = vadd.f32 0.0, %v1129
  %v1131 = vpop.f32.mrb[0].mxu0
  %1132 = vmatprep.mubr.f32.mxu0 %v370
  %1133 = vmatmul.mubr.f32.gmra.mrb[0].mxu0 %v116
  %v1134 = vpop.f32.mrb[0].mxu0
  %v1135 = vadd.f32 0.0, %v1134
  %v1136 = vpop.f32.mrb[0].mxu0
  %1137 = vmatprep.mubr.f32.mxu0 %v372
  %1138 = vmatmul.mubr.f32.gmra.mrb[0].mxu0 %v117
  %v1139 = vpop.f32.mrb[0].mxu0
  %v1140 = vadd.f32 0.0, %v1139
  %v1141 = vpop.f32.mrb[0].mxu0
  %1142 = vmatprep.mubr.f32.mxu0 %v375
  %1143 = vmatmul.mubr.f32.gmra.mrb[0].mxu0 %v119
  %v1144 = vpop.f32.mrb[0].mxu0
  %v1145 = vadd.f32 0.0, %v1144
  %v1146 = vpop.f32.mrb[0].mxu0
  %1147 = vmatprep.mubr.f32.mxu0 %v377
  %1148 = vmatmul.mubr.f32.gmra.mrb[0].mxu0 %v120
  %v1149 = vpop.f32.mrb[0].mxu0
  %v1150 = vadd.f32 0.0, %v1149
  %v1151 = vpop.f32.mrb[0].mxu0
  %1152 = vmatprep.mubr.f32.mxu0 %v380
  %1153 = vmatmul.mubr.f32.gmra.mrb[0].mxu0 %v122
  %v1154 = vpop.f32.mrb[0].mxu0
  %v1155 = vadd.f32 0.0, %v1154
  %v1156 = vpop.f32.mrb[0].mxu0
  %1157 = vmatprep.mubr.f32.mxu0 %v382
  %1158 = vmatmul.mubr.f32.gmra.mrb[0].mxu0 %v123
  %v1159 = vpop.f32.mrb[0].mxu0
  %v1160 = vadd.f32 0.0, %v1159
  %v1161 = vpop.f32.mrb[0].mxu0
  %1162 = vmatprep.mubr.f32.mxu0 %v385
  %1163 = vmatmul.mubr.f32.gmra.mrb[0].mxu0 %v125
  %v1164 = vpop.f32.mrb[0].mxu0
  %v1165 = vadd.f32 0.0, %v1164
  %v1166 = vpop.f32.mrb[0].mxu0
  %1167 = vmatprep.mubr.f32.mxu0 %v387
  %1168 = vmatmul.mubr.f32.gmra.mrb[0].mxu0 %v126
  %v1169 = vpop.f32.mrb[0].mxu0
  %v1170 = vadd.f32 0.0, %v1169
  %v1171 = vpop.f32.mrb[0].mxu0
  %1172 = vmatprep.mubr.f32.mxu0 %v390
  %1173 = vmatmul.mubr.f32.gmra.mrb[0].mxu0 %v128
  %v1174 = vpop.f32.mrb[0].mxu0
  %v1175 = vadd.f32 0.0, %v1174
  %v1176 = vpop.f32.mrb[0].mxu0
  %1177 = vmatprep.mubr.f32.mxu0 %v392
  %1178 = vmatmul.mubr.f32.gmra.mrb[0].mxu0 %v129
  %v1179 = vpop.f32.mrb[0].mxu0
  %v1180 = vadd.f32 0.0, %v1179
  %v1181 = vpop.f32.mrb[0].mxu0
  %1182 = vmatprep.mubr.f32.mxu0 %v395
  %1183 = vmatmul.mubr.f32.gmra.mrb[0].mxu0 %v131
  %v1184 = vpop.f32.mrb[0].mxu0
  %v1185 = vadd.f32 0.0, %v1184
  %v1186 = vpop.f32.mrb[0].mxu0
  %1187 = vmatprep.mubr.f32.mxu0 %v397
  %1188 = vmatmul.mubr.f32.gmra.mrb[0].mxu0 %v132
  %v1189 = vpop.f32.mrb[0].mxu0
  %v1190 = vadd.f32 0.0, %v1189
  %v1191 = vpop.f32.mrb[0].mxu0
  %1192 = vmatprep.mubr.f32.mxu0 %v748
  %1193 = vmatmul.mubr.f32.gmra.mrb[0].mxu0 %v134
  %v1194 = vpop.f32.mrb[0].mxu0
  %v1195 = vadd.f32 0.0, %v1194
  %v1196 = vpop.f32.mrb[0].mxu0
  %1197 = vmatprep.mubr.f32.mxu0 %v750
  %1198 = vmatmul.mubr.f32.gmra.mrb[0].mxu0 %v135
  %v1199 = vpop.f32.mrb[0].mxu0
  %v1200 = vadd.f32 0.0, %v1199
  %v1201 = vpop.f32.mrb[0].mxu0
  %1202 = vdwg.mxu0
  %1203 = vmatprep.subr.mxu0 0.0
  %1204 = vmatpush1.msra.mxu0 %v802
  %1205 = vmatprep.subr.mxu0 0.0
  %1206 = vmatpush1.msra.mxu0 %v803
  %1207 = vmatprep.subr.mxu0 0.0
  %1208 = vmatpush1.msra.mxu0 %v804
  %1209 = vmatprep.subr.mxu0 0.0
  %1210 = vmatpush1.msra.mxu0 %v805
  %1211 = vmatprep.subr.mxu0 0.0
  %1212 = vmatpush1.msra.mxu0 %v806
  %1213 = vmatprep.subr.mxu0 0.0
  %1214 = vmatpush1.msra.mxu0 %v807
  %1215 = vmatprep.subr.mxu0 0.0
  %1216 = vmatpush1.msra.mxu0 %v808
  %1217 = vmatprep.subr.mxu0 0.0
  %1218 = vmatpush1.msra.mxu0 %v809
  %1219 = vmatprep.subr.mxu0 0.0
  %1220 = vmatpush1.msra.mxu0 %v810
  %1221 = vmatprep.subr.mxu0 0.0
  %1222 = vmatpush1.msra.mxu0 %v811
  %1223 = vmatprep.subr.mxu0 0.0
  %1224 = vmatpush1.msra.mxu0 %v812
  %1225 = vmatprep.subr.mxu0 0.0
  %1226 = vmatpush1.msra.mxu0 %v813
  %1227 = vmatprep.subr.mxu0 0.0
  %1228 = vmatpush1.msra.mxu0 %v814
  %1229 = vmatprep.subr.mxu0 0.0
  %1230 = vmatpush1.msra.mxu0 %v815
  %1231 = vmatprep.subr.mxu0 0.0
  %1232 = vmatpush1.msra.mxu0 %v816
  %1233 = vmatprep.subr.mxu0 0.0
  %1234 = vmatpush1.msra.mxu0 %v817
  %1235 = vmatprep.subr.mxu0 0.0
  %1236 = vmatpush1.msra.mxu0 0.0
  %1237 = vmatprep.subr.mxu0 0.0
  %1238 = vmatpush1.msra.mxu0 0.0
  %1239 = vmatprep.subr.mxu0 0.0
  %1240 = vmatpush1.msra.mxu0 0.0
  %1241 = vmatprep.subr.mxu0 0.0
  %1242 = vmatpush1.msra.mxu0 0.0
  %1243 = vmatprep.subr.mxu0 0.0
  %1244 = vmatpush1.msra.mxu0 0.0
  %1245 = vmatprep.subr.mxu0 0.0
  %1246 = vmatpush1.msra.mxu0 0.0
  %1247 = vmatprep.subr.mxu0 0.0
  %1248 = vmatpush1.msra.mxu0 0.0
  %1249 = vmatprep.subr.mxu0 0.0
  %1250 = vmatpush1.msra.mxu0 0.0
  %1251 = vmatprep.subr.mxu0 0.0
  %1252 = vmatpush1.msra.mxu0 0.0
  %1253 = vmatprep.subr.mxu0 0.0
  %1254 = vmatpush1.msra.mxu0 0.0
  %1255 = vmatprep.subr.mxu0 0.0
  %1256 = vmatpush1.msra.mxu0 0.0
  %1257 = vmatprep.subr.mxu0 0.0
  %1258 = vmatpush1.msra.mxu0 0.0
  %1259 = vmatprep.subr.mxu0 0.0
  %1260 = vmatpush1.msra.mxu0 0.0
  %1261 = vmatprep.subr.mxu0 0.0
  %1262 = vmatpush1.msra.mxu0 0.0
  %1263 = vmatprep.subr.mxu0 0.0
  %1264 = vmatpush1.msra.mxu0 0.0
  %1265 = vmatprep.subr.mxu0 0.0
  %1266 = vmatpush1.msra.mxu0 0.0
  %1267 = vmatprep.mubr.f32.mxu0 0.0
  %1268 = vmatmul.mubr.f32.gmra.mrb[0].mxu0 %v470
  %v1269 = vpop.f32.mrb[0].mxu0
  %v1270 = vadd.f32 %v885, %v1269
  %v1271 = vpop.f32.mrb[0].mxu0
  %1272 = vmatprep.mubr.f32.mxu0 0.0
  %1273 = vmatmul.mubr.f32.gmra.mrb[0].mxu0 %v472
  %v1274 = vpop.f32.mrb[0].mxu0
  %v1275 = vadd.f32 %v890, %v1274
  %v1276 = vpop.f32.mrb[0].mxu0
  %1277 = vmatprep.mubr.f32.mxu0 0.0
  %1278 = vmatmul.mubr.f32.gmra.mrb[0].mxu0 %v475
  %v1279 = vpop.f32.mrb[0].mxu0
  %v1280 = vadd.f32 %v895, %v1279
  %v1281 = vpop.f32.mrb[0].mxu0
  %1282 = vmatprep.mubr.f32.mxu0 0.0
  %1283 = vmatmul.mubr.f32.gmra.mrb[0].mxu0 %v477
  %v1284 = vpop.f32.mrb[0].mxu0
  %v1285 = vadd.f32 %v900, %v1284
  %v1286 = vpop.f32.mrb[0].mxu0
  %1287 = vmatprep.mubr.f32.mxu0 0.0
  %1288 = vmatmul.mubr.f32.gmra.mrb[0].mxu0 %v480
  %v1289 = vpop.f32.mrb[0].mxu0
  %v1290 = vadd.f32 %v905, %v1289
  %v1291 = vpop.f32.mrb[0].mxu0
  %1292 = vmatprep.mubr.f32.mxu0 0.0
  %1293 = vmatmul.mubr.f32.gmra.mrb[0].mxu0 %v482
  %v1294 = vpop.f32.mrb[0].mxu0
  %v1295 = vadd.f32 %v910, %v1294
  %v1296 = vpop.f32.mrb[0].mxu0
  %1297 = vmatprep.mubr.f32.mxu0 0.0
  %1298 = vmatmul.mubr.f32.gmra.mrb[0].mxu0 %v485
  %v1299 = vpop.f32.mrb[0].mxu0
  %v1300 = vadd.f32 %v915, %v1299
  %v1301 = vpop.f32.mrb[0].mxu0
  %1302 = vmatprep.mubr.f32.mxu0 0.0
  %1303 = vmatmul.mubr.f32.gmra.mrb[0].mxu0 %v487
  %v1304 = vpop.f32.mrb[0].mxu0
  %v1305 = vadd.f32 %v920, %v1304
  %v1306 = vpop.f32.mrb[0].mxu0
  %1307 = vmatprep.mubr.f32.mxu0 0.0
  %1308 = vmatmul.mubr.f32.gmra.mrb[0].mxu0 %v490
  %v1309 = vpop.f32.mrb[0].mxu0
  %v1310 = vadd.f32 %v925, %v1309
  %v1311 = vpop.f32.mrb[0].mxu0
  %1312 = vmatprep.mubr.f32.mxu0 0.0
  %1313 = vmatmul.mubr.f32.gmra.mrb[0].mxu0 %v492
  %v1314 = vpop.f32.mrb[0].mxu0
  %v1315 = vadd.f32 %v930, %v1314
  %v1316 = vpop.f32.mrb[0].mxu0
  %1317 = vmatprep.mubr.f32.mxu0 0.0
  %1318 = vmatmul.mubr.f32.gmra.mrb[0].mxu0 %v495
  %v1319 = vpop.f32.mrb[0].mxu0
  %v1320 = vadd.f32 %v935, %v1319
  %v1321 = vpop.f32.mrb[0].mxu0
  %1322 = vmatprep.mubr.f32.mxu0 0.0
  %1323 = vmatmul.mubr.f32.gmra.mrb[0].mxu0 %v497
  %v1324 = vpop.f32.mrb[0].mxu0
  %v1325 = vadd.f32 %v940, %v1324
  %v1326 = vpop.f32.mrb[0].mxu0
  %1327 = vmatprep.mubr.f32.mxu0 0.0
  %1328 = vmatmul.mubr.f32.gmra.mrb[0].mxu0 %v500
  %v1329 = vpop.f32.mrb[0].mxu0
  %v1330 = vadd.f32 %v945, %v1329
  %v1331 = vpop.f32.mrb[0].mxu0
  %1332 = vmatprep.mubr.f32.mxu0 0.0
  %1333 = vmatmul.mubr.f32.gmra.mrb[0].mxu0 %v502
  %v1334 = vpop.f32.mrb[0].mxu0
  %v1335 = vadd.f32 %v950, %v1334
  %v1336 = vpop.f32.mrb[0].mxu0
  %1337 = vmatprep.mubr.f32.mxu0 0.0
  %1338 = vmatmul.mubr.f32.gmra.mrb[0].mxu0 %v505
  %v1339 = vpop.f32.mrb[0].mxu0
  %v1340 = vadd.f32 %v955, %v1339
  %v1341 = vpop.f32.mrb[0].mxu0
  %1342 = vmatprep.mubr.f32.mxu0 0.0
  %1343 = vmatmul.mubr.f32.gmra.mrb[0].mxu0 %v507
  %v1344 = vpop.f32.mrb[0].mxu0
  %v1345 = vadd.f32 %v960, %v1344
  %v1346 = vpop.f32.mrb[0].mxu0
  %1347 = vmatprep.mubr.f32.mxu0 0.0
  %1348 = vmatmul.mubr.f32.gmra.mrb[0].mxu0 %v510
  %v1349 = vpop.f32.mrb[0].mxu0
  %v1350 = vadd.f32 %v965, %v1349
  %v1351 = vpop.f32.mrb[0].mxu0
  %1352 = vmatprep.mubr.f32.mxu0 0.0
  %1353 = vmatmul.mubr.f32.gmra.mrb[0].mxu0 %v512
  %v1354 = vpop.f32.mrb[0].mxu0
  %v1355 = vadd.f32 %v970, %v1354
  %v1356 = vpop.f32.mrb[0].mxu0
  %1357 = vmatprep.mubr.f32.mxu0 0.0
  %1358 = vmatmul.mubr.f32.gmra.mrb[0].mxu0 %v515
  %v1359 = vpop.f32.mrb[0].mxu0
  %v1360 = vadd.f32 %v975, %v1359
  %v1361 = vpop.f32.mrb[0].mxu0
  %1362 = vmatprep.mubr.f32.mxu0 0.0
  %1363 = vmatmul.mubr.f32.gmra.mrb[0].mxu0 %v517
  %v1364 = vpop.f32.mrb[0].mxu0
  %v1365 = vadd.f32 %v980, %v1364
  %v1366 = vpop.f32.mrb[0].mxu0
  %1367 = vmatprep.mubr.f32.mxu0 0.0
  %1368 = vmatmul.mubr.f32.gmra.mrb[0].mxu0 %v520
  %v1369 = vpop.f32.mrb[0].mxu0
  %v1370 = vadd.f32 %v985, %v1369
  %v1371 = vpop.f32.mrb[0].mxu0
  %1372 = vmatprep.mubr.f32.mxu0 0.0
  %1373 = vmatmul.mubr.f32.gmra.mrb[0].mxu0 %v522
  %v1374 = vpop.f32.mrb[0].mxu0
  %v1375 = vadd.f32 %v990, %v1374
  %v1376 = vpop.f32.mrb[0].mxu0
  %1377 = vmatprep.mubr.f32.mxu0 0.0
  %1378 = vmatmul.mubr.f32.gmra.mrb[0].mxu0 %v525
  %v1379 = vpop.f32.mrb[0].mxu0
  %v1380 = vadd.f32 %v995, %v1379
  %v1381 = vpop.f32.mrb[0].mxu0
  %1382 = vmatprep.mubr.f32.mxu0 0.0
  %1383 = vmatmul.mubr.f32.gmra.mrb[0].mxu0 %v527
  %v1384 = vpop.f32.mrb[0].mxu0
  %v1385 = vadd.f32 %v1000, %v1384
  %v1386 = vpop.f32.mrb[0].mxu0
  %1387 = vmatprep.mubr.f32.mxu0 0.0
  %1388 = vmatmul.mubr.f32.gmra.mrb[0].mxu0 %v530
  %v1389 = vpop.f32.mrb[0].mxu0
  %v1390 = vadd.f32 %v1005, %v1389
  %v1391 = vpop.f32.mrb[0].mxu0
  %1392 = vmatprep.mubr.f32.mxu0 0.0
  %1393 = vmatmul.mubr.f32.gmra.mrb[0].mxu0 %v532
  %v1394 = vpop.f32.mrb[0].mxu0
  %v1395 = vadd.f32 %v1010, %v1394
  %v1396 = vpop.f32.mrb[0].mxu0
  %1397 = vmatprep.mubr.f32.mxu0 0.0
  %1398 = vmatmul.mubr.f32.gmra.mrb[0].mxu0 %v535
  %v1399 = vpop.f32.mrb[0].mxu0
  %v1400 = vadd.f32 %v1015, %v1399
  %v1401 = vpop.f32.mrb[0].mxu0
  %1402 = vmatprep.mubr.f32.mxu0 0.0
  %1403 = vmatmul.mubr.f32.gmra.mrb[0].mxu0 %v537
  %v1404 = vpop.f32.mrb[0].mxu0
  %v1405 = vadd.f32 %v1020, %v1404
  %v1406 = vpop.f32.mrb[0].mxu0
  %1407 = vmatprep.mubr.f32.mxu0 0.0
  %1408 = vmatmul.mubr.f32.gmra.mrb[0].mxu0 %v540
  %v1409 = vpop.f32.mrb[0].mxu0
  %v1410 = vadd.f32 %v1025, %v1409
  %v1411 = vpop.f32.mrb[0].mxu0
  %1412 = vmatprep.mubr.f32.mxu0 0.0
  %1413 = vmatmul.mubr.f32.gmra.mrb[0].mxu0 %v542
  %v1414 = vpop.f32.mrb[0].mxu0
  %v1415 = vadd.f32 %v1030, %v1414
  %v1416 = vpop.f32.mrb[0].mxu0
  %1417 = vmatprep.mubr.f32.mxu0 0.0
  %1418 = vmatmul.mubr.f32.gmra.mrb[0].mxu0 %v757
  %v1419 = vpop.f32.mrb[0].mxu0
  %v1420 = vadd.f32 %v1035, %v1419
  %v1421 = vpop.f32.mrb[0].mxu0
  %1422 = vmatprep.mubr.f32.mxu0 0.0
  %1423 = vmatmul.mubr.f32.gmra.mrb[0].mxu0 %v759
  %v1424 = vpop.f32.mrb[0].mxu0
  %v1425 = vadd.f32 %v1040, %v1424
  %v1426 = vpop.f32.mrb[0].mxu0
  %1427 = vmatprep.mubr.f32.mxu0 0.0
  %1428 = vmatmul.mubr.f32.gmra.mrb[0].mxu0 %v550
  %v1429 = vpop.f32.mrb[0].mxu0
  %v1430 = vadd.f32 %v1045, %v1429
  %v1431 = vpop.f32.mrb[0].mxu0
  %1432 = vmatprep.mubr.f32.mxu0 0.0
  %1433 = vmatmul.mubr.f32.gmra.mrb[0].mxu0 %v552
  %v1434 = vpop.f32.mrb[0].mxu0
  %v1435 = vadd.f32 %v1050, %v1434
  %v1436 = vpop.f32.mrb[0].mxu0
  %1437 = vmatprep.mubr.f32.mxu0 0.0
  %1438 = vmatmul.mubr.f32.gmra.mrb[0].mxu0 %v555
  %v1439 = vpop.f32.mrb[0].mxu0
  %v1440 = vadd.f32 %v1055, %v1439
  %v1441 = vpop.f32.mrb[0].mxu0
  %1442 = vmatprep.mubr.f32.mxu0 0.0
  %1443 = vmatmul.mubr.f32.gmra.mrb[0].mxu0 %v557
  %v1444 = vpop.f32.mrb[0].mxu0
  %v1445 = vadd.f32 %v1060, %v1444
  %v1446 = vpop.f32.mrb[0].mxu0
  %1447 = vmatprep.mubr.f32.mxu0 0.0
  %1448 = vmatmul.mubr.f32.gmra.mrb[0].mxu0 %v560
  %v1449 = vpop.f32.mrb[0].mxu0
  %v1450 = vadd.f32 %v1065, %v1449
  %v1451 = vpop.f32.mrb[0].mxu0
  %1452 = vmatprep.mubr.f32.mxu0 0.0
  %1453 = vmatmul.mubr.f32.gmra.mrb[0].mxu0 %v562
  %v1454 = vpop.f32.mrb[0].mxu0
  %v1455 = vadd.f32 %v1070, %v1454
  %v1456 = vpop.f32.mrb[0].mxu0
  %1457 = vmatprep.mubr.f32.mxu0 0.0
  %1458 = vmatmul.mubr.f32.gmra.mrb[0].mxu0 %v565
  %v1459 = vpop.f32.mrb[0].mxu0
  %v1460 = vadd.f32 %v1075, %v1459
  %v1461 = vpop.f32.mrb[0].mxu0
  %1462 = vmatprep.mubr.f32.mxu0 0.0
  %1463 = vmatmul.mubr.f32.gmra.mrb[0].mxu0 %v567
  %v1464 = vpop.f32.mrb[0].mxu0
  %v1465 = vadd.f32 %v1080, %v1464
  %v1466 = vpop.f32.mrb[0].mxu0
  %1467 = vmatprep.mubr.f32.mxu0 0.0
  %1468 = vmatmul.mubr.f32.gmra.mrb[0].mxu0 %v570
  %v1469 = vpop.f32.mrb[0].mxu0
  %v1470 = vadd.f32 %v1085, %v1469
  %v1471 = vpop.f32.mrb[0].mxu0
  %1472 = vmatprep.mubr.f32.mxu0 0.0
  %1473 = vmatmul.mubr.f32.gmra.mrb[0].mxu0 %v572
  %v1474 = vpop.f32.mrb[0].mxu0
  %v1475 = vadd.f32 %v1090, %v1474
  %v1476 = vpop.f32.mrb[0].mxu0
  %1477 = vmatprep.mubr.f32.mxu0 0.0
  %1478 = vmatmul.mubr.f32.gmra.mrb[0].mxu0 %v575
  %v1479 = vpop.f32.mrb[0].mxu0
  %v1480 = vadd.f32 %v1095, %v1479
  %v1481 = vpop.f32.mrb[0].mxu0
  %1482 = vmatprep.mubr.f32.mxu0 0.0
  %1483 = vmatmul.mubr.f32.gmra.mrb[0].mxu0 %v577
  %v1484 = vpop.f32.mrb[0].mxu0
  %v1485 = vadd.f32 %v1100, %v1484
  %v1486 = vpop.f32.mrb[0].mxu0
  %1487 = vmatprep.mubr.f32.mxu0 0.0
  %1488 = vmatmul.mubr.f32.gmra.mrb[0].mxu0 %v580
  %v1489 = vpop.f32.mrb[0].mxu0
  %v1490 = vadd.f32 %v1105, %v1489
  %v1491 = vpop.f32.mrb[0].mxu0
  %1492 = vmatprep.mubr.f32.mxu0 0.0
  %1493 = vmatmul.mubr.f32.gmra.mrb[0].mxu0 %v582
  %v1494 = vpop.f32.mrb[0].mxu0
  %v1495 = vadd.f32 %v1110, %v1494
  %v1496 = vpop.f32.mrb[0].mxu0
  %1497 = vmatprep.mubr.f32.mxu0 0.0
  %1498 = vmatmul.mubr.f32.gmra.mrb[0].mxu0 %v585
  %v1499 = vpop.f32.mrb[0].mxu0
  %v1500 = vadd.f32 %v1115, %v1499
  %v1501 = vpop.f32.mrb[0].mxu0
  %1502 = vmatprep.mubr.f32.mxu0 0.0
  %1503 = vmatmul.mubr.f32.gmra.mrb[0].mxu0 %v587
  %v1504 = vpop.f32.mrb[0].mxu0
  %v1505 = vadd.f32 %v1120, %v1504
  %v1506 = vpop.f32.mrb[0].mxu0
  %1507 = vmatprep.mubr.f32.mxu0 0.0
  %1508 = vmatmul.mubr.f32.gmra.mrb[0].mxu0 %v590
  %v1509 = vpop.f32.mrb[0].mxu0
  %v1510 = vadd.f32 %v1125, %v1509
  %v1511 = vpop.f32.mrb[0].mxu0
  %1512 = vmatprep.mubr.f32.mxu0 0.0
  %1513 = vmatmul.mubr.f32.gmra.mrb[0].mxu0 %v592
  %v1514 = vpop.f32.mrb[0].mxu0
  %v1515 = vadd.f32 %v1130, %v1514
  %v1516 = vpop.f32.mrb[0].mxu0
  %1517 = vmatprep.mubr.f32.mxu0 0.0
  %1518 = vmatmul.mubr.f32.gmra.mrb[0].mxu0 %v595
  %v1519 = vpop.f32.mrb[0].mxu0
  %v1520 = vadd.f32 %v1135, %v1519
  %v1521 = vpop.f32.mrb[0].mxu0
  %1522 = vmatprep.mubr.f32.mxu0 0.0
  %1523 = vmatmul.mubr.f32.gmra.mrb[0].mxu0 %v597
  %v1524 = vpop.f32.mrb[0].mxu0
  %v1525 = vadd.f32 %v1140, %v1524
  %v1526 = vpop.f32.mrb[0].mxu0
  %1527 = vmatprep.mubr.f32.mxu0 0.0
  %1528 = vmatmul.mubr.f32.gmra.mrb[0].mxu0 %v600
  %v1529 = vpop.f32.mrb[0].mxu0
  %v1530 = vadd.f32 %v1145, %v1529
  %v1531 = vpop.f32.mrb[0].mxu0
  %1532 = vmatprep.mubr.f32.mxu0 0.0
  %1533 = vmatmul.mubr.f32.gmra.mrb[0].mxu0 %v602
  %v1534 = vpop.f32.mrb[0].mxu0
  %v1535 = vadd.f32 %v1150, %v1534
  %v1536 = vpop.f32.mrb[0].mxu0
  %1537 = vmatprep.mubr.f32.mxu0 0.0
  %1538 = vmatmul.mubr.f32.gmra.mrb[0].mxu0 %v605
  %v1539 = vpop.f32.mrb[0].mxu0
  %v1540 = vadd.f32 %v1155, %v1539
  %v1541 = vpop.f32.mrb[0].mxu0
  %1542 = vmatprep.mubr.f32.mxu0 0.0
  %1543 = vmatmul.mubr.f32.gmra.mrb[0].mxu0 %v607
  %v1544 = vpop.f32.mrb[0].mxu0
  %v1545 = vadd.f32 %v1160, %v1544
  %v1546 = vpop.f32.mrb[0].mxu0
  %1547 = vmatprep.mubr.f32.mxu0 0.0
  %1548 = vmatmul.mubr.f32.gmra.mrb[0].mxu0 %v610
  %v1549 = vpop.f32.mrb[0].mxu0
  %v1550 = vadd.f32 %v1165, %v1549
  %v1551 = vpop.f32.mrb[0].mxu0
  %1552 = vmatprep.mubr.f32.mxu0 0.0
  %1553 = vmatmul.mubr.f32.gmra.mrb[0].mxu0 %v612
  %v1554 = vpop.f32.mrb[0].mxu0
  %v1555 = vadd.f32 %v1170, %v1554
  %v1556 = vpop.f32.mrb[0].mxu0
  %1557 = vmatprep.mubr.f32.mxu0 0.0
  %1558 = vmatmul.mubr.f32.gmra.mrb[0].mxu0 %v615
  %v1559 = vpop.f32.mrb[0].mxu0
  %v1560 = vadd.f32 %v1175, %v1559
  %v1561 = vpop.f32.mrb[0].mxu0
  %1562 = vmatprep.mubr.f32.mxu0 0.0
  %1563 = vmatmul.mubr.f32.gmra.mrb[0].mxu0 %v617
  %v1564 = vpop.f32.mrb[0].mxu0
  %v1565 = vadd.f32 %v1180, %v1564
  %v1566 = vpop.f32.mrb[0].mxu0
  %1567 = vmatprep.mubr.f32.mxu0 0.0
  %1568 = vmatmul.mubr.f32.gmra.mrb[0].mxu0 %v620
  %v1569 = vpop.f32.mrb[0].mxu0
  %v1570 = vadd.f32 %v1185, %v1569
  %v1571 = vpop.f32.mrb[0].mxu0
  %1572 = vmatprep.mubr.f32.mxu0 0.0
  %1573 = vmatmul.mubr.f32.gmra.mrb[0].mxu0 %v622
  %v1574 = vpop.f32.mrb[0].mxu0
  %v1575 = vadd.f32 %v1190, %v1574
  %v1576 = vpop.f32.mrb[0].mxu0
  %1577 = vmatprep.mubr.f32.mxu0 0.0
  %1578 = vmatmul.mubr.f32.gmra.mrb[0].mxu0 %v762
  %v1579 = vpop.f32.mrb[0].mxu0
  %v1580 = vadd.f32 %v1195, %v1579
  %v1581 = vpop.f32.mrb[0].mxu0
  %1582 = vmatprep.mubr.f32.mxu0 0.0
  %1583 = vmatmul.mubr.f32.gmra.mrb[0].mxu0 %v764
  %v1584 = vpop.f32.mrb[0].mxu0
  %v1585 = vadd.f32 %v1200, %v1584
  %v1586 = vpop.f32.mrb[0].mxu0
  %1587 = vdwg.mxu0
  %1588 = vmatprep.subr.mxu0 0.0
  %1589 = vmatpush1.msra.mxu0 %v687
  %1590 = vmatprep.subr.mxu0 0.0
  %1591 = vmatpush1.msra.mxu0 %v688
  %1592 = vmatprep.subr.mxu0 0.0
  %1593 = vmatpush1.msra.mxu0 %v689
  %1594 = vmatprep.subr.mxu0 0.0
  %1595 = vmatpush1.msra.mxu0 %v690
  %1596 = vmatprep.subr.mxu0 0.0
  %1597 = vmatpush1.msra.mxu0 %v691
  %1598 = vmatprep.subr.mxu0 0.0
  %1599 = vmatpush1.msra.mxu0 %v692
  %1600 = vmatprep.subr.mxu0 0.0
  %1601 = vmatpush1.msra.mxu0 %v693
  %1602 = vmatprep.subr.mxu0 0.0
  %1603 = vmatpush1.msra.mxu0 %v694
  %1604 = vmatprep.subr.mxu0 0.0
  %1605 = vmatpush1.msra.mxu0 %v695
  %1606 = vmatprep.subr.mxu0 0.0
  %1607 = vmatpush1.msra.mxu0 %v696
  %1608 = vmatprep.subr.mxu0 0.0
  %1609 = vmatpush1.msra.mxu0 %v697
  %1610 = vmatprep.subr.mxu0 0.0
  %1611 = vmatpush1.msra.mxu0 %v698
  %1612 = vmatprep.subr.mxu0 0.0
  %1613 = vmatpush1.msra.mxu0 %v699
  %1614 = vmatprep.subr.mxu0 0.0
  %1615 = vmatpush1.msra.mxu0 %v700
  %1616 = vmatprep.subr.mxu0 0.0
  %1617 = vmatpush1.msra.mxu0 %v701
  %1618 = vmatprep.subr.mxu0 0.0
  %1619 = vmatpush1.msra.mxu0 %v702
  %1620 = vmatprep.subr.mxu0 0.0
  %1621 = vmatpush1.msra.mxu0 %v703
  %1622 = vmatprep.subr.mxu0 0.0
  %1623 = vmatpush1.msra.mxu0 %v704
  %1624 = vmatprep.subr.mxu0 0.0
  %1625 = vmatpush1.msra.mxu0 %v705
  %1626 = vmatprep.subr.mxu0 0.0
  %1627 = vmatpush1.msra.mxu0 %v706
  %1628 = vmatprep.subr.mxu0 0.0
  %1629 = vmatpush1.msra.mxu0 %v707
  %1630 = vmatprep.subr.mxu0 0.0
  %1631 = vmatpush1.msra.mxu0 %v708
  %1632 = vmatprep.subr.mxu0 0.0
  %1633 = vmatpush1.msra.mxu0 %v709
  %1634 = vmatprep.subr.mxu0 0.0
  %1635 = vmatpush1.msra.mxu0 %v710
  %1636 = vmatprep.subr.mxu0 0.0
  %1637 = vmatpush1.msra.mxu0 %v711
  %1638 = vmatprep.subr.mxu0 0.0
  %1639 = vmatpush1.msra.mxu0 %v712
  %1640 = vmatprep.subr.mxu0 0.0
  %1641 = vmatpush1.msra.mxu0 %v713
  %1642 = vmatprep.subr.mxu0 0.0
  %1643 = vmatpush1.msra.mxu0 %v714
  %1644 = vmatprep.subr.mxu0 0.0
  %1645 = vmatpush1.msra.mxu0 %v715
  %1646 = vmatprep.subr.mxu0 0.0
  %1647 = vmatpush1.msra.mxu0 %v716
  %1648 = vmatprep.subr.mxu0 0.0
  %1649 = vmatpush1.msra.mxu0 %v717
  %1650 = vmatprep.subr.mxu0 0.0
  %1651 = vmatpush1.msra.mxu0 %v718
  %1652 = vmatprep.mubr.f32.mxu0 %v240
  %1653 = vmatmul.mubr.f32.gmra.mrb[0].mxu0 %v32
  %v1654 = vpop.f32.mrb[0].mxu0
  %v1655 = vadd.f32 %v1270, %v1654
  %v1656 = vpop.f32.mrb[0].mxu0
  %1657 = vmatprep.mubr.f32.mxu0 %v242
  %1658 = vmatmul.mubr.f32.gmra.mrb[0].mxu0 %v33
  %v1659 = vpop.f32.mrb[0].mxu0
  %v1660 = vadd.f32 %v1275, %v1659
  %v1661 = vpop.f32.mrb[0].mxu0
  %1662 = vmatprep.mubr.f32.mxu0 %v245
  %1663 = vmatmul.mubr.f32.gmra.mrb[0].mxu0 %v35
  %v1664 = vpop.f32.mrb[0].mxu0
  %v1665 = vadd.f32 %v1280, %v1664
  %v1666 = vpop.f32.mrb[0].mxu0
  %1667 = vmatprep.mubr.f32.mxu0 %v247
  %1668 = vmatmul.mubr.f32.gmra.mrb[0].mxu0 %v36
  %v1669 = vpop.f32.mrb[0].mxu0
  %v1670 = vadd.f32 %v1285, %v1669
  %v1671 = vpop.f32.mrb[0].mxu0
  %1672 = vmatprep.mubr.f32.mxu0 %v250
  %1673 = vmatmul.mubr.f32.gmra.mrb[0].mxu0 %v38
  %v1674 = vpop.f32.mrb[0].mxu0
  %v1675 = vadd.f32 %v1290, %v1674
  %v1676 = vpop.f32.mrb[0].mxu0
  %1677 = vmatprep.mubr.f32.mxu0 %v252
  %1678 = vmatmul.mubr.f32.gmra.mrb[0].mxu0 %v39
  %v1679 = vpop.f32.mrb[0].mxu0
  %v1680 = vadd.f32 %v1295, %v1679
  %v1681 = vpop.f32.mrb[0].mxu0
  %1682 = vmatprep.mubr.f32.mxu0 %v255
  %1683 = vmatmul.mubr.f32.gmra.mrb[0].mxu0 %v41
  %v1684 = vpop.f32.mrb[0].mxu0
  %v1685 = vadd.f32 %v1300, %v1684
  %v1686 = vpop.f32.mrb[0].mxu0
  %1687 = vmatprep.mubr.f32.mxu0 %v257
  %1688 = vmatmul.mubr.f32.gmra.mrb[0].mxu0 %v42
  %v1689 = vpop.f32.mrb[0].mxu0
  %v1690 = vadd.f32 %v1305, %v1689
  %v1691 = vpop.f32.mrb[0].mxu0
  %1692 = vmatprep.mubr.f32.mxu0 %v260
  %1693 = vmatmul.mubr.f32.gmra.mrb[0].mxu0 %v44
  %v1694 = vpop.f32.mrb[0].mxu0
  %v1695 = vadd.f32 %v1310, %v1694
  %v1696 = vpop.f32.mrb[0].mxu0
  %1697 = vmatprep.mubr.f32.mxu0 %v262
  %1698 = vmatmul.mubr.f32.gmra.mrb[0].mxu0 %v45
  %v1699 = vpop.f32.mrb[0].mxu0
  %v1700 = vadd.f32 %v1315, %v1699
  %v1701 = vpop.f32.mrb[0].mxu0
  %1702 = vmatprep.mubr.f32.mxu0 %v265
  %1703 = vmatmul.mubr.f32.gmra.mrb[0].mxu0 %v47
  %v1704 = vpop.f32.mrb[0].mxu0
  %v1705 = vadd.f32 %v1320, %v1704
  %v1706 = vpop.f32.mrb[0].mxu0
  %1707 = vmatprep.mubr.f32.mxu0 %v267
  %1708 = vmatmul.mubr.f32.gmra.mrb[0].mxu0 %v48
  %v1709 = vpop.f32.mrb[0].mxu0
  %v1710 = vadd.f32 %v1325, %v1709
  %v1711 = vpop.f32.mrb[0].mxu0
  %1712 = vmatprep.mubr.f32.mxu0 %v270
  %1713 = vmatmul.mubr.f32.gmra.mrb[0].mxu0 %v50
  %v1714 = vpop.f32.mrb[0].mxu0
  %v1715 = vadd.f32 %v1330, %v1714
  %v1716 = vpop.f32.mrb[0].mxu0
  %1717 = vmatprep.mubr.f32.mxu0 %v272
  %1718 = vmatmul.mubr.f32.gmra.mrb[0].mxu0 %v51
  %v1719 = vpop.f32.mrb[0].mxu0
  %v1720 = vadd.f32 %v1335, %v1719
  %v1721 = vpop.f32.mrb[0].mxu0
  %1722 = vmatprep.mubr.f32.mxu0 %v275
  %1723 = vmatmul.mubr.f32.gmra.mrb[0].mxu0 %v53
  %v1724 = vpop.f32.mrb[0].mxu0
  %v1725 = vadd.f32 %v1340, %v1724
  %v1726 = vpop.f32.mrb[0].mxu0
  %1727 = vmatprep.mubr.f32.mxu0 %v277
  %1728 = vmatmul.mubr.f32.gmra.mrb[0].mxu0 %v54
  %v1729 = vpop.f32.mrb[0].mxu0
  %v1730 = vadd.f32 %v1345, %v1729
  %v1731 = vpop.f32.mrb[0].mxu0
  %1732 = vmatprep.mubr.f32.mxu0 %v280
  %1733 = vmatmul.mubr.f32.gmra.mrb[0].mxu0 %v56
  %v1734 = vpop.f32.mrb[0].mxu0
  %v1735 = vadd.f32 %v1350, %v1734
  %v1736 = vpop.f32.mrb[0].mxu0
  %1737 = vmatprep.mubr.f32.mxu0 %v282
  %1738 = vmatmul.mubr.f32.gmra.mrb[0].mxu0 %v57
  %v1739 = vpop.f32.mrb[0].mxu0
  %v1740 = vadd.f32 %v1355, %v1739
  %v1741 = vpop.f32.mrb[0].mxu0
  %1742 = vmatprep.mubr.f32.mxu0 %v285
  %1743 = vmatmul.mubr.f32.gmra.mrb[0].mxu0 %v59
  %v1744 = vpop.f32.mrb[0].mxu0
  %v1745 = vadd.f32 %v1360, %v1744
  %v1746 = vpop.f32.mrb[0].mxu0
  %1747 = vmatprep.mubr.f32.mxu0 %v287
  %1748 = vmatmul.mubr.f32.gmra.mrb[0].mxu0 %v60
  %v1749 = vpop.f32.mrb[0].mxu0
  %v1750 = vadd.f32 %v1365, %v1749
  %v1751 = vpop.f32.mrb[0].mxu0
  %1752 = vmatprep.mubr.f32.mxu0 %v290
  %1753 = vmatmul.mubr.f32.gmra.mrb[0].mxu0 %v62
  %v1754 = vpop.f32.mrb[0].mxu0
  %v1755 = vadd.f32 %v1370, %v1754
  %v1756 = vpop.f32.mrb[0].mxu0
  %1757 = vmatprep.mubr.f32.mxu0 %v292
  %1758 = vmatmul.mubr.f32.gmra.mrb[0].mxu0 %v63
  %v1759 = vpop.f32.mrb[0].mxu0
  %v1760 = vadd.f32 %v1375, %v1759
  %v1761 = vpop.f32.mrb[0].mxu0
  %1762 = vmatprep.mubr.f32.mxu0 %v295
  %1763 = vmatmul.mubr.f32.gmra.mrb[0].mxu0 %v65
  %v1764 = vpop.f32.mrb[0].mxu0
  %v1765 = vadd.f32 %v1380, %v1764
  %v1766 = vpop.f32.mrb[0].mxu0
  %1767 = vmatprep.mubr.f32.mxu0 %v297
  %1768 = vmatmul.mubr.f32.gmra.mrb[0].mxu0 %v66
  %v1769 = vpop.f32.mrb[0].mxu0
  %v1770 = vadd.f32 %v1385, %v1769
  %v1771 = vpop.f32.mrb[0].mxu0
  %1772 = vmatprep.mubr.f32.mxu0 %v300
  %1773 = vmatmul.mubr.f32.gmra.mrb[0].mxu0 %v68
  %v1774 = vpop.f32.mrb[0].mxu0
  %v1775 = vadd.f32 %v1390, %v1774
  %v1776 = vpop.f32.mrb[0].mxu0
  %1777 = vmatprep.mubr.f32.mxu0 %v302
  %1778 = vmatmul.mubr.f32.gmra.mrb[0].mxu0 %v69
  %v1779 = vpop.f32.mrb[0].mxu0
  %v1780 = vadd.f32 %v1395, %v1779
  %v1781 = vpop.f32.mrb[0].mxu0
  %1782 = vmatprep.mubr.f32.mxu0 %v305
  %1783 = vmatmul.mubr.f32.gmra.mrb[0].mxu0 %v71
  %v1784 = vpop.f32.mrb[0].mxu0
  %v1785 = vadd.f32 %v1400, %v1784
  %v1786 = vpop.f32.mrb[0].mxu0
  %1787 = vmatprep.mubr.f32.mxu0 %v307
  %1788 = vmatmul.mubr.f32.gmra.mrb[0].mxu0 %v72
  %v1789 = vpop.f32.mrb[0].mxu0
  %v1790 = vadd.f32 %v1405, %v1789
  %v1791 = vpop.f32.mrb[0].mxu0
  %1792 = vmatprep.mubr.f32.mxu0 %v310
  %1793 = vmatmul.mubr.f32.gmra.mrb[0].mxu0 %v74
  %v1794 = vpop.f32.mrb[0].mxu0
  %v1795 = vadd.f32 %v1410, %v1794
  %v1796 = vpop.f32.mrb[0].mxu0
  %1797 = vmatprep.mubr.f32.mxu0 %v312
  %1798 = vmatmul.mubr.f32.gmra.mrb[0].mxu0 %v75
  %v1799 = vpop.f32.mrb[0].mxu0
  %v1800 = vadd.f32 %v1415, %v1799
  %v1801 = vpop.f32.mrb[0].mxu0
  %1802 = vmatprep.mubr.f32.mxu0 %v315
  %1803 = vmatmul.mubr.f32.gmra.mrb[0].mxu0 %v77
  %v1804 = vpop.f32.mrb[0].mxu0
  %v1805 = vadd.f32 %v1420, %v1804
  %v1806 = vpop.f32.mrb[0].mxu0
  %1807 = vmatprep.mubr.f32.mxu0 %v317
  %1808 = vmatmul.mubr.f32.gmra.mrb[0].mxu0 %v78
  %v1809 = vpop.f32.mrb[0].mxu0
  %v1810 = vadd.f32 %v1425, %v1809
  %v1811 = vpop.f32.mrb[0].mxu0
  %1812 = vmatprep.mubr.f32.mxu0 %v320
  %1813 = vmatmul.mubr.f32.gmra.mrb[0].mxu0 %v86
  %v1814 = vpop.f32.mrb[0].mxu0
  %v1815 = vadd.f32 %v1430, %v1814
  %v1816 = vpop.f32.mrb[0].mxu0
  %1817 = vmatprep.mubr.f32.mxu0 %v322
  %1818 = vmatmul.mubr.f32.gmra.mrb[0].mxu0 %v87
  %v1819 = vpop.f32.mrb[0].mxu0
  %v1820 = vadd.f32 %v1435, %v1819
  %v1821 = vpop.f32.mrb[0].mxu0
  %1822 = vmatprep.mubr.f32.mxu0 %v325
  %1823 = vmatmul.mubr.f32.gmra.mrb[0].mxu0 %v89
  %v1824 = vpop.f32.mrb[0].mxu0
  %v1825 = vadd.f32 %v1440, %v1824
  %v1826 = vpop.f32.mrb[0].mxu0
  %1827 = vmatprep.mubr.f32.mxu0 %v327
  %1828 = vmatmul.mubr.f32.gmra.mrb[0].mxu0 %v90
  %v1829 = vpop.f32.mrb[0].mxu0
  %v1830 = vadd.f32 %v1445, %v1829
  %v1831 = vpop.f32.mrb[0].mxu0
  %1832 = vmatprep.mubr.f32.mxu0 %v330
  %1833 = vmatmul.mubr.f32.gmra.mrb[0].mxu0 %v92
  %v1834 = vpop.f32.mrb[0].mxu0
  %v1835 = vadd.f32 %v1450, %v1834
  %v1836 = vpop.f32.mrb[0].mxu0
  %1837 = vmatprep.mubr.f32.mxu0 %v332
  %1838 = vmatmul.mubr.f32.gmra.mrb[0].mxu0 %v93
  %v1839 = vpop.f32.mrb[0].mxu0
  %v1840 = vadd.f32 %v1455, %v1839
  %v1841 = vpop.f32.mrb[0].mxu0
  %1842 = vmatprep.mubr.f32.mxu0 %v335
  %1843 = vmatmul.mubr.f32.gmra.mrb[0].mxu0 %v95
  %v1844 = vpop.f32.mrb[0].mxu0
  %v1845 = vadd.f32 %v1460, %v1844
  %v1846 = vpop.f32.mrb[0].mxu0
  %1847 = vmatprep.mubr.f32.mxu0 %v337
  %1848 = vmatmul.mubr.f32.gmra.mrb[0].mxu0 %v96
  %v1849 = vpop.f32.mrb[0].mxu0
  %v1850 = vadd.f32 %v1465, %v1849
  %v1851 = vpop.f32.mrb[0].mxu0
  %1852 = vmatprep.mubr.f32.mxu0 %v340
  %1853 = vmatmul.mubr.f32.gmra.mrb[0].mxu0 %v98
  %v1854 = vpop.f32.mrb[0].mxu0
  %v1855 = vadd.f32 %v1470, %v1854
  %v1856 = vpop.f32.mrb[0].mxu0
  %1857 = vmatprep.mubr.f32.mxu0 %v342
  %1858 = vmatmul.mubr.f32.gmra.mrb[0].mxu0 %v99
  %v1859 = vpop.f32.mrb[0].mxu0
  %v1860 = vadd.f32 %v1475, %v1859
  %v1861 = vpop.f32.mrb[0].mxu0
  %1862 = vmatprep.mubr.f32.mxu0 %v345
  %1863 = vmatmul.mubr.f32.gmra.mrb[0].mxu0 %v101
  %v1864 = vpop.f32.mrb[0].mxu0
  %v1865 = vadd.f32 %v1480, %v1864
  %v1866 = vpop.f32.mrb[0].mxu0
  %1867 = vmatprep.mubr.f32.mxu0 %v347
  %1868 = vmatmul.mubr.f32.gmra.mrb[0].mxu0 %v102
  %v1869 = vpop.f32.mrb[0].mxu0
  %v1870 = vadd.f32 %v1485, %v1869
  %v1871 = vpop.f32.mrb[0].mxu0
  %1872 = vmatprep.mubr.f32.mxu0 %v350
  %1873 = vmatmul.mubr.f32.gmra.mrb[0].mxu0 %v104
  %v1874 = vpop.f32.mrb[0].mxu0
  %v1875 = vadd.f32 %v1490, %v1874
  %v1876 = vpop.f32.mrb[0].mxu0
  %1877 = vmatprep.mubr.f32.mxu0 %v352
  %1878 = vmatmul.mubr.f32.gmra.mrb[0].mxu0 %v105
  %v1879 = vpop.f32.mrb[0].mxu0
  %v1880 = vadd.f32 %v1495, %v1879
  %v1881 = vpop.f32.mrb[0].mxu0
  %1882 = vmatprep.mubr.f32.mxu0 %v355
  %1883 = vmatmul.mubr.f32.gmra.mrb[0].mxu0 %v107
  %v1884 = vpop.f32.mrb[0].mxu0
  %v1885 = vadd.f32 %v1500, %v1884
  %v1886 = vpop.f32.mrb[0].mxu0
  %1887 = vmatprep.mubr.f32.mxu0 %v357
  %1888 = vmatmul.mubr.f32.gmra.mrb[0].mxu0 %v108
  %v1889 = vpop.f32.mrb[0].mxu0
  %v1890 = vadd.f32 %v1505, %v1889
  %v1891 = vpop.f32.mrb[0].mxu0
  %1892 = vmatprep.mubr.f32.mxu0 %v360
  %1893 = vmatmul.mubr.f32.gmra.mrb[0].mxu0 %v110
  %v1894 = vpop.f32.mrb[0].mxu0
  %v1895 = vadd.f32 %v1510, %v1894
  %v1896 = vpop.f32.mrb[0].mxu0
  %1897 = vmatprep.mubr.f32.mxu0 %v362
  %1898 = vmatmul.mubr.f32.gmra.mrb[0].mxu0 %v111
  %v1899 = vpop.f32.mrb[0].mxu0
  %v1900 = vadd.f32 %v1515, %v1899
  %v1901 = vpop.f32.mrb[0].mxu0
  %1902 = vmatprep.mubr.f32.mxu0 %v365
  %1903 = vmatmul.mubr.f32.gmra.mrb[0].mxu0 %v113
  %v1904 = vpop.f32.mrb[0].mxu0
  %v1905 = vadd.f32 %v1520, %v1904
  %v1906 = vpop.f32.mrb[0].mxu0
  %1907 = vmatprep.mubr.f32.mxu0 %v367
  %1908 = vmatmul.mubr.f32.gmra.mrb[0].mxu0 %v114
  %v1909 = vpop.f32.mrb[0].mxu0
  %v1910 = vadd.f32 %v1525, %v1909
  %v1911 = vpop.f32.mrb[0].mxu0
  %1912 = vmatprep.mubr.f32.mxu0 %v370
  %1913 = vmatmul.mubr.f32.gmra.mrb[0].mxu0 %v116
  %v1914 = vpop.f32.mrb[0].mxu0
  %v1915 = vadd.f32 %v1530, %v1914
  %v1916 = vpop.f32.mrb[0].mxu0
  %1917 = vmatprep.mubr.f32.mxu0 %v372
  %1918 = vmatmul.mubr.f32.gmra.mrb[0].mxu0 %v117
  %v1919 = vpop.f32.mrb[0].mxu0
  %v1920 = vadd.f32 %v1535, %v1919
  %v1921 = vpop.f32.mrb[0].mxu0
  %1922 = vmatprep.mubr.f32.mxu0 %v375
  %1923 = vmatmul.mubr.f32.gmra.mrb[0].mxu0 %v119
  %v1924 = vpop.f32.mrb[0].mxu0
  %v1925 = vadd.f32 %v1540, %v1924
  %v1926 = vpop.f32.mrb[0].mxu0
  %1927 = vmatprep.mubr.f32.mxu0 %v377
  %1928 = vmatmul.mubr.f32.gmra.mrb[0].mxu0 %v120
  %v1929 = vpop.f32.mrb[0].mxu0
  %v1930 = vadd.f32 %v1545, %v1929
  %v1931 = vpop.f32.mrb[0].mxu0
  %1932 = vmatprep.mubr.f32.mxu0 %v380
  %1933 = vmatmul.mubr.f32.gmra.mrb[0].mxu0 %v122
  %v1934 = vpop.f32.mrb[0].mxu0
  %v1935 = vadd.f32 %v1550, %v1934
  %v1936 = vpop.f32.mrb[0].mxu0
  %1937 = vmatprep.mubr.f32.mxu0 %v382
  %1938 = vmatmul.mubr.f32.gmra.mrb[0].mxu0 %v123
  %v1939 = vpop.f32.mrb[0].mxu0
  %v1940 = vadd.f32 %v1555, %v1939
  %v1941 = vpop.f32.mrb[0].mxu0
  %1942 = vmatprep.mubr.f32.mxu0 %v385
  %1943 = vmatmul.mubr.f32.gmra.mrb[0].mxu0 %v125
  %v1944 = vpop.f32.mrb[0].mxu0
  %v1945 = vadd.f32 %v1560, %v1944
  %v1946 = vpop.f32.mrb[0].mxu0
  %1947 = vmatprep.mubr.f32.mxu0 %v387
  %1948 = vmatmul.mubr.f32.gmra.mrb[0].mxu0 %v126
  %v1949 = vpop.f32.mrb[0].mxu0
  %v1950 = vadd.f32 %v1565, %v1949
  %v1951 = vpop.f32.mrb[0].mxu0
  %1952 = vmatprep.mubr.f32.mxu0 %v390
  %1953 = vmatmul.mubr.f32.gmra.mrb[0].mxu0 %v128
  %v1954 = vpop.f32.mrb[0].mxu0
  %v1955 = vadd.f32 %v1570, %v1954
  %v1956 = vpop.f32.mrb[0].mxu0
  %1957 = vmatprep.mubr.f32.mxu0 %v392
  %1958 = vmatmul.mubr.f32.gmra.mrb[0].mxu0 %v129
  %v1959 = vpop.f32.mrb[0].mxu0
  %v1960 = vadd.f32 %v1575, %v1959
  %v1961 = vpop.f32.mrb[0].mxu0
  %1962 = vmatprep.mubr.f32.mxu0 %v395
  %1963 = vmatmul.mubr.f32.gmra.mrb[0].mxu0 %v131
  %v1964 = vpop.f32.mrb[0].mxu0
  %v1965 = vadd.f32 %v1580, %v1964
  %v1966 = vpop.f32.mrb[0].mxu0
  %1967 = vmatprep.mubr.f32.mxu0 %v397
  %1968 = vmatmul.mubr.f32.gmra.mrb[0].mxu0 %v132
  %v1969 = vpop.f32.mrb[0].mxu0
  %v1970 = vadd.f32 %v1585, %v1969
  %v1971 = vpop.f32.mrb[0].mxu0
  %1972 = vdwg.mxu0
  %1973 = vmatprep.subr.mxu0 0.0
  %1974 = vmatpush1.msra.mxu0 %v719
  %1975 = vmatprep.subr.mxu0 0.0
  %1976 = vmatpush1.msra.mxu0 %v720
  %1977 = vmatprep.subr.mxu0 0.0
  %1978 = vmatpush1.msra.mxu0 %v721
  %1979 = vmatprep.subr.mxu0 0.0
  %1980 = vmatpush1.msra.mxu0 %v722
  %1981 = vmatprep.subr.mxu0 0.0
  %1982 = vmatpush1.msra.mxu0 %v723
  %1983 = vmatprep.subr.mxu0 0.0
  %1984 = vmatpush1.msra.mxu0 %v724
  %1985 = vmatprep.subr.mxu0 0.0
  %1986 = vmatpush1.msra.mxu0 %v725
  %1987 = vmatprep.subr.mxu0 0.0
  %1988 = vmatpush1.msra.mxu0 %v726
  %1989 = vmatprep.subr.mxu0 0.0
  %1990 = vmatpush1.msra.mxu0 %v727
  %1991 = vmatprep.subr.mxu0 0.0
  %1992 = vmatpush1.msra.mxu0 %v728
  %1993 = vmatprep.subr.mxu0 0.0
  %1994 = vmatpush1.msra.mxu0 %v729
  %1995 = vmatprep.subr.mxu0 0.0
  %1996 = vmatpush1.msra.mxu0 %v730
  %1997 = vmatprep.subr.mxu0 0.0
  %1998 = vmatpush1.msra.mxu0 %v731
  %1999 = vmatprep.subr.mxu0 0.0
  %2000 = vmatpush1.msra.mxu0 %v732
  %2001 = vmatprep.subr.mxu0 0.0
  %2002 = vmatpush1.msra.mxu0 %v733
  %2003 = vmatprep.subr.mxu0 0.0
  %2004 = vmatpush1.msra.mxu0 %v734
  %2005 = vmatprep.subr.mxu0 0.0
  %2006 = vmatpush1.msra.mxu0 0.0
  %2007 = vmatprep.subr.mxu0 0.0
  %2008 = vmatpush1.msra.mxu0 0.0
  %2009 = vmatprep.subr.mxu0 0.0
  %2010 = vmatpush1.msra.mxu0 0.0
  %2011 = vmatprep.subr.mxu0 0.0
  %2012 = vmatpush1.msra.mxu0 0.0
  %2013 = vmatprep.subr.mxu0 0.0
  %2014 = vmatpush1.msra.mxu0 0.0
  %2015 = vmatprep.subr.mxu0 0.0
  %2016 = vmatpush1.msra.mxu0 0.0
  %2017 = vmatprep.subr.mxu0 0.0
  %2018 = vmatpush1.msra.mxu0 0.0
  %2019 = vmatprep.subr.mxu0 0.0
  %2020 = vmatpush1.msra.mxu0 0.0
  %2021 = vmatprep.subr.mxu0 0.0
  %2022 = vmatpush1.msra.mxu0 0.0
  %2023 = vmatprep.subr.mxu0 0.0
  %2024 = vmatpush1.msra.mxu0 0.0
  %2025 = vmatprep.subr.mxu0 0.0
  %2026 = vmatpush1.msra.mxu0 0.0
  %2027 = vmatprep.subr.mxu0 0.0
  %2028 = vmatpush1.msra.mxu0 0.0
  %2029 = vmatprep.subr.mxu0 0.0
  %2030 = vmatpush1.msra.mxu0 0.0
  %2031 = vmatprep.subr.mxu0 0.0
  %2032 = vmatpush1.msra.mxu0 0.0
  %2033 = vmatprep.subr.mxu0 0.0
  %2034 = vmatpush1.msra.mxu0 0.0
  %2035 = vmatprep.subr.mxu0 0.0
  %2036 = vmatpush1.msra.mxu0 0.0
  %2037 = vmatprep.mubr.f32.mxu0 0.0
  %2038 = vmatmul.mubr.f32.gmra.mrb[0].mxu0 %v465
  %v2039 = vpop.f32.mrb[0].mxu0
  %v2040 = vadd.f32 %v1655, %v2039
  %v2041 = vpop.f32.mrb[0].mxu0
  %2042 = vmatprep.mubr.f32.mxu0 0.0
  %2043 = vmatmul.mubr.f32.gmra.mrb[0].mxu0 %v467
  %v2044 = vpop.f32.mrb[0].mxu0
  %v2045 = vadd.f32 %v1660, %v2044
  %v2046 = vpop.f32.mrb[0].mxu0
  %2047 = vmatprep.mubr.f32.mxu0 0.0
  %2048 = vmatmul.mubr.f32.gmra.mrb[0].mxu0 %v470
  %v2049 = vpop.f32.mrb[0].mxu0
  %v2050 = vadd.f32 %v1665, %v2049
  %v2051 = vpop.f32.mrb[0].mxu0
  %2052 = vmatprep.mubr.f32.mxu0 0.0
  %2053 = vmatmul.mubr.f32.gmra.mrb[0].mxu0 %v472
  %v2054 = vpop.f32.mrb[0].mxu0
  %v2055 = vadd.f32 %v1670, %v2054
  %v2056 = vpop.f32.mrb[0].mxu0
  %2057 = vmatprep.mubr.f32.mxu0 0.0
  %2058 = vmatmul.mubr.f32.gmra.mrb[0].mxu0 %v475
  %v2059 = vpop.f32.mrb[0].mxu0
  %v2060 = vadd.f32 %v1675, %v2059
  %v2061 = vpop.f32.mrb[0].mxu0
  %2062 = vmatprep.mubr.f32.mxu0 0.0
  %2063 = vmatmul.mubr.f32.gmra.mrb[0].mxu0 %v477
  %v2064 = vpop.f32.mrb[0].mxu0
  %v2065 = vadd.f32 %v1680, %v2064
  %v2066 = vpop.f32.mrb[0].mxu0
  %2067 = vmatprep.mubr.f32.mxu0 0.0
  %2068 = vmatmul.mubr.f32.gmra.mrb[0].mxu0 %v480
  %v2069 = vpop.f32.mrb[0].mxu0
  %v2070 = vadd.f32 %v1685, %v2069
  %v2071 = vpop.f32.mrb[0].mxu0
  %2072 = vmatprep.mubr.f32.mxu0 0.0
  %2073 = vmatmul.mubr.f32.gmra.mrb[0].mxu0 %v482
  %v2074 = vpop.f32.mrb[0].mxu0
  %v2075 = vadd.f32 %v1690, %v2074
  %v2076 = vpop.f32.mrb[0].mxu0
  %2077 = vmatprep.mubr.f32.mxu0 0.0
  %2078 = vmatmul.mubr.f32.gmra.mrb[0].mxu0 %v485
  %v2079 = vpop.f32.mrb[0].mxu0
  %v2080 = vadd.f32 %v1695, %v2079
  %v2081 = vpop.f32.mrb[0].mxu0
  %2082 = vmatprep.mubr.f32.mxu0 0.0
  %2083 = vmatmul.mubr.f32.gmra.mrb[0].mxu0 %v487
  %v2084 = vpop.f32.mrb[0].mxu0
  %v2085 = vadd.f32 %v1700, %v2084
  %v2086 = vpop.f32.mrb[0].mxu0
  %2087 = vmatprep.mubr.f32.mxu0 0.0
  %2088 = vmatmul.mubr.f32.gmra.mrb[0].mxu0 %v490
  %v2089 = vpop.f32.mrb[0].mxu0
  %v2090 = vadd.f32 %v1705, %v2089
  %v2091 = vpop.f32.mrb[0].mxu0
  %2092 = vmatprep.mubr.f32.mxu0 0.0
  %2093 = vmatmul.mubr.f32.gmra.mrb[0].mxu0 %v492
  %v2094 = vpop.f32.mrb[0].mxu0
  %v2095 = vadd.f32 %v1710, %v2094
  %v2096 = vpop.f32.mrb[0].mxu0
  %2097 = vmatprep.mubr.f32.mxu0 0.0
  %2098 = vmatmul.mubr.f32.gmra.mrb[0].mxu0 %v495
  %v2099 = vpop.f32.mrb[0].mxu0
  %v2100 = vadd.f32 %v1715, %v2099
  %v2101 = vpop.f32.mrb[0].mxu0
  %2102 = vmatprep.mubr.f32.mxu0 0.0
  %2103 = vmatmul.mubr.f32.gmra.mrb[0].mxu0 %v497
  %v2104 = vpop.f32.mrb[0].mxu0
  %v2105 = vadd.f32 %v1720, %v2104
  %v2106 = vpop.f32.mrb[0].mxu0
  %2107 = vmatprep.mubr.f32.mxu0 0.0
  %2108 = vmatmul.mubr.f32.gmra.mrb[0].mxu0 %v500
  %v2109 = vpop.f32.mrb[0].mxu0
  %v2110 = vadd.f32 %v1725, %v2109
  %v2111 = vpop.f32.mrb[0].mxu0
  %2112 = vmatprep.mubr.f32.mxu0 0.0
  %2113 = vmatmul.mubr.f32.gmra.mrb[0].mxu0 %v502
  %v2114 = vpop.f32.mrb[0].mxu0
  %v2115 = vadd.f32 %v1730, %v2114
  %v2116 = vpop.f32.mrb[0].mxu0
  %2117 = vmatprep.mubr.f32.mxu0 0.0
  %2118 = vmatmul.mubr.f32.gmra.mrb[0].mxu0 %v505
  %v2119 = vpop.f32.mrb[0].mxu0
  %v2120 = vadd.f32 %v1735, %v2119
  %v2121 = vpop.f32.mrb[0].mxu0
  %2122 = vmatprep.mubr.f32.mxu0 0.0
  %2123 = vmatmul.mubr.f32.gmra.mrb[0].mxu0 %v507
  %v2124 = vpop.f32.mrb[0].mxu0
  %v2125 = vadd.f32 %v1740, %v2124
  %v2126 = vpop.f32.mrb[0].mxu0
  %2127 = vmatprep.mubr.f32.mxu0 0.0
  %2128 = vmatmul.mubr.f32.gmra.mrb[0].mxu0 %v510
  %v2129 = vpop.f32.mrb[0].mxu0
  %v2130 = vadd.f32 %v1745, %v2129
  %v2131 = vpop.f32.mrb[0].mxu0
  %2132 = vmatprep.mubr.f32.mxu0 0.0
  %2133 = vmatmul.mubr.f32.gmra.mrb[0].mxu0 %v512
  %v2134 = vpop.f32.mrb[0].mxu0
  %v2135 = vadd.f32 %v1750, %v2134
  %v2136 = vpop.f32.mrb[0].mxu0
  %2137 = vmatprep.mubr.f32.mxu0 0.0
  %2138 = vmatmul.mubr.f32.gmra.mrb[0].mxu0 %v515
  %v2139 = vpop.f32.mrb[0].mxu0
  %v2140 = vadd.f32 %v1755, %v2139
  %v2141 = vpop.f32.mrb[0].mxu0
  %2142 = vmatprep.mubr.f32.mxu0 0.0
  %2143 = vmatmul.mubr.f32.gmra.mrb[0].mxu0 %v517
  %v2144 = vpop.f32.mrb[0].mxu0
  %v2145 = vadd.f32 %v1760, %v2144
  %v2146 = vpop.f32.mrb[0].mxu0
  %2147 = vmatprep.mubr.f32.mxu0 0.0
  %2148 = vmatmul.mubr.f32.gmra.mrb[0].mxu0 %v520
  %v2149 = vpop.f32.mrb[0].mxu0
  %v2150 = vadd.f32 %v1765, %v2149
  %v2151 = vpop.f32.mrb[0].mxu0
  %2152 = vmatprep.mubr.f32.mxu0 0.0
  %2153 = vmatmul.mubr.f32.gmra.mrb[0].mxu0 %v522
  %v2154 = vpop.f32.mrb[0].mxu0
  %v2155 = vadd.f32 %v1770, %v2154
  %v2156 = vpop.f32.mrb[0].mxu0
  %2157 = vmatprep.mubr.f32.mxu0 0.0
  %2158 = vmatmul.mubr.f32.gmra.mrb[0].mxu0 %v525
  %v2159 = vpop.f32.mrb[0].mxu0
  %v2160 = vadd.f32 %v1775, %v2159
  %v2161 = vpop.f32.mrb[0].mxu0
  %2162 = vmatprep.mubr.f32.mxu0 0.0
  %2163 = vmatmul.mubr.f32.gmra.mrb[0].mxu0 %v527
  %v2164 = vpop.f32.mrb[0].mxu0
  %v2165 = vadd.f32 %v1780, %v2164
  %v2166 = vpop.f32.mrb[0].mxu0
  %2167 = vmatprep.mubr.f32.mxu0 0.0
  %2168 = vmatmul.mubr.f32.gmra.mrb[0].mxu0 %v530
  %v2169 = vpop.f32.mrb[0].mxu0
  %v2170 = vadd.f32 %v1785, %v2169
  %v2171 = vpop.f32.mrb[0].mxu0
  %2172 = vmatprep.mubr.f32.mxu0 0.0
  %2173 = vmatmul.mubr.f32.gmra.mrb[0].mxu0 %v532
  %v2174 = vpop.f32.mrb[0].mxu0
  %v2175 = vadd.f32 %v1790, %v2174
  %v2176 = vpop.f32.mrb[0].mxu0
  %2177 = vmatprep.mubr.f32.mxu0 0.0
  %2178 = vmatmul.mubr.f32.gmra.mrb[0].mxu0 %v535
  %v2179 = vpop.f32.mrb[0].mxu0
  %v2180 = vadd.f32 %v1795, %v2179
  %v2181 = vpop.f32.mrb[0].mxu0
  %2182 = vmatprep.mubr.f32.mxu0 0.0
  %2183 = vmatmul.mubr.f32.gmra.mrb[0].mxu0 %v537
  %v2184 = vpop.f32.mrb[0].mxu0
  %v2185 = vadd.f32 %v1800, %v2184
  %v2186 = vpop.f32.mrb[0].mxu0
  %2187 = vmatprep.mubr.f32.mxu0 0.0
  %2188 = vmatmul.mubr.f32.gmra.mrb[0].mxu0 %v540
  %v2189 = vpop.f32.mrb[0].mxu0
  %v2190 = vadd.f32 %v1805, %v2189
  %v2191 = vpop.f32.mrb[0].mxu0
  %2192 = vmatprep.mubr.f32.mxu0 0.0
  %2193 = vmatmul.mubr.f32.gmra.mrb[0].mxu0 %v542
  %v2194 = vpop.f32.mrb[0].mxu0
  %v2195 = vadd.f32 %v1810, %v2194
  %v2196 = vpop.f32.mrb[0].mxu0
  %2197 = vmatprep.mubr.f32.mxu0 0.0
  %2198 = vmatmul.mubr.f32.gmra.mrb[0].mxu0 %v545
  %v2199 = vpop.f32.mrb[0].mxu0
  %v2200 = vadd.f32 %v1815, %v2199
  %v2201 = vpop.f32.mrb[0].mxu0
  %2202 = vmatprep.mubr.f32.mxu0 0.0
  %2203 = vmatmul.mubr.f32.gmra.mrb[0].mxu0 %v547
  %v2204 = vpop.f32.mrb[0].mxu0
  %v2205 = vadd.f32 %v1820, %v2204
  %v2206 = vpop.f32.mrb[0].mxu0
  %2207 = vmatprep.mubr.f32.mxu0 0.0
  %2208 = vmatmul.mubr.f32.gmra.mrb[0].mxu0 %v550
  %v2209 = vpop.f32.mrb[0].mxu0
  %v2210 = vadd.f32 %v1825, %v2209
  %v2211 = vpop.f32.mrb[0].mxu0
  %2212 = vmatprep.mubr.f32.mxu0 0.0
  %2213 = vmatmul.mubr.f32.gmra.mrb[0].mxu0 %v552
  %v2214 = vpop.f32.mrb[0].mxu0
  %v2215 = vadd.f32 %v1830, %v2214
  %v2216 = vpop.f32.mrb[0].mxu0
  %2217 = vmatprep.mubr.f32.mxu0 0.0
  %2218 = vmatmul.mubr.f32.gmra.mrb[0].mxu0 %v555
  %v2219 = vpop.f32.mrb[0].mxu0
  %v2220 = vadd.f32 %v1835, %v2219
  %v2221 = vpop.f32.mrb[0].mxu0
  %2222 = vmatprep.mubr.f32.mxu0 0.0
  %2223 = vmatmul.mubr.f32.gmra.mrb[0].mxu0 %v557
  %v2224 = vpop.f32.mrb[0].mxu0
  %v2225 = vadd.f32 %v1840, %v2224
  %v2226 = vpop.f32.mrb[0].mxu0
  %2227 = vmatprep.mubr.f32.mxu0 0.0
  %2228 = vmatmul.mubr.f32.gmra.mrb[0].mxu0 %v560
  %v2229 = vpop.f32.mrb[0].mxu0
  %v2230 = vadd.f32 %v1845, %v2229
  %v2231 = vpop.f32.mrb[0].mxu0
  %2232 = vmatprep.mubr.f32.mxu0 0.0
  %2233 = vmatmul.mubr.f32.gmra.mrb[0].mxu0 %v562
  %v2234 = vpop.f32.mrb[0].mxu0
  %v2235 = vadd.f32 %v1850, %v2234
  %v2236 = vpop.f32.mrb[0].mxu0
  %2237 = vmatprep.mubr.f32.mxu0 0.0
  %2238 = vmatmul.mubr.f32.gmra.mrb[0].mxu0 %v565
  %v2239 = vpop.f32.mrb[0].mxu0
  %v2240 = vadd.f32 %v1855, %v2239
  %v2241 = vpop.f32.mrb[0].mxu0
  %2242 = vmatprep.mubr.f32.mxu0 0.0
  %2243 = vmatmul.mubr.f32.gmra.mrb[0].mxu0 %v567
  %v2244 = vpop.f32.mrb[0].mxu0
  %v2245 = vadd.f32 %v1860, %v2244
  %v2246 = vpop.f32.mrb[0].mxu0
  %2247 = vmatprep.mubr.f32.mxu0 0.0
  %2248 = vmatmul.mubr.f32.gmra.mrb[0].mxu0 %v570
  %v2249 = vpop.f32.mrb[0].mxu0
  %v2250 = vadd.f32 %v1865, %v2249
  %v2251 = vpop.f32.mrb[0].mxu0
  %2252 = vmatprep.mubr.f32.mxu0 0.0
  %2253 = vmatmul.mubr.f32.gmra.mrb[0].mxu0 %v572
  %v2254 = vpop.f32.mrb[0].mxu0
  %v2255 = vadd.f32 %v1870, %v2254
  %v2256 = vpop.f32.mrb[0].mxu0
  %2257 = vmatprep.mubr.f32.mxu0 0.0
  %2258 = vmatmul.mubr.f32.gmra.mrb[0].mxu0 %v575
  %v2259 = vpop.f32.mrb[0].mxu0
  %v2260 = vadd.f32 %v1875, %v2259
  %v2261 = vpop.f32.mrb[0].mxu0
  %2262 = vmatprep.mubr.f32.mxu0 0.0
  %2263 = vmatmul.mubr.f32.gmra.mrb[0].mxu0 %v577
  %v2264 = vpop.f32.mrb[0].mxu0
  %v2265 = vadd.f32 %v1880, %v2264
  %v2266 = vpop.f32.mrb[0].mxu0
  %2267 = vmatprep.mubr.f32.mxu0 0.0
  %2268 = vmatmul.mubr.f32.gmra.mrb[0].mxu0 %v580
  %v2269 = vpop.f32.mrb[0].mxu0
  %v2270 = vadd.f32 %v1885, %v2269
  %v2271 = vpop.f32.mrb[0].mxu0
  %2272 = vmatprep.mubr.f32.mxu0 0.0
  %2273 = vmatmul.mubr.f32.gmra.mrb[0].mxu0 %v582
  %v2274 = vpop.f32.mrb[0].mxu0
  %v2275 = vadd.f32 %v1890, %v2274
  %v2276 = vpop.f32.mrb[0].mxu0
  %2277 = vmatprep.mubr.f32.mxu0 0.0
  %2278 = vmatmul.mubr.f32.gmra.mrb[0].mxu0 %v585
  %v2279 = vpop.f32.mrb[0].mxu0
  %v2280 = vadd.f32 %v1895, %v2279
  %v2281 = vpop.f32.mrb[0].mxu0
  %2282 = vmatprep.mubr.f32.mxu0 0.0
  %2283 = vmatmul.mubr.f32.gmra.mrb[0].mxu0 %v587
  %v2284 = vpop.f32.mrb[0].mxu0
  %v2285 = vadd.f32 %v1900, %v2284
  %v2286 = vpop.f32.mrb[0].mxu0
  %2287 = vmatprep.mubr.f32.mxu0 0.0
  %2288 = vmatmul.mubr.f32.gmra.mrb[0].mxu0 %v590
  %v2289 = vpop.f32.mrb[0].mxu0
  %v2290 = vadd.f32 %v1905, %v2289
  %v2291 = vpop.f32.mrb[0].mxu0
  %2292 = vmatprep.mubr.f32.mxu0 0.0
  %2293 = vmatmul.mubr.f32.gmra.mrb[0].mxu0 %v592
  %v2294 = vpop.f32.mrb[0].mxu0
  %v2295 = vadd.f32 %v1910, %v2294
  %v2296 = vpop.f32.mrb[0].mxu0
  %2297 = vmatprep.mubr.f32.mxu0 0.0
  %2298 = vmatmul.mubr.f32.gmra.mrb[0].mxu0 %v595
  %v2299 = vpop.f32.mrb[0].mxu0
  %v2300 = vadd.f32 %v1915, %v2299
  %v2301 = vpop.f32.mrb[0].mxu0
  %2302 = vmatprep.mubr.f32.mxu0 0.0
  %2303 = vmatmul.mubr.f32.gmra.mrb[0].mxu0 %v597
  %v2304 = vpop.f32.mrb[0].mxu0
  %v2305 = vadd.f32 %v1920, %v2304
  %v2306 = vpop.f32.mrb[0].mxu0
  %2307 = vmatprep.mubr.f32.mxu0 0.0
  %2308 = vmatmul.mubr.f32.gmra.mrb[0].mxu0 %v600
  %v2309 = vpop.f32.mrb[0].mxu0
  %v2310 = vadd.f32 %v1925, %v2309
  %v2311 = vpop.f32.mrb[0].mxu0
  %2312 = vmatprep.mubr.f32.mxu0 0.0
  %2313 = vmatmul.mubr.f32.gmra.mrb[0].mxu0 %v602
  %v2314 = vpop.f32.mrb[0].mxu0
  %v2315 = vadd.f32 %v1930, %v2314
  %v2316 = vpop.f32.mrb[0].mxu0
  %2317 = vmatprep.mubr.f32.mxu0 0.0
  %2318 = vmatmul.mubr.f32.gmra.mrb[0].mxu0 %v605
  %v2319 = vpop.f32.mrb[0].mxu0
  %v2320 = vadd.f32 %v1935, %v2319
  %v2321 = vpop.f32.mrb[0].mxu0
  %2322 = vmatprep.mubr.f32.mxu0 0.0
  %2323 = vmatmul.mubr.f32.gmra.mrb[0].mxu0 %v607
  %v2324 = vpop.f32.mrb[0].mxu0
  %v2325 = vadd.f32 %v1940, %v2324
  %v2326 = vpop.f32.mrb[0].mxu0
  %2327 = vmatprep.mubr.f32.mxu0 0.0
  %2328 = vmatmul.mubr.f32.gmra.mrb[0].mxu0 %v610
  %v2329 = vpop.f32.mrb[0].mxu0
  %v2330 = vadd.f32 %v1945, %v2329
  %v2331 = vpop.f32.mrb[0].mxu0
  %2332 = vmatprep.mubr.f32.mxu0 0.0
  %2333 = vmatmul.mubr.f32.gmra.mrb[0].mxu0 %v612
  %v2334 = vpop.f32.mrb[0].mxu0
  %v2335 = vadd.f32 %v1950, %v2334
  %v2336 = vpop.f32.mrb[0].mxu0
  %2337 = vmatprep.mubr.f32.mxu0 0.0
  %2338 = vmatmul.mubr.f32.gmra.mrb[0].mxu0 %v615
  %v2339 = vpop.f32.mrb[0].mxu0
  %v2340 = vadd.f32 %v1955, %v2339
  %v2341 = vpop.f32.mrb[0].mxu0
  %2342 = vmatprep.mubr.f32.mxu0 0.0
  %2343 = vmatmul.mubr.f32.gmra.mrb[0].mxu0 %v617
  %v2344 = vpop.f32.mrb[0].mxu0
  %v2345 = vadd.f32 %v1960, %v2344
  %v2346 = vpop.f32.mrb[0].mxu0
  %2347 = vmatprep.mubr.f32.mxu0 0.0
  %2348 = vmatmul.mubr.f32.gmra.mrb[0].mxu0 %v620
  %v2349 = vpop.f32.mrb[0].mxu0
  %v2350 = vadd.f32 %v1965, %v2349
  %v2351 = vpop.f32.mrb[0].mxu0
  %2352 = vmatprep.mubr.f32.mxu0 0.0
  %2353 = vmatmul.mubr.f32.gmra.mrb[0].mxu0 %v622
  %v2354 = vpop.f32.mrb[0].mxu0
  %v2355 = vadd.f32 %v1970, %v2354
  %v2356 = vpop.f32.mrb[0].mxu0
  %2357 = vdwg.mxu0
  %v2364 = vrot.slane %v83, 1
  %v2365 = vrot.slane %v84, 1
  %v2366 = vsel %vm237, %v2364, %v2365
  %v2367 = vrot.slane %v85, 1
  %v2368 = vsel %vm237, %v2365, %v2367
  %v2369 = vrot.slane %v137, 1
  %v2370 = vrot.slane %v138, 1
  %v2371 = vsel %vm237, %v2369, %v2370
  %v2372 = vrot.slane %v139, 1
  %v2373 = vsel %vm237, %v2370, %v2372
  %v2378 = vrot.slane %v83, 2
  %v2379 = vrot.slane %v84, 2
  %v2380 = vsel %vm462, %v2378, %v2379
  %v2381 = vrot.slane %v85, 2
  %v2382 = vsel %vm462, %v2379, %v2381
  %v2383 = vrot.slane %v137, 2
  %v2384 = vrot.slane %v138, 2
  %v2385 = vsel %vm462, %v2383, %v2384
  %v2386 = vrot.slane %v139, 2
  %v2387 = vsel %vm462, %v2384, %v2386
  %s2392 = scalar_lea.vmem %s1, 768
  %v2393 = vld [vmem:[%s2392] sm:$0xff]
  %v2394 = vld [vmem:[%s2392 + $0x8] sm:$0xff]
  %v2395 = vld [vmem:[%s2392 + $0x10] sm:$0xff]
  %v2396 = vld [vmem:[%s2392 + $0x18] sm:$0xff]
  %v2397 = vld [vmem:[%s2392 + $0x20] sm:$0xff]
  %v2398 = vld [vmem:[%s2392 + $0x28] sm:$0xff]
  %v2399 = vld [vmem:[%s2392 + $0x30] sm:$0xff]
  %v2400 = vld [vmem:[%s2392 + $0x38] sm:$0xff]
  %v2401 = vld [vmem:[%s2392 + $0x40] sm:$0xff]
  %v2402 = vld [vmem:[%s2392 + $0x48] sm:$0xff]
  %v2403 = vld [vmem:[%s2392 + $0x50] sm:$0xff]
  %v2404 = vld [vmem:[%s2392 + $0x58] sm:$0xff]
  %v2405 = vld [vmem:[%s2392 + $0x60] sm:$0xff]
  %v2406 = vld [vmem:[%s2392 + $0x68] sm:$0xff]
  %v2407 = vld [vmem:[%s2392 + $0x70] sm:$0xff]
  %v2408 = vld [vmem:[%s2392 + $0x78] sm:$0xff]
  %v2409 = vld [vmem:[%s2392 + $0x80] sm:$0xff]
  %v2410 = vld [vmem:[%s2392 + $0x88] sm:$0xff]
  %v2411 = vld [vmem:[%s2392 + $0x90] sm:$0xff]
  %v2412 = vld [vmem:[%s2392 + $0x98] sm:$0xff]
  %v2413 = vld [vmem:[%s2392 + $0xa0] sm:$0xff]
  %v2414 = vld [vmem:[%s2392 + $0xa8] sm:$0xff]
  %v2415 = vld [vmem:[%s2392 + $0xb0] sm:$0xff]
  %v2416 = vld [vmem:[%s2392 + $0xb8] sm:$0xff]
  %v2417 = vld [vmem:[%s2392 + $0xc0] sm:$0xff]
  %v2418 = vld [vmem:[%s2392 + $0xc8] sm:$0xff]
  %v2419 = vld [vmem:[%s2392 + $0xd0] sm:$0xff]
  %v2420 = vld [vmem:[%s2392 + $0xd8] sm:$0xff]
  %v2421 = vld [vmem:[%s2392 + $0xe0] sm:$0xff]
  %v2422 = vld [vmem:[%s2392 + $0xe8] sm:$0xff]
  %v2423 = vld [vmem:[%s2392 + $0xf0] sm:$0xff]
  %v2424 = vld [vmem:[%s2392 + $0xf8] sm:$0xff]
  %v2425 = vld [vmem:[%s2392 + $0x100] sm:$0xff]
  %v2426 = vld [vmem:[%s2392 + $0x108] sm:$0xff]
  %v2427 = vld [vmem:[%s2392 + $0x110] sm:$0xff]
  %v2428 = vld [vmem:[%s2392 + $0x118] sm:$0xff]
  %v2429 = vld [vmem:[%s2392 + $0x120] sm:$0xff]
  %v2430 = vld [vmem:[%s2392 + $0x128] sm:$0xff]
  %v2431 = vld [vmem:[%s2392 + $0x130] sm:$0xff]
  %v2432 = vld [vmem:[%s2392 + $0x138] sm:$0xff]
  %v2433 = vld [vmem:[%s2392 + $0x140] sm:$0xff]
  %v2434 = vld [vmem:[%s2392 + $0x148] sm:$0xff]
  %v2435 = vld [vmem:[%s2392 + $0x150] sm:$0xff]
  %v2436 = vld [vmem:[%s2392 + $0x158] sm:$0xff]
  %v2437 = vld [vmem:[%s2392 + $0x160] sm:$0xff]
  %v2438 = vld [vmem:[%s2392 + $0x168] sm:$0xff]
  %v2439 = vld [vmem:[%s2392 + $0x170] sm:$0xff]
  %v2440 = vld [vmem:[%s2392 + $0x178] sm:$0xff]
  %2441 = vmatprep.subr.mxu0 0.0
  %2442 = vmatpush1.msra.mxu0 %v2393
  %2443 = vmatprep.subr.mxu0 0.0
  %2444 = vmatpush1.msra.mxu0 %v2394
  %2445 = vmatprep.subr.mxu0 0.0
  %2446 = vmatpush1.msra.mxu0 %v2395
  %2447 = vmatprep.subr.mxu0 0.0
  %2448 = vmatpush1.msra.mxu0 %v2396
  %2449 = vmatprep.subr.mxu0 0.0
  %2450 = vmatpush1.msra.mxu0 %v2397
  %2451 = vmatprep.subr.mxu0 0.0
  %2452 = vmatpush1.msra.mxu0 %v2398
  %2453 = vmatprep.subr.mxu0 0.0
  %2454 = vmatpush1.msra.mxu0 %v2399
  %2455 = vmatprep.subr.mxu0 0.0
  %2456 = vmatpush1.msra.mxu0 %v2400
  %2457 = vmatprep.subr.mxu0 0.0
  %2458 = vmatpush1.msra.mxu0 %v2401
  %2459 = vmatprep.subr.mxu0 0.0
  %2460 = vmatpush1.msra.mxu0 %v2402
  %2461 = vmatprep.subr.mxu0 0.0
  %2462 = vmatpush1.msra.mxu0 %v2403
  %2463 = vmatprep.subr.mxu0 0.0
  %2464 = vmatpush1.msra.mxu0 %v2404
  %2465 = vmatprep.subr.mxu0 0.0
  %2466 = vmatpush1.msra.mxu0 %v2405
  %2467 = vmatprep.subr.mxu0 0.0
  %2468 = vmatpush1.msra.mxu0 %v2406
  %2469 = vmatprep.subr.mxu0 0.0
  %2470 = vmatpush1.msra.mxu0 %v2407
  %2471 = vmatprep.subr.mxu0 0.0
  %2472 = vmatpush1.msra.mxu0 %v2408
  %2473 = vmatprep.subr.mxu0 0.0
  %2474 = vmatpush1.msra.mxu0 %v2409
  %2475 = vmatprep.subr.mxu0 0.0
  %2476 = vmatpush1.msra.mxu0 %v2410
  %2477 = vmatprep.subr.mxu0 0.0
  %2478 = vmatpush1.msra.mxu0 %v2411
  %2479 = vmatprep.subr.mxu0 0.0
  %2480 = vmatpush1.msra.mxu0 %v2412
  %2481 = vmatprep.subr.mxu0 0.0
  %2482 = vmatpush1.msra.mxu0 %v2413
  %2483 = vmatprep.subr.mxu0 0.0
  %2484 = vmatpush1.msra.mxu0 %v2414
  %2485 = vmatprep.subr.mxu0 0.0
  %2486 = vmatpush1.msra.mxu0 %v2415
  %2487 = vmatprep.subr.mxu0 0.0
  %2488 = vmatpush1.msra.mxu0 %v2416
  %2489 = vmatprep.subr.mxu0 0.0
  %2490 = vmatpush1.msra.mxu0 %v2417
  %2491 = vmatprep.subr.mxu0 0.0
  %2492 = vmatpush1.msra.mxu0 %v2418
  %2493 = vmatprep.subr.mxu0 0.0
  %2494 = vmatpush1.msra.mxu0 %v2419
  %2495 = vmatprep.subr.mxu0 0.0
  %2496 = vmatpush1.msra.mxu0 %v2420
  %2497 = vmatprep.subr.mxu0 0.0
  %2498 = vmatpush1.msra.mxu0 %v2421
  %2499 = vmatprep.subr.mxu0 0.0
  %2500 = vmatpush1.msra.mxu0 %v2422
  %2501 = vmatprep.subr.mxu0 0.0
  %2502 = vmatpush1.msra.mxu0 %v2423
  %2503 = vmatprep.subr.mxu0 0.0
  %2504 = vmatpush1.msra.mxu0 %v2424
  %2505 = vmatprep.mubr.f32.mxu0 %v250
  %2506 = vmatmul.mubr.f32.gmra.mrb[0].mxu0 %v38
  %v2507 = vpop.f32.mrb[0].mxu0
  %v2508 = vadd.f32 0.0, %v2507
  %v2509 = vpop.f32.mrb[0].mxu0
  %2510 = vmatprep.mubr.f32.mxu0 %v252
  %2511 = vmatmul.mubr.f32.gmra.mrb[0].mxu0 %v39
  %v2512 = vpop.f32.mrb[0].mxu0
  %v2513 = vadd.f32 0.0, %v2512
  %v2514 = vpop.f32.mrb[0].mxu0
  %2515 = vmatprep.mubr.f32.mxu0 %v255
  %2516 = vmatmul.mubr.f32.gmra.mrb[0].mxu0 %v41
  %v2517 = vpop.f32.mrb[0].mxu0
  %v2518 = vadd.f32 0.0, %v2517
  %v2519 = vpop.f32.mrb[0].mxu0
  %2520 = vmatprep.mubr.f32.mxu0 %v257
  %2521 = vmatmul.mubr.f32.gmra.mrb[0].mxu0 %v42
  %v2522 = vpop.f32.mrb[0].mxu0
  %v2523 = vadd.f32 0.0, %v2522
  %v2524 = vpop.f32.mrb[0].mxu0
  %2525 = vmatprep.mubr.f32.mxu0 %v260
  %2526 = vmatmul.mubr.f32.gmra.mrb[0].mxu0 %v44
  %v2527 = vpop.f32.mrb[0].mxu0
  %v2528 = vadd.f32 0.0, %v2527
  %v2529 = vpop.f32.mrb[0].mxu0
  %2530 = vmatprep.mubr.f32.mxu0 %v262
  %2531 = vmatmul.mubr.f32.gmra.mrb[0].mxu0 %v45
  %v2532 = vpop.f32.mrb[0].mxu0
  %v2533 = vadd.f32 0.0, %v2532
  %v2534 = vpop.f32.mrb[0].mxu0
  %2535 = vmatprep.mubr.f32.mxu0 %v265
  %2536 = vmatmul.mubr.f32.gmra.mrb[0].mxu0 %v47
  %v2537 = vpop.f32.mrb[0].mxu0
  %v2538 = vadd.f32 0.0, %v2537
  %v2539 = vpop.f32.mrb[0].mxu0
  %2540 = vmatprep.mubr.f32.mxu0 %v267
  %2541 = vmatmul.mubr.f32.gmra.mrb[0].mxu0 %v48
  %v2542 = vpop.f32.mrb[0].mxu0
  %v2543 = vadd.f32 0.0, %v2542
  %v2544 = vpop.f32.mrb[0].mxu0
  %2545 = vmatprep.mubr.f32.mxu0 %v270
  %2546 = vmatmul.mubr.f32.gmra.mrb[0].mxu0 %v50
  %v2547 = vpop.f32.mrb[0].mxu0
  %v2548 = vadd.f32 0.0, %v2547
  %v2549 = vpop.f32.mrb[0].mxu0
  %2550 = vmatprep.mubr.f32.mxu0 %v272
  %2551 = vmatmul.mubr.f32.gmra.mrb[0].mxu0 %v51
  %v2552 = vpop.f32.mrb[0].mxu0
  %v2553 = vadd.f32 0.0, %v2552
  %v2554 = vpop.f32.mrb[0].mxu0
  %2555 = vmatprep.mubr.f32.mxu0 %v275
  %2556 = vmatmul.mubr.f32.gmra.mrb[0].mxu0 %v53
  %v2557 = vpop.f32.mrb[0].mxu0
  %v2558 = vadd.f32 0.0, %v2557
  %v2559 = vpop.f32.mrb[0].mxu0
  %2560 = vmatprep.mubr.f32.mxu0 %v277
  %2561 = vmatmul.mubr.f32.gmra.mrb[0].mxu0 %v54
  %v2562 = vpop.f32.mrb[0].mxu0
  %v2563 = vadd.f32 0.0, %v2562
  %v2564 = vpop.f32.mrb[0].mxu0
  %2565 = vmatprep.mubr.f32.mxu0 %v280
  %2566 = vmatmul.mubr.f32.gmra.mrb[0].mxu0 %v56
  %v2567 = vpop.f32.mrb[0].mxu0
  %v2568 = vadd.f32 0.0, %v2567
  %v2569 = vpop.f32.mrb[0].mxu0
  %2570 = vmatprep.mubr.f32.mxu0 %v282
  %2571 = vmatmul.mubr.f32.gmra.mrb[0].mxu0 %v57
  %v2572 = vpop.f32.mrb[0].mxu0
  %v2573 = vadd.f32 0.0, %v2572
  %v2574 = vpop.f32.mrb[0].mxu0
  %2575 = vmatprep.mubr.f32.mxu0 %v285
  %2576 = vmatmul.mubr.f32.gmra.mrb[0].mxu0 %v59
  %v2577 = vpop.f32.mrb[0].mxu0
  %v2578 = vadd.f32 0.0, %v2577
  %v2579 = vpop.f32.mrb[0].mxu0
  %2580 = vmatprep.mubr.f32.mxu0 %v287
  %2581 = vmatmul.mubr.f32.gmra.mrb[0].mxu0 %v60
  %v2582 = vpop.f32.mrb[0].mxu0
  %v2583 = vadd.f32 0.0, %v2582
  %v2584 = vpop.f32.mrb[0].mxu0
  %2585 = vmatprep.mubr.f32.mxu0 %v290
  %2586 = vmatmul.mubr.f32.gmra.mrb[0].mxu0 %v62
  %v2587 = vpop.f32.mrb[0].mxu0
  %v2588 = vadd.f32 0.0, %v2587
  %v2589 = vpop.f32.mrb[0].mxu0
  %2590 = vmatprep.mubr.f32.mxu0 %v292
  %2591 = vmatmul.mubr.f32.gmra.mrb[0].mxu0 %v63
  %v2592 = vpop.f32.mrb[0].mxu0
  %v2593 = vadd.f32 0.0, %v2592
  %v2594 = vpop.f32.mrb[0].mxu0
  %2595 = vmatprep.mubr.f32.mxu0 %v295
  %2596 = vmatmul.mubr.f32.gmra.mrb[0].mxu0 %v65
  %v2597 = vpop.f32.mrb[0].mxu0
  %v2598 = vadd.f32 0.0, %v2597
  %v2599 = vpop.f32.mrb[0].mxu0
  %2600 = vmatprep.mubr.f32.mxu0 %v297
  %2601 = vmatmul.mubr.f32.gmra.mrb[0].mxu0 %v66
  %v2602 = vpop.f32.mrb[0].mxu0
  %v2603 = vadd.f32 0.0, %v2602
  %v2604 = vpop.f32.mrb[0].mxu0
  %2605 = vmatprep.mubr.f32.mxu0 %v300
  %2606 = vmatmul.mubr.f32.gmra.mrb[0].mxu0 %v68
  %v2607 = vpop.f32.mrb[0].mxu0
  %v2608 = vadd.f32 0.0, %v2607
  %v2609 = vpop.f32.mrb[0].mxu0
  %2610 = vmatprep.mubr.f32.mxu0 %v302
  %2611 = vmatmul.mubr.f32.gmra.mrb[0].mxu0 %v69
  %v2612 = vpop.f32.mrb[0].mxu0
  %v2613 = vadd.f32 0.0, %v2612
  %v2614 = vpop.f32.mrb[0].mxu0
  %2615 = vmatprep.mubr.f32.mxu0 %v305
  %2616 = vmatmul.mubr.f32.gmra.mrb[0].mxu0 %v71
  %v2617 = vpop.f32.mrb[0].mxu0
  %v2618 = vadd.f32 0.0, %v2617
  %v2619 = vpop.f32.mrb[0].mxu0
  %2620 = vmatprep.mubr.f32.mxu0 %v307
  %2621 = vmatmul.mubr.f32.gmra.mrb[0].mxu0 %v72
  %v2622 = vpop.f32.mrb[0].mxu0
  %v2623 = vadd.f32 0.0, %v2622
  %v2624 = vpop.f32.mrb[0].mxu0
  %2625 = vmatprep.mubr.f32.mxu0 %v310
  %2626 = vmatmul.mubr.f32.gmra.mrb[0].mxu0 %v74
  %v2627 = vpop.f32.mrb[0].mxu0
  %v2628 = vadd.f32 0.0, %v2627
  %v2629 = vpop.f32.mrb[0].mxu0
  %2630 = vmatprep.mubr.f32.mxu0 %v312
  %2631 = vmatmul.mubr.f32.gmra.mrb[0].mxu0 %v75
  %v2632 = vpop.f32.mrb[0].mxu0
  %v2633 = vadd.f32 0.0, %v2632
  %v2634 = vpop.f32.mrb[0].mxu0
  %2635 = vmatprep.mubr.f32.mxu0 %v315
  %2636 = vmatmul.mubr.f32.gmra.mrb[0].mxu0 %v77
  %v2637 = vpop.f32.mrb[0].mxu0
  %v2638 = vadd.f32 0.0, %v2637
  %v2639 = vpop.f32.mrb[0].mxu0
  %2640 = vmatprep.mubr.f32.mxu0 %v317
  %2641 = vmatmul.mubr.f32.gmra.mrb[0].mxu0 %v78
  %v2642 = vpop.f32.mrb[0].mxu0
  %v2643 = vadd.f32 0.0, %v2642
  %v2644 = vpop.f32.mrb[0].mxu0
  %2645 = vmatprep.mubr.f32.mxu0 %v743
  %2646 = vmatmul.mubr.f32.gmra.mrb[0].mxu0 %v80
  %v2647 = vpop.f32.mrb[0].mxu0
  %v2648 = vadd.f32 0.0, %v2647
  %v2649 = vpop.f32.mrb[0].mxu0
  %2650 = vmatprep.mubr.f32.mxu0 %v745
  %2651 = vmatmul.mubr.f32.gmra.mrb[0].mxu0 %v81
  %v2652 = vpop.f32.mrb[0].mxu0
  %v2653 = vadd.f32 0.0, %v2652
  %v2654 = vpop.f32.mrb[0].mxu0
  %2655 = vmatprep.mubr.f32.mxu0 %v2366
  %2656 = vmatmul.mubr.f32.gmra.mrb[0].mxu0 %v83
  %v2657 = vpop.f32.mrb[0].mxu0
  %v2658 = vadd.f32 0.0, %v2657
  %v2659 = vpop.f32.mrb[0].mxu0
  %2660 = vmatprep.mubr.f32.mxu0 %v2368
  %2661 = vmatmul.mubr.f32.gmra.mrb[0].mxu0 %v84
  %v2662 = vpop.f32.mrb[0].mxu0
  %v2663 = vadd.f32 0.0, %v2662
  %v2664 = vpop.f32.mrb[0].mxu0
  %2665 = vmatprep.mubr.f32.mxu0 %v330
  %2666 = vmatmul.mubr.f32.gmra.mrb[0].mxu0 %v92
  %v2667 = vpop.f32.mrb[0].mxu0
  %v2668 = vadd.f32 0.0, %v2667
  %v2669 = vpop.f32.mrb[0].mxu0
  %2670 = vmatprep.mubr.f32.mxu0 %v332
  %2671 = vmatmul.mubr.f32.gmra.mrb[0].mxu0 %v93
  %v2672 = vpop.f32.mrb[0].mxu0
  %v2673 = vadd.f32 0.0, %v2672
  %v2674 = vpop.f32.mrb[0].mxu0
  %2675 = vmatprep.mubr.f32.mxu0 %v335
  %2676 = vmatmul.mubr.f32.gmra.mrb[0].mxu0 %v95
  %v2677 = vpop.f32.mrb[0].mxu0
  %v2678 = vadd.f32 0.0, %v2677
  %v2679 = vpop.f32.mrb[0].mxu0
  %2680 = vmatprep.mubr.f32.mxu0 %v337
  %2681 = vmatmul.mubr.f32.gmra.mrb[0].mxu0 %v96
  %v2682 = vpop.f32.mrb[0].mxu0
  %v2683 = vadd.f32 0.0, %v2682
  %v2684 = vpop.f32.mrb[0].mxu0
  %2685 = vmatprep.mubr.f32.mxu0 %v340
  %2686 = vmatmul.mubr.f32.gmra.mrb[0].mxu0 %v98
  %v2687 = vpop.f32.mrb[0].mxu0
  %v2688 = vadd.f32 0.0, %v2687
  %v2689 = vpop.f32.mrb[0].mxu0
  %2690 = vmatprep.mubr.f32.mxu0 %v342
  %2691 = vmatmul.mubr.f32.gmra.mrb[0].mxu0 %v99
  %v2692 = vpop.f32.mrb[0].mxu0
  %v2693 = vadd.f32 0.0, %v2692
  %v2694 = vpop.f32.mrb[0].mxu0
  %2695 = vmatprep.mubr.f32.mxu0 %v345
  %2696 = vmatmul.mubr.f32.gmra.mrb[0].mxu0 %v101
  %v2697 = vpop.f32.mrb[0].mxu0
  %v2698 = vadd.f32 0.0, %v2697
  %v2699 = vpop.f32.mrb[0].mxu0
  %2700 = vmatprep.mubr.f32.mxu0 %v347
  %2701 = vmatmul.mubr.f32.gmra.mrb[0].mxu0 %v102
  %v2702 = vpop.f32.mrb[0].mxu0
  %v2703 = vadd.f32 0.0, %v2702
  %v2704 = vpop.f32.mrb[0].mxu0
  %2705 = vmatprep.mubr.f32.mxu0 %v350
  %2706 = vmatmul.mubr.f32.gmra.mrb[0].mxu0 %v104
  %v2707 = vpop.f32.mrb[0].mxu0
  %v2708 = vadd.f32 0.0, %v2707
  %v2709 = vpop.f32.mrb[0].mxu0
  %2710 = vmatprep.mubr.f32.mxu0 %v352
  %2711 = vmatmul.mubr.f32.gmra.mrb[0].mxu0 %v105
  %v2712 = vpop.f32.mrb[0].mxu0
  %v2713 = vadd.f32 0.0, %v2712
  %v2714 = vpop.f32.mrb[0].mxu0
  %2715 = vmatprep.mubr.f32.mxu0 %v355
  %2716 = vmatmul.mubr.f32.gmra.mrb[0].mxu0 %v107
  %v2717 = vpop.f32.mrb[0].mxu0
  %v2718 = vadd.f32 0.0, %v2717
  %v2719 = vpop.f32.mrb[0].mxu0
  %2720 = vmatprep.mubr.f32.mxu0 %v357
  %2721 = vmatmul.mubr.f32.gmra.mrb[0].mxu0 %v108
  %v2722 = vpop.f32.mrb[0].mxu0
  %v2723 = vadd.f32 0.0, %v2722
  %v2724 = vpop.f32.mrb[0].mxu0
  %2725 = vmatprep.mubr.f32.mxu0 %v360
  %2726 = vmatmul.mubr.f32.gmra.mrb[0].mxu0 %v110
  %v2727 = vpop.f32.mrb[0].mxu0
  %v2728 = vadd.f32 0.0, %v2727
  %v2729 = vpop.f32.mrb[0].mxu0
  %2730 = vmatprep.mubr.f32.mxu0 %v362
  %2731 = vmatmul.mubr.f32.gmra.mrb[0].mxu0 %v111
  %v2732 = vpop.f32.mrb[0].mxu0
  %v2733 = vadd.f32 0.0, %v2732
  %v2734 = vpop.f32.mrb[0].mxu0
  %2735 = vmatprep.mubr.f32.mxu0 %v365
  %2736 = vmatmul.mubr.f32.gmra.mrb[0].mxu0 %v113
  %v2737 = vpop.f32.mrb[0].mxu0
  %v2738 = vadd.f32 0.0, %v2737
  %v2739 = vpop.f32.mrb[0].mxu0
  %2740 = vmatprep.mubr.f32.mxu0 %v367
  %2741 = vmatmul.mubr.f32.gmra.mrb[0].mxu0 %v114
  %v2742 = vpop.f32.mrb[0].mxu0
  %v2743 = vadd.f32 0.0, %v2742
  %v2744 = vpop.f32.mrb[0].mxu0
  %2745 = vmatprep.mubr.f32.mxu0 %v370
  %2746 = vmatmul.mubr.f32.gmra.mrb[0].mxu0 %v116
  %v2747 = vpop.f32.mrb[0].mxu0
  %v2748 = vadd.f32 0.0, %v2747
  %v2749 = vpop.f32.mrb[0].mxu0
  %2750 = vmatprep.mubr.f32.mxu0 %v372
  %2751 = vmatmul.mubr.f32.gmra.mrb[0].mxu0 %v117
  %v2752 = vpop.f32.mrb[0].mxu0
  %v2753 = vadd.f32 0.0, %v2752
  %v2754 = vpop.f32.mrb[0].mxu0
  %2755 = vmatprep.mubr.f32.mxu0 %v375
  %2756 = vmatmul.mubr.f32.gmra.mrb[0].mxu0 %v119
  %v2757 = vpop.f32.mrb[0].mxu0
  %v2758 = vadd.f32 0.0, %v2757
  %v2759 = vpop.f32.mrb[0].mxu0
  %2760 = vmatprep.mubr.f32.mxu0 %v377
  %2761 = vmatmul.mubr.f32.gmra.mrb[0].mxu0 %v120
  %v2762 = vpop.f32.mrb[0].mxu0
  %v2763 = vadd.f32 0.0, %v2762
  %v2764 = vpop.f32.mrb[0].mxu0
  %2765 = vmatprep.mubr.f32.mxu0 %v380
  %2766 = vmatmul.mubr.f32.gmra.mrb[0].mxu0 %v122
  %v2767 = vpop.f32.mrb[0].mxu0
  %v2768 = vadd.f32 0.0, %v2767
  %v2769 = vpop.f32.mrb[0].mxu0
  %2770 = vmatprep.mubr.f32.mxu0 %v382
  %2771 = vmatmul.mubr.f32.gmra.mrb[0].mxu0 %v123
  %v2772 = vpop.f32.mrb[0].mxu0
  %v2773 = vadd.f32 0.0, %v2772
  %v2774 = vpop.f32.mrb[0].mxu0
  %2775 = vmatprep.mubr.f32.mxu0 %v385
  %2776 = vmatmul.mubr.f32.gmra.mrb[0].mxu0 %v125
  %v2777 = vpop.f32.mrb[0].mxu0
  %v2778 = vadd.f32 0.0, %v2777
  %v2779 = vpop.f32.mrb[0].mxu0
  %2780 = vmatprep.mubr.f32.mxu0 %v387
  %2781 = vmatmul.mubr.f32.gmra.mrb[0].mxu0 %v126
  %v2782 = vpop.f32.mrb[0].mxu0
  %v2783 = vadd.f32 0.0, %v2782
  %v2784 = vpop.f32.mrb[0].mxu0
  %2785 = vmatprep.mubr.f32.mxu0 %v390
  %2786 = vmatmul.mubr.f32.gmra.mrb[0].mxu0 %v128
  %v2787 = vpop.f32.mrb[0].mxu0
  %v2788 = vadd.f32 0.0, %v2787
  %v2789 = vpop.f32.mrb[0].mxu0
  %2790 = vmatprep.mubr.f32.mxu0 %v392
  %2791 = vmatmul.mubr.f32.gmra.mrb[0].mxu0 %v129
  %v2792 = vpop.f32.mrb[0].mxu0
  %v2793 = vadd.f32 0.0, %v2792
  %v2794 = vpop.f32.mrb[0].mxu0
  %2795 = vmatprep.mubr.f32.mxu0 %v395
  %2796 = vmatmul.mubr.f32.gmra.mrb[0].mxu0 %v131
  %v2797 = vpop.f32.mrb[0].mxu0
  %v2798 = vadd.f32 0.0, %v2797
  %v2799 = vpop.f32.mrb[0].mxu0
  %2800 = vmatprep.mubr.f32.mxu0 %v397
  %2801 = vmatmul.mubr.f32.gmra.mrb[0].mxu0 %v132
  %v2802 = vpop.f32.mrb[0].mxu0
  %v2803 = vadd.f32 0.0, %v2802
  %v2804 = vpop.f32.mrb[0].mxu0
  %2805 = vmatprep.mubr.f32.mxu0 %v748
  %2806 = vmatmul.mubr.f32.gmra.mrb[0].mxu0 %v134
  %v2807 = vpop.f32.mrb[0].mxu0
  %v2808 = vadd.f32 0.0, %v2807
  %v2809 = vpop.f32.mrb[0].mxu0
  %2810 = vmatprep.mubr.f32.mxu0 %v750
  %2811 = vmatmul.mubr.f32.gmra.mrb[0].mxu0 %v135
  %v2812 = vpop.f32.mrb[0].mxu0
  %v2813 = vadd.f32 0.0, %v2812
  %v2814 = vpop.f32.mrb[0].mxu0
  %2815 = vmatprep.mubr.f32.mxu0 %v2371
  %2816 = vmatmul.mubr.f32.gmra.mrb[0].mxu0 %v137
  %v2817 = vpop.f32.mrb[0].mxu0
  %v2818 = vadd.f32 0.0, %v2817
  %v2819 = vpop.f32.mrb[0].mxu0
  %2820 = vmatprep.mubr.f32.mxu0 %v2373
  %2821 = vmatmul.mubr.f32.gmra.mrb[0].mxu0 %v138
  %v2822 = vpop.f32.mrb[0].mxu0
  %v2823 = vadd.f32 0.0, %v2822
  %v2824 = vpop.f32.mrb[0].mxu0
  %2825 = vdwg.mxu0
  %2826 = vmatprep.subr.mxu0 0.0
  %2827 = vmatpush1.msra.mxu0 %v2425
  %2828 = vmatprep.subr.mxu0 0.0
  %2829 = vmatpush1.msra.mxu0 %v2426
  %2830 = vmatprep.subr.mxu0 0.0
  %2831 = vmatpush1.msra.mxu0 %v2427
  %2832 = vmatprep.subr.mxu0 0.0
  %2833 = vmatpush1.msra.mxu0 %v2428
  %2834 = vmatprep.subr.mxu0 0.0
  %2835 = vmatpush1.msra.mxu0 %v2429
  %2836 = vmatprep.subr.mxu0 0.0
  %2837 = vmatpush1.msra.mxu0 %v2430
  %2838 = vmatprep.subr.mxu0 0.0
  %2839 = vmatpush1.msra.mxu0 %v2431
  %2840 = vmatprep.subr.mxu0 0.0
  %2841 = vmatpush1.msra.mxu0 %v2432
  %2842 = vmatprep.subr.mxu0 0.0
  %2843 = vmatpush1.msra.mxu0 %v2433
  %2844 = vmatprep.subr.mxu0 0.0
  %2845 = vmatpush1.msra.mxu0 %v2434
  %2846 = vmatprep.subr.mxu0 0.0
  %2847 = vmatpush1.msra.mxu0 %v2435
  %2848 = vmatprep.subr.mxu0 0.0
  %2849 = vmatpush1.msra.mxu0 %v2436
  %2850 = vmatprep.subr.mxu0 0.0
  %2851 = vmatpush1.msra.mxu0 %v2437
  %2852 = vmatprep.subr.mxu0 0.0
  %2853 = vmatpush1.msra.mxu0 %v2438
  %2854 = vmatprep.subr.mxu0 0.0
  %2855 = vmatpush1.msra.mxu0 %v2439
  %2856 = vmatprep.subr.mxu0 0.0
  %2857 = vmatpush1.msra.mxu0 %v2440
  %2858 = vmatprep.subr.mxu0 0.0
  %2859 = vmatpush1.msra.mxu0 0.0
  %2860 = vmatprep.subr.mxu0 0.0
  %2861 = vmatpush1.msra.mxu0 0.0
  %2862 = vmatprep.subr.mxu0 0.0
  %2863 = vmatpush1.msra.mxu0 0.0
  %2864 = vmatprep.subr.mxu0 0.0
  %2865 = vmatpush1.msra.mxu0 0.0
  %2866 = vmatprep.subr.mxu0 0.0
  %2867 = vmatpush1.msra.mxu0 0.0
  %2868 = vmatprep.subr.mxu0 0.0
  %2869 = vmatpush1.msra.mxu0 0.0
  %2870 = vmatprep.subr.mxu0 0.0
  %2871 = vmatpush1.msra.mxu0 0.0
  %2872 = vmatprep.subr.mxu0 0.0
  %2873 = vmatpush1.msra.mxu0 0.0
  %2874 = vmatprep.subr.mxu0 0.0
  %2875 = vmatpush1.msra.mxu0 0.0
  %2876 = vmatprep.subr.mxu0 0.0
  %2877 = vmatpush1.msra.mxu0 0.0
  %2878 = vmatprep.subr.mxu0 0.0
  %2879 = vmatpush1.msra.mxu0 0.0
  %2880 = vmatprep.subr.mxu0 0.0
  %2881 = vmatpush1.msra.mxu0 0.0
  %2882 = vmatprep.subr.mxu0 0.0
  %2883 = vmatpush1.msra.mxu0 0.0
  %2884 = vmatprep.subr.mxu0 0.0
  %2885 = vmatpush1.msra.mxu0 0.0
  %2886 = vmatprep.subr.mxu0 0.0
  %2887 = vmatpush1.msra.mxu0 0.0
  %2888 = vmatprep.subr.mxu0 0.0
  %2889 = vmatpush1.msra.mxu0 0.0
  %2890 = vmatprep.mubr.f32.mxu0 0.0
  %2891 = vmatmul.mubr.f32.gmra.mrb[0].mxu0 %v475
  %v2892 = vpop.f32.mrb[0].mxu0
  %v2893 = vadd.f32 %v2508, %v2892
  %v2894 = vpop.f32.mrb[0].mxu0
  %2895 = vmatprep.mubr.f32.mxu0 0.0
  %2896 = vmatmul.mubr.f32.gmra.mrb[0].mxu0 %v477
  %v2897 = vpop.f32.mrb[0].mxu0
  %v2898 = vadd.f32 %v2513, %v2897
  %v2899 = vpop.f32.mrb[0].mxu0
  %2900 = vmatprep.mubr.f32.mxu0 0.0
  %2901 = vmatmul.mubr.f32.gmra.mrb[0].mxu0 %v480
  %v2902 = vpop.f32.mrb[0].mxu0
  %v2903 = vadd.f32 %v2518, %v2902
  %v2904 = vpop.f32.mrb[0].mxu0
  %2905 = vmatprep.mubr.f32.mxu0 0.0
  %2906 = vmatmul.mubr.f32.gmra.mrb[0].mxu0 %v482
  %v2907 = vpop.f32.mrb[0].mxu0
  %v2908 = vadd.f32 %v2523, %v2907
  %v2909 = vpop.f32.mrb[0].mxu0
  %2910 = vmatprep.mubr.f32.mxu0 0.0
  %2911 = vmatmul.mubr.f32.gmra.mrb[0].mxu0 %v485
  %v2912 = vpop.f32.mrb[0].mxu0
  %v2913 = vadd.f32 %v2528, %v2912
  %v2914 = vpop.f32.mrb[0].mxu0
  %2915 = vmatprep.mubr.f32.mxu0 0.0
  %2916 = vmatmul.mubr.f32.gmra.mrb[0].mxu0 %v487
  %v2917 = vpop.f32.mrb[0].mxu0
  %v2918 = vadd.f32 %v2533, %v2917
  %v2919 = vpop.f32.mrb[0].mxu0
  %2920 = vmatprep.mubr.f32.mxu0 0.0
  %2921 = vmatmul.mubr.f32.gmra.mrb[0].mxu0 %v490
  %v2922 = vpop.f32.mrb[0].mxu0
  %v2923 = vadd.f32 %v2538, %v2922
  %v2924 = vpop.f32.mrb[0].mxu0
  %2925 = vmatprep.mubr.f32.mxu0 0.0
  %2926 = vmatmul.mubr.f32.gmra.mrb[0].mxu0 %v492
  %v2927 = vpop.f32.mrb[0].mxu0
  %v2928 = vadd.f32 %v2543, %v2927
  %v2929 = vpop.f32.mrb[0].mxu0
  %2930 = vmatprep.mubr.f32.mxu0 0.0
  %2931 = vmatmul.mubr.f32.gmra.mrb[0].mxu0 %v495
  %v2932 = vpop.f32.mrb[0].mxu0
  %v2933 = vadd.f32 %v2548, %v2932
  %v2934 = vpop.f32.mrb[0].mxu0
  %2935 = vmatprep.mubr.f32.mxu0 0.0
  %2936 = vmatmul.mubr.f32.gmra.mrb[0].mxu0 %v497
  %v2937 = vpop.f32.mrb[0].mxu0
  %v2938 = vadd.f32 %v2553, %v2937
  %v2939 = vpop.f32.mrb[0].mxu0
  %2940 = vmatprep.mubr.f32.mxu0 0.0
  %2941 = vmatmul.mubr.f32.gmra.mrb[0].mxu0 %v500
  %v2942 = vpop.f32.mrb[0].mxu0
  %v2943 = vadd.f32 %v2558, %v2942
  %v2944 = vpop.f32.mrb[0].mxu0
  %2945 = vmatprep.mubr.f32.mxu0 0.0
  %2946 = vmatmul.mubr.f32.gmra.mrb[0].mxu0 %v502
  %v2947 = vpop.f32.mrb[0].mxu0
  %v2948 = vadd.f32 %v2563, %v2947
  %v2949 = vpop.f32.mrb[0].mxu0
  %2950 = vmatprep.mubr.f32.mxu0 0.0
  %2951 = vmatmul.mubr.f32.gmra.mrb[0].mxu0 %v505
  %v2952 = vpop.f32.mrb[0].mxu0
  %v2953 = vadd.f32 %v2568, %v2952
  %v2954 = vpop.f32.mrb[0].mxu0
  %2955 = vmatprep.mubr.f32.mxu0 0.0
  %2956 = vmatmul.mubr.f32.gmra.mrb[0].mxu0 %v507
  %v2957 = vpop.f32.mrb[0].mxu0
  %v2958 = vadd.f32 %v2573, %v2957
  %v2959 = vpop.f32.mrb[0].mxu0
  %2960 = vmatprep.mubr.f32.mxu0 0.0
  %2961 = vmatmul.mubr.f32.gmra.mrb[0].mxu0 %v510
  %v2962 = vpop.f32.mrb[0].mxu0
  %v2963 = vadd.f32 %v2578, %v2962
  %v2964 = vpop.f32.mrb[0].mxu0
  %2965 = vmatprep.mubr.f32.mxu0 0.0
  %2966 = vmatmul.mubr.f32.gmra.mrb[0].mxu0 %v512
  %v2967 = vpop.f32.mrb[0].mxu0
  %v2968 = vadd.f32 %v2583, %v2967
  %v2969 = vpop.f32.mrb[0].mxu0
  %2970 = vmatprep.mubr.f32.mxu0 0.0
  %2971 = vmatmul.mubr.f32.gmra.mrb[0].mxu0 %v515
  %v2972 = vpop.f32.mrb[0].mxu0
  %v2973 = vadd.f32 %v2588, %v2972
  %v2974 = vpop.f32.mrb[0].mxu0
  %2975 = vmatprep.mubr.f32.mxu0 0.0
  %2976 = vmatmul.mubr.f32.gmra.mrb[0].mxu0 %v517
  %v2977 = vpop.f32.mrb[0].mxu0
  %v2978 = vadd.f32 %v2593, %v2977
  %v2979 = vpop.f32.mrb[0].mxu0
  %2980 = vmatprep.mubr.f32.mxu0 0.0
  %2981 = vmatmul.mubr.f32.gmra.mrb[0].mxu0 %v520
  %v2982 = vpop.f32.mrb[0].mxu0
  %v2983 = vadd.f32 %v2598, %v2982
  %v2984 = vpop.f32.mrb[0].mxu0
  %2985 = vmatprep.mubr.f32.mxu0 0.0
  %2986 = vmatmul.mubr.f32.gmra.mrb[0].mxu0 %v522
  %v2987 = vpop.f32.mrb[0].mxu0
  %v2988 = vadd.f32 %v2603, %v2987
  %v2989 = vpop.f32.mrb[0].mxu0
  %2990 = vmatprep.mubr.f32.mxu0 0.0
  %2991 = vmatmul.mubr.f32.gmra.mrb[0].mxu0 %v525
  %v2992 = vpop.f32.mrb[0].mxu0
  %v2993 = vadd.f32 %v2608, %v2992
  %v2994 = vpop.f32.mrb[0].mxu0
  %2995 = vmatprep.mubr.f32.mxu0 0.0
  %2996 = vmatmul.mubr.f32.gmra.mrb[0].mxu0 %v527
  %v2997 = vpop.f32.mrb[0].mxu0
  %v2998 = vadd.f32 %v2613, %v2997
  %v2999 = vpop.f32.mrb[0].mxu0
  %3000 = vmatprep.mubr.f32.mxu0 0.0
  %3001 = vmatmul.mubr.f32.gmra.mrb[0].mxu0 %v530
  %v3002 = vpop.f32.mrb[0].mxu0
  %v3003 = vadd.f32 %v2618, %v3002
  %v3004 = vpop.f32.mrb[0].mxu0
  %3005 = vmatprep.mubr.f32.mxu0 0.0
  %3006 = vmatmul.mubr.f32.gmra.mrb[0].mxu0 %v532
  %v3007 = vpop.f32.mrb[0].mxu0
  %v3008 = vadd.f32 %v2623, %v3007
  %v3009 = vpop.f32.mrb[0].mxu0
  %3010 = vmatprep.mubr.f32.mxu0 0.0
  %3011 = vmatmul.mubr.f32.gmra.mrb[0].mxu0 %v535
  %v3012 = vpop.f32.mrb[0].mxu0
  %v3013 = vadd.f32 %v2628, %v3012
  %v3014 = vpop.f32.mrb[0].mxu0
  %3015 = vmatprep.mubr.f32.mxu0 0.0
  %3016 = vmatmul.mubr.f32.gmra.mrb[0].mxu0 %v537
  %v3017 = vpop.f32.mrb[0].mxu0
  %v3018 = vadd.f32 %v2633, %v3017
  %v3019 = vpop.f32.mrb[0].mxu0
  %3020 = vmatprep.mubr.f32.mxu0 0.0
  %3021 = vmatmul.mubr.f32.gmra.mrb[0].mxu0 %v540
  %v3022 = vpop.f32.mrb[0].mxu0
  %v3023 = vadd.f32 %v2638, %v3022
  %v3024 = vpop.f32.mrb[0].mxu0
  %3025 = vmatprep.mubr.f32.mxu0 0.0
  %3026 = vmatmul.mubr.f32.gmra.mrb[0].mxu0 %v542
  %v3027 = vpop.f32.mrb[0].mxu0
  %v3028 = vadd.f32 %v2643, %v3027
  %v3029 = vpop.f32.mrb[0].mxu0
  %3030 = vmatprep.mubr.f32.mxu0 0.0
  %3031 = vmatmul.mubr.f32.gmra.mrb[0].mxu0 %v757
  %v3032 = vpop.f32.mrb[0].mxu0
  %v3033 = vadd.f32 %v2648, %v3032
  %v3034 = vpop.f32.mrb[0].mxu0
  %3035 = vmatprep.mubr.f32.mxu0 0.0
  %3036 = vmatmul.mubr.f32.gmra.mrb[0].mxu0 %v759
  %v3037 = vpop.f32.mrb[0].mxu0
  %v3038 = vadd.f32 %v2653, %v3037
  %v3039 = vpop.f32.mrb[0].mxu0
  %3040 = vmatprep.mubr.f32.mxu0 0.0
  %3041 = vmatmul.mubr.f32.gmra.mrb[0].mxu0 %v2380
  %v3042 = vpop.f32.mrb[0].mxu0
  %v3043 = vadd.f32 %v2658, %v3042
  %v3044 = vpop.f32.mrb[0].mxu0
  %3045 = vmatprep.mubr.f32.mxu0 0.0
  %3046 = vmatmul.mubr.f32.gmra.mrb[0].mxu0 %v2382
  %v3047 = vpop.f32.mrb[0].mxu0
  %v3048 = vadd.f32 %v2663, %v3047
  %v3049 = vpop.f32.mrb[0].mxu0
  %3050 = vmatprep.mubr.f32.mxu0 0.0
  %3051 = vmatmul.mubr.f32.gmra.mrb[0].mxu0 %v555
  %v3052 = vpop.f32.mrb[0].mxu0
  %v3053 = vadd.f32 %v2668, %v3052
  %v3054 = vpop.f32.mrb[0].mxu0
  %3055 = vmatprep.mubr.f32.mxu0 0.0
  %3056 = vmatmul.mubr.f32.gmra.mrb[0].mxu0 %v557
  %v3057 = vpop.f32.mrb[0].mxu0
  %v3058 = vadd.f32 %v2673, %v3057
  %v3059 = vpop.f32.mrb[0].mxu0
  %3060 = vmatprep.mubr.f32.mxu0 0.0
  %3061 = vmatmul.mubr.f32.gmra.mrb[0].mxu0 %v560
  %v3062 = vpop.f32.mrb[0].mxu0
  %v3063 = vadd.f32 %v2678, %v3062
  %v3064 = vpop.f32.mrb[0].mxu0
  %3065 = vmatprep.mubr.f32.mxu0 0.0
  %3066 = vmatmul.mubr.f32.gmra.mrb[0].mxu0 %v562
  %v3067 = vpop.f32.mrb[0].mxu0
  %v3068 = vadd.f32 %v2683, %v3067
  %v3069 = vpop.f32.mrb[0].mxu0
  %3070 = vmatprep.mubr.f32.mxu0 0.0
  %3071 = vmatmul.mubr.f32.gmra.mrb[0].mxu0 %v565
  %v3072 = vpop.f32.mrb[0].mxu0
  %v3073 = vadd.f32 %v2688, %v3072
  %v3074 = vpop.f32.mrb[0].mxu0
  %3075 = vmatprep.mubr.f32.mxu0 0.0
  %3076 = vmatmul.mubr.f32.gmra.mrb[0].mxu0 %v567
  %v3077 = vpop.f32.mrb[0].mxu0
  %v3078 = vadd.f32 %v2693, %v3077
  %v3079 = vpop.f32.mrb[0].mxu0
  %3080 = vmatprep.mubr.f32.mxu0 0.0
  %3081 = vmatmul.mubr.f32.gmra.mrb[0].mxu0 %v570
  %v3082 = vpop.f32.mrb[0].mxu0
  %v3083 = vadd.f32 %v2698, %v3082
  %v3084 = vpop.f32.mrb[0].mxu0
  %3085 = vmatprep.mubr.f32.mxu0 0.0
  %3086 = vmatmul.mubr.f32.gmra.mrb[0].mxu0 %v572
  %v3087 = vpop.f32.mrb[0].mxu0
  %v3088 = vadd.f32 %v2703, %v3087
  %v3089 = vpop.f32.mrb[0].mxu0
  %3090 = vmatprep.mubr.f32.mxu0 0.0
  %3091 = vmatmul.mubr.f32.gmra.mrb[0].mxu0 %v575
  %v3092 = vpop.f32.mrb[0].mxu0
  %v3093 = vadd.f32 %v2708, %v3092
  %v3094 = vpop.f32.mrb[0].mxu0
  %3095 = vmatprep.mubr.f32.mxu0 0.0
  %3096 = vmatmul.mubr.f32.gmra.mrb[0].mxu0 %v577
  %v3097 = vpop.f32.mrb[0].mxu0
  %v3098 = vadd.f32 %v2713, %v3097
  %v3099 = vpop.f32.mrb[0].mxu0
  %3100 = vmatprep.mubr.f32.mxu0 0.0
  %3101 = vmatmul.mubr.f32.gmra.mrb[0].mxu0 %v580
  %v3102 = vpop.f32.mrb[0].mxu0
  %v3103 = vadd.f32 %v2718, %v3102
  %v3104 = vpop.f32.mrb[0].mxu0
  %3105 = vmatprep.mubr.f32.mxu0 0.0
  %3106 = vmatmul.mubr.f32.gmra.mrb[0].mxu0 %v582
  %v3107 = vpop.f32.mrb[0].mxu0
  %v3108 = vadd.f32 %v2723, %v3107
  %v3109 = vpop.f32.mrb[0].mxu0
  %3110 = vmatprep.mubr.f32.mxu0 0.0
  %3111 = vmatmul.mubr.f32.gmra.mrb[0].mxu0 %v585
  %v3112 = vpop.f32.mrb[0].mxu0
  %v3113 = vadd.f32 %v2728, %v3112
  %v3114 = vpop.f32.mrb[0].mxu0
  %3115 = vmatprep.mubr.f32.mxu0 0.0
  %3116 = vmatmul.mubr.f32.gmra.mrb[0].mxu0 %v587
  %v3117 = vpop.f32.mrb[0].mxu0
  %v3118 = vadd.f32 %v2733, %v3117
  %v3119 = vpop.f32.mrb[0].mxu0
  %3120 = vmatprep.mubr.f32.mxu0 0.0
  %3121 = vmatmul.mubr.f32.gmra.mrb[0].mxu0 %v590
  %v3122 = vpop.f32.mrb[0].mxu0
  %v3123 = vadd.f32 %v2738, %v3122
  %v3124 = vpop.f32.mrb[0].mxu0
  %3125 = vmatprep.mubr.f32.mxu0 0.0
  %3126 = vmatmul.mubr.f32.gmra.mrb[0].mxu0 %v592
  %v3127 = vpop.f32.mrb[0].mxu0
  %v3128 = vadd.f32 %v2743, %v3127
  %v3129 = vpop.f32.mrb[0].mxu0
  %3130 = vmatprep.mubr.f32.mxu0 0.0
  %3131 = vmatmul.mubr.f32.gmra.mrb[0].mxu0 %v595
  %v3132 = vpop.f32.mrb[0].mxu0
  %v3133 = vadd.f32 %v2748, %v3132
  %v3134 = vpop.f32.mrb[0].mxu0
  %3135 = vmatprep.mubr.f32.mxu0 0.0
  %3136 = vmatmul.mubr.f32.gmra.mrb[0].mxu0 %v597
  %v3137 = vpop.f32.mrb[0].mxu0
  %v3138 = vadd.f32 %v2753, %v3137
  %v3139 = vpop.f32.mrb[0].mxu0
  %3140 = vmatprep.mubr.f32.mxu0 0.0
  %3141 = vmatmul.mubr.f32.gmra.mrb[0].mxu0 %v600
  %v3142 = vpop.f32.mrb[0].mxu0
  %v3143 = vadd.f32 %v2758, %v3142
  %v3144 = vpop.f32.mrb[0].mxu0
  %3145 = vmatprep.mubr.f32.mxu0 0.0
  %3146 = vmatmul.mubr.f32.gmra.mrb[0].mxu0 %v602
  %v3147 = vpop.f32.mrb[0].mxu0
  %v3148 = vadd.f32 %v2763, %v3147
  %v3149 = vpop.f32.mrb[0].mxu0
  %3150 = vmatprep.mubr.f32.mxu0 0.0
  %3151 = vmatmul.mubr.f32.gmra.mrb[0].mxu0 %v605
  %v3152 = vpop.f32.mrb[0].mxu0
  %v3153 = vadd.f32 %v2768, %v3152
  %v3154 = vpop.f32.mrb[0].mxu0
  %3155 = vmatprep.mubr.f32.mxu0 0.0
  %3156 = vmatmul.mubr.f32.gmra.mrb[0].mxu0 %v607
  %v3157 = vpop.f32.mrb[0].mxu0
  %v3158 = vadd.f32 %v2773, %v3157
  %v3159 = vpop.f32.mrb[0].mxu0
  %3160 = vmatprep.mubr.f32.mxu0 0.0
  %3161 = vmatmul.mubr.f32.gmra.mrb[0].mxu0 %v610
  %v3162 = vpop.f32.mrb[0].mxu0
  %v3163 = vadd.f32 %v2778, %v3162
  %v3164 = vpop.f32.mrb[0].mxu0
  %3165 = vmatprep.mubr.f32.mxu0 0.0
  %3166 = vmatmul.mubr.f32.gmra.mrb[0].mxu0 %v612
  %v3167 = vpop.f32.mrb[0].mxu0
  %v3168 = vadd.f32 %v2783, %v3167
  %v3169 = vpop.f32.mrb[0].mxu0
  %3170 = vmatprep.mubr.f32.mxu0 0.0
  %3171 = vmatmul.mubr.f32.gmra.mrb[0].mxu0 %v615
  %v3172 = vpop.f32.mrb[0].mxu0
  %v3173 = vadd.f32 %v2788, %v3172
  %v3174 = vpop.f32.mrb[0].mxu0
  %3175 = vmatprep.mubr.f32.mxu0 0.0
  %3176 = vmatmul.mubr.f32.gmra.mrb[0].mxu0 %v617
  %v3177 = vpop.f32.mrb[0].mxu0
  %v3178 = vadd.f32 %v2793, %v3177
  %v3179 = vpop.f32.mrb[0].mxu0
  %3180 = vmatprep.mubr.f32.mxu0 0.0
  %3181 = vmatmul.mubr.f32.gmra.mrb[0].mxu0 %v620
  %v3182 = vpop.f32.mrb[0].mxu0
  %v3183 = vadd.f32 %v2798, %v3182
  %v3184 = vpop.f32.mrb[0].mxu0
  %3185 = vmatprep.mubr.f32.mxu0 0.0
  %3186 = vmatmul.mubr.f32.gmra.mrb[0].mxu0 %v622
  %v3187 = vpop.f32.mrb[0].mxu0
  %v3188 = vadd.f32 %v2803, %v3187
  %v3189 = vpop.f32.mrb[0].mxu0
  %3190 = vmatprep.mubr.f32.mxu0 0.0
  %3191 = vmatmul.mubr.f32.gmra.mrb[0].mxu0 %v762
  %v3192 = vpop.f32.mrb[0].mxu0
  %v3193 = vadd.f32 %v2808, %v3192
  %v3194 = vpop.f32.mrb[0].mxu0
  %3195 = vmatprep.mubr.f32.mxu0 0.0
  %3196 = vmatmul.mubr.f32.gmra.mrb[0].mxu0 %v764
  %v3197 = vpop.f32.mrb[0].mxu0
  %v3198 = vadd.f32 %v2813, %v3197
  %v3199 = vpop.f32.mrb[0].mxu0
  %3200 = vmatprep.mubr.f32.mxu0 0.0
  %3201 = vmatmul.mubr.f32.gmra.mrb[0].mxu0 %v2385
  %v3202 = vpop.f32.mrb[0].mxu0
  %v3203 = vadd.f32 %v2818, %v3202
  %v3204 = vpop.f32.mrb[0].mxu0
  %3205 = vmatprep.mubr.f32.mxu0 0.0
  %3206 = vmatmul.mubr.f32.gmra.mrb[0].mxu0 %v2387
  %v3207 = vpop.f32.mrb[0].mxu0
  %v3208 = vadd.f32 %v2823, %v3207
  %v3209 = vpop.f32.mrb[0].mxu0
  %3210 = vdwg.mxu0
  %v3211 = vadd.f32 %v2040, %v2893
  %v3212 = vadd.f32 %v2045, %v2898
  %v3213 = vadd.f32 %v2050, %v2903
  %v3214 = vadd.f32 %v2055, %v2908
  %v3215 = vadd.f32 %v2060, %v2913
  %v3216 = vadd.f32 %v2065, %v2918
  %v3217 = vadd.f32 %v2070, %v2923
  %v3218 = vadd.f32 %v2075, %v2928
  %v3219 = vadd.f32 %v2080, %v2933
  %v3220 = vadd.f32 %v2085, %v2938
  %v3221 = vadd.f32 %v2090, %v2943
  %v3222 = vadd.f32 %v2095, %v2948
  %v3223 = vadd.f32 %v2100, %v2953
  %v3224 = vadd.f32 %v2105, %v2958
  %v3225 = vadd.f32 %v2110, %v2963
  %v3226 = vadd.f32 %v2115, %v2968
  %v3227 = vadd.f32 %v2120, %v2973
  %v3228 = vadd.f32 %v2125, %v2978
  %v3229 = vadd.f32 %v2130, %v2983
  %v3230 = vadd.f32 %v2135, %v2988
  %v3231 = vadd.f32 %v2140, %v2993
  %v3232 = vadd.f32 %v2145, %v2998
  %v3233 = vadd.f32 %v2150, %v3003
  %v3234 = vadd.f32 %v2155, %v3008
  %v3235 = vadd.f32 %v2160, %v3013
  %v3236 = vadd.f32 %v2165, %v3018
  %v3237 = vadd.f32 %v2170, %v3023
  %v3238 = vadd.f32 %v2175, %v3028
  %v3239 = vadd.f32 %v2180, %v3033
  %v3240 = vadd.f32 %v2185, %v3038
  %v3241 = vadd.f32 %v2190, %v3043
  %v3242 = vadd.f32 %v2195, %v3048
  %v3243 = vadd.f32 %v2200, %v3053
  %v3244 = vadd.f32 %v2205, %v3058
  %v3245 = vadd.f32 %v2210, %v3063
  %v3246 = vadd.f32 %v2215, %v3068
  %v3247 = vadd.f32 %v2220, %v3073
  %v3248 = vadd.f32 %v2225, %v3078
  %v3249 = vadd.f32 %v2230, %v3083
  %v3250 = vadd.f32 %v2235, %v3088
  %v3251 = vadd.f32 %v2240, %v3093
  %v3252 = vadd.f32 %v2245, %v3098
  %v3253 = vadd.f32 %v2250, %v3103
  %v3254 = vadd.f32 %v2255, %v3108
  %v3255 = vadd.f32 %v2260, %v3113
  %v3256 = vadd.f32 %v2265, %v3118
  %v3257 = vadd.f32 %v2270, %v3123
  %v3258 = vadd.f32 %v2275, %v3128
  %v3259 = vadd.f32 %v2280, %v3133
  %v3260 = vadd.f32 %v2285, %v3138
  %v3261 = vadd.f32 %v2290, %v3143
  %v3262 = vadd.f32 %v2295, %v3148
  %v3263 = vadd.f32 %v2300, %v3153
  %v3264 = vadd.f32 %v2305, %v3158
  %v3265 = vadd.f32 %v2310, %v3163
  %v3266 = vadd.f32 %v2315, %v3168
  %v3267 = vadd.f32 %v2320, %v3173
  %v3268 = vadd.f32 %v2325, %v3178
  %v3269 = vadd.f32 %v2330, %v3183
  %v3270 = vadd.f32 %v2335, %v3188
  %v3271 = vadd.f32 %v2340, %v3193
  %v3272 = vadd.f32 %v2345, %v3198
  %v3273 = vadd.f32 %v2350, %v3203
  %v3274 = vadd.f32 %v2355, %v3208
  %v3276 = vlaneseq
  %v3277 = vshrl.u32 %v3276, 7
  %v3278 = vsub.s32 0, %v3277
  %v3279 = vrot.slane %v140, %v3278
  %v3281 = vadd.f32 %v3211, %v3279
  %v3282 = vadd.f32 %v3212, %v3279
  %v3283 = vadd.f32 %v3213, %v3279
  %v3284 = vadd.f32 %v3214, %v3279
  %v3285 = vadd.f32 %v3215, %v3279
  %v3286 = vadd.f32 %v3216, %v3279
  %v3287 = vadd.f32 %v3217, %v3279
  %v3288 = vadd.f32 %v3218, %v3279
  %v3289 = vadd.f32 %v3219, %v3279
  %v3290 = vadd.f32 %v3220, %v3279
  %v3291 = vadd.f32 %v3221, %v3279
  %v3292 = vadd.f32 %v3222, %v3279
  %v3293 = vadd.f32 %v3223, %v3279
  %v3294 = vadd.f32 %v3224, %v3279
  %v3295 = vadd.f32 %v3225, %v3279
  %v3296 = vadd.f32 %v3226, %v3279
  %v3297 = vadd.f32 %v3227, %v3279
  %v3298 = vadd.f32 %v3228, %v3279
  %v3299 = vadd.f32 %v3229, %v3279
  %v3300 = vadd.f32 %v3230, %v3279
  %v3301 = vadd.f32 %v3231, %v3279
  %v3302 = vadd.f32 %v3232, %v3279
  %v3303 = vadd.f32 %v3233, %v3279
  %v3304 = vadd.f32 %v3234, %v3279
  %v3305 = vadd.f32 %v3235, %v3279
  %v3306 = vadd.f32 %v3236, %v3279
  %v3307 = vadd.f32 %v3237, %v3279
  %v3308 = vadd.f32 %v3238, %v3279
  %v3309 = vadd.f32 %v3239, %v3279
  %v3310 = vadd.f32 %v3240, %v3279
  %v3311 = vadd.f32 %v3241, %v3279
  %v3312 = vadd.f32 %v3242, %v3279
  %v3313 = vadd.f32 %v3243, %v3279
  %v3314 = vadd.f32 %v3244, %v3279
  %v3315 = vadd.f32 %v3245, %v3279
  %v3316 = vadd.f32 %v3246, %v3279
  %v3317 = vadd.f32 %v3247, %v3279
  %v3318 = vadd.f32 %v3248, %v3279
  %v3319 = vadd.f32 %v3249, %v3279
  %v3320 = vadd.f32 %v3250, %v3279
  %v3321 = vadd.f32 %v3251, %v3279
  %v3322 = vadd.f32 %v3252, %v3279
  %v3323 = vadd.f32 %v3253, %v3279
  %v3324 = vadd.f32 %v3254, %v3279
  %v3325 = vadd.f32 %v3255, %v3279
  %v3326 = vadd.f32 %v3256, %v3279
  %v3327 = vadd.f32 %v3257, %v3279
  %v3328 = vadd.f32 %v3258, %v3279
  %v3329 = vadd.f32 %v3259, %v3279
  %v3330 = vadd.f32 %v3260, %v3279
  %v3331 = vadd.f32 %v3261, %v3279
  %v3332 = vadd.f32 %v3262, %v3279
  %v3333 = vadd.f32 %v3263, %v3279
  %v3334 = vadd.f32 %v3264, %v3279
  %v3335 = vadd.f32 %v3265, %v3279
  %v3336 = vadd.f32 %v3266, %v3279
  %v3337 = vadd.f32 %v3267, %v3279
  %v3338 = vadd.f32 %v3268, %v3279
  %v3339 = vadd.f32 %v3269, %v3279
  %v3340 = vadd.f32 %v3270, %v3279
  %v3341 = vadd.f32 %v3271, %v3279
  %v3342 = vadd.f32 %v3272, %v3279
  %v3343 = vadd.f32 %v3273, %v3279
  %v3344 = vadd.f32 %v3274, %v3279
  %v3345 = vmax.f32 %v3281, 0.0
  %v3346 = vmax.f32 %v3282, 0.0
  %v3347 = vmax.f32 %v3283, 0.0
  %v3348 = vmax.f32 %v3284, 0.0
  %v3349 = vmax.f32 %v3285, 0.0
  %v3350 = vmax.f32 %v3286, 0.0
  %v3351 = vmax.f32 %v3287, 0.0
  %v3352 = vmax.f32 %v3288, 0.0
  %v3353 = vmax.f32 %v3289, 0.0
  %v3354 = vmax.f32 %v3290, 0.0
  %v3355 = vmax.f32 %v3291, 0.0
  %v3356 = vmax.f32 %v3292, 0.0
  %v3357 = vmax.f32 %v3293, 0.0
  %v3358 = vmax.f32 %v3294, 0.0
  %v3359 = vmax.f32 %v3295, 0.0
  %v3360 = vmax.f32 %v3296, 0.0
  %v3361 = vmax.f32 %v3297, 0.0
  %v3362 = vmax.f32 %v3298, 0.0
  %v3363 = vmax.f32 %v3299, 0.0
  %v3364 = vmax.f32 %v3300, 0.0
  %v3365 = vmax.f32 %v3301, 0.0
  %v3366 = vmax.f32 %v3302, 0.0
  %v3367 = vmax.f32 %v3303, 0.0
  %v3368 = vmax.f32 %v3304, 0.0
  %v3369 = vmax.f32 %v3305, 0.0
  %v3370 = vmax.f32 %v3306, 0.0
  %v3371 = vmax.f32 %v3307, 0.0
  %v3372 = vmax.f32 %v3308, 0.0
  %v3373 = vmax.f32 %v3309, 0.0
  %v3374 = vmax.f32 %v3310, 0.0
  %v3375 = vmax.f32 %v3311, 0.0
  %v3376 = vmax.f32 %v3312, 0.0
  %v3377 = vmax.f32 %v3313, 0.0
  %v3378 = vmax.f32 %v3314, 0.0
  %v3379 = vmax.f32 %v3315, 0.0
  %v3380 = vmax.f32 %v3316, 0.0
  %v3381 = vmax.f32 %v3317, 0.0
  %v3382 = vmax.f32 %v3318, 0.0
  %v3383 = vmax.f32 %v3319, 0.0
  %v3384 = vmax.f32 %v3320, 0.0
  %v3385 = vmax.f32 %v3321, 0.0
  %v3386 = vmax.f32 %v3322, 0.0
  %v3387 = vmax.f32 %v3323, 0.0
  %v3388 = vmax.f32 %v3324, 0.0
  %v3389 = vmax.f32 %v3325, 0.0
  %v3390 = vmax.f32 %v3326, 0.0
  %v3391 = vmax.f32 %v3327, 0.0
  %v3392 = vmax.f32 %v3328, 0.0
  %v3393 = vmax.f32 %v3329, 0.0
  %v3394 = vmax.f32 %v3330, 0.0
  %v3395 = vmax.f32 %v3331, 0.0
  %v3396 = vmax.f32 %v3332, 0.0
  %v3397 = vmax.f32 %v3333, 0.0
  %v3398 = vmax.f32 %v3334, 0.0
  %v3399 = vmax.f32 %v3335, 0.0
  %v3400 = vmax.f32 %v3336, 0.0
  %v3401 = vmax.f32 %v3337, 0.0
  %v3402 = vmax.f32 %v3338, 0.0
  %v3403 = vmax.f32 %v3339, 0.0
  %v3404 = vmax.f32 %v3340, 0.0
  %v3405 = vmax.f32 %v3341, 0.0
  %v3406 = vmax.f32 %v3342, 0.0
  %v3407 = vmax.f32 %v3343, 0.0
  %v3408 = vmax.f32 %v3344, 0.0
  %v3409 = vld [vmem:[%s3] sm:$0x1]
  %v3410 = vld [vmem:[%s4] sm:$0x1]
  %v3411 = vadd.f32 %v3345, %v3346
  %v3412 = vadd.f32 %v3411, %v3347
  %v3413 = vadd.f32 %v3412, %v3348
  %v3414 = vadd.f32 %v3413, %v3349
  %v3415 = vadd.f32 %v3414, %v3350
  %v3416 = vadd.f32 %v3415, %v3351
  %v3417 = vadd.f32 %v3416, %v3352
  %v3418 = vadd.f32 %v3417, %v3353
  %v3419 = vadd.f32 %v3418, %v3354
  %v3420 = vadd.f32 %v3419, %v3355
  %v3421 = vadd.f32 %v3420, %v3356
  %v3422 = vadd.f32 %v3421, %v3357
  %v3423 = vadd.f32 %v3422, %v3358
  %v3424 = vadd.f32 %v3423, %v3359
  %v3425 = vadd.f32 %v3424, %v3360
  %v3426 = vadd.f32 %v3425, %v3361
  %v3427 = vadd.f32 %v3426, %v3362
  %v3428 = vadd.f32 %v3427, %v3363
  %v3429 = vadd.f32 %v3428, %v3364
  %v3430 = vadd.f32 %v3429, %v3365
  %v3431 = vadd.f32 %v3430, %v3366
  %v3432 = vadd.f32 %v3431, %v3367
  %v3433 = vadd.f32 %v3432, %v3368
  %v3434 = vadd.f32 %v3433, %v3369
  %v3435 = vadd.f32 %v3434, %v3370
  %v3436 = vadd.f32 %v3435, %v3371
  %v3437 = vadd.f32 %v3436, %v3372
  %v3438 = vadd.f32 %v3437, %v3373
  %v3439 = vadd.f32 %v3438, %v3374
  %v3440 = vadd.f32 %v3439, %v3375
  %v3441 = vadd.f32 %v3440, %v3376
  %v3442 = vadd.f32 %v3441, %v3377
  %v3443 = vadd.f32 %v3442, %v3378
  %v3444 = vadd.f32 %v3443, %v3379
  %v3445 = vadd.f32 %v3444, %v3380
  %v3446 = vadd.f32 %v3445, %v3381
  %v3447 = vadd.f32 %v3446, %v3382
  %v3448 = vadd.f32 %v3447, %v3383
  %v3449 = vadd.f32 %v3448, %v3384
  %v3450 = vadd.f32 %v3449, %v3385
  %v3451 = vadd.f32 %v3450, %v3386
  %v3452 = vadd.f32 %v3451, %v3387
  %v3453 = vadd.f32 %v3452, %v3388
  %v3454 = vadd.f32 %v3453, %v3389
  %v3455 = vadd.f32 %v3454, %v3390
  %v3456 = vadd.f32 %v3455, %v3391
  %v3457 = vadd.f32 %v3456, %v3392
  %v3458 = vadd.f32 %v3457, %v3393
  %v3459 = vadd.f32 %v3458, %v3394
  %v3460 = vadd.f32 %v3459, %v3395
  %v3461 = vadd.f32 %v3460, %v3396
  %v3462 = vadd.f32 %v3461, %v3397
  %v3463 = vadd.f32 %v3462, %v3398
  %v3464 = vadd.f32 %v3463, %v3399
  %v3465 = vadd.f32 %v3464, %v3400
  %v3466 = vadd.f32 %v3465, %v3401
  %v3467 = vadd.f32 %v3466, %v3402
  %v3468 = vadd.f32 %v3467, %v3403
  %v3469 = vadd.f32 %v3468, %v3404
  %v3470 = vadd.f32 %v3469, %v3405
  %v3471 = vadd.f32 %v3470, %v3406
  %v3472 = vadd.f32 %v3471, %v3407
  %v3473 = vadd.f32 %v3472, %v3408
  %v3474 = vrot.slane %v3473, 4
  %v3475 = vadd.f32 %v3473, %v3474
  %v3476 = vrot.slane %v3475, 2
  %v3477 = vadd.f32 %v3475, %v3476
  %v3478 = vrot.slane %v3477, 1
  %v3479 = vadd.f32 %v3477, %v3478
  %v3480 = vmul.f32 %v3479, 0.001953125
  %v3481 = vsub.f32 %v3345, %v3480
  %v3482 = vsub.f32 %v3346, %v3480
  %v3483 = vsub.f32 %v3347, %v3480
  %v3484 = vsub.f32 %v3348, %v3480
  %v3485 = vsub.f32 %v3349, %v3480
  %v3486 = vsub.f32 %v3350, %v3480
  %v3487 = vsub.f32 %v3351, %v3480
  %v3488 = vsub.f32 %v3352, %v3480
  %v3489 = vsub.f32 %v3353, %v3480
  %v3490 = vsub.f32 %v3354, %v3480
  %v3491 = vsub.f32 %v3355, %v3480
  %v3492 = vsub.f32 %v3356, %v3480
  %v3493 = vsub.f32 %v3357, %v3480
  %v3494 = vsub.f32 %v3358, %v3480
  %v3495 = vsub.f32 %v3359, %v3480
  %v3496 = vsub.f32 %v3360, %v3480
  %v3497 = vsub.f32 %v3361, %v3480
  %v3498 = vsub.f32 %v3362, %v3480
  %v3499 = vsub.f32 %v3363, %v3480
  %v3500 = vsub.f32 %v3364, %v3480
  %v3501 = vsub.f32 %v3365, %v3480
  %v3502 = vsub.f32 %v3366, %v3480
  %v3503 = vsub.f32 %v3367, %v3480
  %v3504 = vsub.f32 %v3368, %v3480
  %v3505 = vsub.f32 %v3369, %v3480
  %v3506 = vsub.f32 %v3370, %v3480
  %v3507 = vsub.f32 %v3371, %v3480
  %v3508 = vsub.f32 %v3372, %v3480
  %v3509 = vsub.f32 %v3373, %v3480
  %v3510 = vsub.f32 %v3374, %v3480
  %v3511 = vsub.f32 %v3375, %v3480
  %v3512 = vsub.f32 %v3376, %v3480
  %v3513 = vsub.f32 %v3377, %v3480
  %v3514 = vsub.f32 %v3378, %v3480
  %v3515 = vsub.f32 %v3379, %v3480
  %v3516 = vsub.f32 %v3380, %v3480
  %v3517 = vsub.f32 %v3381, %v3480
  %v3518 = vsub.f32 %v3382, %v3480
  %v3519 = vsub.f32 %v3383, %v3480
  %v3520 = vsub.f32 %v3384, %v3480
  %v3521 = vsub.f32 %v3385, %v3480
  %v3522 = vsub.f32 %v3386, %v3480
  %v3523 = vsub.f32 %v3387, %v3480
  %v3524 = vsub.f32 %v3388, %v3480
  %v3525 = vsub.f32 %v3389, %v3480
  %v3526 = vsub.f32 %v3390, %v3480
  %v3527 = vsub.f32 %v3391, %v3480
  %v3528 = vsub.f32 %v3392, %v3480
  %v3529 = vsub.f32 %v3393, %v3480
  %v3530 = vsub.f32 %v3394, %v3480
  %v3531 = vsub.f32 %v3395, %v3480
  %v3532 = vsub.f32 %v3396, %v3480
  %v3533 = vsub.f32 %v3397, %v3480
  %v3534 = vsub.f32 %v3398, %v3480
  %v3535 = vsub.f32 %v3399, %v3480
  %v3536 = vsub.f32 %v3400, %v3480
  %v3537 = vsub.f32 %v3401, %v3480
  %v3538 = vsub.f32 %v3402, %v3480
  %v3539 = vsub.f32 %v3403, %v3480
  %v3540 = vsub.f32 %v3404, %v3480
  %v3541 = vsub.f32 %v3405, %v3480
  %v3542 = vsub.f32 %v3406, %v3480
  %v3543 = vsub.f32 %v3407, %v3480
  %v3544 = vsub.f32 %v3408, %v3480
  %v3545 = vmul.f32 %v3481, %v3481
  %v3546 = vmul.f32 %v3482, %v3482
  %v3547 = vmul.f32 %v3483, %v3483
  %v3548 = vmul.f32 %v3484, %v3484
  %v3549 = vmul.f32 %v3485, %v3485
  %v3550 = vmul.f32 %v3486, %v3486
  %v3551 = vmul.f32 %v3487, %v3487
  %v3552 = vmul.f32 %v3488, %v3488
  %v3553 = vmul.f32 %v3489, %v3489
  %v3554 = vmul.f32 %v3490, %v3490
  %v3555 = vmul.f32 %v3491, %v3491
  %v3556 = vmul.f32 %v3492, %v3492
  %v3557 = vmul.f32 %v3493, %v3493
  %v3558 = vmul.f32 %v3494, %v3494
  %v3559 = vmul.f32 %v3495, %v3495
  %v3560 = vmul.f32 %v3496, %v3496
  %v3561 = vmul.f32 %v3497, %v3497
  %v3562 = vmul.f32 %v3498, %v3498
  %v3563 = vmul.f32 %v3499, %v3499
  %v3564 = vmul.f32 %v3500, %v3500
  %v3565 = vmul.f32 %v3501, %v3501
  %v3566 = vmul.f32 %v3502, %v3502
  %v3567 = vmul.f32 %v3503, %v3503
  %v3568 = vmul.f32 %v3504, %v3504
  %v3569 = vmul.f32 %v3505, %v3505
  %v3570 = vmul.f32 %v3506, %v3506
  %v3571 = vmul.f32 %v3507, %v3507
  %v3572 = vmul.f32 %v3508, %v3508
  %v3573 = vmul.f32 %v3509, %v3509
  %v3574 = vmul.f32 %v3510, %v3510
  %v3575 = vmul.f32 %v3511, %v3511
  %v3576 = vmul.f32 %v3512, %v3512
  %v3577 = vmul.f32 %v3513, %v3513
  %v3578 = vmul.f32 %v3514, %v3514
  %v3579 = vmul.f32 %v3515, %v3515
  %v3580 = vmul.f32 %v3516, %v3516
  %v3581 = vmul.f32 %v3517, %v3517
  %v3582 = vmul.f32 %v3518, %v3518
  %v3583 = vmul.f32 %v3519, %v3519
  %v3584 = vmul.f32 %v3520, %v3520
  %v3585 = vmul.f32 %v3521, %v3521
  %v3586 = vmul.f32 %v3522, %v3522
  %v3587 = vmul.f32 %v3523, %v3523
  %v3588 = vmul.f32 %v3524, %v3524
  %v3589 = vmul.f32 %v3525, %v3525
  %v3590 = vmul.f32 %v3526, %v3526
  %v3591 = vmul.f32 %v3527, %v3527
  %v3592 = vmul.f32 %v3528, %v3528
  %v3593 = vmul.f32 %v3529, %v3529
  %v3594 = vmul.f32 %v3530, %v3530
  %v3595 = vmul.f32 %v3531, %v3531
  %v3596 = vmul.f32 %v3532, %v3532
  %v3597 = vmul.f32 %v3533, %v3533
  %v3598 = vmul.f32 %v3534, %v3534
  %v3599 = vmul.f32 %v3535, %v3535
  %v3600 = vmul.f32 %v3536, %v3536
  %v3601 = vmul.f32 %v3537, %v3537
  %v3602 = vmul.f32 %v3538, %v3538
  %v3603 = vmul.f32 %v3539, %v3539
  %v3604 = vmul.f32 %v3540, %v3540
  %v3605 = vmul.f32 %v3541, %v3541
  %v3606 = vmul.f32 %v3542, %v3542
  %v3607 = vmul.f32 %v3543, %v3543
  %v3608 = vmul.f32 %v3544, %v3544
  %v3609 = vadd.f32 %v3545, %v3546
  %v3610 = vadd.f32 %v3609, %v3547
  %v3611 = vadd.f32 %v3610, %v3548
  %v3612 = vadd.f32 %v3611, %v3549
  %v3613 = vadd.f32 %v3612, %v3550
  %v3614 = vadd.f32 %v3613, %v3551
  %v3615 = vadd.f32 %v3614, %v3552
  %v3616 = vadd.f32 %v3615, %v3553
  %v3617 = vadd.f32 %v3616, %v3554
  %v3618 = vadd.f32 %v3617, %v3555
  %v3619 = vadd.f32 %v3618, %v3556
  %v3620 = vadd.f32 %v3619, %v3557
  %v3621 = vadd.f32 %v3620, %v3558
  %v3622 = vadd.f32 %v3621, %v3559
  %v3623 = vadd.f32 %v3622, %v3560
  %v3624 = vadd.f32 %v3623, %v3561
  %v3625 = vadd.f32 %v3624, %v3562
  %v3626 = vadd.f32 %v3625, %v3563
  %v3627 = vadd.f32 %v3626, %v3564
  %v3628 = vadd.f32 %v3627, %v3565
  %v3629 = vadd.f32 %v3628, %v3566
  %v3630 = vadd.f32 %v3629, %v3567
  %v3631 = vadd.f32 %v3630, %v3568
  %v3632 = vadd.f32 %v3631, %v3569
  %v3633 = vadd.f32 %v3632, %v3570
  %v3634 = vadd.f32 %v3633, %v3571
  %v3635 = vadd.f32 %v3634, %v3572
  %v3636 = vadd.f32 %v3635, %v3573
  %v3637 = vadd.f32 %v3636, %v3574
  %v3638 = vadd.f32 %v3637, %v3575
  %v3639 = vadd.f32 %v3638, %v3576
  %v3640 = vadd.f32 %v3639, %v3577
  %v3641 = vadd.f32 %v3640, %v3578
  %v3642 = vadd.f32 %v3641, %v3579
  %v3643 = vadd.f32 %v3642, %v3580
  %v3644 = vadd.f32 %v3643, %v3581
  %v3645 = vadd.f32 %v3644, %v3582
  %v3646 = vadd.f32 %v3645, %v3583
  %v3647 = vadd.f32 %v3646, %v3584
  %v3648 = vadd.f32 %v3647, %v3585
  %v3649 = vadd.f32 %v3648, %v3586
  %v3650 = vadd.f32 %v3649, %v3587
  %v3651 = vadd.f32 %v3650, %v3588
  %v3652 = vadd.f32 %v3651, %v3589
  %v3653 = vadd.f32 %v3652, %v3590
  %v3654 = vadd.f32 %v3653, %v3591
  %v3655 = vadd.f32 %v3654, %v3592
  %v3656 = vadd.f32 %v3655, %v3593
  %v3657 = vadd.f32 %v3656, %v3594
  %v3658 = vadd.f32 %v3657, %v3595
  %v3659 = vadd.f32 %v3658, %v3596
  %v3660 = vadd.f32 %v3659, %v3597
  %v3661 = vadd.f32 %v3660, %v3598
  %v3662 = vadd.f32 %v3661, %v3599
  %v3663 = vadd.f32 %v3662, %v3600
  %v3664 = vadd.f32 %v3663, %v3601
  %v3665 = vadd.f32 %v3664, %v3602
  %v3666 = vadd.f32 %v3665, %v3603
  %v3667 = vadd.f32 %v3666, %v3604
  %v3668 = vadd.f32 %v3667, %v3605
  %v3669 = vadd.f32 %v3668, %v3606
  %v3670 = vadd.f32 %v3669, %v3607
  %v3671 = vadd.f32 %v3670, %v3608
  %v3672 = vrot.slane %v3671, 4
  %v3673 = vadd.f32 %v3671, %v3672
  %v3674 = vrot.slane %v3673, 2
  %v3675 = vadd.f32 %v3673, %v3674
  %v3676 = vrot.slane %v3675, 1
  %v3677 = vadd.f32 %v3675, %v3676
  %v3678 = vmul.f32 %v3677, 0.001953125
  %v3679 = vadd.f32 %v3678, 1e-05
  %v3680 = vrsqrt.pop %v3679
  %v3681 = vmul.f32 %v3409, %v3680
  %v3682 = vmul.f32 %v3480, %v3681
  %v3683 = vsub.f32 %v3410, %v3682
  %v3685 = vlaneseq
  %v3686 = vshrl.u32 %v3685, 7
  %v3687 = vsub.s32 0, %v3686
  %v3688 = vrot.slane %v3681, %v3687
  %v3690 = vmul.f32 %v3345, %v3688
  %v3691 = vmul.f32 %v3346, %v3688
  %v3692 = vmul.f32 %v3347, %v3688
  %v3693 = vmul.f32 %v3348, %v3688
  %v3694 = vmul.f32 %v3349, %v3688
  %v3695 = vmul.f32 %v3350, %v3688
  %v3696 = vmul.f32 %v3351, %v3688
  %v3697 = vmul.f32 %v3352, %v3688
  %v3698 = vmul.f32 %v3353, %v3688
  %v3699 = vmul.f32 %v3354, %v3688
  %v3700 = vmul.f32 %v3355, %v3688
  %v3701 = vmul.f32 %v3356, %v3688
  %v3702 = vmul.f32 %v3357, %v3688
  %v3703 = vmul.f32 %v3358, %v3688
  %v3704 = vmul.f32 %v3359, %v3688
  %v3705 = vmul.f32 %v3360, %v3688
  %v3706 = vmul.f32 %v3361, %v3688
  %v3707 = vmul.f32 %v3362, %v3688
  %v3708 = vmul.f32 %v3363, %v3688
  %v3709 = vmul.f32 %v3364, %v3688
  %v3710 = vmul.f32 %v3365, %v3688
  %v3711 = vmul.f32 %v3366, %v3688
  %v3712 = vmul.f32 %v3367, %v3688
  %v3713 = vmul.f32 %v3368, %v3688
  %v3714 = vmul.f32 %v3369, %v3688
  %v3715 = vmul.f32 %v3370, %v3688
  %v3716 = vmul.f32 %v3371, %v3688
  %v3717 = vmul.f32 %v3372, %v3688
  %v3718 = vmul.f32 %v3373, %v3688
  %v3719 = vmul.f32 %v3374, %v3688
  %v3720 = vmul.f32 %v3375, %v3688
  %v3721 = vmul.f32 %v3376, %v3688
  %v3722 = vmul.f32 %v3377, %v3688
  %v3723 = vmul.f32 %v3378, %v3688
  %v3724 = vmul.f32 %v3379, %v3688
  %v3725 = vmul.f32 %v3380, %v3688
  %v3726 = vmul.f32 %v3381, %v3688
  %v3727 = vmul.f32 %v3382, %v3688
  %v3728 = vmul.f32 %v3383, %v3688
  %v3729 = vmul.f32 %v3384, %v3688
  %v3730 = vmul.f32 %v3385, %v3688
  %v3731 = vmul.f32 %v3386, %v3688
  %v3732 = vmul.f32 %v3387, %v3688
  %v3733 = vmul.f32 %v3388, %v3688
  %v3734 = vmul.f32 %v3389, %v3688
  %v3735 = vmul.f32 %v3390, %v3688
  %v3736 = vmul.f32 %v3391, %v3688
  %v3737 = vmul.f32 %v3392, %v3688
  %v3738 = vmul.f32 %v3393, %v3688
  %v3739 = vmul.f32 %v3394, %v3688
  %v3740 = vmul.f32 %v3395, %v3688
  %v3741 = vmul.f32 %v3396, %v3688
  %v3742 = vmul.f32 %v3397, %v3688
  %v3743 = vmul.f32 %v3398, %v3688
  %v3744 = vmul.f32 %v3399, %v3688
  %v3745 = vmul.f32 %v3400, %v3688
  %v3746 = vmul.f32 %v3401, %v3688
  %v3747 = vmul.f32 %v3402, %v3688
  %v3748 = vmul.f32 %v3403, %v3688
  %v3749 = vmul.f32 %v3404, %v3688
  %v3750 = vmul.f32 %v3405, %v3688
  %v3751 = vmul.f32 %v3406, %v3688
  %v3752 = vmul.f32 %v3407, %v3688
  %v3753 = vmul.f32 %v3408, %v3688
  %v3755 = vlaneseq
  %v3756 = vshrl.u32 %v3755, 7
  %v3757 = vsub.s32 0, %v3756
  %v3758 = vrot.slane %v3683, %v3757
  %v3760 = vadd.f32 %v3690, %v3758
  %v3761 = vadd.f32 %v3691, %v3758
  %v3762 = vadd.f32 %v3692, %v3758
  %v3763 = vadd.f32 %v3693, %v3758
  %v3764 = vadd.f32 %v3694, %v3758
  %v3765 = vadd.f32 %v3695, %v3758
  %v3766 = vadd.f32 %v3696, %v3758
  %v3767 = vadd.f32 %v3697, %v3758
  %v3768 = vadd.f32 %v3698, %v3758
  %v3769 = vadd.f32 %v3699, %v3758
  %v3770 = vadd.f32 %v3700, %v3758
  %v3771 = vadd.f32 %v3701, %v3758
  %v3772 = vadd.f32 %v3702, %v3758
  %v3773 = vadd.f32 %v3703, %v3758
  %v3774 = vadd.f32 %v3704, %v3758
  %v3775 = vadd.f32 %v3705, %v3758
  %v3776 = vadd.f32 %v3706, %v3758
  %v3777 = vadd.f32 %v3707, %v3758
  %v3778 = vadd.f32 %v3708, %v3758
  %v3779 = vadd.f32 %v3709, %v3758
  %v3780 = vadd.f32 %v3710, %v3758
  %v3781 = vadd.f32 %v3711, %v3758
  %v3782 = vadd.f32 %v3712, %v3758
  %v3783 = vadd.f32 %v3713, %v3758
  %v3784 = vadd.f32 %v3714, %v3758
  %v3785 = vadd.f32 %v3715, %v3758
  %v3786 = vadd.f32 %v3716, %v3758
  %v3787 = vadd.f32 %v3717, %v3758
  %v3788 = vadd.f32 %v3718, %v3758
  %v3789 = vadd.f32 %v3719, %v3758
  %v3790 = vadd.f32 %v3720, %v3758
  %v3791 = vadd.f32 %v3721, %v3758
  %v3792 = vadd.f32 %v3722, %v3758
  %v3793 = vadd.f32 %v3723, %v3758
  %v3794 = vadd.f32 %v3724, %v3758
  %v3795 = vadd.f32 %v3725, %v3758
  %v3796 = vadd.f32 %v3726, %v3758
  %v3797 = vadd.f32 %v3727, %v3758
  %v3798 = vadd.f32 %v3728, %v3758
  %v3799 = vadd.f32 %v3729, %v3758
  %v3800 = vadd.f32 %v3730, %v3758
  %v3801 = vadd.f32 %v3731, %v3758
  %v3802 = vadd.f32 %v3732, %v3758
  %v3803 = vadd.f32 %v3733, %v3758
  %v3804 = vadd.f32 %v3734, %v3758
  %v3805 = vadd.f32 %v3735, %v3758
  %v3806 = vadd.f32 %v3736, %v3758
  %v3807 = vadd.f32 %v3737, %v3758
  %v3808 = vadd.f32 %v3738, %v3758
  %v3809 = vadd.f32 %v3739, %v3758
  %v3810 = vadd.f32 %v3740, %v3758
  %v3811 = vadd.f32 %v3741, %v3758
  %v3812 = vadd.f32 %v3742, %v3758
  %v3813 = vadd.f32 %v3743, %v3758
  %v3814 = vadd.f32 %v3744, %v3758
  %v3815 = vadd.f32 %v3745, %v3758
  %v3816 = vadd.f32 %v3746, %v3758
  %v3817 = vadd.f32 %v3747, %v3758
  %v3818 = vadd.f32 %v3748, %v3758
  %v3819 = vadd.f32 %v3749, %v3758
  %v3820 = vadd.f32 %v3750, %v3758
  %v3821 = vadd.f32 %v3751, %v3758
  %v3822 = vadd.f32 %v3752, %v3758
  %v3823 = vadd.f32 %v3753, %v3758
  %3824 = vst [vmem:[#allocation2] sm:$0xff] 0.0
  %3825 = vst [vmem:[#allocation2 + $0x8] sm:$0xff] 0.0
  %3826 = vst [vmem:[#allocation2 + $0x10] sm:$0x3] 0.0
  %3827 = vst [vmem:[#allocation2 + $0x18] sm:$0xff] 0.0
  %3828 = vst [vmem:[#allocation2 + $0x20] sm:$0xff] 0.0
  %3829 = vst [vmem:[#allocation2 + $0x28] sm:$0x3] 0.0
  %3830 = vst [vmem:[#allocation2 + $0x30] sm:$0xff] 0.0
  %3831 = vst [vmem:[#allocation2 + $0x38] sm:$0xff] 0.0
  %3832 = vst [vmem:[#allocation2 + $0x40] sm:$0x3] 0.0
  %3833 = vst [vmem:[#allocation2 + $0x48] sm:$0xff] 0.0
  %3834 = vst [vmem:[#allocation2 + $0x50] sm:$0xff] 0.0
  %3835 = vst [vmem:[#allocation2 + $0x58] sm:$0x3] 0.0
  %3836 = vst [vmem:[#allocation2 + $0x60] sm:$0xff] 0.0
  %3837 = vst [vmem:[#allocation2 + $0x68] sm:$0xff] 0.0
  %3838 = vst [vmem:[#allocation2 + $0x70] sm:$0x3] 0.0
  %3839 = vst [vmem:[#allocation2 + $0x78] sm:$0xff] 0.0
  %3840 = vst [vmem:[#allocation2 + $0x80] sm:$0xff] 0.0
  %3841 = vst [vmem:[#allocation2 + $0x88] sm:$0x3] 0.0
  %3842 = vst [vmem:[#allocation2 + $0x90] sm:$0xff] 0.0
  %3843 = vst [vmem:[#allocation2 + $0x98] sm:$0xff] 0.0
  %3844 = vst [vmem:[#allocation2 + $0xa0] sm:$0x3] 0.0
  %3845 = vst [vmem:[#allocation2 + $0xa8] sm:$0xff] 0.0
  %3846 = vst [vmem:[#allocation2 + $0xb0] sm:$0xff] 0.0
  %3847 = vst [vmem:[#allocation2 + $0xb8] sm:$0x3] 0.0
  %3848 = vst [vmem:[#allocation2 + $0xc0] sm:$0xff] 0.0
  %3849 = vst [vmem:[#allocation2 + $0xc8] sm:$0xff] 0.0
  %3850 = vst [vmem:[#allocation2 + $0xd0] sm:$0x3] 0.0
  %3851 = vst [vmem:[#allocation2 + $0xd8] sm:$0xff] 0.0
  %3852 = vst [vmem:[#allocation2 + $0xe0] sm:$0xff] 0.0
  %3853 = vst [vmem:[#allocation2 + $0xe8] sm:$0x3] 0.0
  %3854 = vst [vmem:[#allocation2 + $0xf0] sm:$0xff] 0.0
  %3855 = vst [vmem:[#allocation2 + $0xf8] sm:$0xff] 0.0
  %3856 = vst [vmem:[#allocation2 + $0x100] sm:$0x3] 0.0
  %3857 = vst [vmem:[#allocation2 + $0x108] sm:$0xff] 0.0
  %3858 = vst [vmem:[#allocation2 + $0x110] sm:$0xff] 0.0
  %3859 = vst [vmem:[#allocation2 + $0x118] sm:$0x3] 0.0
  %3860 = vst [vmem:[#allocation2 + $0x120] sm:$0xff] 0.0
  %3861 = vst [vmem:[#allocation2 + $0x128] sm:$0xff] 0.0
  %3862 = vst [vmem:[#allocation2 + $0x130] sm:$0x3] 0.0
  %3863 = vst [vmem:[#allocation2 + $0x138] sm:$0xff] 0.0
  %3864 = vst [vmem:[#allocation2 + $0x140] sm:$0xff] 0.0
  %3865 = vst [vmem:[#allocation2 + $0x148] sm:$0x3] 0.0
  %3866 = vst [vmem:[#allocation2 + $0x150] sm:$0xff] 0.0
  %3867 = vst [vmem:[#allocation2 + $0x158] sm:$0xff] 0.0
  %3868 = vst [vmem:[#allocation2 + $0x160] sm:$0x3] 0.0
  %3869 = vst [vmem:[#allocation2 + $0x168] sm:$0xff] 0.0
  %3870 = vst [vmem:[#allocation2 + $0x170] sm:$0xff] 0.0
  %3871 = vst [vmem:[#allocation2 + $0x178] sm:$0x3] 0.0
  %3872 = vst [vmem:[#allocation2 + $0x180] sm:$0xff] 0.0
  %3873 = vst [vmem:[#allocation2 + $0x188] sm:$0xff] 0.0
  %3874 = vst [vmem:[#allocation2 + $0x190] sm:$0x3] 0.0
  %3875 = vst [vmem:[#allocation2 + $0x198] sm:$0xff] 0.0
  %3876 = vst [vmem:[#allocation2 + $0x1a0] sm:$0xff] 0.0
  %3877 = vst [vmem:[#allocation2 + $0x1a8] sm:$0x3] 0.0
  %3878 = vst [vmem:[#allocation2 + $0x1b0] sm:$0xff] 0.0
  %3879 = vst [vmem:[#allocation2 + $0x1b8] sm:$0xff] 0.0
  %3880 = vst [vmem:[#allocation2 + $0x1c0] sm:$0x3] 0.0
  %3881 = vst [vmem:[#allocation2 + $0x1c8] sm:$0xff] 0.0
  %3882 = vst [vmem:[#allocation2 + $0x1d0] sm:$0xff] 0.0
  %3883 = vst [vmem:[#allocation2 + $0x1d8] sm:$0x3] 0.0
  %3884 = vst [vmem:[#allocation2 + $0x1e0] sm:$0xff] 0.0
  %3885 = vst [vmem:[#allocation2 + $0x1e8] sm:$0xff] 0.0
  %3886 = vst [vmem:[#allocation2 + $0x1f0] sm:$0x3] 0.0
  %3887 = vst [vmem:[#allocation2 + $0x1f8] sm:$0xff] 0.0
  %3888 = vst [vmem:[#allocation2 + $0x200] sm:$0xff] 0.0
  %3889 = vst [vmem:[#allocation2 + $0x208] sm:$0x3] 0.0
  %3890 = vst [vmem:[#allocation2 + $0x210] sm:$0xff] 0.0
  %3891 = vst [vmem:[#allocation2 + $0x218] sm:$0xff] 0.0
  %3892 = vst [vmem:[#allocation2 + $0x220] sm:$0x3] 0.0
  %3893 = vst [vmem:[#allocation2 + $0x228] sm:$0xff] 0.0
  %3894 = vst [vmem:[#allocation2 + $0x230] sm:$0xff] 0.0
  %3895 = vst [vmem:[#allocation2 + $0x238] sm:$0x3] 0.0
  %3896 = vst [vmem:[#allocation2 + $0x240] sm:$0xff] 0.0
  %3897 = vst [vmem:[#allocation2 + $0x248] sm:$0xff] 0.0
  %3898 = vst [vmem:[#allocation2 + $0x250] sm:$0x3] 0.0
  %3899 = vst [vmem:[#allocation2 + $0x258] sm:$0xff] 0.0
  %3900 = vst [vmem:[#allocation2 + $0x260] sm:$0xff] 0.0
  %3901 = vst [vmem:[#allocation2 + $0x268] sm:$0x3] 0.0
  %3902 = vst [vmem:[#allocation2 + $0x270] sm:$0xff] 0.0
  %3903 = vst [vmem:[#allocation2 + $0x278] sm:$0xff] 0.0
  %3904 = vst [vmem:[#allocation2 + $0x280] sm:$0x3] 0.0
  %3905 = vst [vmem:[#allocation2 + $0x288] sm:$0xff] 0.0
  %3906 = vst [vmem:[#allocation2 + $0x290] sm:$0xff] 0.0
  %3907 = vst [vmem:[#allocation2 + $0x298] sm:$0x3] 0.0
  %3908 = vst [vmem:[#allocation2 + $0x2a0] sm:$0xff] 0.0
  %3909 = vst [vmem:[#allocation2 + $0x2a8] sm:$0xff] 0.0
  %3910 = vst [vmem:[#allocation2 + $0x2b0] sm:$0x3] 0.0
  %3911 = vst [vmem:[#allocation2 + $0x2b8] sm:$0xff] 0.0
  %3912 = vst [vmem:[#allocation2 + $0x2c0] sm:$0xff] 0.0
  %3913 = vst [vmem:[#allocation2 + $0x2c8] sm:$0x3] 0.0
  %3914 = vst [vmem:[#allocation2 + $0x2d0] sm:$0xff] 0.0
  %3915 = vst [vmem:[#allocation2 + $0x2d8] sm:$0xff] 0.0
  %3916 = vst [vmem:[#allocation2 + $0x2e0] sm:$0x3] 0.0
  %3917 = vst [vmem:[#allocation2 + $0x2e8] sm:$0xff] 0.0
  %3918 = vst [vmem:[#allocation2 + $0x2f0] sm:$0xff] 0.0
  %3919 = vst [vmem:[#allocation2 + $0x2f8] sm:$0x3] 0.0
  %3920 = vst [vmem:[#allocation2 + $0x300] sm:$0xff] 0.0
  %3921 = vst [vmem:[#allocation2 + $0x308] sm:$0xff] 0.0
  %3922 = vst [vmem:[#allocation2 + $0x310] sm:$0x3] 0.0
  %3923 = vst [vmem:[#allocation2 + $0x318] sm:$0xff] 0.0
  %3924 = vst [vmem:[#allocation2 + $0x320] sm:$0xff] 0.0
  %3925 = vst [vmem:[#allocation2 + $0x328] sm:$0x3] 0.0
  %3926 = vst [vmem:[#allocation2 + $0x330] sm:$0xff] 0.0
  %3927 = vst [vmem:[#allocation2 + $0x338] sm:$0xff] 0.0
  %3928 = vst [vmem:[#allocation2 + $0x340] sm:$0x3] 0.0
  %3929 = vst [vmem:[#allocation2 + $0x348] sm:$0xff] 0.0
  %3930 = vst [vmem:[#allocation2 + $0x350] sm:$0xff] 0.0
  %3931 = vst [vmem:[#allocation2 + $0x358] sm:$0x3] 0.0
  %s3932 = scalar_lea.vmem [#allocation2], 24
  %3933 = vst [vmem:[%s3932 + $0x1] sm:$0xff] %v3760
  %3934 = vst [vmem:[%s3932 + $0x9] sm:$0xff] %v3761
  %3935 = vst [vmem:[%s3932 + $0x19] sm:$0xff] %v3762
  %3936 = vst [vmem:[%s3932 + $0x21] sm:$0xff] %v3763
  %3937 = vst [vmem:[%s3932 + $0x31] sm:$0xff] %v3764
  %3938 = vst [vmem:[%s3932 + $0x39] sm:$0xff] %v3765
  %3939 = vst [vmem:[%s3932 + $0x49] sm:$0xff] %v3766
  %3940 = vst [vmem:[%s3932 + $0x51] sm:$0xff] %v3767
  %3941 = vst [vmem:[%s3932 + $0x61] sm:$0xff] %v3768
  %3942 = vst [vmem:[%s3932 + $0x69] sm:$0xff] %v3769
  %3943 = vst [vmem:[%s3932 + $0x79] sm:$0xff] %v3770
  %3944 = vst [vmem:[%s3932 + $0x81] sm:$0xff] %v3771
  %3945 = vst [vmem:[%s3932 + $0x91] sm:$0xff] %v3772
  %3946 = vst [vmem:[%s3932 + $0x99] sm:$0xff] %v3773
  %3947 = vst [vmem:[%s3932 + $0xa9] sm:$0xff] %v3774
  %3948 = vst [vmem:[%s3932 + $0xb1] sm:$0xff] %v3775
  %3949 = vst [vmem:[%s3932 + $0xc1] sm:$0xff] %v3776
  %3950 = vst [vmem:[%s3932 + $0xc9] sm:$0xff] %v3777
  %3951 = vst [vmem:[%s3932 + $0xd9] sm:$0xff] %v3778
  %3952 = vst [vmem:[%s3932 + $0xe1] sm:$0xff] %v3779
  %3953 = vst [vmem:[%s3932 + $0xf1] sm:$0xff] %v3780
  %3954 = vst [vmem:[%s3932 + $0xf9] sm:$0xff] %v3781
  %3955 = vst [vmem:[%s3932 + $0x109] sm:$0xff] %v3782
  %3956 = vst [vmem:[%s3932 + $0x111] sm:$0xff] %v3783
  %3957 = vst [vmem:[%s3932 + $0x121] sm:$0xff] %v3784
  %3958 = vst [vmem:[%s3932 + $0x129] sm:$0xff] %v3785
  %3959 = vst [vmem:[%s3932 + $0x139] sm:$0xff] %v3786
  %3960 = vst [vmem:[%s3932 + $0x141] sm:$0xff] %v3787
  %3961 = vst [vmem:[%s3932 + $0x151] sm:$0xff] %v3788
  %3962 = vst [vmem:[%s3932 + $0x159] sm:$0xff] %v3789
  %3963 = vst [vmem:[%s3932 + $0x169] sm:$0xff] %v3790
  %3964 = vst [vmem:[%s3932 + $0x171] sm:$0xff] %v3791
  %3965 = vst [vmem:[%s3932 + $0x1b1] sm:$0xff] %v3792
  %3966 = vst [vmem:[%s3932 + $0x1b9] sm:$0xff] %v3793
  %3967 = vst [vmem:[%s3932 + $0x1c9] sm:$0xff] %v3794
  %3968 = vst [vmem:[%s3932 + $0x1d1] sm:$0xff] %v3795
  %3969 = vst [vmem:[%s3932 + $0x1e1] sm:$0xff] %v3796
  %3970 = vst [vmem:[%s3932 + $0x1e9] sm:$0xff] %v3797
  %3971 = vst [vmem:[%s3932 + $0x1f9] sm:$0xff] %v3798
  %3972 = vst [vmem:[%s3932 + $0x201] sm:$0xff] %v3799
  %3973 = vst [vmem:[%s3932 + $0x211] sm:$0xff] %v3800
  %3974 = vst [vmem:[%s3932 + $0x219] sm:$0xff] %v3801
  %3975 = vst [vmem:[%s3932 + $0x229] sm:$0xff] %v3802
  %3976 = vst [vmem:[%s3932 + $0x231] sm:$0xff] %v3803
  %3977 = vst [vmem:[%s3932 + $0x241] sm:$0xff] %v3804
  %3978 = vst [vmem:[%s3932 + $0x249] sm:$0xff] %v3805
  %3979 = vst [vmem:[%s3932 + $0x259] sm:$0xff] %v3806
  %3980 = vst [vmem:[%s3932 + $0x261] sm:$0xff] %v3807
  %3981 = vst [vmem:[%s3932 + $0x271] sm:$0xff] %v3808
  %3982 = vst [vmem:[%s3932 + $0x279] sm:$0xff] %v3809
  %3983 = vst [vmem:[%s3932 + $0x289] sm:$0xff] %v3810
  %3984 = vst [vmem:[%s3932 + $0x291] sm:$0xff] %v3811
  %3985 = vst [vmem:[%s3932 + $0x2a1] sm:$0xff] %v3812
  %3986 = vst [vmem:[%s3932 + $0x2a9] sm:$0xff] %v3813
  %3987 = vst [vmem:[%s3932 + $0x2b9] sm:$0xff] %v3814
  %3988 = vst [vmem:[%s3932 + $0x2c1] sm:$0xff] %v3815
  %3989 = vst [vmem:[%s3932 + $0x2d1] sm:$0xff] %v3816
  %3990 = vst [vmem:[%s3932 + $0x2d9] sm:$0xff] %v3817
  %3991 = vst [vmem:[%s3932 + $0x2e9] sm:$0xff] %v3818
  %3992 = vst [vmem:[%s3932 + $0x2f1] sm:$0xff] %v3819
  %3993 = vst [vmem:[%s3932 + $0x301] sm:$0xff] %v3820
  %3994 = vst [vmem:[%s3932 + $0x309] sm:$0xff] %v3821
  %3995 = vst [vmem:[%s3932 + $0x319] sm:$0xff] %v3822
  %3996 = vst [vmem:[%s3932 + $0x321] sm:$0xff] %v3823
  %v3997 = vld [vmem:[#allocation2] sm:$0xff]
  %v3998 = vld [vmem:[#allocation2 + $0x8] sm:$0xff]
  %v3999 = vld [vmem:[#allocation2 + $0x10] sm:$0x3]
  %v4000 = vld [vmem:[#allocation2 + $0x18] sm:$0xff]
  %v4001 = vld [vmem:[#allocation2 + $0x20] sm:$0xff]
  %v4002 = vld [vmem:[#allocation2 + $0x28] sm:$0x3]
  %v4003 = vld [vmem:[#allocation2 + $0x30] sm:$0xff]
  %v4004 = vld [vmem:[#allocation2 + $0x38] sm:$0xff]
  %v4005 = vld [vmem:[#allocation2 + $0x40] sm:$0x3]
  %v4006 = vld [vmem:[#allocation2 + $0x48] sm:$0xff]
  %v4007 = vld [vmem:[#allocation2 + $0x50] sm:$0xff]
  %v4008 = vld [vmem:[#allocation2 + $0x58] sm:$0x3]
  %v4009 = vld [vmem:[#allocation2 + $0x60] sm:$0xff]
  %v4010 = vld [vmem:[#allocation2 + $0x68] sm:$0xff]
  %v4011 = vld [vmem:[#allocation2 + $0x70] sm:$0x3]
  %v4012 = vld [vmem:[#allocation2 + $0x78] sm:$0xff]
  %v4013 = vld [vmem:[#allocation2 + $0x80] sm:$0xff]
  %v4014 = vld [vmem:[#allocation2 + $0x88] sm:$0x3]
  %v4015 = vld [vmem:[#allocation2 + $0x90] sm:$0xff]
  %v4016 = vld [vmem:[#allocation2 + $0x98] sm:$0xff]
  %v4017 = vld [vmem:[#allocation2 + $0xa0] sm:$0x3]
  %v4018 = vld [vmem:[#allocation2 + $0xa8] sm:$0xff]
  %v4019 = vld [vmem:[#allocation2 + $0xb0] sm:$0xff]
  %v4020 = vld [vmem:[#allocation2 + $0xb8] sm:$0x3]
  %v4021 = vld [vmem:[#allocation2 + $0xc0] sm:$0xff]
  %v4022 = vld [vmem:[#allocation2 + $0xc8] sm:$0xff]
  %v4023 = vld [vmem:[#allocation2 + $0xd0] sm:$0x3]
  %v4024 = vld [vmem:[#allocation2 + $0xd8] sm:$0xff]
  %v4025 = vld [vmem:[#allocation2 + $0xe0] sm:$0xff]
  %v4026 = vld [vmem:[#allocation2 + $0xe8] sm:$0x3]
  %v4027 = vld [vmem:[#allocation2 + $0xf0] sm:$0xff]
  %v4028 = vld [vmem:[#allocation2 + $0xf8] sm:$0xff]
  %v4029 = vld [vmem:[#allocation2 + $0x100] sm:$0x3]
  %v4030 = vld [vmem:[#allocation2 + $0x108] sm:$0xff]
  %v4031 = vld [vmem:[#allocation2 + $0x110] sm:$0xff]
  %v4032 = vld [vmem:[#allocation2 + $0x118] sm:$0x3]
  %v4033 = vld [vmem:[#allocation2 + $0x120] sm:$0xff]
  %v4034 = vld [vmem:[#allocation2 + $0x128] sm:$0xff]
  %v4035 = vld [vmem:[#allocation2 + $0x130] sm:$0x3]
  %v4036 = vld [vmem:[#allocation2 + $0x138] sm:$0xff]
  %v4037 = vld [vmem:[#allocation2 + $0x140] sm:$0xff]
  %v4038 = vld [vmem:[#allocation2 + $0x148] sm:$0x3]
  %v4039 = vld [vmem:[#allocation2 + $0x150] sm:$0xff]
  %v4040 = vld [vmem:[#allocation2 + $0x158] sm:$0xff]
  %v4041 = vld [vmem:[#allocation2 + $0x160] sm:$0x3]
  %v4042 = vld [vmem:[#allocation2 + $0x168] sm:$0xff]
  %v4043 = vld [vmem:[#allocation2 + $0x170] sm:$0xff]
  %v4044 = vld [vmem:[#allocation2 + $0x178] sm:$0x3]
  %v4045 = vld [vmem:[#allocation2 + $0x180] sm:$0xff]
  %v4046 = vld [vmem:[#allocation2 + $0x188] sm:$0xff]
  %v4047 = vld [vmem:[#allocation2 + $0x190] sm:$0x3]
  %v4048 = vld [vmem:[#allocation2 + $0x198] sm:$0xff]
  %v4049 = vld [vmem:[#allocation2 + $0x1a0] sm:$0xff]
  %v4050 = vld [vmem:[#allocation2 + $0x1a8] sm:$0x3]
  %v4051 = vld [vmem:[#allocation2 + $0x1b0] sm:$0xff]
  %v4052 = vld [vmem:[#allocation2 + $0x1b8] sm:$0xff]
  %v4053 = vld [vmem:[#allocation2 + $0x1c0] sm:$0x3]
  %v4054 = vld [vmem:[#allocation2 + $0x1c8] sm:$0xff]
  %v4055 = vld [vmem:[#allocation2 + $0x1d0] sm:$0xff]
  %v4056 = vld [vmem:[#allocation2 + $0x1d8] sm:$0x3]
  %v4057 = vld [vmem:[#allocation2 + $0x1e0] sm:$0xff]
  %v4058 = vld [vmem:[#allocation2 + $0x1e8] sm:$0xff]
  %v4059 = vld [vmem:[#allocation2 + $0x1f0] sm:$0x3]
  %v4060 = vld [vmem:[#allocation2 + $0x1f8] sm:$0xff]
  %v4061 = vld [vmem:[#allocation2 + $0x200] sm:$0xff]
  %v4062 = vld [vmem:[#allocation2 + $0x208] sm:$0x3]
  %v4063 = vld [vmem:[#allocation2 + $0x210] sm:$0xff]
  %v4064 = vld [vmem:[#allocation2 + $0x218] sm:$0xff]
  %v4065 = vld [vmem:[#allocation2 + $0x220] sm:$0x3]
  %v4066 = vld [vmem:[#allocation2 + $0x228] sm:$0xff]
  %v4067 = vld [vmem:[#allocation2 + $0x230] sm:$0xff]
  %v4068 = vld [vmem:[#allocation2 + $0x238] sm:$0x3]
  %v4069 = vld [vmem:[#allocation2 + $0x240] sm:$0xff]
  %v4070 = vld [vmem:[#allocation2 + $0x248] sm:$0xff]
  %v4071 = vld [vmem:[#allocation2 + $0x250] sm:$0x3]
  %v4072 = vld [vmem:[#allocation2 + $0x258] sm:$0xff]
  %v4073 = vld [vmem:[#allocation2 + $0x260] sm:$0xff]
  %v4074 = vld [vmem:[#allocation2 + $0x268] sm:$0x3]
  %v4075 = vld [vmem:[#allocation2 + $0x270] sm:$0xff]
  %v4076 = vld [vmem:[#allocation2 + $0x278] sm:$0xff]
  %v4077 = vld [vmem:[#allocation2 + $0x280] sm:$0x3]
  %v4078 = vld [vmem:[#allocation2 + $0x288] sm:$0xff]
  %v4079 = vld [vmem:[#allocation2 + $0x290] sm:$0xff]
  %v4080 = vld [vmem:[#allocation2 + $0x298] sm:$0x3]
  %v4081 = vld [vmem:[#allocation2 + $0x2a0] sm:$0xff]
  %v4082 = vld [vmem:[#allocation2 + $0x2a8] sm:$0xff]
  %v4083 = vld [vmem:[#allocation2 + $0x2b0] sm:$0x3]
  %v4084 = vld [vmem:[#allocation2 + $0x2b8] sm:$0xff]
  %v4085 = vld [vmem:[#allocation2 + $0x2c0] sm:$0xff]
  %v4086 = vld [vmem:[#allocation2 + $0x2c8] sm:$0x3]
  %v4087 = vld [vmem:[#allocation2 + $0x2d0] sm:$0xff]
  %v4088 = vld [vmem:[#allocation2 + $0x2d8] sm:$0xff]
  %v4089 = vld [vmem:[#allocation2 + $0x2e0] sm:$0x3]
  %v4090 = vld [vmem:[#allocation2 + $0x2e8] sm:$0xff]
  %v4091 = vld [vmem:[#allocation2 + $0x2f0] sm:$0xff]
  %v4092 = vld [vmem:[#allocation2 + $0x2f8] sm:$0x3]
  %v4093 = vld [vmem:[#allocation2 + $0x300] sm:$0xff]
  %v4094 = vld [vmem:[#allocation2 + $0x308] sm:$0xff]
  %v4095 = vld [vmem:[#allocation2 + $0x310] sm:$0x3]
  %v4096 = vld [vmem:[#allocation2 + $0x318] sm:$0xff]
  %v4097 = vld [vmem:[#allocation2 + $0x320] sm:$0xff]
  %v4098 = vld [vmem:[#allocation2 + $0x328] sm:$0x3]
  %v4099 = vld [vmem:[#allocation2 + $0x330] sm:$0xff]
  %v4100 = vld [vmem:[#allocation2 + $0x338] sm:$0xff]
  %v4101 = vld [vmem:[#allocation2 + $0x340] sm:$0x3]
  %v4102 = vld [vmem:[#allocation2 + $0x348] sm:$0xff]
  %v4103 = vld [vmem:[#allocation2 + $0x350] sm:$0xff]
  %v4104 = vld [vmem:[#allocation2 + $0x358] sm:$0x3]
  %v4105 = vld [vmem:[%s6] sm:$0x1]
  %v4202 = vrot.slane %v3997, 1
  %v4203 = vrot.slane %v3998, 1
  %v4204 = vsel %vm237, %v4202, %v4203
  %v4205 = vrot.slane %v3999, 1
  %v4206 = vsel %vm237, %v4203, %v4205
  %v4207 = vrot.slane %v4000, 1
  %v4208 = vrot.slane %v4001, 1
  %v4209 = vsel %vm237, %v4207, %v4208
  %v4210 = vrot.slane %v4002, 1
  %v4211 = vsel %vm237, %v4208, %v4210
  %v4212 = vrot.slane %v4003, 1
  %v4213 = vrot.slane %v4004, 1
  %v4214 = vsel %vm237, %v4212, %v4213
  %v4215 = vrot.slane %v4005, 1
  %v4216 = vsel %vm237, %v4213, %v4215
  %v4217 = vrot.slane %v4006, 1
  %v4218 = vrot.slane %v4007, 1
  %v4219 = vsel %vm237, %v4217, %v4218
  %v4220 = vrot.slane %v4008, 1
  %v4221 = vsel %vm237, %v4218, %v4220
  %v4222 = vrot.slane %v4009, 1
  %v4223 = vrot.slane %v4010, 1
  %v4224 = vsel %vm237, %v4222, %v4223
  %v4225 = vrot.slane %v4011, 1
  %v4226 = vsel %vm237, %v4223, %v4225
  %v4227 = vrot.slane %v4012, 1
  %v4228 = vrot.slane %v4013, 1
  %v4229 = vsel %vm237, %v4227, %v4228
  %v4230 = vrot.slane %v4014, 1
  %v4231 = vsel %vm237, %v4228, %v4230
  %v4232 = vrot.slane %v4015, 1
  %v4233 = vrot.slane %v4016, 1
  %v4234 = vsel %vm237, %v4232, %v4233
  %v4235 = vrot.slane %v4017, 1
  %v4236 = vsel %vm237, %v4233, %v4235
  %v4237 = vrot.slane %v4018, 1
  %v4238 = vrot.slane %v4019, 1
  %v4239 = vsel %vm237, %v4237, %v4238
  %v4240 = vrot.slane %v4020, 1
  %v4241 = vsel %vm237, %v4238, %v4240
  %v4242 = vrot.slane %v4021, 1
  %v4243 = vrot.slane %v4022, 1
  %v4244 = vsel %vm237, %v4242, %v4243
  %v4245 = vrot.slane %v4023, 1
  %v4246 = vsel %vm237, %v4243, %v4245
  %v4247 = vrot.slane %v4024, 1
  %v4248 = vrot.slane %v4025, 1
  %v4249 = vsel %vm237, %v4247, %v4248
  %v4250 = vrot.slane %v4026, 1
  %v4251 = vsel %vm237, %v4248, %v4250
  %v4252 = vrot.slane %v4027, 1
  %v4253 = vrot.slane %v4028, 1
  %v4254 = vsel %vm237, %v4252, %v4253
  %v4255 = vrot.slane %v4029, 1
  %v4256 = vsel %vm237, %v4253, %v4255
  %v4257 = vrot.slane %v4030, 1
  %v4258 = vrot.slane %v4031, 1
  %v4259 = vsel %vm237, %v4257, %v4258
  %v4260 = vrot.slane %v4032, 1
  %v4261 = vsel %vm237, %v4258, %v4260
  %v4262 = vrot.slane %v4033, 1
  %v4263 = vrot.slane %v4034, 1
  %v4264 = vsel %vm237, %v4262, %v4263
  %v4265 = vrot.slane %v4035, 1
  %v4266 = vsel %vm237, %v4263, %v4265
  %v4267 = vrot.slane %v4036, 1
  %v4268 = vrot.slane %v4037, 1
  %v4269 = vsel %vm237, %v4267, %v4268
  %v4270 = vrot.slane %v4038, 1
  %v4271 = vsel %vm237, %v4268, %v4270
  %v4272 = vrot.slane %v4039, 1
  %v4273 = vrot.slane %v4040, 1
  %v4274 = vsel %vm237, %v4272, %v4273
  %v4275 = vrot.slane %v4041, 1
  %v4276 = vsel %vm237, %v4273, %v4275
  %v4277 = vrot.slane %v4042, 1
  %v4278 = vrot.slane %v4043, 1
  %v4279 = vsel %vm237, %v4277, %v4278
  %v4280 = vrot.slane %v4044, 1
  %v4281 = vsel %vm237, %v4278, %v4280
  %v4282 = vrot.slane %v4051, 1
  %v4283 = vrot.slane %v4052, 1
  %v4284 = vsel %vm237, %v4282, %v4283
  %v4285 = vrot.slane %v4053, 1
  %v4286 = vsel %vm237, %v4283, %v4285
  %v4287 = vrot.slane %v4054, 1
  %v4288 = vrot.slane %v4055, 1
  %v4289 = vsel %vm237, %v4287, %v4288
  %v4290 = vrot.slane %v4056, 1
  %v4291 = vsel %vm237, %v4288, %v4290
  %v4292 = vrot.slane %v4057, 1
  %v4293 = vrot.slane %v4058, 1
  %v4294 = vsel %vm237, %v4292, %v4293
  %v4295 = vrot.slane %v4059, 1
  %v4296 = vsel %vm237, %v4293, %v4295
  %v4297 = vrot.slane %v4060, 1
  %v4298 = vrot.slane %v4061, 1
  %v4299 = vsel %vm237, %v4297, %v4298
  %v4300 = vrot.slane %v4062, 1
  %v4301 = vsel %vm237, %v4298, %v4300
  %v4302 = vrot.slane %v4063, 1
  %v4303 = vrot.slane %v4064, 1
  %v4304 = vsel %vm237, %v4302, %v4303
  %v4305 = vrot.slane %v4065, 1
  %v4306 = vsel %vm237, %v4303, %v4305
  %v4307 = vrot.slane %v4066, 1
  %v4308 = vrot.slane %v4067, 1
  %v4309 = vsel %vm237, %v4307, %v4308
  %v4310 = vrot.slane %v4068, 1
  %v4311 = vsel %vm237, %v4308, %v4310
  %v4312 = vrot.slane %v4069, 1
  %v4313 = vrot.slane %v4070, 1
  %v4314 = vsel %vm237, %v4312, %v4313
  %v4315 = vrot.slane %v4071, 1
  %v4316 = vsel %vm237, %v4313, %v4315
  %v4317 = vrot.slane %v4072, 1
  %v4318 = vrot.slane %v4073, 1
  %v4319 = vsel %vm237, %v4317, %v4318
  %v4320 = vrot.slane %v4074, 1
  %v4321 = vsel %vm237, %v4318, %v4320
  %v4322 = vrot.slane %v4075, 1
  %v4323 = vrot.slane %v4076, 1
  %v4324 = vsel %vm237, %v4322, %v4323
  %v4325 = vrot.slane %v4077, 1
  %v4326 = vsel %vm237, %v4323, %v4325
  %v4327 = vrot.slane %v4078, 1
  %v4328 = vrot.slane %v4079, 1
  %v4329 = vsel %vm237, %v4327, %v4328
  %v4330 = vrot.slane %v4080, 1
  %v4331 = vsel %vm237, %v4328, %v4330
  %v4332 = vrot.slane %v4081, 1
  %v4333 = vrot.slane %v4082, 1
  %v4334 = vsel %vm237, %v4332, %v4333
  %v4335 = vrot.slane %v4083, 1
  %v4336 = vsel %vm237, %v4333, %v4335
  %v4337 = vrot.slane %v4084, 1
  %v4338 = vrot.slane %v4085, 1
  %v4339 = vsel %vm237, %v4337, %v4338
  %v4340 = vrot.slane %v4086, 1
  %v4341 = vsel %vm237, %v4338, %v4340
  %v4342 = vrot.slane %v4087, 1
  %v4343 = vrot.slane %v4088, 1
  %v4344 = vsel %vm237, %v4342, %v4343
  %v4345 = vrot.slane %v4089, 1
  %v4346 = vsel %vm237, %v4343, %v4345
  %v4347 = vrot.slane %v4090, 1
  %v4348 = vrot.slane %v4091, 1
  %v4349 = vsel %vm237, %v4347, %v4348
  %v4350 = vrot.slane %v4092, 1
  %v4351 = vsel %vm237, %v4348, %v4350
  %v4352 = vrot.slane %v4093, 1
  %v4353 = vrot.slane %v4094, 1
  %v4354 = vsel %vm237, %v4352, %v4353
  %v4355 = vrot.slane %v4095, 1
  %v4356 = vsel %vm237, %v4353, %v4355
  %v4357 = vrot.slane %v4096, 1
  %v4358 = vrot.slane %v4097, 1
  %v4359 = vsel %vm237, %v4357, %v4358
  %v4360 = vrot.slane %v4098, 1
  %v4361 = vsel %vm237, %v4358, %v4360
  %v4426 = vrot.slane %v3997, 2
  %v4427 = vrot.slane %v3998, 2
  %v4428 = vsel %vm462, %v4426, %v4427
  %v4429 = vrot.slane %v3999, 2
  %v4430 = vsel %vm462, %v4427, %v4429
  %v4431 = vrot.slane %v4000, 2
  %v4432 = vrot.slane %v4001, 2
  %v4433 = vsel %vm462, %v4431, %v4432
  %v4434 = vrot.slane %v4002, 2
  %v4435 = vsel %vm462, %v4432, %v4434
  %v4436 = vrot.slane %v4003, 2
  %v4437 = vrot.slane %v4004, 2
  %v4438 = vsel %vm462, %v4436, %v4437
  %v4439 = vrot.slane %v4005, 2
  %v4440 = vsel %vm462, %v4437, %v4439
  %v4441 = vrot.slane %v4006, 2
  %v4442 = vrot.slane %v4007, 2
  %v4443 = vsel %vm462, %v4441, %v4442
  %v4444 = vrot.slane %v4008, 2
  %v4445 = vsel %vm462, %v4442, %v4444
  %v4446 = vrot.slane %v4009, 2
  %v4447 = vrot.slane %v4010, 2
  %v4448 = vsel %vm462, %v4446, %v4447
  %v4449 = vrot.slane %v4011, 2
  %v4450 = vsel %vm462, %v4447, %v4449
  %v4451 = vrot.slane %v4012, 2
  %v4452 = vrot.slane %v4013, 2
  %v4453 = vsel %vm462, %v4451, %v4452
  %v4454 = vrot.slane %v4014, 2
  %v4455 = vsel %vm462, %v4452, %v4454
  %v4456 = vrot.slane %v4015, 2
  %v4457 = vrot.slane %v4016, 2
  %v4458 = vsel %vm462, %v4456, %v4457
  %v4459 = vrot.slane %v4017, 2
  %v4460 = vsel %vm462, %v4457, %v4459
  %v4461 = vrot.slane %v4018, 2
  %v4462 = vrot.slane %v4019, 2
  %v4463 = vsel %vm462, %v4461, %v4462
  %v4464 = vrot.slane %v4020, 2
  %v4465 = vsel %vm462, %v4462, %v4464
  %v4466 = vrot.slane %v4021, 2
  %v4467 = vrot.slane %v4022, 2
  %v4468 = vsel %vm462, %v4466, %v4467
  %v4469 = vrot.slane %v4023, 2
  %v4470 = vsel %vm462, %v4467, %v4469
  %v4471 = vrot.slane %v4024, 2
  %v4472 = vrot.slane %v4025, 2
  %v4473 = vsel %vm462, %v4471, %v4472
  %v4474 = vrot.slane %v4026, 2
  %v4475 = vsel %vm462, %v4472, %v4474
  %v4476 = vrot.slane %v4027, 2
  %v4477 = vrot.slane %v4028, 2
  %v4478 = vsel %vm462, %v4476, %v4477
  %v4479 = vrot.slane %v4029, 2
  %v4480 = vsel %vm462, %v4477, %v4479
  %v4481 = vrot.slane %v4030, 2
  %v4482 = vrot.slane %v4031, 2
  %v4483 = vsel %vm462, %v4481, %v4482
  %v4484 = vrot.slane %v4032, 2
  %v4485 = vsel %vm462, %v4482, %v4484
  %v4486 = vrot.slane %v4033, 2
  %v4487 = vrot.slane %v4034, 2
  %v4488 = vsel %vm462, %v4486, %v4487
  %v4489 = vrot.slane %v4035, 2
  %v4490 = vsel %vm462, %v4487, %v4489
  %v4491 = vrot.slane %v4036, 2
  %v4492 = vrot.slane %v4037, 2
  %v4493 = vsel %vm462, %v4491, %v4492
  %v4494 = vrot.slane %v4038, 2
  %v4495 = vsel %vm462, %v4492, %v4494
  %v4496 = vrot.slane %v4039, 2
  %v4497 = vrot.slane %v4040, 2
  %v4498 = vsel %vm462, %v4496, %v4497
  %v4499 = vrot.slane %v4041, 2
  %v4500 = vsel %vm462, %v4497, %v4499
  %v4501 = vrot.slane %v4042, 2
  %v4502 = vrot.slane %v4043, 2
  %v4503 = vsel %vm462, %v4501, %v4502
  %v4504 = vrot.slane %v4044, 2
  %v4505 = vsel %vm462, %v4502, %v4504
  %v4506 = vrot.slane %v4051, 2
  %v4507 = vrot.slane %v4052, 2
  %v4508 = vsel %vm462, %v4506, %v4507
  %v4509 = vrot.slane %v4053, 2
  %v4510 = vsel %vm462, %v4507, %v4509
  %v4511 = vrot.slane %v4054, 2
  %v4512 = vrot.slane %v4055, 2
  %v4513 = vsel %vm462, %v4511, %v4512
  %v4514 = vrot.slane %v4056, 2
  %v4515 = vsel %vm462, %v4512, %v4514
  %v4516 = vrot.slane %v4057, 2
  %v4517 = vrot.slane %v4058, 2
  %v4518 = vsel %vm462, %v4516, %v4517
  %v4519 = vrot.slane %v4059, 2
  %v4520 = vsel %vm462, %v4517, %v4519
  %v4521 = vrot.slane %v4060, 2
  %v4522 = vrot.slane %v4061, 2
  %v4523 = vsel %vm462, %v4521, %v4522
  %v4524 = vrot.slane %v4062, 2
  %v4525 = vsel %vm462, %v4522, %v4524
  %v4526 = vrot.slane %v4063, 2
  %v4527 = vrot.slane %v4064, 2
  %v4528 = vsel %vm462, %v4526, %v4527
  %v4529 = vrot.slane %v4065, 2
  %v4530 = vsel %vm462, %v4527, %v4529
  %v4531 = vrot.slane %v4066, 2
  %v4532 = vrot.slane %v4067, 2
  %v4533 = vsel %vm462, %v4531, %v4532
  %v4534 = vrot.slane %v4068, 2
  %v4535 = vsel %vm462, %v4532, %v4534
  %v4536 = vrot.slane %v4069, 2
  %v4537 = vrot.slane %v4070, 2
  %v4538 = vsel %vm462, %v4536, %v4537
  %v4539 = vrot.slane %v4071, 2
  %v4540 = vsel %vm462, %v4537, %v4539
  %v4541 = vrot.slane %v4072, 2
  %v4542 = vrot.slane %v4073, 2
  %v4543 = vsel %vm462, %v4541, %v4542
  %v4544 = vrot.slane %v4074, 2
  %v4545 = vsel %vm462, %v4542, %v4544
  %v4546 = vrot.slane %v4075, 2
  %v4547 = vrot.slane %v4076, 2
  %v4548 = vsel %vm462, %v4546, %v4547
  %v4549 = vrot.slane %v4077, 2
  %v4550 = vsel %vm462, %v4547, %v4549
  %v4551 = vrot.slane %v4078, 2
  %v4552 = vrot.slane %v4079, 2
  %v4553 = vsel %vm462, %v4551, %v4552
  %v4554 = vrot.slane %v4080, 2
  %v4555 = vsel %vm462, %v4552, %v4554
  %v4556 = vrot.slane %v4081, 2
  %v4557 = vrot.slane %v4082, 2
  %v4558 = vsel %vm462, %v4556, %v4557
  %v4559 = vrot.slane %v4083, 2
  %v4560 = vsel %vm462, %v4557, %v4559
  %v4561 = vrot.slane %v4084, 2
  %v4562 = vrot.slane %v4085, 2
  %v4563 = vsel %vm462, %v4561, %v4562
  %v4564 = vrot.slane %v4086, 2
  %v4565 = vsel %vm462, %v4562, %v4564
  %v4566 = vrot.slane %v4087, 2
  %v4567 = vrot.slane %v4088, 2
  %v4568 = vsel %vm462, %v4566, %v4567
  %v4569 = vrot.slane %v4089, 2
  %v4570 = vsel %vm462, %v4567, %v4569
  %v4571 = vrot.slane %v4090, 2
  %v4572 = vrot.slane %v4091, 2
  %v4573 = vsel %vm462, %v4571, %v4572
  %v4574 = vrot.slane %v4092, 2
  %v4575 = vsel %vm462, %v4572, %v4574
  %v4576 = vrot.slane %v4093, 2
  %v4577 = vrot.slane %v4094, 2
  %v4578 = vsel %vm462, %v4576, %v4577
  %v4579 = vrot.slane %v4095, 2
  %v4580 = vsel %vm462, %v4577, %v4579
  %v4581 = vrot.slane %v4096, 2
  %v4582 = vrot.slane %v4097, 2
  %v4583 = vsel %vm462, %v4581, %v4582
  %v4584 = vrot.slane %v4098, 2
  %v4585 = vsel %vm462, %v4582, %v4584
  %v4650 = vld [vmem:[%s5] sm:$0xff]
  %v4651 = vld [vmem:[%s5 + $0x8] sm:$0xff]
  %v4652 = vld [vmem:[%s5 + $0x10] sm:$0xff]
  %v4653 = vld [vmem:[%s5 + $0x18] sm:$0xff]
  %v4654 = vld [vmem:[%s5 + $0x20] sm:$0xff]
  %v4655 = vld [vmem:[%s5 + $0x28] sm:$0xff]
  %v4656 = vld [vmem:[%s5 + $0x30] sm:$0xff]
  %v4657 = vld [vmem:[%s5 + $0x38] sm:$0xff]
  %v4658 = vld [vmem:[%s5 + $0x40] sm:$0xff]
  %v4659 = vld [vmem:[%s5 + $0x48] sm:$0xff]
  %v4660 = vld [vmem:[%s5 + $0x50] sm:$0xff]
  %v4661 = vld [vmem:[%s5 + $0x58] sm:$0xff]
  %v4662 = vld [vmem:[%s5 + $0x60] sm:$0xff]
  %v4663 = vld [vmem:[%s5 + $0x68] sm:$0xff]
  %v4664 = vld [vmem:[%s5 + $0x70] sm:$0xff]
  %v4665 = vld [vmem:[%s5 + $0x78] sm:$0xff]
  %v4666 = vld [vmem:[%s5 + $0x80] sm:$0xff]
  %v4667 = vld [vmem:[%s5 + $0x88] sm:$0xff]
  %v4668 = vld [vmem:[%s5 + $0x90] sm:$0xff]
  %v4669 = vld [vmem:[%s5 + $0x98] sm:$0xff]
  %v4670 = vld [vmem:[%s5 + $0xa0] sm:$0xff]
  %v4671 = vld [vmem:[%s5 + $0xa8] sm:$0xff]
  %v4672 = vld [vmem:[%s5 + $0xb0] sm:$0xff]
  %v4673 = vld [vmem:[%s5 + $0xb8] sm:$0xff]
  %v4674 = vld [vmem:[%s5 + $0xc0] sm:$0xff]
  %v4675 = vld [vmem:[%s5 + $0xc8] sm:$0xff]
  %v4676 = vld [vmem:[%s5 + $0xd0] sm:$0xff]
  %v4677 = vld [vmem:[%s5 + $0xd8] sm:$0xff]
  %v4678 = vld [vmem:[%s5 + $0xe0] sm:$0xff]
  %v4679 = vld [vmem:[%s5 + $0xe8] sm:$0xff]
  %v4680 = vld [vmem:[%s5 + $0xf0] sm:$0xff]
  %v4681 = vld [vmem:[%s5 + $0xf8] sm:$0xff]
  %v4682 = vld [vmem:[%s5 + $0x100] sm:$0xff]
  %v4683 = vld [vmem:[%s5 + $0x108] sm:$0xff]
  %v4684 = vld [vmem:[%s5 + $0x110] sm:$0xff]
  %v4685 = vld [vmem:[%s5 + $0x118] sm:$0xff]
  %v4686 = vld [vmem:[%s5 + $0x120] sm:$0xff]
  %v4687 = vld [vmem:[%s5 + $0x128] sm:$0xff]
  %v4688 = vld [vmem:[%s5 + $0x130] sm:$0xff]
  %v4689 = vld [vmem:[%s5 + $0x138] sm:$0xff]
  %v4690 = vld [vmem:[%s5 + $0x140] sm:$0xff]
  %v4691 = vld [vmem:[%s5 + $0x148] sm:$0xff]
  %v4692 = vld [vmem:[%s5 + $0x150] sm:$0xff]
  %v4693 = vld [vmem:[%s5 + $0x158] sm:$0xff]
  %v4694 = vld [vmem:[%s5 + $0x160] sm:$0xff]
  %v4695 = vld [vmem:[%s5 + $0x168] sm:$0xff]
  %v4696 = vld [vmem:[%s5 + $0x170] sm:$0xff]
  %v4697 = vld [vmem:[%s5 + $0x178] sm:$0xff]
  %v4704 = vrot.slane %v4045, 1
  %v4705 = vrot.slane %v4046, 1
  %v4706 = vsel %vm237, %v4704, %v4705
  %v4707 = vrot.slane %v4047, 1
  %v4708 = vsel %vm237, %v4705, %v4707
  %v4709 = vrot.slane %v4099, 1
  %v4710 = vrot.slane %v4100, 1
  %v4711 = vsel %vm237, %v4709, %v4710
  %v4712 = vrot.slane %v4101, 1
  %v4713 = vsel %vm237, %v4710, %v4712
  %v4718 = vrot.slane %v4045, 2
  %v4719 = vrot.slane %v4046, 2
  %v4720 = vsel %vm462, %v4718, %v4719
  %v4721 = vrot.slane %v4047, 2
  %v4722 = vsel %vm462, %v4719, %v4721
  %v4723 = vrot.slane %v4099, 2
  %v4724 = vrot.slane %v4100, 2
  %v4725 = vsel %vm462, %v4723, %v4724
  %v4726 = vrot.slane %v4101, 2
  %v4727 = vsel %vm462, %v4724, %v4726
  %s4732 = scalar_lea.vmem %s5, 384
  %v4733 = vld [vmem:[%s4732] sm:$0xff]
  %v4734 = vld [vmem:[%s4732 + $0x8] sm:$0xff]
  %v4735 = vld [vmem:[%s4732 + $0x10] sm:$0xff]
  %v4736 = vld [vmem:[%s4732 + $0x18] sm:$0xff]
  %v4737 = vld [vmem:[%s4732 + $0x20] sm:$0xff]
  %v4738 = vld [vmem:[%s4732 + $0x28] sm:$0xff]
  %v4739 = vld [vmem:[%s4732 + $0x30] sm:$0xff]
  %v4740 = vld [vmem:[%s4732 + $0x38] sm:$0xff]
  %v4741 = vld [vmem:[%s4732 + $0x40] sm:$0xff]
  %v4742 = vld [vmem:[%s4732 + $0x48] sm:$0xff]
  %v4743 = vld [vmem:[%s4732 + $0x50] sm:$0xff]
  %v4744 = vld [vmem:[%s4732 + $0x58] sm:$0xff]
  %v4745 = vld [vmem:[%s4732 + $0x60] sm:$0xff]
  %v4746 = vld [vmem:[%s4732 + $0x68] sm:$0xff]
  %v4747 = vld [vmem:[%s4732 + $0x70] sm:$0xff]
  %v4748 = vld [vmem:[%s4732 + $0x78] sm:$0xff]
  %v4749 = vld [vmem:[%s4732 + $0x80] sm:$0xff]
  %v4750 = vld [vmem:[%s4732 + $0x88] sm:$0xff]
  %v4751 = vld [vmem:[%s4732 + $0x90] sm:$0xff]
  %v4752 = vld [vmem:[%s4732 + $0x98] sm:$0xff]
  %v4753 = vld [vmem:[%s4732 + $0xa0] sm:$0xff]
  %v4754 = vld [vmem:[%s4732 + $0xa8] sm:$0xff]
  %v4755 = vld [vmem:[%s4732 + $0xb0] sm:$0xff]
  %v4756 = vld [vmem:[%s4732 + $0xb8] sm:$0xff]
  %v4757 = vld [vmem:[%s4732 + $0xc0] sm:$0xff]
  %v4758 = vld [vmem:[%s4732 + $0xc8] sm:$0xff]
  %v4759 = vld [vmem:[%s4732 + $0xd0] sm:$0xff]
  %v4760 = vld [vmem:[%s4732 + $0xd8] sm:$0xff]
  %v4761 = vld [vmem:[%s4732 + $0xe0] sm:$0xff]
  %v4762 = vld [vmem:[%s4732 + $0xe8] sm:$0xff]
  %v4763 = vld [vmem:[%s4732 + $0xf0] sm:$0xff]
  %v4764 = vld [vmem:[%s4732 + $0xf8] sm:$0xff]
  %v4765 = vld [vmem:[%s4732 + $0x100] sm:$0xff]
  %v4766 = vld [vmem:[%s4732 + $0x108] sm:$0xff]
  %v4767 = vld [vmem:[%s4732 + $0x110] sm:$0xff]
  %v4768 = vld [vmem:[%s4732 + $0x118] sm:$0xff]
  %v4769 = vld [vmem:[%s4732 + $0x120] sm:$0xff]
  %v4770 = vld [vmem:[%s4732 + $0x128] sm:$0xff]
  %v4771 = vld [vmem:[%s4732 + $0x130] sm:$0xff]
  %v4772 = vld [vmem:[%s4732 + $0x138] sm:$0xff]
  %v4773 = vld [vmem:[%s4732 + $0x140] sm:$0xff]
  %v4774 = vld [vmem:[%s4732 + $0x148] sm:$0xff]
  %v4775 = vld [vmem:[%s4732 + $0x150] sm:$0xff]
  %v4776 = vld [vmem:[%s4732 + $0x158] sm:$0xff]
  %v4777 = vld [vmem:[%s4732 + $0x160] sm:$0xff]
  %v4778 = vld [vmem:[%s4732 + $0x168] sm:$0xff]
  %v4779 = vld [vmem:[%s4732 + $0x170] sm:$0xff]
  %v4780 = vld [vmem:[%s4732 + $0x178] sm:$0xff]
  %4781 = vmatprep.subr.mxu0 0.0
  %4782 = vmatpush1.msra.mxu0 %v4733
  %4783 = vmatprep.subr.mxu0 0.0
  %4784 = vmatpush1.msra.mxu0 %v4734
  %4785 = vmatprep.subr.mxu0 0.0
  %4786 = vmatpush1.msra.mxu0 %v4735
  %4787 = vmatprep.subr.mxu0 0.0
  %4788 = vmatpush1.msra.mxu0 %v4736
  %4789 = vmatprep.subr.mxu0 0.0
  %4790 = vmatpush1.msra.mxu0 %v4737
  %4791 = vmatprep.subr.mxu0 0.0
  %4792 = vmatpush1.msra.mxu0 %v4738
  %4793 = vmatprep.subr.mxu0 0.0
  %4794 = vmatpush1.msra.mxu0 %v4739
  %4795 = vmatprep.subr.mxu0 0.0
  %4796 = vmatpush1.msra.mxu0 %v4740
  %4797 = vmatprep.subr.mxu0 0.0
  %4798 = vmatpush1.msra.mxu0 %v4741
  %4799 = vmatprep.subr.mxu0 0.0
  %4800 = vmatpush1.msra.mxu0 %v4742
  %4801 = vmatprep.subr.mxu0 0.0
  %4802 = vmatpush1.msra.mxu0 %v4743
  %4803 = vmatprep.subr.mxu0 0.0
  %4804 = vmatpush1.msra.mxu0 %v4744
  %4805 = vmatprep.subr.mxu0 0.0
  %4806 = vmatpush1.msra.mxu0 %v4745
  %4807 = vmatprep.subr.mxu0 0.0
  %4808 = vmatpush1.msra.mxu0 %v4746
  %4809 = vmatprep.subr.mxu0 0.0
  %4810 = vmatpush1.msra.mxu0 %v4747
  %4811 = vmatprep.subr.mxu0 0.0
  %4812 = vmatpush1.msra.mxu0 %v4748
  %4813 = vmatprep.subr.mxu0 0.0
  %4814 = vmatpush1.msra.mxu0 %v4749
  %4815 = vmatprep.subr.mxu0 0.0
  %4816 = vmatpush1.msra.mxu0 %v4750
  %4817 = vmatprep.subr.mxu0 0.0
  %4818 = vmatpush1.msra.mxu0 %v4751
  %4819 = vmatprep.subr.mxu0 0.0
  %4820 = vmatpush1.msra.mxu0 %v4752
  %4821 = vmatprep.subr.mxu0 0.0
  %4822 = vmatpush1.msra.mxu0 %v4753
  %4823 = vmatprep.subr.mxu0 0.0
  %4824 = vmatpush1.msra.mxu0 %v4754
  %4825 = vmatprep.subr.mxu0 0.0
  %4826 = vmatpush1.msra.mxu0 %v4755
  %4827 = vmatprep.subr.mxu0 0.0
  %4828 = vmatpush1.msra.mxu0 %v4756
  %4829 = vmatprep.subr.mxu0 0.0
  %4830 = vmatpush1.msra.mxu0 %v4757
  %4831 = vmatprep.subr.mxu0 0.0
  %4832 = vmatpush1.msra.mxu0 %v4758
  %4833 = vmatprep.subr.mxu0 0.0
  %4834 = vmatpush1.msra.mxu0 %v4759
  %4835 = vmatprep.subr.mxu0 0.0
  %4836 = vmatpush1.msra.mxu0 %v4760
  %4837 = vmatprep.subr.mxu0 0.0
  %4838 = vmatpush1.msra.mxu0 %v4761
  %4839 = vmatprep.subr.mxu0 0.0
  %4840 = vmatpush1.msra.mxu0 %v4762
  %4841 = vmatprep.subr.mxu0 0.0
  %4842 = vmatpush1.msra.mxu0 %v4763
  %4843 = vmatprep.subr.mxu0 0.0
  %4844 = vmatpush1.msra.mxu0 %v4764
  %4845 = vmatprep.mubr.f32.mxu0 %v4209
  %4846 = vmatmul.mubr.f32.gmra.mrb[0].mxu0 %v4000
  %v4847 = vpop.f32.mrb[0].mxu0
  %v4848 = vadd.f32 0.0, %v4847
  %v4849 = vpop.f32.mrb[0].mxu0
  %4850 = vmatprep.mubr.f32.mxu0 %v4211
  %4851 = vmatmul.mubr.f32.gmra.mrb[0].mxu0 %v4001
  %v4852 = vpop.f32.mrb[0].mxu0
  %v4853 = vadd.f32 0.0, %v4852
  %v4854 = vpop.f32.mrb[0].mxu0
  %4855 = vmatprep.mubr.f32.mxu0 %v4214
  %4856 = vmatmul.mubr.f32.gmra.mrb[0].mxu0 %v4003
  %v4857 = vpop.f32.mrb[0].mxu0
  %v4858 = vadd.f32 0.0, %v4857
  %v4859 = vpop.f32.mrb[0].mxu0
  %4860 = vmatprep.mubr.f32.mxu0 %v4216
  %4861 = vmatmul.mubr.f32.gmra.mrb[0].mxu0 %v4004
  %v4862 = vpop.f32.mrb[0].mxu0
  %v4863 = vadd.f32 0.0, %v4862
  %v4864 = vpop.f32.mrb[0].mxu0
  %4865 = vmatprep.mubr.f32.mxu0 %v4219
  %4866 = vmatmul.mubr.f32.gmra.mrb[0].mxu0 %v4006
  %v4867 = vpop.f32.mrb[0].mxu0
  %v4868 = vadd.f32 0.0, %v4867
  %v4869 = vpop.f32.mrb[0].mxu0
  %4870 = vmatprep.mubr.f32.mxu0 %v4221
  %4871 = vmatmul.mubr.f32.gmra.mrb[0].mxu0 %v4007
  %v4872 = vpop.f32.mrb[0].mxu0
  %v4873 = vadd.f32 0.0, %v4872
  %v4874 = vpop.f32.mrb[0].mxu0
  %4875 = vmatprep.mubr.f32.mxu0 %v4224
  %4876 = vmatmul.mubr.f32.gmra.mrb[0].mxu0 %v4009
  %v4877 = vpop.f32.mrb[0].mxu0
  %v4878 = vadd.f32 0.0, %v4877
  %v4879 = vpop.f32.mrb[0].mxu0
  %4880 = vmatprep.mubr.f32.mxu0 %v4226
  %4881 = vmatmul.mubr.f32.gmra.mrb[0].mxu0 %v4010
  %v4882 = vpop.f32.mrb[0].mxu0
  %v4883 = vadd.f32 0.0, %v4882
  %v4884 = vpop.f32.mrb[0].mxu0
  %4885 = vmatprep.mubr.f32.mxu0 %v4229
  %4886 = vmatmul.mubr.f32.gmra.mrb[0].mxu0 %v4012
  %v4887 = vpop.f32.mrb[0].mxu0
  %v4888 = vadd.f32 0.0, %v4887
  %v4889 = vpop.f32.mrb[0].mxu0
  %4890 = vmatprep.mubr.f32.mxu0 %v4231
  %4891 = vmatmul.mubr.f32.gmra.mrb[0].mxu0 %v4013
  %v4892 = vpop.f32.mrb[0].mxu0
  %v4893 = vadd.f32 0.0, %v4892
  %v4894 = vpop.f32.mrb[0].mxu0
  %4895 = vmatprep.mubr.f32.mxu0 %v4234
  %4896 = vmatmul.mubr.f32.gmra.mrb[0].mxu0 %v4015
  %v4897 = vpop.f32.mrb[0].mxu0
  %v4898 = vadd.f32 0.0, %v4897
  %v4899 = vpop.f32.mrb[0].mxu0
  %4900 = vmatprep.mubr.f32.mxu0 %v4236
  %4901 = vmatmul.mubr.f32.gmra.mrb[0].mxu0 %v4016
  %v4902 = vpop.f32.mrb[0].mxu0
  %v4903 = vadd.f32 0.0, %v4902
  %v4904 = vpop.f32.mrb[0].mxu0
  %4905 = vmatprep.mubr.f32.mxu0 %v4239
  %4906 = vmatmul.mubr.f32.gmra.mrb[0].mxu0 %v4018
  %v4907 = vpop.f32.mrb[0].mxu0
  %v4908 = vadd.f32 0.0, %v4907
  %v4909 = vpop.f32.mrb[0].mxu0
  %4910 = vmatprep.mubr.f32.mxu0 %v4241
  %4911 = vmatmul.mubr.f32.gmra.mrb[0].mxu0 %v4019
  %v4912 = vpop.f32.mrb[0].mxu0
  %v4913 = vadd.f32 0.0, %v4912
  %v4914 = vpop.f32.mrb[0].mxu0
  %4915 = vmatprep.mubr.f32.mxu0 %v4244
  %4916 = vmatmul.mubr.f32.gmra.mrb[0].mxu0 %v4021
  %v4917 = vpop.f32.mrb[0].mxu0
  %v4918 = vadd.f32 0.0, %v4917
  %v4919 = vpop.f32.mrb[0].mxu0
  %4920 = vmatprep.mubr.f32.mxu0 %v4246
  %4921 = vmatmul.mubr.f32.gmra.mrb[0].mxu0 %v4022
  %v4922 = vpop.f32.mrb[0].mxu0
  %v4923 = vadd.f32 0.0, %v4922
  %v4924 = vpop.f32.mrb[0].mxu0
  %4925 = vmatprep.mubr.f32.mxu0 %v4249
  %4926 = vmatmul.mubr.f32.gmra.mrb[0].mxu0 %v4024
  %v4927 = vpop.f32.mrb[0].mxu0
  %v4928 = vadd.f32 0.0, %v4927
  %v4929 = vpop.f32.mrb[0].mxu0
  %4930 = vmatprep.mubr.f32.mxu0 %v4251
  %4931 = vmatmul.mubr.f32.gmra.mrb[0].mxu0 %v4025
  %v4932 = vpop.f32.mrb[0].mxu0
  %v4933 = vadd.f32 0.0, %v4932
  %v4934 = vpop.f32.mrb[0].mxu0
  %4935 = vmatprep.mubr.f32.mxu0 %v4254
  %4936 = vmatmul.mubr.f32.gmra.mrb[0].mxu0 %v4027
  %v4937 = vpop.f32.mrb[0].mxu0
  %v4938 = vadd.f32 0.0, %v4937
  %v4939 = vpop.f32.mrb[0].mxu0
  %4940 = vmatprep.mubr.f32.mxu0 %v4256
  %4941 = vmatmul.mubr.f32.gmra.mrb[0].mxu0 %v4028
  %v4942 = vpop.f32.mrb[0].mxu0
  %v4943 = vadd.f32 0.0, %v4942
  %v4944 = vpop.f32.mrb[0].mxu0
  %4945 = vmatprep.mubr.f32.mxu0 %v4259
  %4946 = vmatmul.mubr.f32.gmra.mrb[0].mxu0 %v4030
  %v4947 = vpop.f32.mrb[0].mxu0
  %v4948 = vadd.f32 0.0, %v4947
  %v4949 = vpop.f32.mrb[0].mxu0
  %4950 = vmatprep.mubr.f32.mxu0 %v4261
  %4951 = vmatmul.mubr.f32.gmra.mrb[0].mxu0 %v4031
  %v4952 = vpop.f32.mrb[0].mxu0
  %v4953 = vadd.f32 0.0, %v4952
  %v4954 = vpop.f32.mrb[0].mxu0
  %4955 = vmatprep.mubr.f32.mxu0 %v4264
  %4956 = vmatmul.mubr.f32.gmra.mrb[0].mxu0 %v4033
  %v4957 = vpop.f32.mrb[0].mxu0
  %v4958 = vadd.f32 0.0, %v4957
  %v4959 = vpop.f32.mrb[0].mxu0
  %4960 = vmatprep.mubr.f32.mxu0 %v4266
  %4961 = vmatmul.mubr.f32.gmra.mrb[0].mxu0 %v4034
  %v4962 = vpop.f32.mrb[0].mxu0
  %v4963 = vadd.f32 0.0, %v4962
  %v4964 = vpop.f32.mrb[0].mxu0
  %4965 = vmatprep.mubr.f32.mxu0 %v4269
  %4966 = vmatmul.mubr.f32.gmra.mrb[0].mxu0 %v4036
  %v4967 = vpop.f32.mrb[0].mxu0
  %v4968 = vadd.f32 0.0, %v4967
  %v4969 = vpop.f32.mrb[0].mxu0
  %4970 = vmatprep.mubr.f32.mxu0 %v4271
  %4971 = vmatmul.mubr.f32.gmra.mrb[0].mxu0 %v4037
  %v4972 = vpop.f32.mrb[0].mxu0
  %v4973 = vadd.f32 0.0, %v4972
  %v4974 = vpop.f32.mrb[0].mxu0
  %4975 = vmatprep.mubr.f32.mxu0 %v4274
  %4976 = vmatmul.mubr.f32.gmra.mrb[0].mxu0 %v4039
  %v4977 = vpop.f32.mrb[0].mxu0
  %v4978 = vadd.f32 0.0, %v4977
  %v4979 = vpop.f32.mrb[0].mxu0
  %4980 = vmatprep.mubr.f32.mxu0 %v4276
  %4981 = vmatmul.mubr.f32.gmra.mrb[0].mxu0 %v4040
  %v4982 = vpop.f32.mrb[0].mxu0
  %v4983 = vadd.f32 0.0, %v4982
  %v4984 = vpop.f32.mrb[0].mxu0
  %4985 = vmatprep.mubr.f32.mxu0 %v4279
  %4986 = vmatmul.mubr.f32.gmra.mrb[0].mxu0 %v4042
  %v4987 = vpop.f32.mrb[0].mxu0
  %v4988 = vadd.f32 0.0, %v4987
  %v4989 = vpop.f32.mrb[0].mxu0
  %4990 = vmatprep.mubr.f32.mxu0 %v4281
  %4991 = vmatmul.mubr.f32.gmra.mrb[0].mxu0 %v4043
  %v4992 = vpop.f32.mrb[0].mxu0
  %v4993 = vadd.f32 0.0, %v4992
  %v4994 = vpop.f32.mrb[0].mxu0
  %4995 = vmatprep.mubr.f32.mxu0 %v4706
  %4996 = vmatmul.mubr.f32.gmra.mrb[0].mxu0 %v4045
  %v4997 = vpop.f32.mrb[0].mxu0
  %v4998 = vadd.f32 0.0, %v4997
  %v4999 = vpop.f32.mrb[0].mxu0
  %5000 = vmatprep.mubr.f32.mxu0 %v4708
  %5001 = vmatmul.mubr.f32.gmra.mrb[0].mxu0 %v4046
  %v5002 = vpop.f32.mrb[0].mxu0
  %v5003 = vadd.f32 0.0, %v5002
  %v5004 = vpop.f32.mrb[0].mxu0
  %5005 = vmatprep.mubr.f32.mxu0 %v4289
  %5006 = vmatmul.mubr.f32.gmra.mrb[0].mxu0 %v4054
  %v5007 = vpop.f32.mrb[0].mxu0
  %v5008 = vadd.f32 0.0, %v5007
  %v5009 = vpop.f32.mrb[0].mxu0
  %5010 = vmatprep.mubr.f32.mxu0 %v4291
  %5011 = vmatmul.mubr.f32.gmra.mrb[0].mxu0 %v4055
  %v5012 = vpop.f32.mrb[0].mxu0
  %v5013 = vadd.f32 0.0, %v5012
  %v5014 = vpop.f32.mrb[0].mxu0
  %5015 = vmatprep.mubr.f32.mxu0 %v4294
  %5016 = vmatmul.mubr.f32.gmra.mrb[0].mxu0 %v4057
  %v5017 = vpop.f32.mrb[0].mxu0
  %v5018 = vadd.f32 0.0, %v5017
  %v5019 = vpop.f32.mrb[0].mxu0
  %5020 = vmatprep.mubr.f32.mxu0 %v4296
  %5021 = vmatmul.mubr.f32.gmra.mrb[0].mxu0 %v4058
  %v5022 = vpop.f32.mrb[0].mxu0
  %v5023 = vadd.f32 0.0, %v5022
  %v5024 = vpop.f32.mrb[0].mxu0
  %5025 = vmatprep.mubr.f32.mxu0 %v4299
  %5026 = vmatmul.mubr.f32.gmra.mrb[0].mxu0 %v4060
  %v5027 = vpop.f32.mrb[0].mxu0
  %v5028 = vadd.f32 0.0, %v5027
  %v5029 = vpop.f32.mrb[0].mxu0
  %5030 = vmatprep.mubr.f32.mxu0 %v4301
  %5031 = vmatmul.mubr.f32.gmra.mrb[0].mxu0 %v4061
  %v5032 = vpop.f32.mrb[0].mxu0
  %v5033 = vadd.f32 0.0, %v5032
  %v5034 = vpop.f32.mrb[0].mxu0
  %5035 = vmatprep.mubr.f32.mxu0 %v4304
  %5036 = vmatmul.mubr.f32.gmra.mrb[0].mxu0 %v4063
  %v5037 = vpop.f32.mrb[0].mxu0
  %v5038 = vadd.f32 0.0, %v5037
  %v5039 = vpop.f32.mrb[0].mxu0
  %5040 = vmatprep.mubr.f32.mxu0 %v4306
  %5041 = vmatmul.mubr.f32.gmra.mrb[0].mxu0 %v4064
  %v5042 = vpop.f32.mrb[0].mxu0
  %v5043 = vadd.f32 0.0, %v5042
  %v5044 = vpop.f32.mrb[0].mxu0
  %5045 = vmatprep.mubr.f32.mxu0 %v4309
  %5046 = vmatmul.mubr.f32.gmra.mrb[0].mxu0 %v4066
  %v5047 = vpop.f32.mrb[0].mxu0
  %v5048 = vadd.f32 0.0, %v5047
  %v5049 = vpop.f32.mrb[0].mxu0
  %5050 = vmatprep.mubr.f32.mxu0 %v4311
  %5051 = vmatmul.mubr.f32.gmra.mrb[0].mxu0 %v4067
  %v5052 = vpop.f32.mrb[0].mxu0
  %v5053 = vadd.f32 0.0, %v5052
  %v5054 = vpop.f32.mrb[0].mxu0
  %5055 = vmatprep.mubr.f32.mxu0 %v4314
  %5056 = vmatmul.mubr.f32.gmra.mrb[0].mxu0 %v4069
  %v5057 = vpop.f32.mrb[0].mxu0
  %v5058 = vadd.f32 0.0, %v5057
  %v5059 = vpop.f32.mrb[0].mxu0
  %5060 = vmatprep.mubr.f32.mxu0 %v4316
  %5061 = vmatmul.mubr.f32.gmra.mrb[0].mxu0 %v4070
  %v5062 = vpop.f32.mrb[0].mxu0
  %v5063 = vadd.f32 0.0, %v5062
  %v5064 = vpop.f32.mrb[0].mxu0
  %5065 = vmatprep.mubr.f32.mxu0 %v4319
  %5066 = vmatmul.mubr.f32.gmra.mrb[0].mxu0 %v4072
  %v5067 = vpop.f32.mrb[0].mxu0
  %v5068 = vadd.f32 0.0, %v5067
  %v5069 = vpop.f32.mrb[0].mxu0
  %5070 = vmatprep.mubr.f32.mxu0 %v4321
  %5071 = vmatmul.mubr.f32.gmra.mrb[0].mxu0 %v4073
  %v5072 = vpop.f32.mrb[0].mxu0
  %v5073 = vadd.f32 0.0, %v5072
  %v5074 = vpop.f32.mrb[0].mxu0
  %5075 = vmatprep.mubr.f32.mxu0 %v4324
  %5076 = vmatmul.mubr.f32.gmra.mrb[0].mxu0 %v4075
  %v5077 = vpop.f32.mrb[0].mxu0
  %v5078 = vadd.f32 0.0, %v5077
  %v5079 = vpop.f32.mrb[0].mxu0
  %5080 = vmatprep.mubr.f32.mxu0 %v4326
  %5081 = vmatmul.mubr.f32.gmra.mrb[0].mxu0 %v4076
  %v5082 = vpop.f32.mrb[0].mxu0
  %v5083 = vadd.f32 0.0, %v5082
  %v5084 = vpop.f32.mrb[0].mxu0
  %5085 = vmatprep.mubr.f32.mxu0 %v4329
  %5086 = vmatmul.mubr.f32.gmra.mrb[0].mxu0 %v4078
  %v5087 = vpop.f32.mrb[0].mxu0
  %v5088 = vadd.f32 0.0, %v5087
  %v5089 = vpop.f32.mrb[0].mxu0
  %5090 = vmatprep.mubr.f32.mxu0 %v4331
  %5091 = vmatmul.mubr.f32.gmra.mrb[0].mxu0 %v4079
  %v5092 = vpop.f32.mrb[0].mxu0
  %v5093 = vadd.f32 0.0, %v5092
  %v5094 = vpop.f32.mrb[0].mxu0
  %5095 = vmatprep.mubr.f32.mxu0 %v4334
  %5096 = vmatmul.mubr.f32.gmra.mrb[0].mxu0 %v4081
  %v5097 = vpop.f32.mrb[0].mxu0
  %v5098 = vadd.f32 0.0, %v5097
  %v5099 = vpop.f32.mrb[0].mxu0
  %5100 = vmatprep.mubr.f32.mxu0 %v4336
  %5101 = vmatmul.mubr.f32.gmra.mrb[0].mxu0 %v4082
  %v5102 = vpop.f32.mrb[0].mxu0
  %v5103 = vadd.f32 0.0, %v5102
  %v5104 = vpop.f32.mrb[0].mxu0
  %5105 = vmatprep.mubr.f32.mxu0 %v4339
  %5106 = vmatmul.mubr.f32.gmra.mrb[0].mxu0 %v4084
  %v5107 = vpop.f32.mrb[0].mxu0
  %v5108 = vadd.f32 0.0, %v5107
  %v5109 = vpop.f32.mrb[0].mxu0
  %5110 = vmatprep.mubr.f32.mxu0 %v4341
  %5111 = vmatmul.mubr.f32.gmra.mrb[0].mxu0 %v4085
  %v5112 = vpop.f32.mrb[0].mxu0
  %v5113 = vadd.f32 0.0, %v5112
  %v5114 = vpop.f32.mrb[0].mxu0
  %5115 = vmatprep.mubr.f32.mxu0 %v4344
  %5116 = vmatmul.mubr.f32.gmra.mrb[0].mxu0 %v4087
  %v5117 = vpop.f32.mrb[0].mxu0
  %v5118 = vadd.f32 0.0, %v5117
  %v5119 = vpop.f32.mrb[0].mxu0
  %5120 = vmatprep.mubr.f32.mxu0 %v4346
  %5121 = vmatmul.mubr.f32.gmra.mrb[0].mxu0 %v4088
  %v5122 = vpop.f32.mrb[0].mxu0
  %v5123 = vadd.f32 0.0, %v5122
  %v5124 = vpop.f32.mrb[0].mxu0
  %5125 = vmatprep.mubr.f32.mxu0 %v4349
  %5126 = vmatmul.mubr.f32.gmra.mrb[0].mxu0 %v4090
  %v5127 = vpop.f32.mrb[0].mxu0
  %v5128 = vadd.f32 0.0, %v5127
  %v5129 = vpop.f32.mrb[0].mxu0
  %5130 = vmatprep.mubr.f32.mxu0 %v4351
  %5131 = vmatmul.mubr.f32.gmra.mrb[0].mxu0 %v4091
  %v5132 = vpop.f32.mrb[0].mxu0
  %v5133 = vadd.f32 0.0, %v5132
  %v5134 = vpop.f32.mrb[0].mxu0
  %5135 = vmatprep.mubr.f32.mxu0 %v4354
  %5136 = vmatmul.mubr.f32.gmra.mrb[0].mxu0 %v4093
  %v5137 = vpop.f32.mrb[0].mxu0
  %v5138 = vadd.f32 0.0, %v5137
  %v5139 = vpop.f32.mrb[0].mxu0
  %5140 = vmatprep.mubr.f32.mxu0 %v4356
  %5141 = vmatmul.mubr.f32.gmra.mrb[0].mxu0 %v4094
  %v5142 = vpop.f32.mrb[0].mxu0
  %v5143 = vadd.f32 0.0, %v5142
  %v5144 = vpop.f32.mrb[0].mxu0
  %5145 = vmatprep.mubr.f32.mxu0 %v4359
  %5146 = vmatmul.mubr.f32.gmra.mrb[0].mxu0 %v4096
  %v5147 = vpop.f32.mrb[0].mxu0
  %v5148 = vadd.f32 0.0, %v5147
  %v5149 = vpop.f32.mrb[0].mxu0
  %5150 = vmatprep.mubr.f32.mxu0 %v4361
  %5151 = vmatmul.mubr.f32.gmra.mrb[0].mxu0 %v4097
  %v5152 = vpop.f32.mrb[0].mxu0
  %v5153 = vadd.f32 0.0, %v5152
  %v5154 = vpop.f32.mrb[0].mxu0
  %5155 = vmatprep.mubr.f32.mxu0 %v4711
  %5156 = vmatmul.mubr.f32.gmra.mrb[0].mxu0 %v4099
  %v5157 = vpop.f32.mrb[0].mxu0
  %v5158 = vadd.f32 0.0, %v5157
  %v5159 = vpop.f32.mrb[0].mxu0
  %5160 = vmatprep.mubr.f32.mxu0 %v4713
  %5161 = vmatmul.mubr.f32.gmra.mrb[0].mxu0 %v4100
  %v5162 = vpop.f32.mrb[0].mxu0
  %v5163 = vadd.f32 0.0, %v5162
  %v5164 = vpop.f32.mrb[0].mxu0
  %5165 = vdwg.mxu0
  %5166 = vmatprep.subr.mxu0 0.0
  %5167 = vmatpush1.msra.mxu0 %v4765
  %5168 = vmatprep.subr.mxu0 0.0
  %5169 = vmatpush1.msra.mxu0 %v4766
  %5170 = vmatprep.subr.mxu0 0.0
  %5171 = vmatpush1.msra.mxu0 %v4767
  %5172 = vmatprep.subr.mxu0 0.0
  %5173 = vmatpush1.msra.mxu0 %v4768
  %5174 = vmatprep.subr.mxu0 0.0
  %5175 = vmatpush1.msra.mxu0 %v4769
  %5176 = vmatprep.subr.mxu0 0.0
  %5177 = vmatpush1.msra.mxu0 %v4770
  %5178 = vmatprep.subr.mxu0 0.0
  %5179 = vmatpush1.msra.mxu0 %v4771
  %5180 = vmatprep.subr.mxu0 0.0
  %5181 = vmatpush1.msra.mxu0 %v4772
  %5182 = vmatprep.subr.mxu0 0.0
  %5183 = vmatpush1.msra.mxu0 %v4773
  %5184 = vmatprep.subr.mxu0 0.0
  %5185 = vmatpush1.msra.mxu0 %v4774
  %5186 = vmatprep.subr.mxu0 0.0
  %5187 = vmatpush1.msra.mxu0 %v4775
  %5188 = vmatprep.subr.mxu0 0.0
  %5189 = vmatpush1.msra.mxu0 %v4776
  %5190 = vmatprep.subr.mxu0 0.0
  %5191 = vmatpush1.msra.mxu0 %v4777
  %5192 = vmatprep.subr.mxu0 0.0
  %5193 = vmatpush1.msra.mxu0 %v4778
  %5194 = vmatprep.subr.mxu0 0.0
  %5195 = vmatpush1.msra.mxu0 %v4779
  %5196 = vmatprep.subr.mxu0 0.0
  %5197 = vmatpush1.msra.mxu0 %v4780
  %5198 = vmatprep.subr.mxu0 0.0
  %5199 = vmatpush1.msra.mxu0 0.0
  %5200 = vmatprep.subr.mxu0 0.0
  %5201 = vmatpush1.msra.mxu0 0.0
  %5202 = vmatprep.subr.mxu0 0.0
  %5203 = vmatpush1.msra.mxu0 0.0
  %5204 = vmatprep.subr.mxu0 0.0
  %5205 = vmatpush1.msra.mxu0 0.0
  %5206 = vmatprep.subr.mxu0 0.0
  %5207 = vmatpush1.msra.mxu0 0.0
  %5208 = vmatprep.subr.mxu0 0.0
  %5209 = vmatpush1.msra.mxu0 0.0
  %5210 = vmatprep.subr.mxu0 0.0
  %5211 = vmatpush1.msra.mxu0 0.0
  %5212 = vmatprep.subr.mxu0 0.0
  %5213 = vmatpush1.msra.mxu0 0.0
  %5214 = vmatprep.subr.mxu0 0.0
  %5215 = vmatpush1.msra.mxu0 0.0
  %5216 = vmatprep.subr.mxu0 0.0
  %5217 = vmatpush1.msra.mxu0 0.0
  %5218 = vmatprep.subr.mxu0 0.0
  %5219 = vmatpush1.msra.mxu0 0.0
  %5220 = vmatprep.subr.mxu0 0.0
  %5221 = vmatpush1.msra.mxu0 0.0
  %5222 = vmatprep.subr.mxu0 0.0
  %5223 = vmatpush1.msra.mxu0 0.0
  %5224 = vmatprep.subr.mxu0 0.0
  %5225 = vmatpush1.msra.mxu0 0.0
  %5226 = vmatprep.subr.mxu0 0.0
  %5227 = vmatpush1.msra.mxu0 0.0
  %5228 = vmatprep.subr.mxu0 0.0
  %5229 = vmatpush1.msra.mxu0 0.0
  %5230 = vmatprep.mubr.f32.mxu0 0.0
  %5231 = vmatmul.mubr.f32.gmra.mrb[0].mxu0 %v4433
  %v5232 = vpop.f32.mrb[0].mxu0
  %v5233 = vadd.f32 %v4848, %v5232
  %v5234 = vpop.f32.mrb[0].mxu0
  %5235 = vmatprep.mubr.f32.mxu0 0.0
  %5236 = vmatmul.mubr.f32.gmra.mrb[0].mxu0 %v4435
  %v5237 = vpop.f32.mrb[0].mxu0
  %v5238 = vadd.f32 %v4853, %v5237
  %v5239 = vpop.f32.mrb[0].mxu0
  %5240 = vmatprep.mubr.f32.mxu0 0.0
  %5241 = vmatmul.mubr.f32.gmra.mrb[0].mxu0 %v4438
  %v5242 = vpop.f32.mrb[0].mxu0
  %v5243 = vadd.f32 %v4858, %v5242
  %v5244 = vpop.f32.mrb[0].mxu0
  %5245 = vmatprep.mubr.f32.mxu0 0.0
  %5246 = vmatmul.mubr.f32.gmra.mrb[0].mxu0 %v4440
  %v5247 = vpop.f32.mrb[0].mxu0
  %v5248 = vadd.f32 %v4863, %v5247
  %v5249 = vpop.f32.mrb[0].mxu0
  %5250 = vmatprep.mubr.f32.mxu0 0.0
  %5251 = vmatmul.mubr.f32.gmra.mrb[0].mxu0 %v4443
  %v5252 = vpop.f32.mrb[0].mxu0
  %v5253 = vadd.f32 %v4868, %v5252
  %v5254 = vpop.f32.mrb[0].mxu0
  %5255 = vmatprep.mubr.f32.mxu0 0.0
  %5256 = vmatmul.mubr.f32.gmra.mrb[0].mxu0 %v4445
  %v5257 = vpop.f32.mrb[0].mxu0
  %v5258 = vadd.f32 %v4873, %v5257
  %v5259 = vpop.f32.mrb[0].mxu0
  %5260 = vmatprep.mubr.f32.mxu0 0.0
  %5261 = vmatmul.mubr.f32.gmra.mrb[0].mxu0 %v4448
  %v5262 = vpop.f32.mrb[0].mxu0
  %v5263 = vadd.f32 %v4878, %v5262
  %v5264 = vpop.f32.mrb[0].mxu0
  %5265 = vmatprep.mubr.f32.mxu0 0.0
  %5266 = vmatmul.mubr.f32.gmra.mrb[0].mxu0 %v4450
  %v5267 = vpop.f32.mrb[0].mxu0
  %v5268 = vadd.f32 %v4883, %v5267
  %v5269 = vpop.f32.mrb[0].mxu0
  %5270 = vmatprep.mubr.f32.mxu0 0.0
  %5271 = vmatmul.mubr.f32.gmra.mrb[0].mxu0 %v4453
  %v5272 = vpop.f32.mrb[0].mxu0
  %v5273 = vadd.f32 %v4888, %v5272
  %v5274 = vpop.f32.mrb[0].mxu0
  %5275 = vmatprep.mubr.f32.mxu0 0.0
  %5276 = vmatmul.mubr.f32.gmra.mrb[0].mxu0 %v4455
  %v5277 = vpop.f32.mrb[0].mxu0
  %v5278 = vadd.f32 %v4893, %v5277
  %v5279 = vpop.f32.mrb[0].mxu0
  %5280 = vmatprep.mubr.f32.mxu0 0.0
  %5281 = vmatmul.mubr.f32.gmra.mrb[0].mxu0 %v4458
  %v5282 = vpop.f32.mrb[0].mxu0
  %v5283 = vadd.f32 %v4898, %v5282
  %v5284 = vpop.f32.mrb[0].mxu0
  %5285 = vmatprep.mubr.f32.mxu0 0.0
  %5286 = vmatmul.mubr.f32.gmra.mrb[0].mxu0 %v4460
  %v5287 = vpop.f32.mrb[0].mxu0
  %v5288 = vadd.f32 %v4903, %v5287
  %v5289 = vpop.f32.mrb[0].mxu0
  %5290 = vmatprep.mubr.f32.mxu0 0.0
  %5291 = vmatmul.mubr.f32.gmra.mrb[0].mxu0 %v4463
  %v5292 = vpop.f32.mrb[0].mxu0
  %v5293 = vadd.f32 %v4908, %v5292
  %v5294 = vpop.f32.mrb[0].mxu0
  %5295 = vmatprep.mubr.f32.mxu0 0.0
  %5296 = vmatmul.mubr.f32.gmra.mrb[0].mxu0 %v4465
  %v5297 = vpop.f32.mrb[0].mxu0
  %v5298 = vadd.f32 %v4913, %v5297
  %v5299 = vpop.f32.mrb[0].mxu0
  %5300 = vmatprep.mubr.f32.mxu0 0.0
  %5301 = vmatmul.mubr.f32.gmra.mrb[0].mxu0 %v4468
  %v5302 = vpop.f32.mrb[0].mxu0
  %v5303 = vadd.f32 %v4918, %v5302
  %v5304 = vpop.f32.mrb[0].mxu0
  %5305 = vmatprep.mubr.f32.mxu0 0.0
  %5306 = vmatmul.mubr.f32.gmra.mrb[0].mxu0 %v4470
  %v5307 = vpop.f32.mrb[0].mxu0
  %v5308 = vadd.f32 %v4923, %v5307
  %v5309 = vpop.f32.mrb[0].mxu0
  %5310 = vmatprep.mubr.f32.mxu0 0.0
  %5311 = vmatmul.mubr.f32.gmra.mrb[0].mxu0 %v4473
  %v5312 = vpop.f32.mrb[0].mxu0
  %v5313 = vadd.f32 %v4928, %v5312
  %v5314 = vpop.f32.mrb[0].mxu0
  %5315 = vmatprep.mubr.f32.mxu0 0.0
  %5316 = vmatmul.mubr.f32.gmra.mrb[0].mxu0 %v4475
  %v5317 = vpop.f32.mrb[0].mxu0
  %v5318 = vadd.f32 %v4933, %v5317
  %v5319 = vpop.f32.mrb[0].mxu0
  %5320 = vmatprep.mubr.f32.mxu0 0.0
  %5321 = vmatmul.mubr.f32.gmra.mrb[0].mxu0 %v4478
  %v5322 = vpop.f32.mrb[0].mxu0
  %v5323 = vadd.f32 %v4938, %v5322
  %v5324 = vpop.f32.mrb[0].mxu0
  %5325 = vmatprep.mubr.f32.mxu0 0.0
  %5326 = vmatmul.mubr.f32.gmra.mrb[0].mxu0 %v4480
  %v5327 = vpop.f32.mrb[0].mxu0
  %v5328 = vadd.f32 %v4943, %v5327
  %v5329 = vpop.f32.mrb[0].mxu0
  %5330 = vmatprep.mubr.f32.mxu0 0.0
  %5331 = vmatmul.mubr.f32.gmra.mrb[0].mxu0 %v4483
  %v5332 = vpop.f32.mrb[0].mxu0
  %v5333 = vadd.f32 %v4948, %v5332
  %v5334 = vpop.f32.mrb[0].mxu0
  %5335 = vmatprep.mubr.f32.mxu0 0.0
  %5336 = vmatmul.mubr.f32.gmra.mrb[0].mxu0 %v4485
  %v5337 = vpop.f32.mrb[0].mxu0
  %v5338 = vadd.f32 %v4953, %v5337
  %v5339 = vpop.f32.mrb[0].mxu0
  %5340 = vmatprep.mubr.f32.mxu0 0.0
  %5341 = vmatmul.mubr.f32.gmra.mrb[0].mxu0 %v4488
  %v5342 = vpop.f32.mrb[0].mxu0
  %v5343 = vadd.f32 %v4958, %v5342
  %v5344 = vpop.f32.mrb[0].mxu0
  %5345 = vmatprep.mubr.f32.mxu0 0.0
  %5346 = vmatmul.mubr.f32.gmra.mrb[0].mxu0 %v4490
  %v5347 = vpop.f32.mrb[0].mxu0
  %v5348 = vadd.f32 %v4963, %v5347
  %v5349 = vpop.f32.mrb[0].mxu0
  %5350 = vmatprep.mubr.f32.mxu0 0.0
  %5351 = vmatmul.mubr.f32.gmra.mrb[0].mxu0 %v4493
  %v5352 = vpop.f32.mrb[0].mxu0
  %v5353 = vadd.f32 %v4968, %v5352
  %v5354 = vpop.f32.mrb[0].mxu0
  %5355 = vmatprep.mubr.f32.mxu0 0.0
  %5356 = vmatmul.mubr.f32.gmra.mrb[0].mxu0 %v4495
  %v5357 = vpop.f32.mrb[0].mxu0
  %v5358 = vadd.f32 %v4973, %v5357
  %v5359 = vpop.f32.mrb[0].mxu0
  %5360 = vmatprep.mubr.f32.mxu0 0.0
  %5361 = vmatmul.mubr.f32.gmra.mrb[0].mxu0 %v4498
  %v5362 = vpop.f32.mrb[0].mxu0
  %v5363 = vadd.f32 %v4978, %v5362
  %v5364 = vpop.f32.mrb[0].mxu0
  %5365 = vmatprep.mubr.f32.mxu0 0.0
  %5366 = vmatmul.mubr.f32.gmra.mrb[0].mxu0 %v4500
  %v5367 = vpop.f32.mrb[0].mxu0
  %v5368 = vadd.f32 %v4983, %v5367
  %v5369 = vpop.f32.mrb[0].mxu0
  %5370 = vmatprep.mubr.f32.mxu0 0.0
  %5371 = vmatmul.mubr.f32.gmra.mrb[0].mxu0 %v4503
  %v5372 = vpop.f32.mrb[0].mxu0
  %v5373 = vadd.f32 %v4988, %v5372
  %v5374 = vpop.f32.mrb[0].mxu0
  %5375 = vmatprep.mubr.f32.mxu0 0.0
  %5376 = vmatmul.mubr.f32.gmra.mrb[0].mxu0 %v4505
  %v5377 = vpop.f32.mrb[0].mxu0
  %v5378 = vadd.f32 %v4993, %v5377
  %v5379 = vpop.f32.mrb[0].mxu0
  %5380 = vmatprep.mubr.f32.mxu0 0.0
  %5381 = vmatmul.mubr.f32.gmra.mrb[0].mxu0 %v4720
  %v5382 = vpop.f32.mrb[0].mxu0
  %v5383 = vadd.f32 %v4998, %v5382
  %v5384 = vpop.f32.mrb[0].mxu0
  %5385 = vmatprep.mubr.f32.mxu0 0.0
  %5386 = vmatmul.mubr.f32.gmra.mrb[0].mxu0 %v4722
  %v5387 = vpop.f32.mrb[0].mxu0
  %v5388 = vadd.f32 %v5003, %v5387
  %v5389 = vpop.f32.mrb[0].mxu0
  %5390 = vmatprep.mubr.f32.mxu0 0.0
  %5391 = vmatmul.mubr.f32.gmra.mrb[0].mxu0 %v4513
  %v5392 = vpop.f32.mrb[0].mxu0
  %v5393 = vadd.f32 %v5008, %v5392
  %v5394 = vpop.f32.mrb[0].mxu0
  %5395 = vmatprep.mubr.f32.mxu0 0.0
  %5396 = vmatmul.mubr.f32.gmra.mrb[0].mxu0 %v4515
  %v5397 = vpop.f32.mrb[0].mxu0
  %v5398 = vadd.f32 %v5013, %v5397
  %v5399 = vpop.f32.mrb[0].mxu0
  %5400 = vmatprep.mubr.f32.mxu0 0.0
  %5401 = vmatmul.mubr.f32.gmra.mrb[0].mxu0 %v4518
  %v5402 = vpop.f32.mrb[0].mxu0
  %v5403 = vadd.f32 %v5018, %v5402
  %v5404 = vpop.f32.mrb[0].mxu0
  %5405 = vmatprep.mubr.f32.mxu0 0.0
  %5406 = vmatmul.mubr.f32.gmra.mrb[0].mxu0 %v4520
  %v5407 = vpop.f32.mrb[0].mxu0
  %v5408 = vadd.f32 %v5023, %v5407
  %v5409 = vpop.f32.mrb[0].mxu0
  %5410 = vmatprep.mubr.f32.mxu0 0.0
  %5411 = vmatmul.mubr.f32.gmra.mrb[0].mxu0 %v4523
  %v5412 = vpop.f32.mrb[0].mxu0
  %v5413 = vadd.f32 %v5028, %v5412
  %v5414 = vpop.f32.mrb[0].mxu0
  %5415 = vmatprep.mubr.f32.mxu0 0.0
  %5416 = vmatmul.mubr.f32.gmra.mrb[0].mxu0 %v4525
  %v5417 = vpop.f32.mrb[0].mxu0
  %v5418 = vadd.f32 %v5033, %v5417
  %v5419 = vpop.f32.mrb[0].mxu0
  %5420 = vmatprep.mubr.f32.mxu0 0.0
  %5421 = vmatmul.mubr.f32.gmra.mrb[0].mxu0 %v4528
  %v5422 = vpop.f32.mrb[0].mxu0
  %v5423 = vadd.f32 %v5038, %v5422
  %v5424 = vpop.f32.mrb[0].mxu0
  %5425 = vmatprep.mubr.f32.mxu0 0.0
  %5426 = vmatmul.mubr.f32.gmra.mrb[0].mxu0 %v4530
  %v5427 = vpop.f32.mrb[0].mxu0
  %v5428 = vadd.f32 %v5043, %v5427
  %v5429 = vpop.f32.mrb[0].mxu0
  %5430 = vmatprep.mubr.f32.mxu0 0.0
  %5431 = vmatmul.mubr.f32.gmra.mrb[0].mxu0 %v4533
  %v5432 = vpop.f32.mrb[0].mxu0
  %v5433 = vadd.f32 %v5048, %v5432
  %v5434 = vpop.f32.mrb[0].mxu0
  %5435 = vmatprep.mubr.f32.mxu0 0.0
  %5436 = vmatmul.mubr.f32.gmra.mrb[0].mxu0 %v4535
  %v5437 = vpop.f32.mrb[0].mxu0
  %v5438 = vadd.f32 %v5053, %v5437
  %v5439 = vpop.f32.mrb[0].mxu0
  %5440 = vmatprep.mubr.f32.mxu0 0.0
  %5441 = vmatmul.mubr.f32.gmra.mrb[0].mxu0 %v4538
  %v5442 = vpop.f32.mrb[0].mxu0
  %v5443 = vadd.f32 %v5058, %v5442
  %v5444 = vpop.f32.mrb[0].mxu0
  %5445 = vmatprep.mubr.f32.mxu0 0.0
  %5446 = vmatmul.mubr.f32.gmra.mrb[0].mxu0 %v4540
  %v5447 = vpop.f32.mrb[0].mxu0
  %v5448 = vadd.f32 %v5063, %v5447
  %v5449 = vpop.f32.mrb[0].mxu0
  %5450 = vmatprep.mubr.f32.mxu0 0.0
  %5451 = vmatmul.mubr.f32.gmra.mrb[0].mxu0 %v4543
  %v5452 = vpop.f32.mrb[0].mxu0
  %v5453 = vadd.f32 %v5068, %v5452
  %v5454 = vpop.f32.mrb[0].mxu0
  %5455 = vmatprep.mubr.f32.mxu0 0.0
  %5456 = vmatmul.mubr.f32.gmra.mrb[0].mxu0 %v4545
  %v5457 = vpop.f32.mrb[0].mxu0
  %v5458 = vadd.f32 %v5073, %v5457
  %v5459 = vpop.f32.mrb[0].mxu0
  %5460 = vmatprep.mubr.f32.mxu0 0.0
  %5461 = vmatmul.mubr.f32.gmra.mrb[0].mxu0 %v4548
  %v5462 = vpop.f32.mrb[0].mxu0
  %v5463 = vadd.f32 %v5078, %v5462
  %v5464 = vpop.f32.mrb[0].mxu0
  %5465 = vmatprep.mubr.f32.mxu0 0.0
  %5466 = vmatmul.mubr.f32.gmra.mrb[0].mxu0 %v4550
  %v5467 = vpop.f32.mrb[0].mxu0
  %v5468 = vadd.f32 %v5083, %v5467
  %v5469 = vpop.f32.mrb[0].mxu0
  %5470 = vmatprep.mubr.f32.mxu0 0.0
  %5471 = vmatmul.mubr.f32.gmra.mrb[0].mxu0 %v4553
  %v5472 = vpop.f32.mrb[0].mxu0
  %v5473 = vadd.f32 %v5088, %v5472
  %v5474 = vpop.f32.mrb[0].mxu0
  %5475 = vmatprep.mubr.f32.mxu0 0.0
  %5476 = vmatmul.mubr.f32.gmra.mrb[0].mxu0 %v4555
  %v5477 = vpop.f32.mrb[0].mxu0
  %v5478 = vadd.f32 %v5093, %v5477
  %v5479 = vpop.f32.mrb[0].mxu0
  %5480 = vmatprep.mubr.f32.mxu0 0.0
  %5481 = vmatmul.mubr.f32.gmra.mrb[0].mxu0 %v4558
  %v5482 = vpop.f32.mrb[0].mxu0
  %v5483 = vadd.f32 %v5098, %v5482
  %v5484 = vpop.f32.mrb[0].mxu0
  %5485 = vmatprep.mubr.f32.mxu0 0.0
  %5486 = vmatmul.mubr.f32.gmra.mrb[0].mxu0 %v4560
  %v5487 = vpop.f32.mrb[0].mxu0
  %v5488 = vadd.f32 %v5103, %v5487
  %v5489 = vpop.f32.mrb[0].mxu0
  %5490 = vmatprep.mubr.f32.mxu0 0.0
  %5491 = vmatmul.mubr.f32.gmra.mrb[0].mxu0 %v4563
  %v5492 = vpop.f32.mrb[0].mxu0
  %v5493 = vadd.f32 %v5108, %v5492
  %v5494 = vpop.f32.mrb[0].mxu0
  %5495 = vmatprep.mubr.f32.mxu0 0.0
  %5496 = vmatmul.mubr.f32.gmra.mrb[0].mxu0 %v4565
  %v5497 = vpop.f32.mrb[0].mxu0
  %v5498 = vadd.f32 %v5113, %v5497
  %v5499 = vpop.f32.mrb[0].mxu0
  %5500 = vmatprep.mubr.f32.mxu0 0.0
  %5501 = vmatmul.mubr.f32.gmra.mrb[0].mxu0 %v4568
  %v5502 = vpop.f32.mrb[0].mxu0
  %v5503 = vadd.f32 %v5118, %v5502
  %v5504 = vpop.f32.mrb[0].mxu0
  %5505 = vmatprep.mubr.f32.mxu0 0.0
  %5506 = vmatmul.mubr.f32.gmra.mrb[0].mxu0 %v4570
  %v5507 = vpop.f32.mrb[0].mxu0
  %v5508 = vadd.f32 %v5123, %v5507
  %v5509 = vpop.f32.mrb[0].mxu0
  %5510 = vmatprep.mubr.f32.mxu0 0.0
  %5511 = vmatmul.mubr.f32.gmra.mrb[0].mxu0 %v4573
  %v5512 = vpop.f32.mrb[0].mxu0
  %v5513 = vadd.f32 %v5128, %v5512
  %v5514 = vpop.f32.mrb[0].mxu0
  %5515 = vmatprep.mubr.f32.mxu0 0.0
  %5516 = vmatmul.mubr.f32.gmra.mrb[0].mxu0 %v4575
  %v5517 = vpop.f32.mrb[0].mxu0
  %v5518 = vadd.f32 %v5133, %v5517
  %v5519 = vpop.f32.mrb[0].mxu0
  %5520 = vmatprep.mubr.f32.mxu0 0.0
  %5521 = vmatmul.mubr.f32.gmra.mrb[0].mxu0 %v4578
  %v5522 = vpop.f32.mrb[0].mxu0
  %v5523 = vadd.f32 %v5138, %v5522
  %v5524 = vpop.f32.mrb[0].mxu0
  %5525 = vmatprep.mubr.f32.mxu0 0.0
  %5526 = vmatmul.mubr.f32.gmra.mrb[0].mxu0 %v4580
  %v5527 = vpop.f32.mrb[0].mxu0
  %v5528 = vadd.f32 %v5143, %v5527
  %v5529 = vpop.f32.mrb[0].mxu0
  %5530 = vmatprep.mubr.f32.mxu0 0.0
  %5531 = vmatmul.mubr.f32.gmra.mrb[0].mxu0 %v4583
  %v5532 = vpop.f32.mrb[0].mxu0
  %v5533 = vadd.f32 %v5148, %v5532
  %v5534 = vpop.f32.mrb[0].mxu0
  %5535 = vmatprep.mubr.f32.mxu0 0.0
  %5536 = vmatmul.mubr.f32.gmra.mrb[0].mxu0 %v4585
  %v5537 = vpop.f32.mrb[0].mxu0
  %v5538 = vadd.f32 %v5153, %v5537
  %v5539 = vpop.f32.mrb[0].mxu0
  %5540 = vmatprep.mubr.f32.mxu0 0.0
  %5541 = vmatmul.mubr.f32.gmra.mrb[0].mxu0 %v4725
  %v5542 = vpop.f32.mrb[0].mxu0
  %v5543 = vadd.f32 %v5158, %v5542
  %v5544 = vpop.f32.mrb[0].mxu0
  %5545 = vmatprep.mubr.f32.mxu0 0.0
  %5546 = vmatmul.mubr.f32.gmra.mrb[0].mxu0 %v4727
  %v5547 = vpop.f32.mrb[0].mxu0
  %v5548 = vadd.f32 %v5163, %v5547
  %v5549 = vpop.f32.mrb[0].mxu0
  %5550 = vdwg.mxu0
  %5551 = vmatprep.subr.mxu0 0.0
  %5552 = vmatpush1.msra.mxu0 %v4650
  %5553 = vmatprep.subr.mxu0 0.0
  %5554 = vmatpush1.msra.mxu0 %v4651
  %5555 = vmatprep.subr.mxu0 0.0
  %5556 = vmatpush1.msra.mxu0 %v4652
  %5557 = vmatprep.subr.mxu0 0.0
  %5558 = vmatpush1.msra.mxu0 %v4653
  %5559 = vmatprep.subr.mxu0 0.0
  %5560 = vmatpush1.msra.mxu0 %v4654
  %5561 = vmatprep.subr.mxu0 0.0
  %5562 = vmatpush1.msra.mxu0 %v4655
  %5563 = vmatprep.subr.mxu0 0.0
  %5564 = vmatpush1.msra.mxu0 %v4656
  %5565 = vmatprep.subr.mxu0 0.0
  %5566 = vmatpush1.msra.mxu0 %v4657
  %5567 = vmatprep.subr.mxu0 0.0
  %5568 = vmatpush1.msra.mxu0 %v4658
  %5569 = vmatprep.subr.mxu0 0.0
  %5570 = vmatpush1.msra.mxu0 %v4659
  %5571 = vmatprep.subr.mxu0 0.0
  %5572 = vmatpush1.msra.mxu0 %v4660
  %5573 = vmatprep.subr.mxu0 0.0
  %5574 = vmatpush1.msra.mxu0 %v4661
  %5575 = vmatprep.subr.mxu0 0.0
  %5576 = vmatpush1.msra.mxu0 %v4662
  %5577 = vmatprep.subr.mxu0 0.0
  %5578 = vmatpush1.msra.mxu0 %v4663
  %5579 = vmatprep.subr.mxu0 0.0
  %5580 = vmatpush1.msra.mxu0 %v4664
  %5581 = vmatprep.subr.mxu0 0.0
  %5582 = vmatpush1.msra.mxu0 %v4665
  %5583 = vmatprep.subr.mxu0 0.0
  %5584 = vmatpush1.msra.mxu0 %v4666
  %5585 = vmatprep.subr.mxu0 0.0
  %5586 = vmatpush1.msra.mxu0 %v4667
  %5587 = vmatprep.subr.mxu0 0.0
  %5588 = vmatpush1.msra.mxu0 %v4668
  %5589 = vmatprep.subr.mxu0 0.0
  %5590 = vmatpush1.msra.mxu0 %v4669
  %5591 = vmatprep.subr.mxu0 0.0
  %5592 = vmatpush1.msra.mxu0 %v4670
  %5593 = vmatprep.subr.mxu0 0.0
  %5594 = vmatpush1.msra.mxu0 %v4671
  %5595 = vmatprep.subr.mxu0 0.0
  %5596 = vmatpush1.msra.mxu0 %v4672
  %5597 = vmatprep.subr.mxu0 0.0
  %5598 = vmatpush1.msra.mxu0 %v4673
  %5599 = vmatprep.subr.mxu0 0.0
  %5600 = vmatpush1.msra.mxu0 %v4674
  %5601 = vmatprep.subr.mxu0 0.0
  %5602 = vmatpush1.msra.mxu0 %v4675
  %5603 = vmatprep.subr.mxu0 0.0
  %5604 = vmatpush1.msra.mxu0 %v4676
  %5605 = vmatprep.subr.mxu0 0.0
  %5606 = vmatpush1.msra.mxu0 %v4677
  %5607 = vmatprep.subr.mxu0 0.0
  %5608 = vmatpush1.msra.mxu0 %v4678
  %5609 = vmatprep.subr.mxu0 0.0
  %5610 = vmatpush1.msra.mxu0 %v4679
  %5611 = vmatprep.subr.mxu0 0.0
  %5612 = vmatpush1.msra.mxu0 %v4680
  %5613 = vmatprep.subr.mxu0 0.0
  %5614 = vmatpush1.msra.mxu0 %v4681
  %5615 = vmatprep.mubr.f32.mxu0 %v4204
  %5616 = vmatmul.mubr.f32.gmra.mrb[0].mxu0 %v3997
  %v5617 = vpop.f32.mrb[0].mxu0
  %v5618 = vadd.f32 %v5233, %v5617
  %v5619 = vpop.f32.mrb[0].mxu0
  %5620 = vmatprep.mubr.f32.mxu0 %v4206
  %5621 = vmatmul.mubr.f32.gmra.mrb[0].mxu0 %v3998
  %v5622 = vpop.f32.mrb[0].mxu0
  %v5623 = vadd.f32 %v5238, %v5622
  %v5624 = vpop.f32.mrb[0].mxu0
  %5625 = vmatprep.mubr.f32.mxu0 %v4209
  %5626 = vmatmul.mubr.f32.gmra.mrb[0].mxu0 %v4000
  %v5627 = vpop.f32.mrb[0].mxu0
  %v5628 = vadd.f32 %v5243, %v5627
  %v5629 = vpop.f32.mrb[0].mxu0
  %5630 = vmatprep.mubr.f32.mxu0 %v4211
  %5631 = vmatmul.mubr.f32.gmra.mrb[0].mxu0 %v4001
  %v5632 = vpop.f32.mrb[0].mxu0
  %v5633 = vadd.f32 %v5248, %v5632
  %v5634 = vpop.f32.mrb[0].mxu0
  %5635 = vmatprep.mubr.f32.mxu0 %v4214
  %5636 = vmatmul.mubr.f32.gmra.mrb[0].mxu0 %v4003
  %v5637 = vpop.f32.mrb[0].mxu0
  %v5638 = vadd.f32 %v5253, %v5637
  %v5639 = vpop.f32.mrb[0].mxu0
  %5640 = vmatprep.mubr.f32.mxu0 %v4216
  %5641 = vmatmul.mubr.f32.gmra.mrb[0].mxu0 %v4004
  %v5642 = vpop.f32.mrb[0].mxu0
  %v5643 = vadd.f32 %v5258, %v5642
  %v5644 = vpop.f32.mrb[0].mxu0
  %5645 = vmatprep.mubr.f32.mxu0 %v4219
  %5646 = vmatmul.mubr.f32.gmra.mrb[0].mxu0 %v4006
  %v5647 = vpop.f32.mrb[0].mxu0
  %v5648 = vadd.f32 %v5263, %v5647
  %v5649 = vpop.f32.mrb[0].mxu0
  %5650 = vmatprep.mubr.f32.mxu0 %v4221
  %5651 = vmatmul.mubr.f32.gmra.mrb[0].mxu0 %v4007
  %v5652 = vpop.f32.mrb[0].mxu0
  %v5653 = vadd.f32 %v5268, %v5652
  %v5654 = vpop.f32.mrb[0].mxu0
  %5655 = vmatprep.mubr.f32.mxu0 %v4224
  %5656 = vmatmul.mubr.f32.gmra.mrb[0].mxu0 %v4009
  %v5657 = vpop.f32.mrb[0].mxu0
  %v5658 = vadd.f32 %v5273, %v5657
  %v5659 = vpop.f32.mrb[0].mxu0
  %5660 = vmatprep.mubr.f32.mxu0 %v4226
  %5661 = vmatmul.mubr.f32.gmra.mrb[0].mxu0 %v4010
  %v5662 = vpop.f32.mrb[0].mxu0
  %v5663 = vadd.f32 %v5278, %v5662
  %v5664 = vpop.f32.mrb[0].mxu0
  %5665 = vmatprep.mubr.f32.mxu0 %v4229
  %5666 = vmatmul.mubr.f32.gmra.mrb[0].mxu0 %v4012
  %v5667 = vpop.f32.mrb[0].mxu0
  %v5668 = vadd.f32 %v5283, %v5667
  %v5669 = vpop.f32.mrb[0].mxu0
  %5670 = vmatprep.mubr.f32.mxu0 %v4231
  %5671 = vmatmul.mubr.f32.gmra.mrb[0].mxu0 %v4013
  %v5672 = vpop.f32.mrb[0].mxu0
  %v5673 = vadd.f32 %v5288, %v5672
  %v5674 = vpop.f32.mrb[0].mxu0
  %5675 = vmatprep.mubr.f32.mxu0 %v4234
  %5676 = vmatmul.mubr.f32.gmra.mrb[0].mxu0 %v4015
  %v5677 = vpop.f32.mrb[0].mxu0
  %v5678 = vadd.f32 %v5293, %v5677
  %v5679 = vpop.f32.mrb[0].mxu0
  %5680 = vmatprep.mubr.f32.mxu0 %v4236
  %5681 = vmatmul.mubr.f32.gmra.mrb[0].mxu0 %v4016
  %v5682 = vpop.f32.mrb[0].mxu0
  %v5683 = vadd.f32 %v5298, %v5682
  %v5684 = vpop.f32.mrb[0].mxu0
  %5685 = vmatprep.mubr.f32.mxu0 %v4239
  %5686 = vmatmul.mubr.f32.gmra.mrb[0].mxu0 %v4018
  %v5687 = vpop.f32.mrb[0].mxu0
  %v5688 = vadd.f32 %v5303, %v5687
  %v5689 = vpop.f32.mrb[0].mxu0
  %5690 = vmatprep.mubr.f32.mxu0 %v4241
  %5691 = vmatmul.mubr.f32.gmra.mrb[0].mxu0 %v4019
  %v5692 = vpop.f32.mrb[0].mxu0
  %v5693 = vadd.f32 %v5308, %v5692
  %v5694 = vpop.f32.mrb[0].mxu0
  %5695 = vmatprep.mubr.f32.mxu0 %v4244
  %5696 = vmatmul.mubr.f32.gmra.mrb[0].mxu0 %v4021
  %v5697 = vpop.f32.mrb[0].mxu0
  %v5698 = vadd.f32 %v5313, %v5697
  %v5699 = vpop.f32.mrb[0].mxu0
  %5700 = vmatprep.mubr.f32.mxu0 %v4246
  %5701 = vmatmul.mubr.f32.gmra.mrb[0].mxu0 %v4022
  %v5702 = vpop.f32.mrb[0].mxu0
  %v5703 = vadd.f32 %v5318, %v5702
  %v5704 = vpop.f32.mrb[0].mxu0
  %5705 = vmatprep.mubr.f32.mxu0 %v4249
  %5706 = vmatmul.mubr.f32.gmra.mrb[0].mxu0 %v4024
  %v5707 = vpop.f32.mrb[0].mxu0
  %v5708 = vadd.f32 %v5323, %v5707
  %v5709 = vpop.f32.mrb[0].mxu0
  %5710 = vmatprep.mubr.f32.mxu0 %v4251
  %5711 = vmatmul.mubr.f32.gmra.mrb[0].mxu0 %v4025
  %v5712 = vpop.f32.mrb[0].mxu0
  %v5713 = vadd.f32 %v5328, %v5712
  %v5714 = vpop.f32.mrb[0].mxu0
  %5715 = vmatprep.mubr.f32.mxu0 %v4254
  %5716 = vmatmul.mubr.f32.gmra.mrb[0].mxu0 %v4027
  %v5717 = vpop.f32.mrb[0].mxu0
  %v5718 = vadd.f32 %v5333, %v5717
  %v5719 = vpop.f32.mrb[0].mxu0
  %5720 = vmatprep.mubr.f32.mxu0 %v4256
  %5721 = vmatmul.mubr.f32.gmra.mrb[0].mxu0 %v4028
  %v5722 = vpop.f32.mrb[0].mxu0
  %v5723 = vadd.f32 %v5338, %v5722
  %v5724 = vpop.f32.mrb[0].mxu0
  %5725 = vmatprep.mubr.f32.mxu0 %v4259
  %5726 = vmatmul.mubr.f32.gmra.mrb[0].mxu0 %v4030
  %v5727 = vpop.f32.mrb[0].mxu0
  %v5728 = vadd.f32 %v5343, %v5727
  %v5729 = vpop.f32.mrb[0].mxu0
  %5730 = vmatprep.mubr.f32.mxu0 %v4261
  %5731 = vmatmul.mubr.f32.gmra.mrb[0].mxu0 %v4031
  %v5732 = vpop.f32.mrb[0].mxu0
  %v5733 = vadd.f32 %v5348, %v5732
  %v5734 = vpop.f32.mrb[0].mxu0
  %5735 = vmatprep.mubr.f32.mxu0 %v4264
  %5736 = vmatmul.mubr.f32.gmra.mrb[0].mxu0 %v4033
  %v5737 = vpop.f32.mrb[0].mxu0
  %v5738 = vadd.f32 %v5353, %v5737
  %v5739 = vpop.f32.mrb[0].mxu0
  %5740 = vmatprep.mubr.f32.mxu0 %v4266
  %5741 = vmatmul.mubr.f32.gmra.mrb[0].mxu0 %v4034
  %v5742 = vpop.f32.mrb[0].mxu0
  %v5743 = vadd.f32 %v5358, %v5742
  %v5744 = vpop.f32.mrb[0].mxu0
  %5745 = vmatprep.mubr.f32.mxu0 %v4269
  %5746 = vmatmul.mubr.f32.gmra.mrb[0].mxu0 %v4036
  %v5747 = vpop.f32.mrb[0].mxu0
  %v5748 = vadd.f32 %v5363, %v5747
  %v5749 = vpop.f32.mrb[0].mxu0
  %5750 = vmatprep.mubr.f32.mxu0 %v4271
  %5751 = vmatmul.mubr.f32.gmra.mrb[0].mxu0 %v4037
  %v5752 = vpop.f32.mrb[0].mxu0
  %v5753 = vadd.f32 %v5368, %v5752
  %v5754 = vpop.f32.mrb[0].mxu0
  %5755 = vmatprep.mubr.f32.mxu0 %v4274
  %5756 = vmatmul.mubr.f32.gmra.mrb[0].mxu0 %v4039
  %v5757 = vpop.f32.mrb[0].mxu0
  %v5758 = vadd.f32 %v5373, %v5757
  %v5759 = vpop.f32.mrb[0].mxu0
  %5760 = vmatprep.mubr.f32.mxu0 %v4276
  %5761 = vmatmul.mubr.f32.gmra.mrb[0].mxu0 %v4040
  %v5762 = vpop.f32.mrb[0].mxu0
  %v5763 = vadd.f32 %v5378, %v5762
  %v5764 = vpop.f32.mrb[0].mxu0
  %5765 = vmatprep.mubr.f32.mxu0 %v4279
  %5766 = vmatmul.mubr.f32.gmra.mrb[0].mxu0 %v4042
  %v5767 = vpop.f32.mrb[0].mxu0
  %v5768 = vadd.f32 %v5383, %v5767
  %v5769 = vpop.f32.mrb[0].mxu0
  %5770 = vmatprep.mubr.f32.mxu0 %v4281
  %5771 = vmatmul.mubr.f32.gmra.mrb[0].mxu0 %v4043
  %v5772 = vpop.f32.mrb[0].mxu0
  %v5773 = vadd.f32 %v5388, %v5772
  %v5774 = vpop.f32.mrb[0].mxu0
  %5775 = vmatprep.mubr.f32.mxu0 %v4284
  %5776 = vmatmul.mubr.f32.gmra.mrb[0].mxu0 %v4051
  %v5777 = vpop.f32.mrb[0].mxu0
  %v5778 = vadd.f32 %v5393, %v5777
  %v5779 = vpop.f32.mrb[0].mxu0
  %5780 = vmatprep.mubr.f32.mxu0 %v4286
  %5781 = vmatmul.mubr.f32.gmra.mrb[0].mxu0 %v4052
  %v5782 = vpop.f32.mrb[0].mxu0
  %v5783 = vadd.f32 %v5398, %v5782
  %v5784 = vpop.f32.mrb[0].mxu0
  %5785 = vmatprep.mubr.f32.mxu0 %v4289
  %5786 = vmatmul.mubr.f32.gmra.mrb[0].mxu0 %v4054
  %v5787 = vpop.f32.mrb[0].mxu0
  %v5788 = vadd.f32 %v5403, %v5787
  %v5789 = vpop.f32.mrb[0].mxu0
  %5790 = vmatprep.mubr.f32.mxu0 %v4291
  %5791 = vmatmul.mubr.f32.gmra.mrb[0].mxu0 %v4055
  %v5792 = vpop.f32.mrb[0].mxu0
  %v5793 = vadd.f32 %v5408, %v5792
  %v5794 = vpop.f32.mrb[0].mxu0
  %5795 = vmatprep.mubr.f32.mxu0 %v4294
  %5796 = vmatmul.mubr.f32.gmra.mrb[0].mxu0 %v4057
  %v5797 = vpop.f32.mrb[0].mxu0
  %v5798 = vadd.f32 %v5413, %v5797
  %v5799 = vpop.f32.mrb[0].mxu0
  %5800 = vmatprep.mubr.f32.mxu0 %v4296
  %5801 = vmatmul.mubr.f32.gmra.mrb[0].mxu0 %v4058
  %v5802 = vpop.f32.mrb[0].mxu0
  %v5803 = vadd.f32 %v5418, %v5802
  %v5804 = vpop.f32.mrb[0].mxu0
  %5805 = vmatprep.mubr.f32.mxu0 %v4299
  %5806 = vmatmul.mubr.f32.gmra.mrb[0].mxu0 %v4060
  %v5807 = vpop.f32.mrb[0].mxu0
  %v5808 = vadd.f32 %v5423, %v5807
  %v5809 = vpop.f32.mrb[0].mxu0
  %5810 = vmatprep.mubr.f32.mxu0 %v4301
  %5811 = vmatmul.mubr.f32.gmra.mrb[0].mxu0 %v4061
  %v5812 = vpop.f32.mrb[0].mxu0
  %v5813 = vadd.f32 %v5428, %v5812
  %v5814 = vpop.f32.mrb[0].mxu0
  %5815 = vmatprep.mubr.f32.mxu0 %v4304
  %5816 = vmatmul.mubr.f32.gmra.mrb[0].mxu0 %v4063
  %v5817 = vpop.f32.mrb[0].mxu0
  %v5818 = vadd.f32 %v5433, %v5817
  %v5819 = vpop.f32.mrb[0].mxu0
  %5820 = vmatprep.mubr.f32.mxu0 %v4306
  %5821 = vmatmul.mubr.f32.gmra.mrb[0].mxu0 %v4064
  %v5822 = vpop.f32.mrb[0].mxu0
  %v5823 = vadd.f32 %v5438, %v5822
  %v5824 = vpop.f32.mrb[0].mxu0
  %5825 = vmatprep.mubr.f32.mxu0 %v4309
  %5826 = vmatmul.mubr.f32.gmra.mrb[0].mxu0 %v4066
  %v5827 = vpop.f32.mrb[0].mxu0
  %v5828 = vadd.f32 %v5443, %v5827
  %v5829 = vpop.f32.mrb[0].mxu0
  %5830 = vmatprep.mubr.f32.mxu0 %v4311
  %5831 = vmatmul.mubr.f32.gmra.mrb[0].mxu0 %v4067
  %v5832 = vpop.f32.mrb[0].mxu0
  %v5833 = vadd.f32 %v5448, %v5832
  %v5834 = vpop.f32.mrb[0].mxu0
  %5835 = vmatprep.mubr.f32.mxu0 %v4314
  %5836 = vmatmul.mubr.f32.gmra.mrb[0].mxu0 %v4069
  %v5837 = vpop.f32.mrb[0].mxu0
  %v5838 = vadd.f32 %v5453, %v5837
  %v5839 = vpop.f32.mrb[0].mxu0
  %5840 = vmatprep.mubr.f32.mxu0 %v4316
  %5841 = vmatmul.mubr.f32.gmra.mrb[0].mxu0 %v4070
  %v5842 = vpop.f32.mrb[0].mxu0
  %v5843 = vadd.f32 %v5458, %v5842
  %v5844 = vpop.f32.mrb[0].mxu0
  %5845 = vmatprep.mubr.f32.mxu0 %v4319
  %5846 = vmatmul.mubr.f32.gmra.mrb[0].mxu0 %v4072
  %v5847 = vpop.f32.mrb[0].mxu0
  %v5848 = vadd.f32 %v5463, %v5847
  %v5849 = vpop.f32.mrb[0].mxu0
  %5850 = vmatprep.mubr.f32.mxu0 %v4321
  %5851 = vmatmul.mubr.f32.gmra.mrb[0].mxu0 %v4073
  %v5852 = vpop.f32.mrb[0].mxu0
  %v5853 = vadd.f32 %v5468, %v5852
  %v5854 = vpop.f32.mrb[0].mxu0
  %5855 = vmatprep.mubr.f32.mxu0 %v4324
  %5856 = vmatmul.mubr.f32.gmra.mrb[0].mxu0 %v4075
  %v5857 = vpop.f32.mrb[0].mxu0
  %v5858 = vadd.f32 %v5473, %v5857
  %v5859 = vpop.f32.mrb[0].mxu0
  %5860 = vmatprep.mubr.f32.mxu0 %v4326
  %5861 = vmatmul.mubr.f32.gmra.mrb[0].mxu0 %v4076
  %v5862 = vpop.f32.mrb[0].mxu0
  %v5863 = vadd.f32 %v5478, %v5862
  %v5864 = vpop.f32.mrb[0].mxu0
  %5865 = vmatprep.mubr.f32.mxu0 %v4329
  %5866 = vmatmul.mubr.f32.gmra.mrb[0].mxu0 %v4078
  %v5867 = vpop.f32.mrb[0].mxu0
  %v5868 = vadd.f32 %v5483, %v5867
  %v5869 = vpop.f32.mrb[0].mxu0
  %5870 = vmatprep.mubr.f32.mxu0 %v4331
  %5871 = vmatmul.mubr.f32.gmra.mrb[0].mxu0 %v4079
  %v5872 = vpop.f32.mrb[0].mxu0
  %v5873 = vadd.f32 %v5488, %v5872
  %v5874 = vpop.f32.mrb[0].mxu0
  %5875 = vmatprep.mubr.f32.mxu0 %v4334
  %5876 = vmatmul.mubr.f32.gmra.mrb[0].mxu0 %v4081
  %v5877 = vpop.f32.mrb[0].mxu0
  %v5878 = vadd.f32 %v5493, %v5877
  %v5879 = vpop.f32.mrb[0].mxu0
  %5880 = vmatprep.mubr.f32.mxu0 %v4336
  %5881 = vmatmul.mubr.f32.gmra.mrb[0].mxu0 %v4082
  %v5882 = vpop.f32.mrb[0].mxu0
  %v5883 = vadd.f32 %v5498, %v5882
  %v5884 = vpop.f32.mrb[0].mxu0
  %5885 = vmatprep.mubr.f32.mxu0 %v4339
  %5886 = vmatmul.mubr.f32.gmra.mrb[0].mxu0 %v4084
  %v5887 = vpop.f32.mrb[0].mxu0
  %v5888 = vadd.f32 %v5503, %v5887
  %v5889 = vpop.f32.mrb[0].mxu0
  %5890 = vmatprep.mubr.f32.mxu0 %v4341
  %5891 = vmatmul.mubr.f32.gmra.mrb[0].mxu0 %v4085
  %v5892 = vpop.f32.mrb[0].mxu0
  %v5893 = vadd.f32 %v5508, %v5892
  %v5894 = vpop.f32.mrb[0].mxu0
  %5895 = vmatprep.mubr.f32.mxu0 %v4344
  %5896 = vmatmul.mubr.f32.gmra.mrb[0].mxu0 %v4087
  %v5897 = vpop.f32.mrb[0].mxu0
  %v5898 = vadd.f32 %v5513, %v5897
  %v5899 = vpop.f32.mrb[0].mxu0
  %5900 = vmatprep.mubr.f32.mxu0 %v4346
  %5901 = vmatmul.mubr.f32.gmra.mrb[0].mxu0 %v4088
  %v5902 = vpop.f32.mrb[0].mxu0
  %v5903 = vadd.f32 %v5518, %v5902
  %v5904 = vpop.f32.mrb[0].mxu0
  %5905 = vmatprep.mubr.f32.mxu0 %v4349
  %5906 = vmatmul.mubr.f32.gmra.mrb[0].mxu0 %v4090
  %v5907 = vpop.f32.mrb[0].mxu0
  %v5908 = vadd.f32 %v5523, %v5907
  %v5909 = vpop.f32.mrb[0].mxu0
  %5910 = vmatprep.mubr.f32.mxu0 %v4351
  %5911 = vmatmul.mubr.f32.gmra.mrb[0].mxu0 %v4091
  %v5912 = vpop.f32.mrb[0].mxu0
  %v5913 = vadd.f32 %v5528, %v5912
  %v5914 = vpop.f32.mrb[0].mxu0
  %5915 = vmatprep.mubr.f32.mxu0 %v4354
  %5916 = vmatmul.mubr.f32.gmra.mrb[0].mxu0 %v4093
  %v5917 = vpop.f32.mrb[0].mxu0
  %v5918 = vadd.f32 %v5533, %v5917
  %v5919 = vpop.f32.mrb[0].mxu0
  %5920 = vmatprep.mubr.f32.mxu0 %v4356
  %5921 = vmatmul.mubr.f32.gmra.mrb[0].mxu0 %v4094
  %v5922 = vpop.f32.mrb[0].mxu0
  %v5923 = vadd.f32 %v5538, %v5922
  %v5924 = vpop.f32.mrb[0].mxu0
  %5925 = vmatprep.mubr.f32.mxu0 %v4359
  %5926 = vmatmul.mubr.f32.gmra.mrb[0].mxu0 %v4096
  %v5927 = vpop.f32.mrb[0].mxu0
  %v5928 = vadd.f32 %v5543, %v5927
  %v5929 = vpop.f32.mrb[0].mxu0
  %5930 = vmatprep.mubr.f32.mxu0 %v4361
  %5931 = vmatmul.mubr.f32.gmra.mrb[0].mxu0 %v4097
  %v5932 = vpop.f32.mrb[0].mxu0
  %v5933 = vadd.f32 %v5548, %v5932
  %v5934 = vpop.f32.mrb[0].mxu0
  %5935 = vdwg.mxu0
  %5936 = vmatprep.subr.mxu0 0.0
  %5937 = vmatpush1.msra.mxu0 %v4682
  %5938 = vmatprep.subr.mxu0 0.0
  %5939 = vmatpush1.msra.mxu0 %v4683
  %5940 = vmatprep.subr.mxu0 0.0
  %5941 = vmatpush1.msra.mxu0 %v4684
  %5942 = vmatprep.subr.mxu0 0.0
  %5943 = vmatpush1.msra.mxu0 %v4685
  %5944 = vmatprep.subr.mxu0 0.0
  %5945 = vmatpush1.msra.mxu0 %v4686
  %5946 = vmatprep.subr.mxu0 0.0
  %5947 = vmatpush1.msra.mxu0 %v4687
  %5948 = vmatprep.subr.mxu0 0.0
  %5949 = vmatpush1.msra.mxu0 %v4688
  %5950 = vmatprep.subr.mxu0 0.0
  %5951 = vmatpush1.msra.mxu0 %v4689
  %5952 = vmatprep.subr.mxu0 0.0
  %5953 = vmatpush1.msra.mxu0 %v4690
  %5954 = vmatprep.subr.mxu0 0.0
  %5955 = vmatpush1.msra.mxu0 %v4691
  %5956 = vmatprep.subr.mxu0 0.0
  %5957 = vmatpush1.msra.mxu0 %v4692
  %5958 = vmatprep.subr.mxu0 0.0
  %5959 = vmatpush1.msra.mxu0 %v4693
  %5960 = vmatprep.subr.mxu0 0.0
  %5961 = vmatpush1.msra.mxu0 %v4694
  %5962 = vmatprep.subr.mxu0 0.0
  %5963 = vmatpush1.msra.mxu0 %v4695
  %5964 = vmatprep.subr.mxu0 0.0
  %5965 = vmatpush1.msra.mxu0 %v4696
  %5966 = vmatprep.subr.mxu0 0.0
  %5967 = vmatpush1.msra.mxu0 %v4697
  %5968 = vmatprep.subr.mxu0 0.0
  %5969 = vmatpush1.msra.mxu0 0.0
  %5970 = vmatprep.subr.mxu0 0.0
  %5971 = vmatpush1.msra.mxu0 0.0
  %5972 = vmatprep.subr.mxu0 0.0
  %5973 = vmatpush1.msra.mxu0 0.0
  %5974 = vmatprep.subr.mxu0 0.0
  %5975 = vmatpush1.msra.mxu0 0.0
  %5976 = vmatprep.subr.mxu0 0.0
  %5977 = vmatpush1.msra.mxu0 0.0
  %5978 = vmatprep.subr.mxu0 0.0
  %5979 = vmatpush1.msra.mxu0 0.0
  %5980 = vmatprep.subr.mxu0 0.0
  %5981 = vmatpush1.msra.mxu0 0.0
  %5982 = vmatprep.subr.mxu0 0.0
  %5983 = vmatpush1.msra.mxu0 0.0
  %5984 = vmatprep.subr.mxu0 0.0
  %5985 = vmatpush1.msra.mxu0 0.0
  %5986 = vmatprep.subr.mxu0 0.0
  %5987 = vmatpush1.msra.mxu0 0.0
  %5988 = vmatprep.subr.mxu0 0.0
  %5989 = vmatpush1.msra.mxu0 0.0
  %5990 = vmatprep.subr.mxu0 0.0
  %5991 = vmatpush1.msra.mxu0 0.0
  %5992 = vmatprep.subr.mxu0 0.0
  %5993 = vmatpush1.msra.mxu0 0.0
  %5994 = vmatprep.subr.mxu0 0.0
  %5995 = vmatpush1.msra.mxu0 0.0
  %5996 = vmatprep.subr.mxu0 0.0
  %5997 = vmatpush1.msra.mxu0 0.0
  %5998 = vmatprep.subr.mxu0 0.0
  %5999 = vmatpush1.msra.mxu0 0.0
  %6000 = vmatprep.mubr.f32.mxu0 0.0
  %6001 = vmatmul.mubr.f32.gmra.mrb[0].mxu0 %v4428
  %v6002 = vpop.f32.mrb[0].mxu0
  %v6003 = vadd.f32 %v5618, %v6002
  %v6004 = vpop.f32.mrb[0].mxu0
  %6005 = vmatprep.mubr.f32.mxu0 0.0
  %6006 = vmatmul.mubr.f32.gmra.mrb[0].mxu0 %v4430
  %v6007 = vpop.f32.mrb[0].mxu0
  %v6008 = vadd.f32 %v5623, %v6007
  %v6009 = vpop.f32.mrb[0].mxu0
  %6010 = vmatprep.mubr.f32.mxu0 0.0
  %6011 = vmatmul.mubr.f32.gmra.mrb[0].mxu0 %v4433
  %v6012 = vpop.f32.mrb[0].mxu0
  %v6013 = vadd.f32 %v5628, %v6012
  %v6014 = vpop.f32.mrb[0].mxu0
  %6015 = vmatprep.mubr.f32.mxu0 0.0
  %6016 = vmatmul.mubr.f32.gmra.mrb[0].mxu0 %v4435
  %v6017 = vpop.f32.mrb[0].mxu0
  %v6018 = vadd.f32 %v5633, %v6017
  %v6019 = vpop.f32.mrb[0].mxu0
  %6020 = vmatprep.mubr.f32.mxu0 0.0
  %6021 = vmatmul.mubr.f32.gmra.mrb[0].mxu0 %v4438
  %v6022 = vpop.f32.mrb[0].mxu0
  %v6023 = vadd.f32 %v5638, %v6022
  %v6024 = vpop.f32.mrb[0].mxu0
  %6025 = vmatprep.mubr.f32.mxu0 0.0
  %6026 = vmatmul.mubr.f32.gmra.mrb[0].mxu0 %v4440
  %v6027 = vpop.f32.mrb[0].mxu0
  %v6028 = vadd.f32 %v5643, %v6027
  %v6029 = vpop.f32.mrb[0].mxu0
  %6030 = vmatprep.mubr.f32.mxu0 0.0
  %6031 = vmatmul.mubr.f32.gmra.mrb[0].mxu0 %v4443
  %v6032 = vpop.f32.mrb[0].mxu0
  %v6033 = vadd.f32 %v5648, %v6032
  %v6034 = vpop.f32.mrb[0].mxu0
  %6035 = vmatprep.mubr.f32.mxu0 0.0
  %6036 = vmatmul.mubr.f32.gmra.mrb[0].mxu0 %v4445
  %v6037 = vpop.f32.mrb[0].mxu0
  %v6038 = vadd.f32 %v5653, %v6037
  %v6039 = vpop.f32.mrb[0].mxu0
  %6040 = vmatprep.mubr.f32.mxu0 0.0
  %6041 = vmatmul.mubr.f32.gmra.mrb[0].mxu0 %v4448
  %v6042 = vpop.f32.mrb[0].mxu0
  %v6043 = vadd.f32 %v5658, %v6042
  %v6044 = vpop.f32.mrb[0].mxu0
  %6045 = vmatprep.mubr.f32.mxu0 0.0
  %6046 = vmatmul.mubr.f32.gmra.mrb[0].mxu0 %v4450
  %v6047 = vpop.f32.mrb[0].mxu0
  %v6048 = vadd.f32 %v5663, %v6047
  %v6049 = vpop.f32.mrb[0].mxu0
  %6050 = vmatprep.mubr.f32.mxu0 0.0
  %6051 = vmatmul.mubr.f32.gmra.mrb[0].mxu0 %v4453
  %v6052 = vpop.f32.mrb[0].mxu0
  %v6053 = vadd.f32 %v5668, %v6052
  %v6054 = vpop.f32.mrb[0].mxu0
  %6055 = vmatprep.mubr.f32.mxu0 0.0
  %6056 = vmatmul.mubr.f32.gmra.mrb[0].mxu0 %v4455
  %v6057 = vpop.f32.mrb[0].mxu0
  %v6058 = vadd.f32 %v5673, %v6057
  %v6059 = vpop.f32.mrb[0].mxu0
  %6060 = vmatprep.mubr.f32.mxu0 0.0
  %6061 = vmatmul.mubr.f32.gmra.mrb[0].mxu0 %v4458
  %v6062 = vpop.f32.mrb[0].mxu0
  %v6063 = vadd.f32 %v5678, %v6062
  %v6064 = vpop.f32.mrb[0].mxu0
  %6065 = vmatprep.mubr.f32.mxu0 0.0
  %6066 = vmatmul.mubr.f32.gmra.mrb[0].mxu0 %v4460
  %v6067 = vpop.f32.mrb[0].mxu0
  %v6068 = vadd.f32 %v5683, %v6067
  %v6069 = vpop.f32.mrb[0].mxu0
  %6070 = vmatprep.mubr.f32.mxu0 0.0
  %6071 = vmatmul.mubr.f32.gmra.mrb[0].mxu0 %v4463
  %v6072 = vpop.f32.mrb[0].mxu0
  %v6073 = vadd.f32 %v5688, %v6072
  %v6074 = vpop.f32.mrb[0].mxu0
  %6075 = vmatprep.mubr.f32.mxu0 0.0
  %6076 = vmatmul.mubr.f32.gmra.mrb[0].mxu0 %v4465
  %v6077 = vpop.f32.mrb[0].mxu0
  %v6078 = vadd.f32 %v5693, %v6077
  %v6079 = vpop.f32.mrb[0].mxu0
  %6080 = vmatprep.mubr.f32.mxu0 0.0
  %6081 = vmatmul.mubr.f32.gmra.mrb[0].mxu0 %v4468
  %v6082 = vpop.f32.mrb[0].mxu0
  %v6083 = vadd.f32 %v5698, %v6082
  %v6084 = vpop.f32.mrb[0].mxu0
  %6085 = vmatprep.mubr.f32.mxu0 0.0
  %6086 = vmatmul.mubr.f32.gmra.mrb[0].mxu0 %v4470
  %v6087 = vpop.f32.mrb[0].mxu0
  %v6088 = vadd.f32 %v5703, %v6087
  %v6089 = vpop.f32.mrb[0].mxu0
  %6090 = vmatprep.mubr.f32.mxu0 0.0
  %6091 = vmatmul.mubr.f32.gmra.mrb[0].mxu0 %v4473
  %v6092 = vpop.f32.mrb[0].mxu0
  %v6093 = vadd.f32 %v5708, %v6092
  %v6094 = vpop.f32.mrb[0].mxu0
  %6095 = vmatprep.mubr.f32.mxu0 0.0
  %6096 = vmatmul.mubr.f32.gmra.mrb[0].mxu0 %v4475
  %v6097 = vpop.f32.mrb[0].mxu0
  %v6098 = vadd.f32 %v5713, %v6097
  %v6099 = vpop.f32.mrb[0].mxu0
  %6100 = vmatprep.mubr.f32.mxu0 0.0
  %6101 = vmatmul.mubr.f32.gmra.mrb[0].mxu0 %v4478
  %v6102 = vpop.f32.mrb[0].mxu0
  %v6103 = vadd.f32 %v5718, %v6102
  %v6104 = vpop.f32.mrb[0].mxu0
  %6105 = vmatprep.mubr.f32.mxu0 0.0
  %6106 = vmatmul.mubr.f32.gmra.mrb[0].mxu0 %v4480
  %v6107 = vpop.f32.mrb[0].mxu0
  %v6108 = vadd.f32 %v5723, %v6107
  %v6109 = vpop.f32.mrb[0].mxu0
  %6110 = vmatprep.mubr.f32.mxu0 0.0
  %6111 = vmatmul.mubr.f32.gmra.mrb[0].mxu0 %v4483
  %v6112 = vpop.f32.mrb[0].mxu0
  %v6113 = vadd.f32 %v5728, %v6112
  %v6114 = vpop.f32.mrb[0].mxu0
  %6115 = vmatprep.mubr.f32.mxu0 0.0
  %6116 = vmatmul.mubr.f32.gmra.mrb[0].mxu0 %v4485
  %v6117 = vpop.f32.mrb[0].mxu0
  %v6118 = vadd.f32 %v5733, %v6117
  %v6119 = vpop.f32.mrb[0].mxu0
  %6120 = vmatprep.mubr.f32.mxu0 0.0
  %6121 = vmatmul.mubr.f32.gmra.mrb[0].mxu0 %v4488
  %v6122 = vpop.f32.mrb[0].mxu0
  %v6123 = vadd.f32 %v5738, %v6122
  %v6124 = vpop.f32.mrb[0].mxu0
  %6125 = vmatprep.mubr.f32.mxu0 0.0
  %6126 = vmatmul.mubr.f32.gmra.mrb[0].mxu0 %v4490
  %v6127 = vpop.f32.mrb[0].mxu0
  %v6128 = vadd.f32 %v5743, %v6127
  %v6129 = vpop.f32.mrb[0].mxu0
  %6130 = vmatprep.mubr.f32.mxu0 0.0
  %6131 = vmatmul.mubr.f32.gmra.mrb[0].mxu0 %v4493
  %v6132 = vpop.f32.mrb[0].mxu0
  %v6133 = vadd.f32 %v5748, %v6132
  %v6134 = vpop.f32.mrb[0].mxu0
  %6135 = vmatprep.mubr.f32.mxu0 0.0
  %6136 = vmatmul.mubr.f32.gmra.mrb[0].mxu0 %v4495
  %v6137 = vpop.f32.mrb[0].mxu0
  %v6138 = vadd.f32 %v5753, %v6137
  %v6139 = vpop.f32.mrb[0].mxu0
  %6140 = vmatprep.mubr.f32.mxu0 0.0
  %6141 = vmatmul.mubr.f32.gmra.mrb[0].mxu0 %v4498
  %v6142 = vpop.f32.mrb[0].mxu0
  %v6143 = vadd.f32 %v5758, %v6142
  %v6144 = vpop.f32.mrb[0].mxu0
  %6145 = vmatprep.mubr.f32.mxu0 0.0
  %6146 = vmatmul.mubr.f32.gmra.mrb[0].mxu0 %v4500
  %v6147 = vpop.f32.mrb[0].mxu0
  %v6148 = vadd.f32 %v5763, %v6147
  %v6149 = vpop.f32.mrb[0].mxu0
  %6150 = vmatprep.mubr.f32.mxu0 0.0
  %6151 = vmatmul.mubr.f32.gmra.mrb[0].mxu0 %v4503
  %v6152 = vpop.f32.mrb[0].mxu0
  %v6153 = vadd.f32 %v5768, %v6152
  %v6154 = vpop.f32.mrb[0].mxu0
  %6155 = vmatprep.mubr.f32.mxu0 0.0
  %6156 = vmatmul.mubr.f32.gmra.mrb[0].mxu0 %v4505
  %v6157 = vpop.f32.mrb[0].mxu0
  %v6158 = vadd.f32 %v5773, %v6157
  %v6159 = vpop.f32.mrb[0].mxu0
  %6160 = vmatprep.mubr.f32.mxu0 0.0
  %6161 = vmatmul.mubr.f32.gmra.mrb[0].mxu0 %v4508
  %v6162 = vpop.f32.mrb[0].mxu0
  %v6163 = vadd.f32 %v5778, %v6162
  %v6164 = vpop.f32.mrb[0].mxu0
  %6165 = vmatprep.mubr.f32.mxu0 0.0
  %6166 = vmatmul.mubr.f32.gmra.mrb[0].mxu0 %v4510
  %v6167 = vpop.f32.mrb[0].mxu0
  %v6168 = vadd.f32 %v5783, %v6167
  %v6169 = vpop.f32.mrb[0].mxu0
  %6170 = vmatprep.mubr.f32.mxu0 0.0
  %6171 = vmatmul.mubr.f32.gmra.mrb[0].mxu0 %v4513
  %v6172 = vpop.f32.mrb[0].mxu0
  %v6173 = vadd.f32 %v5788, %v6172
  %v6174 = vpop.f32.mrb[0].mxu0
  %6175 = vmatprep.mubr.f32.mxu0 0.0
  %6176 = vmatmul.mubr.f32.gmra.mrb[0].mxu0 %v4515
  %v6177 = vpop.f32.mrb[0].mxu0
  %v6178 = vadd.f32 %v5793, %v6177
  %v6179 = vpop.f32.mrb[0].mxu0
  %6180 = vmatprep.mubr.f32.mxu0 0.0
  %6181 = vmatmul.mubr.f32.gmra.mrb[0].mxu0 %v4518
  %v6182 = vpop.f32.mrb[0].mxu0
  %v6183 = vadd.f32 %v5798, %v6182
  %v6184 = vpop.f32.mrb[0].mxu0
  %6185 = vmatprep.mubr.f32.mxu0 0.0
  %6186 = vmatmul.mubr.f32.gmra.mrb[0].mxu0 %v4520
  %v6187 = vpop.f32.mrb[0].mxu0
  %v6188 = vadd.f32 %v5803, %v6187
  %v6189 = vpop.f32.mrb[0].mxu0
  %6190 = vmatprep.mubr.f32.mxu0 0.0
  %6191 = vmatmul.mubr.f32.gmra.mrb[0].mxu0 %v4523
  %v6192 = vpop.f32.mrb[0].mxu0
  %v6193 = vadd.f32 %v5808, %v6192
  %v6194 = vpop.f32.mrb[0].mxu0
  %6195 = vmatprep.mubr.f32.mxu0 0.0
  %6196 = vmatmul.mubr.f32.gmra.mrb[0].mxu0 %v4525
  %v6197 = vpop.f32.mrb[0].mxu0
  %v6198 = vadd.f32 %v5813, %v6197
  %v6199 = vpop.f32.mrb[0].mxu0
  %6200 = vmatprep.mubr.f32.mxu0 0.0
  %6201 = vmatmul.mubr.f32.gmra.mrb[0].mxu0 %v4528
  %v6202 = vpop.f32.mrb[0].mxu0
  %v6203 = vadd.f32 %v5818, %v6202
  %v6204 = vpop.f32.mrb[0].mxu0
  %6205 = vmatprep.mubr.f32.mxu0 0.0
  %6206 = vmatmul.mubr.f32.gmra.mrb[0].mxu0 %v4530
  %v6207 = vpop.f32.mrb[0].mxu0
  %v6208 = vadd.f32 %v5823, %v6207
  %v6209 = vpop.f32.mrb[0].mxu0
  %6210 = vmatprep.mubr.f32.mxu0 0.0
  %6211 = vmatmul.mubr.f32.gmra.mrb[0].mxu0 %v4533
  %v6212 = vpop.f32.mrb[0].mxu0
  %v6213 = vadd.f32 %v5828, %v6212
  %v6214 = vpop.f32.mrb[0].mxu0
  %6215 = vmatprep.mubr.f32.mxu0 0.0
  %6216 = vmatmul.mubr.f32.gmra.mrb[0].mxu0 %v4535
  %v6217 = vpop.f32.mrb[0].mxu0
  %v6218 = vadd.f32 %v5833, %v6217
  %v6219 = vpop.f32.mrb[0].mxu0
  %6220 = vmatprep.mubr.f32.mxu0 0.0
  %6221 = vmatmul.mubr.f32.gmra.mrb[0].mxu0 %v4538
  %v6222 = vpop.f32.mrb[0].mxu0
  %v6223 = vadd.f32 %v5838, %v6222
  %v6224 = vpop.f32.mrb[0].mxu0
  %6225 = vmatprep.mubr.f32.mxu0 0.0
  %6226 = vmatmul.mubr.f32.gmra.mrb[0].mxu0 %v4540
  %v6227 = vpop.f32.mrb[0].mxu0
  %v6228 = vadd.f32 %v5843, %v6227
  %v6229 = vpop.f32.mrb[0].mxu0
  %6230 = vmatprep.mubr.f32.mxu0 0.0
  %6231 = vmatmul.mubr.f32.gmra.mrb[0].mxu0 %v4543
  %v6232 = vpop.f32.mrb[0].mxu0
  %v6233 = vadd.f32 %v5848, %v6232
  %v6234 = vpop.f32.mrb[0].mxu0
  %6235 = vmatprep.mubr.f32.mxu0 0.0
  %6236 = vmatmul.mubr.f32.gmra.mrb[0].mxu0 %v4545
  %v6237 = vpop.f32.mrb[0].mxu0
  %v6238 = vadd.f32 %v5853, %v6237
  %v6239 = vpop.f32.mrb[0].mxu0
  %6240 = vmatprep.mubr.f32.mxu0 0.0
  %6241 = vmatmul.mubr.f32.gmra.mrb[0].mxu0 %v4548
  %v6242 = vpop.f32.mrb[0].mxu0
  %v6243 = vadd.f32 %v5858, %v6242
  %v6244 = vpop.f32.mrb[0].mxu0
  %6245 = vmatprep.mubr.f32.mxu0 0.0
  %6246 = vmatmul.mubr.f32.gmra.mrb[0].mxu0 %v4550
  %v6247 = vpop.f32.mrb[0].mxu0
  %v6248 = vadd.f32 %v5863, %v6247
  %v6249 = vpop.f32.mrb[0].mxu0
  %6250 = vmatprep.mubr.f32.mxu0 0.0
  %6251 = vmatmul.mubr.f32.gmra.mrb[0].mxu0 %v4553
  %v6252 = vpop.f32.mrb[0].mxu0
  %v6253 = vadd.f32 %v5868, %v6252
  %v6254 = vpop.f32.mrb[0].mxu0
  %6255 = vmatprep.mubr.f32.mxu0 0.0
  %6256 = vmatmul.mubr.f32.gmra.mrb[0].mxu0 %v4555
  %v6257 = vpop.f32.mrb[0].mxu0
  %v6258 = vadd.f32 %v5873, %v6257
  %v6259 = vpop.f32.mrb[0].mxu0
  %6260 = vmatprep.mubr.f32.mxu0 0.0
  %6261 = vmatmul.mubr.f32.gmra.mrb[0].mxu0 %v4558
  %v6262 = vpop.f32.mrb[0].mxu0
  %v6263 = vadd.f32 %v5878, %v6262
  %v6264 = vpop.f32.mrb[0].mxu0
  %6265 = vmatprep.mubr.f32.mxu0 0.0
  %6266 = vmatmul.mubr.f32.gmra.mrb[0].mxu0 %v4560
  %v6267 = vpop.f32.mrb[0].mxu0
  %v6268 = vadd.f32 %v5883, %v6267
  %v6269 = vpop.f32.mrb[0].mxu0
  %6270 = vmatprep.mubr.f32.mxu0 0.0
  %6271 = vmatmul.mubr.f32.gmra.mrb[0].mxu0 %v4563
  %v6272 = vpop.f32.mrb[0].mxu0
  %v6273 = vadd.f32 %v5888, %v6272
  %v6274 = vpop.f32.mrb[0].mxu0
  %6275 = vmatprep.mubr.f32.mxu0 0.0
  %6276 = vmatmul.mubr.f32.gmra.mrb[0].mxu0 %v4565
  %v6277 = vpop.f32.mrb[0].mxu0
  %v6278 = vadd.f32 %v5893, %v6277
  %v6279 = vpop.f32.mrb[0].mxu0
  %6280 = vmatprep.mubr.f32.mxu0 0.0
  %6281 = vmatmul.mubr.f32.gmra.mrb[0].mxu0 %v4568
  %v6282 = vpop.f32.mrb[0].mxu0
  %v6283 = vadd.f32 %v5898, %v6282
  %v6284 = vpop.f32.mrb[0].mxu0
  %6285 = vmatprep.mubr.f32.mxu0 0.0
  %6286 = vmatmul.mubr.f32.gmra.mrb[0].mxu0 %v4570
  %v6287 = vpop.f32.mrb[0].mxu0
  %v6288 = vadd.f32 %v5903, %v6287
  %v6289 = vpop.f32.mrb[0].mxu0
  %6290 = vmatprep.mubr.f32.mxu0 0.0
  %6291 = vmatmul.mubr.f32.gmra.mrb[0].mxu0 %v4573
  %v6292 = vpop.f32.mrb[0].mxu0
  %v6293 = vadd.f32 %v5908, %v6292
  %v6294 = vpop.f32.mrb[0].mxu0
  %6295 = vmatprep.mubr.f32.mxu0 0.0
  %6296 = vmatmul.mubr.f32.gmra.mrb[0].mxu0 %v4575
  %v6297 = vpop.f32.mrb[0].mxu0
  %v6298 = vadd.f32 %v5913, %v6297
  %v6299 = vpop.f32.mrb[0].mxu0
  %6300 = vmatprep.mubr.f32.mxu0 0.0
  %6301 = vmatmul.mubr.f32.gmra.mrb[0].mxu0 %v4578
  %v6302 = vpop.f32.mrb[0].mxu0
  %v6303 = vadd.f32 %v5918, %v6302
  %v6304 = vpop.f32.mrb[0].mxu0
  %6305 = vmatprep.mubr.f32.mxu0 0.0
  %6306 = vmatmul.mubr.f32.gmra.mrb[0].mxu0 %v4580
  %v6307 = vpop.f32.mrb[0].mxu0
  %v6308 = vadd.f32 %v5923, %v6307
  %v6309 = vpop.f32.mrb[0].mxu0
  %6310 = vmatprep.mubr.f32.mxu0 0.0
  %6311 = vmatmul.mubr.f32.gmra.mrb[0].mxu0 %v4583
  %v6312 = vpop.f32.mrb[0].mxu0
  %v6313 = vadd.f32 %v5928, %v6312
  %v6314 = vpop.f32.mrb[0].mxu0
  %6315 = vmatprep.mubr.f32.mxu0 0.0
  %6316 = vmatmul.mubr.f32.gmra.mrb[0].mxu0 %v4585
  %v6317 = vpop.f32.mrb[0].mxu0
  %v6318 = vadd.f32 %v5933, %v6317
  %v6319 = vpop.f32.mrb[0].mxu0
  %6320 = vdwg.mxu0
  %v6327 = vrot.slane %v4048, 1
  %v6328 = vrot.slane %v4049, 1
  %v6329 = vsel %vm237, %v6327, %v6328
  %v6330 = vrot.slane %v4050, 1
  %v6331 = vsel %vm237, %v6328, %v6330
  %v6332 = vrot.slane %v4102, 1
  %v6333 = vrot.slane %v4103, 1
  %v6334 = vsel %vm237, %v6332, %v6333
  %v6335 = vrot.slane %v4104, 1
  %v6336 = vsel %vm237, %v6333, %v6335
  %v6341 = vrot.slane %v4048, 2
  %v6342 = vrot.slane %v4049, 2
  %v6343 = vsel %vm462, %v6341, %v6342
  %v6344 = vrot.slane %v4050, 2
  %v6345 = vsel %vm462, %v6342, %v6344
  %v6346 = vrot.slane %v4102, 2
  %v6347 = vrot.slane %v4103, 2
  %v6348 = vsel %vm462, %v6346, %v6347
  %v6349 = vrot.slane %v4104, 2
  %v6350 = vsel %vm462, %v6347, %v6349
  %s6355 = scalar_lea.vmem %s5, 768
  %v6356 = vld [vmem:[%s6355] sm:$0xff]
  %v6357 = vld [vmem:[%s6355 + $0x8] sm:$0xff]
  %v6358 = vld [vmem:[%s6355 + $0x10] sm:$0xff]
  %v6359 = vld [vmem:[%s6355 + $0x18] sm:$0xff]
  %v6360 = vld [vmem:[%s6355 + $0x20] sm:$0xff]
  %v6361 = vld [vmem:[%s6355 + $0x28] sm:$0xff]
  %v6362 = vld [vmem:[%s6355 + $0x30] sm:$0xff]
  %v6363 = vld [vmem:[%s6355 + $0x38] sm:$0xff]
  %v6364 = vld [vmem:[%s6355 + $0x40] sm:$0xff]
  %v6365 = vld [vmem:[%s6355 + $0x48] sm:$0xff]
  %v6366 = vld [vmem:[%s6355 + $0x50] sm:$0xff]
  %v6367 = vld [vmem:[%s6355 + $0x58] sm:$0xff]
  %v6368 = vld [vmem:[%s6355 + $0x60] sm:$0xff]
  %v6369 = vld [vmem:[%s6355 + $0x68] sm:$0xff]
  %v6370 = vld [vmem:[%s6355 + $0x70] sm:$0xff]
  %v6371 = vld [vmem:[%s6355 + $0x78] sm:$0xff]
  %v6372 = vld [vmem:[%s6355 + $0x80] sm:$0xff]
  %v6373 = vld [vmem:[%s6355 + $0x88] sm:$0xff]
  %v6374 = vld [vmem:[%s6355 + $0x90] sm:$0xff]
  %v6375 = vld [vmem:[%s6355 + $0x98] sm:$0xff]
  %v6376 = vld [vmem:[%s6355 + $0xa0] sm:$0xff]
  %v6377 = vld [vmem:[%s6355 + $0xa8] sm:$0xff]
  %v6378 = vld [vmem:[%s6355 + $0xb0] sm:$0xff]
  %v6379 = vld [vmem:[%s6355 + $0xb8] sm:$0xff]
  %v6380 = vld [vmem:[%s6355 + $0xc0] sm:$0xff]
  %v6381 = vld [vmem:[%s6355 + $0xc8] sm:$0xff]
  %v6382 = vld [vmem:[%s6355 + $0xd0] sm:$0xff]
  %v6383 = vld [vmem:[%s6355 + $0xd8] sm:$0xff]
  %v6384 = vld [vmem:[%s6355 + $0xe0] sm:$0xff]
  %v6385 = vld [vmem:[%s6355 + $0xe8] sm:$0xff]
  %v6386 = vld [vmem:[%s6355 + $0xf0] sm:$0xff]
  %v6387 = vld [vmem:[%s6355 + $0xf8] sm:$0xff]
  %v6388 = vld [vmem:[%s6355 + $0x100] sm:$0xff]
  %v6389 = vld [vmem:[%s6355 + $0x108] sm:$0xff]
  %v6390 = vld [vmem:[%s6355 + $0x110] sm:$0xff]
  %v6391 = vld [vmem:[%s6355 + $0x118] sm:$0xff]
  %v6392 = vld [vmem:[%s6355 + $0x120] sm:$0xff]
  %v6393 = vld [vmem:[%s6355 + $0x128] sm:$0xff]
  %v6394 = vld [vmem:[%s6355 + $0x130] sm:$0xff]
  %v6395 = vld [vmem:[%s6355 + $0x138] sm:$0xff]
  %v6396 = vld [vmem:[%s6355 + $0x140] sm:$0xff]
  %v6397 = vld [vmem:[%s6355 + $0x148] sm:$0xff]
  %v6398 = vld [vmem:[%s6355 + $0x150] sm:$0xff]
  %v6399 = vld [vmem:[%s6355 + $0x158] sm:$0xff]
  %v6400 = vld [vmem:[%s6355 + $0x160] sm:$0xff]
  %v6401 = vld [vmem:[%s6355 + $0x168] sm:$0xff]
  %v6402 = vld [vmem:[%s6355 + $0x170] sm:$0xff]
  %v6403 = vld [vmem:[%s6355 + $0x178] sm:$0xff]
  %6404 = vmatprep.subr.mxu0 0.0
  %6405 = vmatpush1.msra.mxu0 %v6356
  %6406 = vmatprep.subr.mxu0 0.0
  %6407 = vmatpush1.msra.mxu0 %v6357
  %6408 = vmatprep.subr.mxu0 0.0
  %6409 = vmatpush1.msra.mxu0 %v6358
  %6410 = vmatprep.subr.mxu0 0.0
  %6411 = vmatpush1.msra.mxu0 %v6359
  %6412 = vmatprep.subr.mxu0 0.0
  %6413 = vmatpush1.msra.mxu0 %v6360
  %6414 = vmatprep.subr.mxu0 0.0
  %6415 = vmatpush1.msra.mxu0 %v6361
  %6416 = vmatprep.subr.mxu0 0.0
  %6417 = vmatpush1.msra.mxu0 %v6362
  %6418 = vmatprep.subr.mxu0 0.0
  %6419 = vmatpush1.msra.mxu0 %v6363
  %6420 = vmatprep.subr.mxu0 0.0
  %6421 = vmatpush1.msra.mxu0 %v6364
  %6422 = vmatprep.subr.mxu0 0.0
  %6423 = vmatpush1.msra.mxu0 %v6365
  %6424 = vmatprep.subr.mxu0 0.0
  %6425 = vmatpush1.msra.mxu0 %v6366
  %6426 = vmatprep.subr.mxu0 0.0
  %6427 = vmatpush1.msra.mxu0 %v6367
  %6428 = vmatprep.subr.mxu0 0.0
  %6429 = vmatpush1.msra.mxu0 %v6368
  %6430 = vmatprep.subr.mxu0 0.0
  %6431 = vmatpush1.msra.mxu0 %v6369
  %6432 = vmatprep.subr.mxu0 0.0
  %6433 = vmatpush1.msra.mxu0 %v6370
  %6434 = vmatprep.subr.mxu0 0.0
  %6435 = vmatpush1.msra.mxu0 %v6371
  %6436 = vmatprep.subr.mxu0 0.0
  %6437 = vmatpush1.msra.mxu0 %v6372
  %6438 = vmatprep.subr.mxu0 0.0
  %6439 = vmatpush1.msra.mxu0 %v6373
  %6440 = vmatprep.subr.mxu0 0.0
  %6441 = vmatpush1.msra.mxu0 %v6374
  %6442 = vmatprep.subr.mxu0 0.0
  %6443 = vmatpush1.msra.mxu0 %v6375
  %6444 = vmatprep.subr.mxu0 0.0
  %6445 = vmatpush1.msra.mxu0 %v6376
  %6446 = vmatprep.subr.mxu0 0.0
  %6447 = vmatpush1.msra.mxu0 %v6377
  %6448 = vmatprep.subr.mxu0 0.0
  %6449 = vmatpush1.msra.mxu0 %v6378
  %6450 = vmatprep.subr.mxu0 0.0
  %6451 = vmatpush1.msra.mxu0 %v6379
  %6452 = vmatprep.subr.mxu0 0.0
  %6453 = vmatpush1.msra.mxu0 %v6380
  %6454 = vmatprep.subr.mxu0 0.0
  %6455 = vmatpush1.msra.mxu0 %v6381
  %6456 = vmatprep.subr.mxu0 0.0
  %6457 = vmatpush1.msra.mxu0 %v6382
  %6458 = vmatprep.subr.mxu0 0.0
  %6459 = vmatpush1.msra.mxu0 %v6383
  %6460 = vmatprep.subr.mxu0 0.0
  %6461 = vmatpush1.msra.mxu0 %v6384
  %6462 = vmatprep.subr.mxu0 0.0
  %6463 = vmatpush1.msra.mxu0 %v6385
  %6464 = vmatprep.subr.mxu0 0.0
  %6465 = vmatpush1.msra.mxu0 %v6386
  %6466 = vmatprep.subr.mxu0 0.0
  %6467 = vmatpush1.msra.mxu0 %v6387
  %6468 = vmatprep.mubr.f32.mxu0 %v4214
  %6469 = vmatmul.mubr.f32.gmra.mrb[0].mxu0 %v4003
  %v6470 = vpop.f32.mrb[0].mxu0
  %v6471 = vadd.f32 0.0, %v6470
  %v6472 = vpop.f32.mrb[0].mxu0
  %6473 = vmatprep.mubr.f32.mxu0 %v4216
  %6474 = vmatmul.mubr.f32.gmra.mrb[0].mxu0 %v4004
  %v6475 = vpop.f32.mrb[0].mxu0
  %v6476 = vadd.f32 0.0, %v6475
  %v6477 = vpop.f32.mrb[0].mxu0
  %6478 = vmatprep.mubr.f32.mxu0 %v4219
  %6479 = vmatmul.mubr.f32.gmra.mrb[0].mxu0 %v4006
  %v6480 = vpop.f32.mrb[0].mxu0
  %v6481 = vadd.f32 0.0, %v6480
  %v6482 = vpop.f32.mrb[0].mxu0
  %6483 = vmatprep.mubr.f32.mxu0 %v4221
  %6484 = vmatmul.mubr.f32.gmra.mrb[0].mxu0 %v4007
  %v6485 = vpop.f32.mrb[0].mxu0
  %v6486 = vadd.f32 0.0, %v6485
  %v6487 = vpop.f32.mrb[0].mxu0
  %6488 = vmatprep.mubr.f32.mxu0 %v4224
  %6489 = vmatmul.mubr.f32.gmra.mrb[0].mxu0 %v4009
  %v6490 = vpop.f32.mrb[0].mxu0
  %v6491 = vadd.f32 0.0, %v6490
  %v6492 = vpop.f32.mrb[0].mxu0
  %6493 = vmatprep.mubr.f32.mxu0 %v4226
  %6494 = vmatmul.mubr.f32.gmra.mrb[0].mxu0 %v4010
  %v6495 = vpop.f32.mrb[0].mxu0
  %v6496 = vadd.f32 0.0, %v6495
  %v6497 = vpop.f32.mrb[0].mxu0
  %6498 = vmatprep.mubr.f32.mxu0 %v4229
  %6499 = vmatmul.mubr.f32.gmra.mrb[0].mxu0 %v4012
  %v6500 = vpop.f32.mrb[0].mxu0
  %v6501 = vadd.f32 0.0, %v6500
  %v6502 = vpop.f32.mrb[0].mxu0
  %6503 = vmatprep.mubr.f32.mxu0 %v4231
  %6504 = vmatmul.mubr.f32.gmra.mrb[0].mxu0 %v4013
  %v6505 = vpop.f32.mrb[0].mxu0
  %v6506 = vadd.f32 0.0, %v6505
  %v6507 = vpop.f32.mrb[0].mxu0
  %6508 = vmatprep.mubr.f32.mxu0 %v4234
  %6509 = vmatmul.mubr.f32.gmra.mrb[0].mxu0 %v4015
  %v6510 = vpop.f32.mrb[0].mxu0
  %v6511 = vadd.f32 0.0, %v6510
  %v6512 = vpop.f32.mrb[0].mxu0
  %6513 = vmatprep.mubr.f32.mxu0 %v4236
  %6514 = vmatmul.mubr.f32.gmra.mrb[0].mxu0 %v4016
  %v6515 = vpop.f32.mrb[0].mxu0
  %v6516 = vadd.f32 0.0, %v6515
  %v6517 = vpop.f32.mrb[0].mxu0
  %6518 = vmatprep.mubr.f32.mxu0 %v4239
  %6519 = vmatmul.mubr.f32.gmra.mrb[0].mxu0 %v4018
  %v6520 = vpop.f32.mrb[0].mxu0
  %v6521 = vadd.f32 0.0, %v6520
  %v6522 = vpop.f32.mrb[0].mxu0
  %6523 = vmatprep.mubr.f32.mxu0 %v4241
  %6524 = vmatmul.mubr.f32.gmra.mrb[0].mxu0 %v4019
  %v6525 = vpop.f32.mrb[0].mxu0
  %v6526 = vadd.f32 0.0, %v6525
  %v6527 = vpop.f32.mrb[0].mxu0
  %6528 = vmatprep.mubr.f32.mxu0 %v4244
  %6529 = vmatmul.mubr.f32.gmra.mrb[0].mxu0 %v4021
  %v6530 = vpop.f32.mrb[0].mxu0
  %v6531 = vadd.f32 0.0, %v6530
  %v6532 = vpop.f32.mrb[0].mxu0
  %6533 = vmatprep.mubr.f32.mxu0 %v4246
  %6534 = vmatmul.mubr.f32.gmra.mrb[0].mxu0 %v4022
  %v6535 = vpop.f32.mrb[0].mxu0
  %v6536 = vadd.f32 0.0, %v6535
  %v6537 = vpop.f32.mrb[0].mxu0
  %6538 = vmatprep.mubr.f32.mxu0 %v4249
  %6539 = vmatmul.mubr.f32.gmra.mrb[0].mxu0 %v4024
  %v6540 = vpop.f32.mrb[0].mxu0
  %v6541 = vadd.f32 0.0, %v6540
  %v6542 = vpop.f32.mrb[0].mxu0
  %6543 = vmatprep.mubr.f32.mxu0 %v4251
  %6544 = vmatmul.mubr.f32.gmra.mrb[0].mxu0 %v4025
  %v6545 = vpop.f32.mrb[0].mxu0
  %v6546 = vadd.f32 0.0, %v6545
  %v6547 = vpop.f32.mrb[0].mxu0
  %6548 = vmatprep.mubr.f32.mxu0 %v4254
  %6549 = vmatmul.mubr.f32.gmra.mrb[0].mxu0 %v4027
  %v6550 = vpop.f32.mrb[0].mxu0
  %v6551 = vadd.f32 0.0, %v6550
  %v6552 = vpop.f32.mrb[0].mxu0
  %6553 = vmatprep.mubr.f32.mxu0 %v4256
  %6554 = vmatmul.mubr.f32.gmra.mrb[0].mxu0 %v4028
  %v6555 = vpop.f32.mrb[0].mxu0
  %v6556 = vadd.f32 0.0, %v6555
  %v6557 = vpop.f32.mrb[0].mxu0
  %6558 = vmatprep.mubr.f32.mxu0 %v4259
  %6559 = vmatmul.mubr.f32.gmra.mrb[0].mxu0 %v4030
  %v6560 = vpop.f32.mrb[0].mxu0
  %v6561 = vadd.f32 0.0, %v6560
  %v6562 = vpop.f32.mrb[0].mxu0
  %6563 = vmatprep.mubr.f32.mxu0 %v4261
  %6564 = vmatmul.mubr.f32.gmra.mrb[0].mxu0 %v4031
  %v6565 = vpop.f32.mrb[0].mxu0
  %v6566 = vadd.f32 0.0, %v6565
  %v6567 = vpop.f32.mrb[0].mxu0
  %6568 = vmatprep.mubr.f32.mxu0 %v4264
  %6569 = vmatmul.mubr.f32.gmra.mrb[0].mxu0 %v4033
  %v6570 = vpop.f32.mrb[0].mxu0
  %v6571 = vadd.f32 0.0, %v6570
  %v6572 = vpop.f32.mrb[0].mxu0
  %6573 = vmatprep.mubr.f32.mxu0 %v4266
  %6574 = vmatmul.mubr.f32.gmra.mrb[0].mxu0 %v4034
  %v6575 = vpop.f32.mrb[0].mxu0
  %v6576 = vadd.f32 0.0, %v6575
  %v6577 = vpop.f32.mrb[0].mxu0
  %6578 = vmatprep.mubr.f32.mxu0 %v4269
  %6579 = vmatmul.mubr.f32.gmra.mrb[0].mxu0 %v4036
  %v6580 = vpop.f32.mrb[0].mxu0
  %v6581 = vadd.f32 0.0, %v6580
  %v6582 = vpop.f32.mrb[0].mxu0
  %6583 = vmatprep.mubr.f32.mxu0 %v4271
  %6584 = vmatmul.mubr.f32.gmra.mrb[0].mxu0 %v4037
  %v6585 = vpop.f32.mrb[0].mxu0
  %v6586 = vadd.f32 0.0, %v6585
  %v6587 = vpop.f32.mrb[0].mxu0
  %6588 = vmatprep.mubr.f32.mxu0 %v4274
  %6589 = vmatmul.mubr.f32.gmra.mrb[0].mxu0 %v4039
  %v6590 = vpop.f32.mrb[0].mxu0
  %v6591 = vadd.f32 0.0, %v6590
  %v6592 = vpop.f32.mrb[0].mxu0
  %6593 = vmatprep.mubr.f32.mxu0 %v4276
  %6594 = vmatmul.mubr.f32.gmra.mrb[0].mxu0 %v4040
  %v6595 = vpop.f32.mrb[0].mxu0
  %v6596 = vadd.f32 0.0, %v6595
  %v6597 = vpop.f32.mrb[0].mxu0
  %6598 = vmatprep.mubr.f32.mxu0 %v4279
  %6599 = vmatmul.mubr.f32.gmra.mrb[0].mxu0 %v4042
  %v6600 = vpop.f32.mrb[0].mxu0
  %v6601 = vadd.f32 0.0, %v6600
  %v6602 = vpop.f32.mrb[0].mxu0
  %6603 = vmatprep.mubr.f32.mxu0 %v4281
  %6604 = vmatmul.mubr.f32.gmra.mrb[0].mxu0 %v4043
  %v6605 = vpop.f32.mrb[0].mxu0
  %v6606 = vadd.f32 0.0, %v6605
  %v6607 = vpop.f32.mrb[0].mxu0
  %6608 = vmatprep.mubr.f32.mxu0 %v4706
  %6609 = vmatmul.mubr.f32.gmra.mrb[0].mxu0 %v4045
  %v6610 = vpop.f32.mrb[0].mxu0
  %v6611 = vadd.f32 0.0, %v6610
  %v6612 = vpop.f32.mrb[0].mxu0
  %6613 = vmatprep.mubr.f32.mxu0 %v4708
  %6614 = vmatmul.mubr.f32.gmra.mrb[0].mxu0 %v4046
  %v6615 = vpop.f32.mrb[0].mxu0
  %v6616 = vadd.f32 0.0, %v6615
  %v6617 = vpop.f32.mrb[0].mxu0
  %6618 = vmatprep.mubr.f32.mxu0 %v6329
  %6619 = vmatmul.mubr.f32.gmra.mrb[0].mxu0 %v4048
  %v6620 = vpop.f32.mrb[0].mxu0
  %v6621 = vadd.f32 0.0, %v6620
  %v6622 = vpop.f32.mrb[0].mxu0
  %6623 = vmatprep.mubr.f32.mxu0 %v6331
  %6624 = vmatmul.mubr.f32.gmra.mrb[0].mxu0 %v4049
  %v6625 = vpop.f32.mrb[0].mxu0
  %v6626 = vadd.f32 0.0, %v6625
  %v6627 = vpop.f32.mrb[0].mxu0
  %6628 = vmatprep.mubr.f32.mxu0 %v4294
  %6629 = vmatmul.mubr.f32.gmra.mrb[0].mxu0 %v4057
  %v6630 = vpop.f32.mrb[0].mxu0
  %v6631 = vadd.f32 0.0, %v6630
  %v6632 = vpop.f32.mrb[0].mxu0
  %6633 = vmatprep.mubr.f32.mxu0 %v4296
  %6634 = vmatmul.mubr.f32.gmra.mrb[0].mxu0 %v4058
  %v6635 = vpop.f32.mrb[0].mxu0
  %v6636 = vadd.f32 0.0, %v6635
  %v6637 = vpop.f32.mrb[0].mxu0
  %6638 = vmatprep.mubr.f32.mxu0 %v4299
  %6639 = vmatmul.mubr.f32.gmra.mrb[0].mxu0 %v4060
  %v6640 = vpop.f32.mrb[0].mxu0
  %v6641 = vadd.f32 0.0, %v6640
  %v6642 = vpop.f32.mrb[0].mxu0
  %6643 = vmatprep.mubr.f32.mxu0 %v4301
  %6644 = vmatmul.mubr.f32.gmra.mrb[0].mxu0 %v4061
  %v6645 = vpop.f32.mrb[0].mxu0
  %v6646 = vadd.f32 0.0, %v6645
  %v6647 = vpop.f32.mrb[0].mxu0
  %6648 = vmatprep.mubr.f32.mxu0 %v4304
  %6649 = vmatmul.mubr.f32.gmra.mrb[0].mxu0 %v4063
  %v6650 = vpop.f32.mrb[0].mxu0
  %v6651 = vadd.f32 0.0, %v6650
  %v6652 = vpop.f32.mrb[0].mxu0
  %6653 = vmatprep.mubr.f32.mxu0 %v4306
  %6654 = vmatmul.mubr.f32.gmra.mrb[0].mxu0 %v4064
  %v6655 = vpop.f32.mrb[0].mxu0
  %v6656 = vadd.f32 0.0, %v6655
  %v6657 = vpop.f32.mrb[0].mxu0
  %6658 = vmatprep.mubr.f32.mxu0 %v4309
  %6659 = vmatmul.mubr.f32.gmra.mrb[0].mxu0 %v4066
  %v6660 = vpop.f32.mrb[0].mxu0
  %v6661 = vadd.f32 0.0, %v6660
  %v6662 = vpop.f32.mrb[0].mxu0
  %6663 = vmatprep.mubr.f32.mxu0 %v4311
  %6664 = vmatmul.mubr.f32.gmra.mrb[0].mxu0 %v4067
  %v6665 = vpop.f32.mrb[0].mxu0
  %v6666 = vadd.f32 0.0, %v6665
  %v6667 = vpop.f32.mrb[0].mxu0
  %6668 = vmatprep.mubr.f32.mxu0 %v4314
  %6669 = vmatmul.mubr.f32.gmra.mrb[0].mxu0 %v4069
  %v6670 = vpop.f32.mrb[0].mxu0
  %v6671 = vadd.f32 0.0, %v6670
  %v6672 = vpop.f32.mrb[0].mxu0
  %6673 = vmatprep.mubr.f32.mxu0 %v4316
  %6674 = vmatmul.mubr.f32.gmra.mrb[0].mxu0 %v4070
  %v6675 = vpop.f32.mrb[0].mxu0
  %v6676 = vadd.f32 0.0, %v6675
  %v6677 = vpop.f32.mrb[0].mxu0
  %6678 = vmatprep.mubr.f32.mxu0 %v4319
  %6679 = vmatmul.mubr.f32.gmra.mrb[0].mxu0 %v4072
  %v6680 = vpop.f32.mrb[0].mxu0
  %v6681 = vadd.f32 0.0, %v6680
  %v6682 = vpop.f32.mrb[0].mxu0
  %6683 = vmatprep.mubr.f32.mxu0 %v4321
  %6684 = vmatmul.mubr.f32.gmra.mrb[0].mxu0 %v4073
  %v6685 = vpop.f32.mrb[0].mxu0
  %v6686 = vadd.f32 0.0, %v6685
  %v6687 = vpop.f32.mrb[0].mxu0
  %6688 = vmatprep.mubr.f32.mxu0 %v4324
  %6689 = vmatmul.mubr.f32.gmra.mrb[0].mxu0 %v4075
  %v6690 = vpop.f32.mrb[0].mxu0
  %v6691 = vadd.f32 0.0, %v6690
  %v6692 = vpop.f32.mrb[0].mxu0
  %6693 = vmatprep.mubr.f32.mxu0 %v4326
  %6694 = vmatmul.mubr.f32.gmra.mrb[0].mxu0 %v4076
  %v6695 = vpop.f32.mrb[0].mxu0
  %v6696 = vadd.f32 0.0, %v6695
  %v6697 = vpop.f32.mrb[0].mxu0
  %6698 = vmatprep.mubr.f32.mxu0 %v4329
  %6699 = vmatmul.mubr.f32.gmra.mrb[0].mxu0 %v4078
  %v6700 = vpop.f32.mrb[0].mxu0
  %v6701 = vadd.f32 0.0, %v6700
  %v6702 = vpop.f32.mrb[0].mxu0
  %6703 = vmatprep.mubr.f32.mxu0 %v4331
  %6704 = vmatmul.mubr.f32.gmra.mrb[0].mxu0 %v4079
  %v6705 = vpop.f32.mrb[0].mxu0
  %v6706 = vadd.f32 0.0, %v6705
  %v6707 = vpop.f32.mrb[0].mxu0
  %6708 = vmatprep.mubr.f32.mxu0 %v4334
  %6709 = vmatmul.mubr.f32.gmra.mrb[0].mxu0 %v4081
  %v6710 = vpop.f32.mrb[0].mxu0
  %v6711 = vadd.f32 0.0, %v6710
  %v6712 = vpop.f32.mrb[0].mxu0
  %6713 = vmatprep.mubr.f32.mxu0 %v4336
  %6714 = vmatmul.mubr.f32.gmra.mrb[0].mxu0 %v4082
  %v6715 = vpop.f32.mrb[0].mxu0
  %v6716 = vadd.f32 0.0, %v6715
  %v6717 = vpop.f32.mrb[0].mxu0
  %6718 = vmatprep.mubr.f32.mxu0 %v4339
  %6719 = vmatmul.mubr.f32.gmra.mrb[0].mxu0 %v4084
  %v6720 = vpop.f32.mrb[0].mxu0
  %v6721 = vadd.f32 0.0, %v6720
  %v6722 = vpop.f32.mrb[0].mxu0
  %6723 = vmatprep.mubr.f32.mxu0 %v4341
  %6724 = vmatmul.mubr.f32.gmra.mrb[0].mxu0 %v4085
  %v6725 = vpop.f32.mrb[0].mxu0
  %v6726 = vadd.f32 0.0, %v6725
  %v6727 = vpop.f32.mrb[0].mxu0
  %6728 = vmatprep.mubr.f32.mxu0 %v4344
  %6729 = vmatmul.mubr.f32.gmra.mrb[0].mxu0 %v4087
  %v6730 = vpop.f32.mrb[0].mxu0
  %v6731 = vadd.f32 0.0, %v6730
  %v6732 = vpop.f32.mrb[0].mxu0
  %6733 = vmatprep.mubr.f32.mxu0 %v4346
  %6734 = vmatmul.mubr.f32.gmra.mrb[0].mxu0 %v4088
  %v6735 = vpop.f32.mrb[0].mxu0
  %v6736 = vadd.f32 0.0, %v6735
  %v6737 = vpop.f32.mrb[0].mxu0
  %6738 = vmatprep.mubr.f32.mxu0 %v4349
  %6739 = vmatmul.mubr.f32.gmra.mrb[0].mxu0 %v4090
  %v6740 = vpop.f32.mrb[0].mxu0
  %v6741 = vadd.f32 0.0, %v6740
  %v6742 = vpop.f32.mrb[0].mxu0
  %6743 = vmatprep.mubr.f32.mxu0 %v4351
  %6744 = vmatmul.mubr.f32.gmra.mrb[0].mxu0 %v4091
  %v6745 = vpop.f32.mrb[0].mxu0
  %v6746 = vadd.f32 0.0, %v6745
  %v6747 = vpop.f32.mrb[0].mxu0
  %6748 = vmatprep.mubr.f32.mxu0 %v4354
  %6749 = vmatmul.mubr.f32.gmra.mrb[0].mxu0 %v4093
  %v6750 = vpop.f32.mrb[0].mxu0
  %v6751 = vadd.f32 0.0, %v6750
  %v6752 = vpop.f32.mrb[0].mxu0
  %6753 = vmatprep.mubr.f32.mxu0 %v4356
  %6754 = vmatmul.mubr.f32.gmra.mrb[0].mxu0 %v4094
  %v6755 = vpop.f32.mrb[0].mxu0
  %v6756 = vadd.f32 0.0, %v6755
  %v6757 = vpop.f32.mrb[0].mxu0
  %6758 = vmatprep.mubr.f32.mxu0 %v4359
  %6759 = vmatmul.mubr.f32.gmra.mrb[0].mxu0 %v4096
  %v6760 = vpop.f32.mrb[0].mxu0
  %v6761 = vadd.f32 0.0, %v6760
  %v6762 = vpop.f32.mrb[0].mxu0
  %6763 = vmatprep.mubr.f32.mxu0 %v4361
  %6764 = vmatmul.mubr.f32.gmra.mrb[0].mxu0 %v4097
  %v6765 = vpop.f32.mrb[0].mxu0
  %v6766 = vadd.f32 0.0, %v6765
  %v6767 = vpop.f32.mrb[0].mxu0
  %6768 = vmatprep.mubr.f32.mxu0 %v4711
  %6769 = vmatmul.mubr.f32.gmra.mrb[0].mxu0 %v4099
  %v6770 = vpop.f32.mrb[0].mxu0
  %v6771 = vadd.f32 0.0, %v6770
  %v6772 = vpop.f32.mrb[0].mxu0
  %6773 = vmatprep.mubr.f32.mxu0 %v4713
  %6774 = vmatmul.mubr.f32.gmra.mrb[0].mxu0 %v4100
  %v6775 = vpop.f32.mrb[0].mxu0
  %v6776 = vadd.f32 0.0, %v6775
  %v6777 = vpop.f32.mrb[0].mxu0
  %6778 = vmatprep.mubr.f32.mxu0 %v6334
  %6779 = vmatmul.mubr.f32.gmra.mrb[0].mxu0 %v4102
  %v6780 = vpop.f32.mrb[0].mxu0
  %v6781 = vadd.f32 0.0, %v6780
  %v6782 = vpop.f32.mrb[0].mxu0
  %6783 = vmatprep.mubr.f32.mxu0 %v6336
  %6784 = vmatmul.mubr.f32.gmra.mrb[0].mxu0 %v4103
  %v6785 = vpop.f32.mrb[0].mxu0
  %v6786 = vadd.f32 0.0, %v6785
  %v6787 = vpop.f32.mrb[0].mxu0
  %6788 = vdwg.mxu0
  %6789 = vmatprep.subr.mxu0 0.0
  %6790 = vmatpush1.msra.mxu0 %v6388
  %6791 = vmatprep.subr.mxu0 0.0
  %6792 = vmatpush1.msra.mxu0 %v6389
  %6793 = vmatprep.subr.mxu0 0.0
  %6794 = vmatpush1.msra.mxu0 %v6390
  %6795 = vmatprep.subr.mxu0 0.0
  %6796 = vmatpush1.msra.mxu0 %v6391
  %6797 = vmatprep.subr.mxu0 0.0
  %6798 = vmatpush1.msra.mxu0 %v6392
  %6799 = vmatprep.subr.mxu0 0.0
  %6800 = vmatpush1.msra.mxu0 %v6393
  %6801 = vmatprep.subr.mxu0 0.0
  %6802 = vmatpush1.msra.mxu0 %v6394
  %6803 = vmatprep.subr.mxu0 0.0
  %6804 = vmatpush1.msra.mxu0 %v6395
  %6805 = vmatprep.subr.mxu0 0.0
  %6806 = vmatpush1.msra.mxu0 %v6396
  %6807 = vmatprep.subr.mxu0 0.0
  %6808 = vmatpush1.msra.mxu0 %v6397
  %6809 = vmatprep.subr.mxu0 0.0
  %6810 = vmatpush1.msra.mxu0 %v6398
  %6811 = vmatprep.subr.mxu0 0.0
  %6812 = vmatpush1.msra.mxu0 %v6399
  %6813 = vmatprep.subr.mxu0 0.0
  %6814 = vmatpush1.msra.mxu0 %v6400
  %6815 = vmatprep.subr.mxu0 0.0
  %6816 = vmatpush1.msra.mxu0 %v6401
  %6817 = vmatprep.subr.mxu0 0.0
  %6818 = vmatpush1.msra.mxu0 %v6402
  %6819 = vmatprep.subr.mxu0 0.0
  %6820 = vmatpush1.msra.mxu0 %v6403
  %6821 = vmatprep.subr.mxu0 0.0
  %6822 = vmatpush1.msra.mxu0 0.0
  %6823 = vmatprep.subr.mxu0 0.0
  %6824 = vmatpush1.msra.mxu0 0.0
  %6825 = vmatprep.subr.mxu0 0.0
  %6826 = vmatpush1.msra.mxu0 0.0
  %6827 = vmatprep.subr.mxu0 0.0
  %6828 = vmatpush1.msra.mxu0 0.0
  %6829 = vmatprep.subr.mxu0 0.0
  %6830 = vmatpush1.msra.mxu0 0.0
  %6831 = vmatprep.subr.mxu0 0.0
  %6832 = vmatpush1.msra.mxu0 0.0
  %6833 = vmatprep.subr.mxu0 0.0
  %6834 = vmatpush1.msra.mxu0 0.0
  %6835 = vmatprep.subr.mxu0 0.0
  %6836 = vmatpush1.msra.mxu0 0.0
  %6837 = vmatprep.subr.mxu0 0.0
  %6838 = vmatpush1.msra.mxu0 0.0
  %6839 = vmatprep.subr.mxu0 0.0
  %6840 = vmatpush1.msra.mxu0 0.0
  %6841 = vmatprep.subr.mxu0 0.0
  %6842 = vmatpush1.msra.mxu0 0.0
  %6843 = vmatprep.subr.mxu0 0.0
  %6844 = vmatpush1.msra.mxu0 0.0
  %6845 = vmatprep.subr.mxu0 0.0
  %6846 = vmatpush1.msra.mxu0 0.0
  %6847 = vmatprep.subr.mxu0 0.0
  %6848 = vmatpush1.msra.mxu0 0.0
  %6849 = vmatprep.subr.mxu0 0.0
  %6850 = vmatpush1.msra.mxu0 0.0
  %6851 = vmatprep.subr.mxu0 0.0
  %6852 = vmatpush1.msra.mxu0 0.0
  %6853 = vmatprep.mubr.f32.mxu0 0.0
  %6854 = vmatmul.mubr.f32.gmra.mrb[0].mxu0 %v4438
  %v6855 = vpop.f32.mrb[0].mxu0
  %v6856 = vadd.f32 %v6471, %v6855
  %v6857 = vpop.f32.mrb[0].mxu0
  %6858 = vmatprep.mubr.f32.mxu0 0.0
  %6859 = vmatmul.mubr.f32.gmra.mrb[0].mxu0 %v4440
  %v6860 = vpop.f32.mrb[0].mxu0
  %v6861 = vadd.f32 %v6476, %v6860
  %v6862 = vpop.f32.mrb[0].mxu0
  %6863 = vmatprep.mubr.f32.mxu0 0.0
  %6864 = vmatmul.mubr.f32.gmra.mrb[0].mxu0 %v4443
  %v6865 = vpop.f32.mrb[0].mxu0
  %v6866 = vadd.f32 %v6481, %v6865
  %v6867 = vpop.f32.mrb[0].mxu0
  %6868 = vmatprep.mubr.f32.mxu0 0.0
  %6869 = vmatmul.mubr.f32.gmra.mrb[0].mxu0 %v4445
  %v6870 = vpop.f32.mrb[0].mxu0
  %v6871 = vadd.f32 %v6486, %v6870
  %v6872 = vpop.f32.mrb[0].mxu0
  %6873 = vmatprep.mubr.f32.mxu0 0.0
  %6874 = vmatmul.mubr.f32.gmra.mrb[0].mxu0 %v4448
  %v6875 = vpop.f32.mrb[0].mxu0
  %v6876 = vadd.f32 %v6491, %v6875
  %v6877 = vpop.f32.mrb[0].mxu0
  %6878 = vmatprep.mubr.f32.mxu0 0.0
  %6879 = vmatmul.mubr.f32.gmra.mrb[0].mxu0 %v4450
  %v6880 = vpop.f32.mrb[0].mxu0
  %v6881 = vadd.f32 %v6496, %v6880
  %v6882 = vpop.f32.mrb[0].mxu0
  %6883 = vmatprep.mubr.f32.mxu0 0.0
  %6884 = vmatmul.mubr.f32.gmra.mrb[0].mxu0 %v4453
  %v6885 = vpop.f32.mrb[0].mxu0
  %v6886 = vadd.f32 %v6501, %v6885
  %v6887 = vpop.f32.mrb[0].mxu0
  %6888 = vmatprep.mubr.f32.mxu0 0.0
  %6889 = vmatmul.mubr.f32.gmra.mrb[0].mxu0 %v4455
  %v6890 = vpop.f32.mrb[0].mxu0
  %v6891 = vadd.f32 %v6506, %v6890
  %v6892 = vpop.f32.mrb[0].mxu0
  %6893 = vmatprep.mubr.f32.mxu0 0.0
  %6894 = vmatmul.mubr.f32.gmra.mrb[0].mxu0 %v4458
  %v6895 = vpop.f32.mrb[0].mxu0
  %v6896 = vadd.f32 %v6511, %v6895
  %v6897 = vpop.f32.mrb[0].mxu0
  %6898 = vmatprep.mubr.f32.mxu0 0.0
  %6899 = vmatmul.mubr.f32.gmra.mrb[0].mxu0 %v4460
  %v6900 = vpop.f32.mrb[0].mxu0
  %v6901 = vadd.f32 %v6516, %v6900
  %v6902 = vpop.f32.mrb[0].mxu0
  %6903 = vmatprep.mubr.f32.mxu0 0.0
  %6904 = vmatmul.mubr.f32.gmra.mrb[0].mxu0 %v4463
  %v6905 = vpop.f32.mrb[0].mxu0
  %v6906 = vadd.f32 %v6521, %v6905
  %v6907 = vpop.f32.mrb[0].mxu0
  %6908 = vmatprep.mubr.f32.mxu0 0.0
  %6909 = vmatmul.mubr.f32.gmra.mrb[0].mxu0 %v4465
  %v6910 = vpop.f32.mrb[0].mxu0
  %v6911 = vadd.f32 %v6526, %v6910
  %v6912 = vpop.f32.mrb[0].mxu0
  %6913 = vmatprep.mubr.f32.mxu0 0.0
  %6914 = vmatmul.mubr.f32.gmra.mrb[0].mxu0 %v4468
  %v6915 = vpop.f32.mrb[0].mxu0
  %v6916 = vadd.f32 %v6531, %v6915
  %v6917 = vpop.f32.mrb[0].mxu0
  %6918 = vmatprep.mubr.f32.mxu0 0.0
  %6919 = vmatmul.mubr.f32.gmra.mrb[0].mxu0 %v4470
  %v6920 = vpop.f32.mrb[0].mxu0
  %v6921 = vadd.f32 %v6536, %v6920
  %v6922 = vpop.f32.mrb[0].mxu0
  %6923 = vmatprep.mubr.f32.mxu0 0.0
  %6924 = vmatmul.mubr.f32.gmra.mrb[0].mxu0 %v4473
  %v6925 = vpop.f32.mrb[0].mxu0
  %v6926 = vadd.f32 %v6541, %v6925
  %v6927 = vpop.f32.mrb[0].mxu0
  %6928 = vmatprep.mubr.f32.mxu0 0.0
  %6929 = vmatmul.mubr.f32.gmra.mrb[0].mxu0 %v4475
  %v6930 = vpop.f32.mrb[0].mxu0
  %v6931 = vadd.f32 %v6546, %v6930
  %v6932 = vpop.f32.mrb[0].mxu0
  %6933 = vmatprep.mubr.f32.mxu0 0.0
  %6934 = vmatmul.mubr.f32.gmra.mrb[0].mxu0 %v4478
  %v6935 = vpop.f32.mrb[0].mxu0
  %v6936 = vadd.f32 %v6551, %v6935
  %v6937 = vpop.f32.mrb[0].mxu0
  %6938 = vmatprep.mubr.f32.mxu0 0.0
  %6939 = vmatmul.mubr.f32.gmra.mrb[0].mxu0 %v4480
  %v6940 = vpop.f32.mrb[0].mxu0
  %v6941 = vadd.f32 %v6556, %v6940
  %v6942 = vpop.f32.mrb[0].mxu0
  %6943 = vmatprep.mubr.f32.mxu0 0.0
  %6944 = vmatmul.mubr.f32.gmra.mrb[0].mxu0 %v4483
  %v6945 = vpop.f32.mrb[0].mxu0
  %v6946 = vadd.f32 %v6561, %v6945
  %v6947 = vpop.f32.mrb[0].mxu0
  %6948 = vmatprep.mubr.f32.mxu0 0.0
  %6949 = vmatmul.mubr.f32.gmra.mrb[0].mxu0 %v4485
  %v6950 = vpop.f32.mrb[0].mxu0
  %v6951 = vadd.f32 %v6566, %v6950
  %v6952 = vpop.f32.mrb[0].mxu0
  %6953 = vmatprep.mubr.f32.mxu0 0.0
  %6954 = vmatmul.mubr.f32.gmra.mrb[0].mxu0 %v4488
  %v6955 = vpop.f32.mrb[0].mxu0
  %v6956 = vadd.f32 %v6571, %v6955
  %v6957 = vpop.f32.mrb[0].mxu0
  %6958 = vmatprep.mubr.f32.mxu0 0.0
  %6959 = vmatmul.mubr.f32.gmra.mrb[0].mxu0 %v4490
  %v6960 = vpop.f32.mrb[0].mxu0
  %v6961 = vadd.f32 %v6576, %v6960
  %v6962 = vpop.f32.mrb[0].mxu0
  %6963 = vmatprep.mubr.f32.mxu0 0.0
  %6964 = vmatmul.mubr.f32.gmra.mrb[0].mxu0 %v4493
  %v6965 = vpop.f32.mrb[0].mxu0
  %v6966 = vadd.f32 %v6581, %v6965
  %v6967 = vpop.f32.mrb[0].mxu0
  %6968 = vmatprep.mubr.f32.mxu0 0.0
  %6969 = vmatmul.mubr.f32.gmra.mrb[0].mxu0 %v4495
  %v6970 = vpop.f32.mrb[0].mxu0
  %v6971 = vadd.f32 %v6586, %v6970
  %v6972 = vpop.f32.mrb[0].mxu0
  %6973 = vmatprep.mubr.f32.mxu0 0.0
  %6974 = vmatmul.mubr.f32.gmra.mrb[0].mxu0 %v4498
  %v6975 = vpop.f32.mrb[0].mxu0
  %v6976 = vadd.f32 %v6591, %v6975
  %v6977 = vpop.f32.mrb[0].mxu0
  %6978 = vmatprep.mubr.f32.mxu0 0.0
  %6979 = vmatmul.mubr.f32.gmra.mrb[0].mxu0 %v4500
  %v6980 = vpop.f32.mrb[0].mxu0
  %v6981 = vadd.f32 %v6596, %v6980
  %v6982 = vpop.f32.mrb[0].mxu0
  %6983 = vmatprep.mubr.f32.mxu0 0.0
  %6984 = vmatmul.mubr.f32.gmra.mrb[0].mxu0 %v4503
  %v6985 = vpop.f32.mrb[0].mxu0
  %v6986 = vadd.f32 %v6601, %v6985
  %v6987 = vpop.f32.mrb[0].mxu0
  %6988 = vmatprep.mubr.f32.mxu0 0.0
  %6989 = vmatmul.mubr.f32.gmra.mrb[0].mxu0 %v4505
  %v6990 = vpop.f32.mrb[0].mxu0
  %v6991 = vadd.f32 %v6606, %v6990
  %v6992 = vpop.f32.mrb[0].mxu0
  %6993 = vmatprep.mubr.f32.mxu0 0.0
  %6994 = vmatmul.mubr.f32.gmra.mrb[0].mxu0 %v4720
  %v6995 = vpop.f32.mrb[0].mxu0
  %v6996 = vadd.f32 %v6611, %v6995
  %v6997 = vpop.f32.mrb[0].mxu0
  %6998 = vmatprep.mubr.f32.mxu0 0.0
  %6999 = vmatmul.mubr.f32.gmra.mrb[0].mxu0 %v4722
  %v7000 = vpop.f32.mrb[0].mxu0
  %v7001 = vadd.f32 %v6616, %v7000
  %v7002 = vpop.f32.mrb[0].mxu0
  %7003 = vmatprep.mubr.f32.mxu0 0.0
  %7004 = vmatmul.mubr.f32.gmra.mrb[0].mxu0 %v6343
  %v7005 = vpop.f32.mrb[0].mxu0
  %v7006 = vadd.f32 %v6621, %v7005
  %v7007 = vpop.f32.mrb[0].mxu0
  %7008 = vmatprep.mubr.f32.mxu0 0.0
  %7009 = vmatmul.mubr.f32.gmra.mrb[0].mxu0 %v6345
  %v7010 = vpop.f32.mrb[0].mxu0
  %v7011 = vadd.f32 %v6626, %v7010
  %v7012 = vpop.f32.mrb[0].mxu0
  %7013 = vmatprep.mubr.f32.mxu0 0.0
  %7014 = vmatmul.mubr.f32.gmra.mrb[0].mxu0 %v4518
  %v7015 = vpop.f32.mrb[0].mxu0
  %v7016 = vadd.f32 %v6631, %v7015
  %v7017 = vpop.f32.mrb[0].mxu0
  %7018 = vmatprep.mubr.f32.mxu0 0.0
  %7019 = vmatmul.mubr.f32.gmra.mrb[0].mxu0 %v4520
  %v7020 = vpop.f32.mrb[0].mxu0
  %v7021 = vadd.f32 %v6636, %v7020
  %v7022 = vpop.f32.mrb[0].mxu0
  %7023 = vmatprep.mubr.f32.mxu0 0.0
  %7024 = vmatmul.mubr.f32.gmra.mrb[0].mxu0 %v4523
  %v7025 = vpop.f32.mrb[0].mxu0
  %v7026 = vadd.f32 %v6641, %v7025
  %v7027 = vpop.f32.mrb[0].mxu0
  %7028 = vmatprep.mubr.f32.mxu0 0.0
  %7029 = vmatmul.mubr.f32.gmra.mrb[0].mxu0 %v4525
  %v7030 = vpop.f32.mrb[0].mxu0
  %v7031 = vadd.f32 %v6646, %v7030
  %v7032 = vpop.f32.mrb[0].mxu0
  %7033 = vmatprep.mubr.f32.mxu0 0.0
  %7034 = vmatmul.mubr.f32.gmra.mrb[0].mxu0 %v4528
  %v7035 = vpop.f32.mrb[0].mxu0
  %v7036 = vadd.f32 %v6651, %v7035
  %v7037 = vpop.f32.mrb[0].mxu0
  %7038 = vmatprep.mubr.f32.mxu0 0.0
  %7039 = vmatmul.mubr.f32.gmra.mrb[0].mxu0 %v4530
  %v7040 = vpop.f32.mrb[0].mxu0
  %v7041 = vadd.f32 %v6656, %v7040
  %v7042 = vpop.f32.mrb[0].mxu0
  %7043 = vmatprep.mubr.f32.mxu0 0.0
  %7044 = vmatmul.mubr.f32.gmra.mrb[0].mxu0 %v4533
  %v7045 = vpop.f32.mrb[0].mxu0
  %v7046 = vadd.f32 %v6661, %v7045
  %v7047 = vpop.f32.mrb[0].mxu0
  %7048 = vmatprep.mubr.f32.mxu0 0.0
  %7049 = vmatmul.mubr.f32.gmra.mrb[0].mxu0 %v4535
  %v7050 = vpop.f32.mrb[0].mxu0
  %v7051 = vadd.f32 %v6666, %v7050
  %v7052 = vpop.f32.mrb[0].mxu0
  %7053 = vmatprep.mubr.f32.mxu0 0.0
  %7054 = vmatmul.mubr.f32.gmra.mrb[0].mxu0 %v4538
  %v7055 = vpop.f32.mrb[0].mxu0
  %v7056 = vadd.f32 %v6671, %v7055
  %v7057 = vpop.f32.mrb[0].mxu0
  %7058 = vmatprep.mubr.f32.mxu0 0.0
  %7059 = vmatmul.mubr.f32.gmra.mrb[0].mxu0 %v4540
  %v7060 = vpop.f32.mrb[0].mxu0
  %v7061 = vadd.f32 %v6676, %v7060
  %v7062 = vpop.f32.mrb[0].mxu0
  %7063 = vmatprep.mubr.f32.mxu0 0.0
  %7064 = vmatmul.mubr.f32.gmra.mrb[0].mxu0 %v4543
  %v7065 = vpop.f32.mrb[0].mxu0
  %v7066 = vadd.f32 %v6681, %v7065
  %v7067 = vpop.f32.mrb[0].mxu0
  %7068 = vmatprep.mubr.f32.mxu0 0.0
  %7069 = vmatmul.mubr.f32.gmra.mrb[0].mxu0 %v4545
  %v7070 = vpop.f32.mrb[0].mxu0
  %v7071 = vadd.f32 %v6686, %v7070
  %v7072 = vpop.f32.mrb[0].mxu0
  %7073 = vmatprep.mubr.f32.mxu0 0.0
  %7074 = vmatmul.mubr.f32.gmra.mrb[0].mxu0 %v4548
  %v7075 = vpop.f32.mrb[0].mxu0
  %v7076 = vadd.f32 %v6691, %v7075
  %v7077 = vpop.f32.mrb[0].mxu0
  %7078 = vmatprep.mubr.f32.mxu0 0.0
  %7079 = vmatmul.mubr.f32.gmra.mrb[0].mxu0 %v4550
  %v7080 = vpop.f32.mrb[0].mxu0
  %v7081 = vadd.f32 %v6696, %v7080
  %v7082 = vpop.f32.mrb[0].mxu0
  %7083 = vmatprep.mubr.f32.mxu0 0.0
  %7084 = vmatmul.mubr.f32.gmra.mrb[0].mxu0 %v4553
  %v7085 = vpop.f32.mrb[0].mxu0
  %v7086 = vadd.f32 %v6701, %v7085
  %v7087 = vpop.f32.mrb[0].mxu0
  %7088 = vmatprep.mubr.f32.mxu0 0.0
  %7089 = vmatmul.mubr.f32.gmra.mrb[0].mxu0 %v4555
  %v7090 = vpop.f32.mrb[0].mxu0
  %v7091 = vadd.f32 %v6706, %v7090
  %v7092 = vpop.f32.mrb[0].mxu0
  %7093 = vmatprep.mubr.f32.mxu0 0.0
  %7094 = vmatmul.mubr.f32.gmra.mrb[0].mxu0 %v4558
  %v7095 = vpop.f32.mrb[0].mxu0
  %v7096 = vadd.f32 %v6711, %v7095
  %v7097 = vpop.f32.mrb[0].mxu0
  %7098 = vmatprep.mubr.f32.mxu0 0.0
  %7099 = vmatmul.mubr.f32.gmra.mrb[0].mxu0 %v4560
  %v7100 = vpop.f32.mrb[0].mxu0
  %v7101 = vadd.f32 %v6716, %v7100
  %v7102 = vpop.f32.mrb[0].mxu0
  %7103 = vmatprep.mubr.f32.mxu0 0.0
  %7104 = vmatmul.mubr.f32.gmra.mrb[0].mxu0 %v4563
  %v7105 = vpop.f32.mrb[0].mxu0
  %v7106 = vadd.f32 %v6721, %v7105
  %v7107 = vpop.f32.mrb[0].mxu0
  %7108 = vmatprep.mubr.f32.mxu0 0.0
  %7109 = vmatmul.mubr.f32.gmra.mrb[0].mxu0 %v4565
  %v7110 = vpop.f32.mrb[0].mxu0
  %v7111 = vadd.f32 %v6726, %v7110
  %v7112 = vpop.f32.mrb[0].mxu0
  %7113 = vmatprep.mubr.f32.mxu0 0.0
  %7114 = vmatmul.mubr.f32.gmra.mrb[0].mxu0 %v4568
  %v7115 = vpop.f32.mrb[0].mxu0
  %v7116 = vadd.f32 %v6731, %v7115
  %v7117 = vpop.f32.mrb[0].mxu0
  %7118 = vmatprep.mubr.f32.mxu0 0.0
  %7119 = vmatmul.mubr.f32.gmra.mrb[0].mxu0 %v4570
  %v7120 = vpop.f32.mrb[0].mxu0
  %v7121 = vadd.f32 %v6736, %v7120
  %v7122 = vpop.f32.mrb[0].mxu0
  %7123 = vmatprep.mubr.f32.mxu0 0.0
  %7124 = vmatmul.mubr.f32.gmra.mrb[0].mxu0 %v4573
  %v7125 = vpop.f32.mrb[0].mxu0
  %v7126 = vadd.f32 %v6741, %v7125
  %v7127 = vpop.f32.mrb[0].mxu0
  %7128 = vmatprep.mubr.f32.mxu0 0.0
  %7129 = vmatmul.mubr.f32.gmra.mrb[0].mxu0 %v4575
  %v7130 = vpop.f32.mrb[0].mxu0
  %v7131 = vadd.f32 %v6746, %v7130
  %v7132 = vpop.f32.mrb[0].mxu0
  %7133 = vmatprep.mubr.f32.mxu0 0.0
  %7134 = vmatmul.mubr.f32.gmra.mrb[0].mxu0 %v4578
  %v7135 = vpop.f32.mrb[0].mxu0
  %v7136 = vadd.f32 %v6751, %v7135
  %v7137 = vpop.f32.mrb[0].mxu0
  %7138 = vmatprep.mubr.f32.mxu0 0.0
  %7139 = vmatmul.mubr.f32.gmra.mrb[0].mxu0 %v4580
  %v7140 = vpop.f32.mrb[0].mxu0
  %v7141 = vadd.f32 %v6756, %v7140
  %v7142 = vpop.f32.mrb[0].mxu0
  %7143 = vmatprep.mubr.f32.mxu0 0.0
  %7144 = vmatmul.mubr.f32.gmra.mrb[0].mxu0 %v4583
  %v7145 = vpop.f32.mrb[0].mxu0
  %v7146 = vadd.f32 %v6761, %v7145
  %v7147 = vpop.f32.mrb[0].mxu0
  %7148 = vmatprep.mubr.f32.mxu0 0.0
  %7149 = vmatmul.mubr.f32.gmra.mrb[0].mxu0 %v4585
  %v7150 = vpop.f32.mrb[0].mxu0
  %v7151 = vadd.f32 %v6766, %v7150
  %v7152 = vpop.f32.mrb[0].mxu0
  %7153 = vmatprep.mubr.f32.mxu0 0.0
  %7154 = vmatmul.mubr.f32.gmra.mrb[0].mxu0 %v4725
  %v7155 = vpop.f32.mrb[0].mxu0
  %v7156 = vadd.f32 %v6771, %v7155
  %v7157 = vpop.f32.mrb[0].mxu0
  %7158 = vmatprep.mubr.f32.mxu0 0.0
  %7159 = vmatmul.mubr.f32.gmra.mrb[0].mxu0 %v4727
  %v7160 = vpop.f32.mrb[0].mxu0
  %v7161 = vadd.f32 %v6776, %v7160
  %v7162 = vpop.f32.mrb[0].mxu0
  %7163 = vmatprep.mubr.f32.mxu0 0.0
  %7164 = vmatmul.mubr.f32.gmra.mrb[0].mxu0 %v6348
  %v7165 = vpop.f32.mrb[0].mxu0
  %v7166 = vadd.f32 %v6781, %v7165
  %v7167 = vpop.f32.mrb[0].mxu0
  %7168 = vmatprep.mubr.f32.mxu0 0.0
  %7169 = vmatmul.mubr.f32.gmra.mrb[0].mxu0 %v6350
  %v7170 = vpop.f32.mrb[0].mxu0
  %v7171 = vadd.f32 %v6786, %v7170
  %v7172 = vpop.f32.mrb[0].mxu0
  %7173 = vdwg.mxu0
  %v7174 = vadd.f32 %v6003, %v6856
  %v7175 = vadd.f32 %v6008, %v6861
  %v7176 = vadd.f32 %v6013, %v6866
  %v7177 = vadd.f32 %v6018, %v6871
  %v7178 = vadd.f32 %v6023, %v6876
  %v7179 = vadd.f32 %v6028, %v6881
  %v7180 = vadd.f32 %v6033, %v6886
  %v7181 = vadd.f32 %v6038, %v6891
  %v7182 = vadd.f32 %v6043, %v6896
  %v7183 = vadd.f32 %v6048, %v6901
  %v7184 = vadd.f32 %v6053, %v6906
  %v7185 = vadd.f32 %v6058, %v6911
  %v7186 = vadd.f32 %v6063, %v6916
  %v7187 = vadd.f32 %v6068, %v6921
  %v7188 = vadd.f32 %v6073, %v6926
  %v7189 = vadd.f32 %v6078, %v6931
  %v7190 = vadd.f32 %v6083, %v6936
  %v7191 = vadd.f32 %v6088, %v6941
  %v7192 = vadd.f32 %v6093, %v6946
  %v7193 = vadd.f32 %v6098, %v6951
  %v7194 = vadd.f32 %v6103, %v6956
  %v7195 = vadd.f32 %v6108, %v6961
  %v7196 = vadd.f32 %v6113, %v6966
  %v7197 = vadd.f32 %v6118, %v6971
  %v7198 = vadd.f32 %v6123, %v6976
  %v7199 = vadd.f32 %v6128, %v6981
  %v7200 = vadd.f32 %v6133, %v6986
  %v7201 = vadd.f32 %v6138, %v6991
  %v7202 = vadd.f32 %v6143, %v6996
  %v7203 = vadd.f32 %v6148, %v7001
  %v7204 = vadd.f32 %v6153, %v7006
  %v7205 = vadd.f32 %v6158, %v7011
  %v7206 = vadd.f32 %v6163, %v7016
  %v7207 = vadd.f32 %v6168, %v7021
  %v7208 = vadd.f32 %v6173, %v7026
  %v7209 = vadd.f32 %v6178, %v7031
  %v7210 = vadd.f32 %v6183, %v7036
  %v7211 = vadd.f32 %v6188, %v7041
  %v7212 = vadd.f32 %v6193, %v7046
  %v7213 = vadd.f32 %v6198, %v7051
  %v7214 = vadd.f32 %v6203, %v7056
  %v7215 = vadd.f32 %v6208, %v7061
  %v7216 = vadd.f32 %v6213, %v7066
  %v7217 = vadd.f32 %v6218, %v7071
  %v7218 = vadd.f32 %v6223, %v7076
  %v7219 = vadd.f32 %v6228, %v7081
  %v7220 = vadd.f32 %v6233, %v7086
  %v7221 = vadd.f32 %v6238, %v7091
  %v7222 = vadd.f32 %v6243, %v7096
  %v7223 = vadd.f32 %v6248, %v7101
  %v7224 = vadd.f32 %v6253, %v7106
  %v7225 = vadd.f32 %v6258, %v7111
  %v7226 = vadd.f32 %v6263, %v7116
  %v7227 = vadd.f32 %v6268, %v7121
  %v7228 = vadd.f32 %v6273, %v7126
  %v7229 = vadd.f32 %v6278, %v7131
  %v7230 = vadd.f32 %v6283, %v7136
  %v7231 = vadd.f32 %v6288, %v7141
  %v7232 = vadd.f32 %v6293, %v7146
  %v7233 = vadd.f32 %v6298, %v7151
  %v7234 = vadd.f32 %v6303, %v7156
  %v7235 = vadd.f32 %v6308, %v7161
  %v7236 = vadd.f32 %v6313, %v7166
  %v7237 = vadd.f32 %v6318, %v7171
  %v7239 = vlaneseq
  %v7240 = vshrl.u32 %v7239, 7
  %v7241 = vsub.s32 0, %v7240
  %v7242 = vrot.slane %v4105, %v7241
  %v7244 = vadd.f32 %v7174, %v7242
  %v7245 = vadd.f32 %v7175, %v7242
  %v7246 = vadd.f32 %v7176, %v7242
  %v7247 = vadd.f32 %v7177, %v7242
  %v7248 = vadd.f32 %v7178, %v7242
  %v7249 = vadd.f32 %v7179, %v7242
  %v7250 = vadd.f32 %v7180, %v7242
  %v7251 = vadd.f32 %v7181, %v7242
  %v7252 = vadd.f32 %v7182, %v7242
  %v7253 = vadd.f32 %v7183, %v7242
  %v7254 = vadd.f32 %v7184, %v7242
  %v7255 = vadd.f32 %v7185, %v7242
  %v7256 = vadd.f32 %v7186, %v7242
  %v7257 = vadd.f32 %v7187, %v7242
  %v7258 = vadd.f32 %v7188, %v7242
  %v7259 = vadd.f32 %v7189, %v7242
  %v7260 = vadd.f32 %v7190, %v7242
  %v7261 = vadd.f32 %v7191, %v7242
  %v7262 = vadd.f32 %v7192, %v7242
  %v7263 = vadd.f32 %v7193, %v7242
  %v7264 = vadd.f32 %v7194, %v7242
  %v7265 = vadd.f32 %v7195, %v7242
  %v7266 = vadd.f32 %v7196, %v7242
  %v7267 = vadd.f32 %v7197, %v7242
  %v7268 = vadd.f32 %v7198, %v7242
  %v7269 = vadd.f32 %v7199, %v7242
  %v7270 = vadd.f32 %v7200, %v7242
  %v7271 = vadd.f32 %v7201, %v7242
  %v7272 = vadd.f32 %v7202, %v7242
  %v7273 = vadd.f32 %v7203, %v7242
  %v7274 = vadd.f32 %v7204, %v7242
  %v7275 = vadd.f32 %v7205, %v7242
  %v7276 = vadd.f32 %v7206, %v7242
  %v7277 = vadd.f32 %v7207, %v7242
  %v7278 = vadd.f32 %v7208, %v7242
  %v7279 = vadd.f32 %v7209, %v7242
  %v7280 = vadd.f32 %v7210, %v7242
  %v7281 = vadd.f32 %v7211, %v7242
  %v7282 = vadd.f32 %v7212, %v7242
  %v7283 = vadd.f32 %v7213, %v7242
  %v7284 = vadd.f32 %v7214, %v7242
  %v7285 = vadd.f32 %v7215, %v7242
  %v7286 = vadd.f32 %v7216, %v7242
  %v7287 = vadd.f32 %v7217, %v7242
  %v7288 = vadd.f32 %v7218, %v7242
  %v7289 = vadd.f32 %v7219, %v7242
  %v7290 = vadd.f32 %v7220, %v7242
  %v7291 = vadd.f32 %v7221, %v7242
  %v7292 = vadd.f32 %v7222, %v7242
  %v7293 = vadd.f32 %v7223, %v7242
  %v7294 = vadd.f32 %v7224, %v7242
  %v7295 = vadd.f32 %v7225, %v7242
  %v7296 = vadd.f32 %v7226, %v7242
  %v7297 = vadd.f32 %v7227, %v7242
  %v7298 = vadd.f32 %v7228, %v7242
  %v7299 = vadd.f32 %v7229, %v7242
  %v7300 = vadd.f32 %v7230, %v7242
  %v7301 = vadd.f32 %v7231, %v7242
  %v7302 = vadd.f32 %v7232, %v7242
  %v7303 = vadd.f32 %v7233, %v7242
  %v7304 = vadd.f32 %v7234, %v7242
  %v7305 = vadd.f32 %v7235, %v7242
  %v7306 = vadd.f32 %v7236, %v7242
  %v7307 = vadd.f32 %v7237, %v7242
  %v7308 = vld [vmem:[%s7] sm:$0x1]
  %v7309 = vld [vmem:[%s8] sm:$0x1]
  %v7310 = vadd.f32 %v7244, %v7245
  %v7311 = vadd.f32 %v7310, %v7246
  %v7312 = vadd.f32 %v7311, %v7247
  %v7313 = vadd.f32 %v7312, %v7248
  %v7314 = vadd.f32 %v7313, %v7249
  %v7315 = vadd.f32 %v7314, %v7250
  %v7316 = vadd.f32 %v7315, %v7251
  %v7317 = vadd.f32 %v7316, %v7252
  %v7318 = vadd.f32 %v7317, %v7253
  %v7319 = vadd.f32 %v7318, %v7254
  %v7320 = vadd.f32 %v7319, %v7255
  %v7321 = vadd.f32 %v7320, %v7256
  %v7322 = vadd.f32 %v7321, %v7257
  %v7323 = vadd.f32 %v7322, %v7258
  %v7324 = vadd.f32 %v7323, %v7259
  %v7325 = vadd.f32 %v7324, %v7260
  %v7326 = vadd.f32 %v7325, %v7261
  %v7327 = vadd.f32 %v7326, %v7262
  %v7328 = vadd.f32 %v7327, %v7263
  %v7329 = vadd.f32 %v7328, %v7264
  %v7330 = vadd.f32 %v7329, %v7265
  %v7331 = vadd.f32 %v7330, %v7266
  %v7332 = vadd.f32 %v7331, %v7267
  %v7333 = vadd.f32 %v7332, %v7268
  %v7334 = vadd.f32 %v7333, %v7269
  %v7335 = vadd.f32 %v7334, %v7270
  %v7336 = vadd.f32 %v7335, %v7271
  %v7337 = vadd.f32 %v7336, %v7272
  %v7338 = vadd.f32 %v7337, %v7273
  %v7339 = vadd.f32 %v7338, %v7274
  %v7340 = vadd.f32 %v7339, %v7275
  %v7341 = vadd.f32 %v7340, %v7276
  %v7342 = vadd.f32 %v7341, %v7277
  %v7343 = vadd.f32 %v7342, %v7278
  %v7344 = vadd.f32 %v7343, %v7279
  %v7345 = vadd.f32 %v7344, %v7280
  %v7346 = vadd.f32 %v7345, %v7281
  %v7347 = vadd.f32 %v7346, %v7282
  %v7348 = vadd.f32 %v7347, %v7283
  %v7349 = vadd.f32 %v7348, %v7284
  %v7350 = vadd.f32 %v7349, %v7285
  %v7351 = vadd.f32 %v7350, %v7286
  %v7352 = vadd.f32 %v7351, %v7287
  %v7353 = vadd.f32 %v7352, %v7288
  %v7354 = vadd.f32 %v7353, %v7289
  %v7355 = vadd.f32 %v7354, %v7290
  %v7356 = vadd.f32 %v7355, %v7291
  %v7357 = vadd.f32 %v7356, %v7292
  %v7358 = vadd.f32 %v7357, %v7293
  %v7359 = vadd.f32 %v7358, %v7294
  %v7360 = vadd.f32 %v7359, %v7295
  %v7361 = vadd.f32 %v7360, %v7296
  %v7362 = vadd.f32 %v7361, %v7297
  %v7363 = vadd.f32 %v7362, %v7298
  %v7364 = vadd.f32 %v7363, %v7299
  %v7365 = vadd.f32 %v7364, %v7300
  %v7366 = vadd.f32 %v7365, %v7301
  %v7367 = vadd.f32 %v7366, %v7302
  %v7368 = vadd.f32 %v7367, %v7303
  %v7369 = vadd.f32 %v7368, %v7304
  %v7370 = vadd.f32 %v7369, %v7305
  %v7371 = vadd.f32 %v7370, %v7306
  %v7372 = vadd.f32 %v7371, %v7307
  %v7373 = vrot.slane %v7372, 4
  %v7374 = vadd.f32 %v7372, %v7373
  %v7375 = vrot.slane %v7374, 2
  %v7376 = vadd.f32 %v7374, %v7375
  %v7377 = vrot.slane %v7376, 1
  %v7378 = vadd.f32 %v7376, %v7377
  %v7379 = vmul.f32 %v7378, 0.001953125
  %v7380 = vsub.f32 %v7244, %v7379
  %v7381 = vsub.f32 %v7245, %v7379
  %v7382 = vsub.f32 %v7246, %v7379
  %v7383 = vsub.f32 %v7247, %v7379
  %v7384 = vsub.f32 %v7248, %v7379
  %v7385 = vsub.f32 %v7249, %v7379
  %v7386 = vsub.f32 %v7250, %v7379
  %v7387 = vsub.f32 %v7251, %v7379
  %v7388 = vsub.f32 %v7252, %v7379
  %v7389 = vsub.f32 %v7253, %v7379
  %v7390 = vsub.f32 %v7254, %v7379
  %v7391 = vsub.f32 %v7255, %v7379
  %v7392 = vsub.f32 %v7256, %v7379
  %v7393 = vsub.f32 %v7257, %v7379
  %v7394 = vsub.f32 %v7258, %v7379
  %v7395 = vsub.f32 %v7259, %v7379
  %v7396 = vsub.f32 %v7260, %v7379
  %v7397 = vsub.f32 %v7261, %v7379
  %v7398 = vsub.f32 %v7262, %v7379
  %v7399 = vsub.f32 %v7263, %v7379
  %v7400 = vsub.f32 %v7264, %v7379
  %v7401 = vsub.f32 %v7265, %v7379
  %v7402 = vsub.f32 %v7266, %v7379
  %v7403 = vsub.f32 %v7267, %v7379
  %v7404 = vsub.f32 %v7268, %v7379
  %v7405 = vsub.f32 %v7269, %v7379
  %v7406 = vsub.f32 %v7270, %v7379
  %v7407 = vsub.f32 %v7271, %v7379
  %v7408 = vsub.f32 %v7272, %v7379
  %v7409 = vsub.f32 %v7273, %v7379
  %v7410 = vsub.f32 %v7274, %v7379
  %v7411 = vsub.f32 %v7275, %v7379
  %v7412 = vsub.f32 %v7276, %v7379
  %v7413 = vsub.f32 %v7277, %v7379
  %v7414 = vsub.f32 %v7278, %v7379
  %v7415 = vsub.f32 %v7279, %v7379
  %v7416 = vsub.f32 %v7280, %v7379
  %v7417 = vsub.f32 %v7281, %v7379
  %v7418 = vsub.f32 %v7282, %v7379
  %v7419 = vsub.f32 %v7283, %v7379
  %v7420 = vsub.f32 %v7284, %v7379
  %v7421 = vsub.f32 %v7285, %v7379
  %v7422 = vsub.f32 %v7286, %v7379
  %v7423 = vsub.f32 %v7287, %v7379
  %v7424 = vsub.f32 %v7288, %v7379
  %v7425 = vsub.f32 %v7289, %v7379
  %v7426 = vsub.f32 %v7290, %v7379
  %v7427 = vsub.f32 %v7291, %v7379
  %v7428 = vsub.f32 %v7292, %v7379
  %v7429 = vsub.f32 %v7293, %v7379
  %v7430 = vsub.f32 %v7294, %v7379
  %v7431 = vsub.f32 %v7295, %v7379
  %v7432 = vsub.f32 %v7296, %v7379
  %v7433 = vsub.f32 %v7297, %v7379
  %v7434 = vsub.f32 %v7298, %v7379
  %v7435 = vsub.f32 %v7299, %v7379
  %v7436 = vsub.f32 %v7300, %v7379
  %v7437 = vsub.f32 %v7301, %v7379
  %v7438 = vsub.f32 %v7302, %v7379
  %v7439 = vsub.f32 %v7303, %v7379
  %v7440 = vsub.f32 %v7304, %v7379
  %v7441 = vsub.f32 %v7305, %v7379
  %v7442 = vsub.f32 %v7306, %v7379
  %v7443 = vsub.f32 %v7307, %v7379
  %v7444 = vmul.f32 %v7380, %v7380
  %v7445 = vmul.f32 %v7381, %v7381
  %v7446 = vmul.f32 %v7382, %v7382
  %v7447 = vmul.f32 %v7383, %v7383
  %v7448 = vmul.f32 %v7384, %v7384
  %v7449 = vmul.f32 %v7385, %v7385
  %v7450 = vmul.f32 %v7386, %v7386
  %v7451 = vmul.f32 %v7387, %v7387
  %v7452 = vmul.f32 %v7388, %v7388
  %v7453 = vmul.f32 %v7389, %v7389
  %v7454 = vmul.f32 %v7390, %v7390
  %v7455 = vmul.f32 %v7391, %v7391
  %v7456 = vmul.f32 %v7392, %v7392
  %v7457 = vmul.f32 %v7393, %v7393
  %v7458 = vmul.f32 %v7394, %v7394
  %v7459 = vmul.f32 %v7395, %v7395
  %v7460 = vmul.f32 %v7396, %v7396
  %v7461 = vmul.f32 %v7397, %v7397
  %v7462 = vmul.f32 %v7398, %v7398
  %v7463 = vmul.f32 %v7399, %v7399
  %v7464 = vmul.f32 %v7400, %v7400
  %v7465 = vmul.f32 %v7401, %v7401
  %v7466 = vmul.f32 %v7402, %v7402
  %v7467 = vmul.f32 %v7403, %v7403
  %v7468 = vmul.f32 %v7404, %v7404
  %v7469 = vmul.f32 %v7405, %v7405
  %v7470 = vmul.f32 %v7406, %v7406
  %v7471 = vmul.f32 %v7407, %v7407
  %v7472 = vmul.f32 %v7408, %v7408
  %v7473 = vmul.f32 %v7409, %v7409
  %v7474 = vmul.f32 %v7410, %v7410
  %v7475 = vmul.f32 %v7411, %v7411
  %v7476 = vmul.f32 %v7412, %v7412
  %v7477 = vmul.f32 %v7413, %v7413
  %v7478 = vmul.f32 %v7414, %v7414
  %v7479 = vmul.f32 %v7415, %v7415
  %v7480 = vmul.f32 %v7416, %v7416
  %v7481 = vmul.f32 %v7417, %v7417
  %v7482 = vmul.f32 %v7418, %v7418
  %v7483 = vmul.f32 %v7419, %v7419
  %v7484 = vmul.f32 %v7420, %v7420
  %v7485 = vmul.f32 %v7421, %v7421
  %v7486 = vmul.f32 %v7422, %v7422
  %v7487 = vmul.f32 %v7423, %v7423
  %v7488 = vmul.f32 %v7424, %v7424
  %v7489 = vmul.f32 %v7425, %v7425
  %v7490 = vmul.f32 %v7426, %v7426
  %v7491 = vmul.f32 %v7427, %v7427
  %v7492 = vmul.f32 %v7428, %v7428
  %v7493 = vmul.f32 %v7429, %v7429
  %v7494 = vmul.f32 %v7430, %v7430
  %v7495 = vmul.f32 %v7431, %v7431
  %v7496 = vmul.f32 %v7432, %v7432
  %v7497 = vmul.f32 %v7433, %v7433
  %v7498 = vmul.f32 %v7434, %v7434
  %v7499 = vmul.f32 %v7435, %v7435
  %v7500 = vmul.f32 %v7436, %v7436
  %v7501 = vmul.f32 %v7437, %v7437
  %v7502 = vmul.f32 %v7438, %v7438
  %v7503 = vmul.f32 %v7439, %v7439
  %v7504 = vmul.f32 %v7440, %v7440
  %v7505 = vmul.f32 %v7441, %v7441
  %v7506 = vmul.f32 %v7442, %v7442
  %v7507 = vmul.f32 %v7443, %v7443
  %v7508 = vadd.f32 %v7444, %v7445
  %v7509 = vadd.f32 %v7508, %v7446
  %v7510 = vadd.f32 %v7509, %v7447
  %v7511 = vadd.f32 %v7510, %v7448
  %v7512 = vadd.f32 %v7511, %v7449
  %v7513 = vadd.f32 %v7512, %v7450
  %v7514 = vadd.f32 %v7513, %v7451
  %v7515 = vadd.f32 %v7514, %v7452
  %v7516 = vadd.f32 %v7515, %v7453
  %v7517 = vadd.f32 %v7516, %v7454
  %v7518 = vadd.f32 %v7517, %v7455
  %v7519 = vadd.f32 %v7518, %v7456
  %v7520 = vadd.f32 %v7519, %v7457
  %v7521 = vadd.f32 %v7520, %v7458
  %v7522 = vadd.f32 %v7521, %v7459
  %v7523 = vadd.f32 %v7522, %v7460
  %v7524 = vadd.f32 %v7523, %v7461
  %v7525 = vadd.f32 %v7524, %v7462
  %v7526 = vadd.f32 %v7525, %v7463
  %v7527 = vadd.f32 %v7526, %v7464
  %v7528 = vadd.f32 %v7527, %v7465
  %v7529 = vadd.f32 %v7528, %v7466
  %v7530 = vadd.f32 %v7529, %v7467
  %v7531 = vadd.f32 %v7530, %v7468
  %v7532 = vadd.f32 %v7531, %v7469
  %v7533 = vadd.f32 %v7532, %v7470
  %v7534 = vadd.f32 %v7533, %v7471
  %v7535 = vadd.f32 %v7534, %v7472
  %v7536 = vadd.f32 %v7535, %v7473
  %v7537 = vadd.f32 %v7536, %v7474
  %v7538 = vadd.f32 %v7537, %v7475
  %v7539 = vadd.f32 %v7538, %v7476
  %v7540 = vadd.f32 %v7539, %v7477
  %v7541 = vadd.f32 %v7540, %v7478
  %v7542 = vadd.f32 %v7541, %v7479
  %v7543 = vadd.f32 %v7542, %v7480
  %v7544 = vadd.f32 %v7543, %v7481
  %v7545 = vadd.f32 %v7544, %v7482
  %v7546 = vadd.f32 %v7545, %v7483
  %v7547 = vadd.f32 %v7546, %v7484
  %v7548 = vadd.f32 %v7547, %v7485
  %v7549 = vadd.f32 %v7548, %v7486
  %v7550 = vadd.f32 %v7549, %v7487
  %v7551 = vadd.f32 %v7550, %v7488
  %v7552 = vadd.f32 %v7551, %v7489
  %v7553 = vadd.f32 %v7552, %v7490
  %v7554 = vadd.f32 %v7553, %v7491
  %v7555 = vadd.f32 %v7554, %v7492
  %v7556 = vadd.f32 %v7555, %v7493
  %v7557 = vadd.f32 %v7556, %v7494
  %v7558 = vadd.f32 %v7557, %v7495
  %v7559 = vadd.f32 %v7558, %v7496
  %v7560 = vadd.f32 %v7559, %v7497
  %v7561 = vadd.f32 %v7560, %v7498
  %v7562 = vadd.f32 %v7561, %v7499
  %v7563 = vadd.f32 %v7562, %v7500
  %v7564 = vadd.f32 %v7563, %v7501
  %v7565 = vadd.f32 %v7564, %v7502
  %v7566 = vadd.f32 %v7565, %v7503
  %v7567 = vadd.f32 %v7566, %v7504
  %v7568 = vadd.f32 %v7567, %v7505
  %v7569 = vadd.f32 %v7568, %v7506
  %v7570 = vadd.f32 %v7569, %v7507
  %v7571 = vrot.slane %v7570, 4
  %v7572 = vadd.f32 %v7570, %v7571
  %v7573 = vrot.slane %v7572, 2
  %v7574 = vadd.f32 %v7572, %v7573
  %v7575 = vrot.slane %v7574, 1
  %v7576 = vadd.f32 %v7574, %v7575
  %v7577 = vmul.f32 %v7576, 0.001953125
  %v7578 = vadd.f32 %v7577, 1e-05
  %v7579 = vrsqrt.pop %v7578
  %v7580 = vmul.f32 %v7308, %v7579
  %v7581 = vmul.f32 %v7379, %v7580
  %v7582 = vsub.f32 %v7309, %v7581
  %v7584 = vlaneseq
  %v7585 = vshrl.u32 %v7584, 7
  %v7586 = vsub.s32 0, %v7585
  %v7587 = vrot.slane %v7580, %v7586
  %v7589 = vmul.f32 %v7244, %v7587
  %v7590 = vmul.f32 %v7245, %v7587
  %v7591 = vmul.f32 %v7246, %v7587
  %v7592 = vmul.f32 %v7247, %v7587
  %v7593 = vmul.f32 %v7248, %v7587
  %v7594 = vmul.f32 %v7249, %v7587
  %v7595 = vmul.f32 %v7250, %v7587
  %v7596 = vmul.f32 %v7251, %v7587
  %v7597 = vmul.f32 %v7252, %v7587
  %v7598 = vmul.f32 %v7253, %v7587
  %v7599 = vmul.f32 %v7254, %v7587
  %v7600 = vmul.f32 %v7255, %v7587
  %v7601 = vmul.f32 %v7256, %v7587
  %v7602 = vmul.f32 %v7257, %v7587
  %v7603 = vmul.f32 %v7258, %v7587
  %v7604 = vmul.f32 %v7259, %v7587
  %v7605 = vmul.f32 %v7260, %v7587
  %v7606 = vmul.f32 %v7261, %v7587
  %v7607 = vmul.f32 %v7262, %v7587
  %v7608 = vmul.f32 %v7263, %v7587
  %v7609 = vmul.f32 %v7264, %v7587
  %v7610 = vmul.f32 %v7265, %v7587
  %v7611 = vmul.f32 %v7266, %v7587
  %v7612 = vmul.f32 %v7267, %v7587
  %v7613 = vmul.f32 %v7268, %v7587
  %v7614 = vmul.f32 %v7269, %v7587
  %v7615 = vmul.f32 %v7270, %v7587
  %v7616 = vmul.f32 %v7271, %v7587
  %v7617 = vmul.f32 %v7272, %v7587
  %v7618 = vmul.f32 %v7273, %v7587
  %v7619 = vmul.f32 %v7274, %v7587
  %v7620 = vmul.f32 %v7275, %v7587
  %v7621 = vmul.f32 %v7276, %v7587
  %v7622 = vmul.f32 %v7277, %v7587
  %v7623 = vmul.f32 %v7278, %v7587
  %v7624 = vmul.f32 %v7279, %v7587
  %v7625 = vmul.f32 %v7280, %v7587
  %v7626 = vmul.f32 %v7281, %v7587
  %v7627 = vmul.f32 %v7282, %v7587
  %v7628 = vmul.f32 %v7283, %v7587
  %v7629 = vmul.f32 %v7284, %v7587
  %v7630 = vmul.f32 %v7285, %v7587
  %v7631 = vmul.f32 %v7286, %v7587
  %v7632 = vmul.f32 %v7287, %v7587
  %v7633 = vmul.f32 %v7288, %v7587
  %v7634 = vmul.f32 %v7289, %v7587
  %v7635 = vmul.f32 %v7290, %v7587
  %v7636 = vmul.f32 %v7291, %v7587
  %v7637 = vmul.f32 %v7292, %v7587
  %v7638 = vmul.f32 %v7293, %v7587
  %v7639 = vmul.f32 %v7294, %v7587
  %v7640 = vmul.f32 %v7295, %v7587
  %v7641 = vmul.f32 %v7296, %v7587
  %v7642 = vmul.f32 %v7297, %v7587
  %v7643 = vmul.f32 %v7298, %v7587
  %v7644 = vmul.f32 %v7299, %v7587
  %v7645 = vmul.f32 %v7300, %v7587
  %v7646 = vmul.f32 %v7301, %v7587
  %v7647 = vmul.f32 %v7302, %v7587
  %v7648 = vmul.f32 %v7303, %v7587
  %v7649 = vmul.f32 %v7304, %v7587
  %v7650 = vmul.f32 %v7305, %v7587
  %v7651 = vmul.f32 %v7306, %v7587
  %v7652 = vmul.f32 %v7307, %v7587
  %v7654 = vlaneseq
  %v7655 = vshrl.u32 %v7654, 7
  %v7656 = vsub.s32 0, %v7655
  %v7657 = vrot.slane %v7582, %v7656
  %v7659 = vadd.f32 %v7589, %v7657
  %v7660 = vadd.f32 %v7590, %v7657
  %v7661 = vadd.f32 %v7591, %v7657
  %v7662 = vadd.f32 %v7592, %v7657
  %v7663 = vadd.f32 %v7593, %v7657
  %v7664 = vadd.f32 %v7594, %v7657
  %v7665 = vadd.f32 %v7595, %v7657
  %v7666 = vadd.f32 %v7596, %v7657
  %v7667 = vadd.f32 %v7597, %v7657
  %v7668 = vadd.f32 %v7598, %v7657
  %v7669 = vadd.f32 %v7599, %v7657
  %v7670 = vadd.f32 %v7600, %v7657
  %v7671 = vadd.f32 %v7601, %v7657
  %v7672 = vadd.f32 %v7602, %v7657
  %v7673 = vadd.f32 %v7603, %v7657
  %v7674 = vadd.f32 %v7604, %v7657
  %v7675 = vadd.f32 %v7605, %v7657
  %v7676 = vadd.f32 %v7606, %v7657
  %v7677 = vadd.f32 %v7607, %v7657
  %v7678 = vadd.f32 %v7608, %v7657
  %v7679 = vadd.f32 %v7609, %v7657
  %v7680 = vadd.f32 %v7610, %v7657
  %v7681 = vadd.f32 %v7611, %v7657
  %v7682 = vadd.f32 %v7612, %v7657
  %v7683 = vadd.f32 %v7613, %v7657
  %v7684 = vadd.f32 %v7614, %v7657
  %v7685 = vadd.f32 %v7615, %v7657
  %v7686 = vadd.f32 %v7616, %v7657
  %v7687 = vadd.f32 %v7617, %v7657
  %v7688 = vadd.f32 %v7618, %v7657
  %v7689 = vadd.f32 %v7619, %v7657
  %v7690 = vadd.f32 %v7620, %v7657
  %v7691 = vadd.f32 %v7621, %v7657
  %v7692 = vadd.f32 %v7622, %v7657
  %v7693 = vadd.f32 %v7623, %v7657
  %v7694 = vadd.f32 %v7624, %v7657
  %v7695 = vadd.f32 %v7625, %v7657
  %v7696 = vadd.f32 %v7626, %v7657
  %v7697 = vadd.f32 %v7627, %v7657
  %v7698 = vadd.f32 %v7628, %v7657
  %v7699 = vadd.f32 %v7629, %v7657
  %v7700 = vadd.f32 %v7630, %v7657
  %v7701 = vadd.f32 %v7631, %v7657
  %v7702 = vadd.f32 %v7632, %v7657
  %v7703 = vadd.f32 %v7633, %v7657
  %v7704 = vadd.f32 %v7634, %v7657
  %v7705 = vadd.f32 %v7635, %v7657
  %v7706 = vadd.f32 %v7636, %v7657
  %v7707 = vadd.f32 %v7637, %v7657
  %v7708 = vadd.f32 %v7638, %v7657
  %v7709 = vadd.f32 %v7639, %v7657
  %v7710 = vadd.f32 %v7640, %v7657
  %v7711 = vadd.f32 %v7641, %v7657
  %v7712 = vadd.f32 %v7642, %v7657
  %v7713 = vadd.f32 %v7643, %v7657
  %v7714 = vadd.f32 %v7644, %v7657
  %v7715 = vadd.f32 %v7645, %v7657
  %v7716 = vadd.f32 %v7646, %v7657
  %v7717 = vadd.f32 %v7647, %v7657
  %v7718 = vadd.f32 %v7648, %v7657
  %v7719 = vadd.f32 %v7649, %v7657
  %v7720 = vadd.f32 %v7650, %v7657
  %v7721 = vadd.f32 %v7651, %v7657
  %v7722 = vadd.f32 %v7652, %v7657
  %v7723 = vadd.f32 %v7659, %v245
  %v7724 = vadd.f32 %v7660, %v247
  %v7725 = vadd.f32 %v7661, %v250
  %v7726 = vadd.f32 %v7662, %v252
  %v7727 = vadd.f32 %v7663, %v255
  %v7728 = vadd.f32 %v7664, %v257
  %v7729 = vadd.f32 %v7665, %v260
  %v7730 = vadd.f32 %v7666, %v262
  %v7731 = vadd.f32 %v7667, %v265
  %v7732 = vadd.f32 %v7668, %v267
  %v7733 = vadd.f32 %v7669, %v270
  %v7734 = vadd.f32 %v7670, %v272
  %v7735 = vadd.f32 %v7671, %v275
  %v7736 = vadd.f32 %v7672, %v277
  %v7737 = vadd.f32 %v7673, %v280
  %v7738 = vadd.f32 %v7674, %v282
  %v7739 = vadd.f32 %v7675, %v285
  %v7740 = vadd.f32 %v7676, %v287
  %v7741 = vadd.f32 %v7677, %v290
  %v7742 = vadd.f32 %v7678, %v292
  %v7743 = vadd.f32 %v7679, %v295
  %v7744 = vadd.f32 %v7680, %v297
  %v7745 = vadd.f32 %v7681, %v300
  %v7746 = vadd.f32 %v7682, %v302
  %v7747 = vadd.f32 %v7683, %v305
  %v7748 = vadd.f32 %v7684, %v307
  %v7749 = vadd.f32 %v7685, %v310
  %v7750 = vadd.f32 %v7686, %v312
  %v7751 = vadd.f32 %v7687, %v315
  %v7752 = vadd.f32 %v7688, %v317
  %v7753 = vadd.f32 %v7689, %v743
  %v7754 = vadd.f32 %v7690, %v745
  %v7755 = vadd.f32 %v7691, %v325
  %v7756 = vadd.f32 %v7692, %v327
  %v7757 = vadd.f32 %v7693, %v330
  %v7758 = vadd.f32 %v7694, %v332
  %v7759 = vadd.f32 %v7695, %v335
  %v7760 = vadd.f32 %v7696, %v337
  %v7761 = vadd.f32 %v7697, %v340
  %v7762 = vadd.f32 %v7698, %v342
  %v7763 = vadd.f32 %v7699, %v345
  %v7764 = vadd.f32 %v7700, %v347
  %v7765 = vadd.f32 %v7701, %v350
  %v7766 = vadd.f32 %v7702, %v352
  %v7767 = vadd.f32 %v7703, %v355
  %v7768 = vadd.f32 %v7704, %v357
  %v7769 = vadd.f32 %v7705, %v360
  %v7770 = vadd.f32 %v7706, %v362
  %v7771 = vadd.f32 %v7707, %v365
  %v7772 = vadd.f32 %v7708, %v367
  %v7773 = vadd.f32 %v7709, %v370
  %v7774 = vadd.f32 %v7710, %v372
  %v7775 = vadd.f32 %v7711, %v375
  %v7776 = vadd.f32 %v7712, %v377
  %v7777 = vadd.f32 %v7713, %v380
  %v7778 = vadd.f32 %v7714, %v382
  %v7779 = vadd.f32 %v7715, %v385
  %v7780 = vadd.f32 %v7716, %v387
  %v7781 = vadd.f32 %v7717, %v390
  %v7782 = vadd.f32 %v7718, %v392
  %v7783 = vadd.f32 %v7719, %v395
  %v7784 = vadd.f32 %v7720, %v397
  %v7785 = vadd.f32 %v7721, %v748
  %v7786 = vadd.f32 %v7722, %v750
  %v7787 = vmax.f32 %v7723, 0.0
  %v7788 = vmax.f32 %v7724, 0.0
  %v7789 = vmax.f32 %v7725, 0.0
  %v7790 = vmax.f32 %v7726, 0.0
  %v7791 = vmax.f32 %v7727, 0.0
  %v7792 = vmax.f32 %v7728, 0.0
  %v7793 = vmax.f32 %v7729, 0.0
  %v7794 = vmax.f32 %v7730, 0.0
  %v7795 = vmax.f32 %v7731, 0.0
  %v7796 = vmax.f32 %v7732, 0.0
  %v7797 = vmax.f32 %v7733, 0.0
  %v7798 = vmax.f32 %v7734, 0.0
  %v7799 = vmax.f32 %v7735, 0.0
  %v7800 = vmax.f32 %v7736, 0.0
  %v7801 = vmax.f32 %v7737, 0.0
  %v7802 = vmax.f32 %v7738, 0.0
  %v7803 = vmax.f32 %v7739, 0.0
  %v7804 = vmax.f32 %v7740, 0.0
  %v7805 = vmax.f32 %v7741, 0.0
  %v7806 = vmax.f32 %v7742, 0.0
  %v7807 = vmax.f32 %v7743, 0.0
  %v7808 = vmax.f32 %v7744, 0.0
  %v7809 = vmax.f32 %v7745, 0.0
  %v7810 = vmax.f32 %v7746, 0.0
  %v7811 = vmax.f32 %v7747, 0.0
  %v7812 = vmax.f32 %v7748, 0.0
  %v7813 = vmax.f32 %v7749, 0.0
  %v7814 = vmax.f32 %v7750, 0.0
  %v7815 = vmax.f32 %v7751, 0.0
  %v7816 = vmax.f32 %v7752, 0.0
  %v7817 = vmax.f32 %v7753, 0.0
  %v7818 = vmax.f32 %v7754, 0.0
  %v7819 = vmax.f32 %v7755, 0.0
  %v7820 = vmax.f32 %v7756, 0.0
  %v7821 = vmax.f32 %v7757, 0.0
  %v7822 = vmax.f32 %v7758, 0.0
  %v7823 = vmax.f32 %v7759, 0.0
  %v7824 = vmax.f32 %v7760, 0.0
  %v7825 = vmax.f32 %v7761, 0.0
  %v7826 = vmax.f32 %v7762, 0.0
  %v7827 = vmax.f32 %v7763, 0.0
  %v7828 = vmax.f32 %v7764, 0.0
  %v7829 = vmax.f32 %v7765, 0.0
  %v7830 = vmax.f32 %v7766, 0.0
  %v7831 = vmax.f32 %v7767, 0.0
  %v7832 = vmax.f32 %v7768, 0.0
  %v7833 = vmax.f32 %v7769, 0.0
  %v7834 = vmax.f32 %v7770, 0.0
  %v7835 = vmax.f32 %v7771, 0.0
  %v7836 = vmax.f32 %v7772, 0.0
  %v7837 = vmax.f32 %v7773, 0.0
  %v7838 = vmax.f32 %v7774, 0.0
  %v7839 = vmax.f32 %v7775, 0.0
  %v7840 = vmax.f32 %v7776, 0.0
  %v7841 = vmax.f32 %v7777, 0.0
  %v7842 = vmax.f32 %v7778, 0.0
  %v7843 = vmax.f32 %v7779, 0.0
  %v7844 = vmax.f32 %v7780, 0.0
  %v7845 = vmax.f32 %v7781, 0.0
  %v7846 = vmax.f32 %v7782, 0.0
  %v7847 = vmax.f32 %v7783, 0.0
  %v7848 = vmax.f32 %v7784, 0.0
  %v7849 = vmax.f32 %v7785, 0.0
  %v7850 = vmax.f32 %v7786, 0.0
  %7851 = vst [vmem:[%s9] sm:$0xff] %v7787
  %7852 = vst [vmem:[%s9 + $0x8] sm:$0xff] %v7788
  %7853 = vst [vmem:[%s9 + $0x10] sm:$0xff] %v7789
  %7854 = vst [vmem:[%s9 + $0x18] sm:$0xff] %v7790
  %7855 = vst [vmem:[%s9 + $0x20] sm:$0xff] %v7791
  %7856 = vst [vmem:[%s9 + $0x28] sm:$0xff] %v7792
  %7857 = vst [vmem:[%s9 + $0x30] sm:$0xff] %v7793
  %7858 = vst [vmem:[%s9 + $0x38] sm:$0xff] %v7794
  %7859 = vst [vmem:[%s9 + $0x40] sm:$0xff] %v7795
  %7860 = vst [vmem:[%s9 + $0x48] sm:$0xff] %v7796
  %7861 = vst [vmem:[%s9 + $0x50] sm:$0xff] %v7797
  %7862 = vst [vmem:[%s9 + $0x58] sm:$0xff] %v7798
  %7863 = vst [vmem:[%s9 + $0x60] sm:$0xff] %v7799
  %7864 = vst [vmem:[%s9 + $0x68] sm:$0xff] %v7800
  %7865 = vst [vmem:[%s9 + $0x70] sm:$0xff] %v7801
  %7866 = vst [vmem:[%s9 + $0x78] sm:$0xff] %v7802
  %7867 = vst [vmem:[%s9 + $0x80] sm:$0xff] %v7803
  %7868 = vst [vmem:[%s9 + $0x88] sm:$0xff] %v7804
  %7869 = vst [vmem:[%s9 + $0x90] sm:$0xff] %v7805
  %7870 = vst [vmem:[%s9 + $0x98] sm:$0xff] %v7806
  %7871 = vst [vmem:[%s9 + $0xa0] sm:$0xff] %v7807
  %7872 = vst [vmem:[%s9 + $0xa8] sm:$0xff] %v7808
  %7873 = vst [vmem:[%s9 + $0xb0] sm:$0xff] %v7809
  %7874 = vst [vmem:[%s9 + $0xb8] sm:$0xff] %v7810
  %7875 = vst [vmem:[%s9 + $0xc0] sm:$0xff] %v7811
  %7876 = vst [vmem:[%s9 + $0xc8] sm:$0xff] %v7812
  %7877 = vst [vmem:[%s9 + $0xd0] sm:$0xff] %v7813
  %7878 = vst [vmem:[%s9 + $0xd8] sm:$0xff] %v7814
  %7879 = vst [vmem:[%s9 + $0xe0] sm:$0xff] %v7815
  %7880 = vst [vmem:[%s9 + $0xe8] sm:$0xff] %v7816
  %7881 = vst [vmem:[%s9 + $0xf0] sm:$0xff] %v7817
  %7882 = vst [vmem:[%s9 + $0xf8] sm:$0xff] %v7818
  %7883 = vst [vmem:[%s9 + $0x100] sm:$0xff] %v7819
  %7884 = vst [vmem:[%s9 + $0x108] sm:$0xff] %v7820
  %7885 = vst [vmem:[%s9 + $0x110] sm:$0xff] %v7821
  %7886 = vst [vmem:[%s9 + $0x118] sm:$0xff] %v7822
  %7887 = vst [vmem:[%s9 + $0x120] sm:$0xff] %v7823
  %7888 = vst [vmem:[%s9 + $0x128] sm:$0xff] %v7824
  %7889 = vst [vmem:[%s9 + $0x130] sm:$0xff] %v7825
  %7890 = vst [vmem:[%s9 + $0x138] sm:$0xff] %v7826
  %7891 = vst [vmem:[%s9 + $0x140] sm:$0xff] %v7827
  %7892 = vst [vmem:[%s9 + $0x148] sm:$0xff] %v7828
  %7893 = vst [vmem:[%s9 + $0x150] sm:$0xff] %v7829
  %7894 = vst [vmem:[%s9 + $0x158] sm:$0xff] %v7830
  %7895 = vst [vmem:[%s9 + $0x160] sm:$0xff] %v7831
  %7896 = vst [vmem:[%s9 + $0x168] sm:$0xff] %v7832
  %7897 = vst [vmem:[%s9 + $0x170] sm:$0xff] %v7833
  %7898 = vst [vmem:[%s9 + $0x178] sm:$0xff] %v7834
  %7899 = vst [vmem:[%s9 + $0x180] sm:$0xff] %v7835
  %7900 = vst [vmem:[%s9 + $0x188] sm:$0xff] %v7836
  %7901 = vst [vmem:[%s9 + $0x190] sm:$0xff] %v7837
  %7902 = vst [vmem:[%s9 + $0x198] sm:$0xff] %v7838
  %7903 = vst [vmem:[%s9 + $0x1a0] sm:$0xff] %v7839
  %7904 = vst [vmem:[%s9 + $0x1a8] sm:$0xff] %v7840
  %7905 = vst [vmem:[%s9 + $0x1b0] sm:$0xff] %v7841
  %7906 = vst [vmem:[%s9 + $0x1b8] sm:$0xff] %v7842
  %7907 = vst [vmem:[%s9 + $0x1c0] sm:$0xff] %v7843
  %7908 = vst [vmem:[%s9 + $0x1c8] sm:$0xff] %v7844
  %7909 = vst [vmem:[%s9 + $0x1d0] sm:$0xff] %v7845
  %7910 = vst [vmem:[%s9 + $0x1d8] sm:$0xff] %v7846
  %7911 = vst [vmem:[%s9 + $0x1e0] sm:$0xff] %v7847
  %7912 = vst [vmem:[%s9 + $0x1e8] sm:$0xff] %v7848
  %7913 = vst [vmem:[%s9 + $0x1f0] sm:$0xff] %v7849
  %7914 = vst [vmem:[%s9 + $0x1f8] sm:$0xff] %v7850
  // Predicated region
  $region38: #{residual_block_forward.1} parent=0 // pred_check
    _
  $region39: #{residual_block_forward.1} parent=0 // pred_check_branch
    %7916 = sbr.rel (0) target = $region41
  $region40: #{residual_block_forward.1} parent=0 // pred_region
    _
  $region41: #{residual_block_forward.1} parent=0 // pred_fallthru
    _
  // Predicated region
  $region42: #{residual_block_forward.1} parent=0 // pred_check
    _
  $region43: #{residual_block_forward.1} parent=0 // pred_check_branch
    %7918 = sbr.rel (0) target = $region45
  $region44: #{residual_block_forward.1} parent=0 // pred_region
    _
  $region45: #{residual_block_forward.1} parent=0 // pred_fallthru
    _

</llo_original>
